<compile_context>
chip_gen: v7x
topology: tpu7x:2x2x1
jax: 0.10.0
libtpu: 0.0.40
codegen_flags: <defaults>
</compile_context>

<pallas_src>
import functools
import math

import jax
import jax.numpy as jnp
from jax.experimental import pallas as pl
from jax.experimental.pallas import tpu as pltpu

jax.config.update("jax_default_matmul_precision", "highest")

MODULE_LEAKY_SLOPE = 0.01   # F.leaky_relu default used in GraphEmbedding.forward
ATTN_LEAKY_SLOPE = 0.2      # GATv2Conv internal negative_slope default
GN_EPS = 1e-5               # GraphNorm eps

NODE_TYPES = ("opes", "mas", "combs", "jobs")
EDGE_TYPES = (
    ("opes", "pre", "opes"),
    ("mas", "proc", "opes"),
    ("opes", "proc_rev", "mas"),
    ("opes", "belong_comb", "combs"),
    ("combs", "belong_comb_rev", "opes"),
    ("combs", "belong_job", "jobs"),
    ("jobs", "belong_job_rev", "combs"),
)
EDGE_ATTR_TYPES = (("mas", "proc", "opes"), ("opes", "proc_rev", "mas"))


def _round_up(n, m=8):
    return ((n + m - 1) // m) * m


# --------------------------------------------------------------------------
# Kernel 1: dense-masked GATv2Conv for one edge type (one layer).
#
# refs: x_src (Ns,Fs), x_dst (Nd,Fd), s1 (P, Ns+Nd+1) [T | R | adj_flat],
#       rt (Nd, P), slab (params), [e_flat (P, De)], out (Nd, H*C)
# where P = Nd*Ns, row p = i*Ns + j <-> (dst i, src j).
# --------------------------------------------------------------------------
def _gatv2_kernel(heads, c, f_src, f_dst, n_src, n_dst, edge_dim, *refs):
    has_edge = edge_dim is not None
    if has_edge:
        x_src_ref, x_dst_ref, s1_ref, rt_ref, slab_ref, e_ref, o_ref = refs
    else:
        x_src_ref, x_dst_ref, s1_ref, rt_ref, slab_ref, o_ref = refs
        e_ref = None

    rl = _round_up(f_src)
    rr = _round_up(f_dst)

    # ---- unpack the packed parameter slab (single VMEM input) ----
    w_l = slab_ref[0:f_src, :]                      # (Fs, HC)
    w_r = slab_ref[rl:rl + f_dst, :]                # (Fd, HC)
    tail = slab_ref[rl + rr:rl + rr + 8, :]         # (8, HC)
    b_l = tail[0:1, :]
    b_r = tail[1:2, :]
    bias_out = tail[2:3, :]
    att = tail[3:4, :]                              # flattened (1, HC) attention vec

    # ---- linear transforms of source / target features (MXU) ----
    xl = jnp.dot(x_src_ref[...], w_l, preferred_element_type=jnp.float32) + b_l  # (Ns, HC)
    xr = jnp.dot(x_dst_ref[...], w_r, preferred_element_type=jnp.float32) + b_r  # (Nd, HC)

    # ---- structure matrices (0/1) to build the pairwise (dst, src) message ----
    t_mat = s1_ref[:, 0:n_src]                              # (P, Ns)
    r_mat = s1_ref[:, n_src:n_src + n_dst]                  # (P, Nd)
    adj_f = s1_ref[:, n_src + n_dst:n_src + n_dst + 1]      # (P, 1)

    xl_t = jnp.dot(t_mat, xl, preferred_element_type=jnp.float32)   # (P, HC) = xl[j]
    xr_r = jnp.dot(r_mat, xr, preferred_element_type=jnp.float32)   # (P, HC) = xr[i]
    m = xl_t + xr_r
    if has_edge:
        w_e = slab_ref[rl + rr + 8:rl + rr + 8 + edge_dim, :]        # (De, HC)
        m = m + jnp.dot(e_ref[...], w_e, preferred_element_type=jnp.float32)

    # GATv2 internal LeakyReLU (negative_slope = 0.2), max-form.
    m = jnp.maximum(m, ATTN_LEAKY_SLOPE * m)
    scored = m * att                                                 # (P, HC)

    rt = rt_ref[...]                                                 # (Nd, P)

    for h in range(heads):
        sl = slice(h * c, (h + 1) * c)
        logit = jnp.sum(scored[:, sl], axis=1, keepdims=True)        # (P, 1)
        logit = jnp.where(adj_f > 0.0, logit, -1e30)
        # Global shift (softmax is shift-invariant per target group).
        logit = logit - jnp.max(logit, axis=0, keepdims=True)
        p = jnp.exp(logit) * adj_f                                   # (P, 1)
        denom = jnp.dot(rt, p, preferred_element_type=jnp.float32)   # (Nd, 1)
        inv = 1.0 / jnp.maximum(denom, 1e-30)
        out_h = jnp.dot(rt, p * xl_t[:, sl],
                        preferred_element_type=jnp.float32) * inv    # (Nd, C)
        o_ref[:, sl] = out_h + bias_out[:, sl]


def gatv2_conv(x_src, x_dst, s1, rt, slab, e_flat, heads, c, edge_dim):
    n_src, f_src = x_src.shape
    n_dst, f_dst = x_dst.shape
    hc = heads * c
    kern = functools.partial(_gatv2_kernel, heads, c, f_src, f_dst,
                             n_src, n_dst, edge_dim)
    inputs = [x_src, x_dst, s1, rt, slab]
    if edge_dim is not None:
        inputs.append(e_flat)
    return pl.pallas_call(
        kern,
        out_shape=jax.ShapeDtypeStruct((n_dst, hc), jnp.float32),
        in_specs=[pl.BlockSpec(memory_space=pltpu.VMEM)] * len(inputs),
        out_specs=pl.BlockSpec(memory_space=pltpu.VMEM),
    )(*inputs)


# --------------------------------------------------------------------------
# Kernel 2: HeteroConv 'sum' aggregation + LeakyReLU(0.01) + GraphNorm.
# refs: x_1..x_n (N, HC), gn_slab (3, HC) [weight; bias; mean_scale], out (N, HC)
# --------------------------------------------------------------------------
def _sum_leaky_norm_kernel(n_in, *refs):
    x_refs = refs[:n_in]
    gn_ref = refs[n_in]
    o_ref = refs[n_in + 1]

    x = x_refs[0][...]
    for r in x_refs[1:]:
        x = x + r[...]
    x = jnp.maximum(x, MODULE_LEAKY_SLOPE * x)          # F.leaky_relu, max-form

    weight = gn_ref[0:1, :]
    bias = gn_ref[1:2, :]
    mean_scale = gn_ref[2:3, :]

    mean = jnp.mean(x, axis=0, keepdims=True)
    centered = x - mean * mean_scale
    var = jnp.mean(centered * centered, axis=0, keepdims=True)
    o_ref[...] = weight * centered / jnp.sqrt(var + GN_EPS) + bias


def sum_leaky_norm(xs, gn_slab):
    n_in = len(xs)
    n, d = xs[0].shape
    kern = functools.partial(_sum_leaky_norm_kernel, n_in)
    return pl.pallas_call(
        kern,
        out_shape=jax.ShapeDtypeStruct((n, d), jnp.float32),
        in_specs=[pl.BlockSpec(memory_space=pltpu.VMEM)] * (n_in + 1),
        out_specs=pl.BlockSpec(memory_space=pltpu.VMEM),
    )(*xs, gn_slab)


# --------------------------------------------------------------------------
# Wrapper: full GraphEmbedding forward (Pallas path).
# --------------------------------------------------------------------------
def build_structure(adj):
    """Precompute tile/repeat/segment 0-1 matrices for one edge type."""
    nd, ns = adj.shape
    p = nd * ns
    pid = jnp.arange(p, dtype=jnp.int32)
    t_mat = (pid[:, None] % ns == jnp.arange(ns, dtype=jnp.int32)[None, :]
             ).astype(jnp.float32)                      # (P, Ns)
    r_mat = (pid[:, None] // ns == jnp.arange(nd, dtype=jnp.int32)[None, :]
             ).astype(jnp.float32)                      # (P, Nd)
    s1 = jnp.concatenate([t_mat, r_mat, adj.reshape(p, 1)], axis=1)
    rt = jnp.transpose(r_mat)                           # (Nd, P)
    return s1, rt


def graph_embedding_forward(x_dict, adj_dict, eattr_dict, params,
                            hidden_dim, num_heads):
    structures = {et: build_structure(adj_dict[et]) for et in EDGE_TYPES}
    eflat = {}
    for et in EDGE_ATTR_TYPES:
        e = eattr_dict[et]
        nd, ns, de = e.shape
        eflat[et] = e.reshape(nd * ns, de)

    gn_slab = params["graph_norm"]
    h = dict(x_dict)
    layer_outs = {nt: [] for nt in NODE_TYPES}

    for li, heads in enumerate(num_heads):
        c = hidden_dim // heads
        agg = {nt: [] for nt in NODE_TYPES}
        for et in EDGE_TYPES:
            src, _, dst = et
            p = params["convs"][li][et]
            s1, rt = structures[et]
            if et in EDGE_ATTR_TYPES:
                out = gatv2_conv(h[src], h[dst], s1, rt, p["slab"], eflat[et],
                                 heads, c, eflat[et].shape[1])
            else:
                out = gatv2_conv(h[src], h[dst], s1, rt, p["slab"], None,
                                 heads, c, None)
            agg[dst].append(out)
        new_h = {}
        for nt in NODE_TYPES:
            new_h[nt] = sum_leaky_norm(agg[nt], gn_slab)
            layer_outs[nt].append(new_h[nt])
        h = new_h

    # JumpingKnowledge 'cat'
    return {nt: jnp.concatenate(layer_outs[nt], axis=-1) for nt in NODE_TYPES}


# --------------------------------------------------------------------------
# Parameter construction (deterministic) + packed slabs.
# --------------------------------------------------------------------------
def init_conv_params(key, f_src, f_dst, hidden_dim, heads, edge_dim=None):
    c = hidden_dim // heads
    hc = hidden_dim
    keys = jax.random.split(key, 7)

    def std(fan):
        return math.sqrt(2.0 / max(fan, 1))

    w_l = std(f_src) * jax.random.normal(keys[0], (f_src, hc), jnp.float32)
    w_r = std(f_dst) * jax.random.normal(keys[1], (f_dst, hc), jnp.float32)
    b_l = 0.1 * jax.random.normal(keys[2], (hc,), jnp.float32)
    b_r = 0.1 * jax.random.normal(keys[3], (hc,), jnp.float32)
    bias = 0.1 * jax.random.normal(keys[4], (hc,), jnp.float32)
    att = std(c) * jax.random.normal(keys[5], (heads, c), jnp.float32)

    rl, rr = _round_up(f_src), _round_up(f_dst)
    n_rows = rl + rr + 8 + (_round_up(edge_dim) if edge_dim is not None else 0)
    slab = jnp.zeros((n_rows, hc), jnp.float32)
    slab = slab.at[0:f_src, :].set(w_l)
    slab = slab.at[rl:rl + f_dst, :].set(w_r)
    slab = slab.at[rl + rr + 0, :].set(b_l)
    slab = slab.at[rl + rr + 1, :].set(b_r)
    slab = slab.at[rl + rr + 2, :].set(bias)
    slab = slab.at[rl + rr + 3, :].set(att.reshape(-1))

    p = {"slab": slab, "w_l": w_l, "w_r": w_r, "b_l": b_l, "b_r": b_r,
         "bias": bias, "att": att}
    if edge_dim is not None:
        w_e = std(edge_dim) * jax.random.normal(keys[6], (edge_dim, hc), jnp.float32)
        slab = slab.at[rl + rr + 8:rl + rr + 8 + edge_dim, :].set(w_e)
        p["slab"] = slab
        p["w_e"] = w_e
    return p


def init_params(key, in_dims, hidden_dim, num_heads, proc_dim):
    convs = []
    for li, heads in enumerate(num_heads):
        layer_params = {}
        for et in EDGE_TYPES:
            src, _, dst = et
            f_src = in_dims[src] if li == 0 else hidden_dim
            f_dst = in_dims[dst] if li == 0 else hidden_dim
            key, sub = jax.random.split(key)
            edge_dim = proc_dim if et in EDGE_ATTR_TYPES else None
            layer_params[et] = init_conv_params(sub, f_src, f_dst, hidden_dim,
                                                heads, edge_dim)
        convs.append(layer_params)
    key, sub = jax.random.split(key)
    k1, k2, k3 = jax.random.split(sub, 3)
    gn = jnp.stack([
        1.0 + 0.1 * jax.random.normal(k1, (hidden_dim,), jnp.float32),  # weight
        0.1 * jax.random.normal(k2, (hidden_dim,), jnp.float32),        # bias
        1.0 + 0.1 * jax.random.normal(k3, (hidden_dim,), jnp.float32),  # mean_scale
    ], axis=0)
    return {"convs": convs, "graph_norm": gn}


# --------------------------------------------------------------------------
# Pure-JAX reference (dense-masked GATv2 / GraphNorm / JK-cat) for validation.
# --------------------------------------------------------------------------
def _gatv2_dense_ref(x_src, x_dst, adj, p, heads, c, e_dense=None):
    hc = heads * c
    xl = x_src @ p["w_l"] + p["b_l"]
    xr = x_dst @ p["w_r"] + p["b_r"]
    m = xl[None, :, :] + xr[:, None, :]
    if e_dense is not None:
        m = m + jnp.einsum("ijd,dk->ijk", e_dense, p["w_e"])
    m = jnp.where(m > 0, m, ATTN_LEAKY_SLOPE * m)
    nd, ns = adj.shape
    m4 = m.reshape(nd, ns, heads, c)
    logits = jnp.sum(m4 * p["att"][None, None, :, :], axis=-1)       # (Nd, Ns, H)
    mask = adj[:, :, None] > 0
    logits = jnp.where(mask, logits, -1e30)
    logits = logits - jnp.max(logits, axis=1, keepdims=True)         # per-target shift
    probs = jnp.where(mask, jnp.exp(logits), 0.0)
    denom = jnp.sum(probs, axis=1, keepdims=True)
    alpha = probs / jnp.maximum(denom, 1e-30)
    xl4 = xl.reshape(ns, heads, c)
    out = jnp.einsum("nsh,shc->nhc", alpha, xl4).reshape(nd, hc)
    return out + p["bias"]


def _graph_norm_ref(x, gn):
    weight, bias, mean_scale = gn[0:1, :], gn[1:2, :], gn[2:3, :]
    mean = jnp.mean(x, axis=0, keepdims=True)
    centered = x - mean * mean_scale
    var = jnp.mean(centered * centered, axis=0, keepdims=True)
    return weight * centered / jnp.sqrt(var + GN_EPS) + bias


def graph_embedding_ref(x_dict, adj_dict, eattr_dict, params, hidden_dim, num_heads):
    gn = params["graph_norm"]
    h = dict(x_dict)
    layer_outs = {nt: [] for nt in NODE_TYPES}
    for li, heads in enumerate(num_heads):
        c = hidden_dim // heads
        agg = {nt: [] for nt in NODE_TYPES}
        for et in EDGE_TYPES:
            src, _, dst = et
            p = params["convs"][li][et]
            e_dense = eattr_dict.get(et)
            agg[dst].append(
                _gatv2_dense_ref(h[src], h[dst], adj_dict[et], p, heads, c, e_dense))
        new_h = {}
        for nt in NODE_TYPES:
            x = agg[nt][0]
            for extra in agg[nt][1:]:
                x = x + extra
            x = jnp.where(x > 0, x, MODULE_LEAKY_SLOPE * x)
            new_h[nt] = _graph_norm_ref(x, gn)
            layer_outs[nt].append(new_h[nt])
        h = new_h
    return {nt: jnp.concatenate(layer_outs[nt], axis=-1) for nt in NODE_TYPES}


# --------------------------------------------------------------------------
# Demo / self-check.
# --------------------------------------------------------------------------
if __name__ == "__main__":
    # Small config consistent with the module.
    ope_dim, mas_dim, comb_dim, job_dim, proc_dim = 6, 5, 4, 3, 2
    hidden_dim = 8
    num_heads = (4, 4)              # 2 layers, hidden_dim divisible by heads
    n_nodes = {"opes": 12, "mas": 5, "combs": 6, "jobs": 3}
    in_dims = {"opes": ope_dim, "mas": mas_dim, "combs": comb_dim, "jobs": job_dim}

    key = jax.random.PRNGKey(0)

    # Node features.
    x_dict = {}
    for nt in NODE_TYPES:
        key, sub = jax.random.split(key)
        x_dict[nt] = jax.random.normal(sub, (n_nodes[nt], in_dims[nt]), jnp.float32)

    # Dense 0/1 adjacency masks (dst, src) per edge type; every dst has >=1 edge.
    adj_dict = {}
    for et in EDGE_TYPES:
        src, _, dst = et
        key, sub = jax.random.split(key)
        a = (jax.random.uniform(sub, (n_nodes[dst], n_nodes[src])) < 0.6
             ).astype(jnp.float32)
        a = a.at[:, 0].set(1.0)
        adj_dict[et] = a

    # Dense edge attributes for the 'proc' / 'proc_rev' edge types (zero off-edge).
    eattr_dict = {}
    for et in EDGE_ATTR_TYPES:
        src, _, dst = et
        key, sub = jax.random.split(key)
        e = jax.random.normal(sub, (n_nodes[dst], n_nodes[src], proc_dim), jnp.float32)
        eattr_dict[et] = e * adj_dict[et][:, :, None]

    params = init_params(key, in_dims, hidden_dim, num_heads, proc_dim)

    out = graph_embedding_forward(x_dict, adj_dict, eattr_dict, params,
                                  hidden_dim, num_heads)
    for v in out.values():
        v.block_until_ready()

    ref = graph_embedding_ref(x_dict, adj_dict, eattr_dict, params,
                              hidden_dim, num_heads)

    out_dim = hidden_dim * len(num_heads)
    for nt in NODE_TYPES:
        assert out[nt].shape == (n_nodes[nt], out_dim), (nt, out[nt].shape)
        err = float(jnp.max(jnp.abs(out[nt] - ref[nt])))
        assert jnp.allclose(out[nt], ref[nt], atol=1e-3, rtol=1e-3), (nt, err)

    print("KERNEL_OK")
</pallas_src>

<mosaic_0001>
module attributes {stable_mosaic.version = 11 : i64} {
  func.func @_gatv2_kernel(%arg0: memref<12x6xf32, #tpu.memory_space<vmem>>, %arg1: memref<12x6xf32, #tpu.memory_space<vmem>>, %arg2: memref<144x25xf32, #tpu.memory_space<vmem>>, %arg3: memref<12x144xf32, #tpu.memory_space<vmem>>, %arg4: memref<24x8xf32, #tpu.memory_space<vmem>>, %arg5: memref<12x8xf32, #tpu.memory_space<vmem>>) attributes {dimension_semantics = [], scalar_prefetch = 0 : i64, scratch_operands = 0 : i64, tpu.core_type = #tpu.core_type<tc>} {
    %c0 = arith.constant 0 : index
    %c0_0 = arith.constant 0 : index
    %0 = vector.load %arg4[%c0, %c0_0] : memref<24x8xf32, #tpu.memory_space<vmem>>, vector<6x8xf32>
    %c8 = arith.constant 8 : index
    %c0_1 = arith.constant 0 : index
    %1 = vector.load %arg4[%c8, %c0_1] : memref<24x8xf32, #tpu.memory_space<vmem>>, vector<6x8xf32>
    %c16 = arith.constant 16 : index
    %c0_2 = arith.constant 0 : index
    %2 = vector.load %arg4[%c16, %c0_2] : memref<24x8xf32, #tpu.memory_space<vmem>>, vector<8x8xf32>
    %3 = vector.extract_strided_slice %2 {offsets = [0, 0], sizes = [1, 8], strides = [1, 1]} : vector<8x8xf32> to vector<1x8xf32>
    %4 = vector.extract_strided_slice %2 {offsets = [1, 0], sizes = [1, 8], strides = [1, 1]} : vector<8x8xf32> to vector<1x8xf32>
    %5 = vector.extract_strided_slice %2 {offsets = [2, 0], sizes = [1, 8], strides = [1, 1]} : vector<8x8xf32> to vector<1x8xf32>
    %6 = vector.extract_strided_slice %2 {offsets = [3, 0], sizes = [1, 8], strides = [1, 1]} : vector<8x8xf32> to vector<1x8xf32>
    %c0_3 = arith.constant 0 : index
    %c0_4 = arith.constant 0 : index
    %7 = vector.load %arg0[%c0_3, %c0_4] : memref<12x6xf32, #tpu.memory_space<vmem>>, vector<12x6xf32>
    %cst = arith.constant dense<0.000000e+00> : vector<12x8xf32>
    %8 = tpu.matmul %7, %0, %cst {dimension_numbers = #tpu.dot_dimension_numbers<[1], [0], [0], [1], [0, 0, 1, 1], [], []>, precision = #tpu.contract_precision<fp32>} : vector<12x6xf32>, vector<6x8xf32>, vector<12x8xf32> -> vector<12x8xf32>
    %9 = vector.broadcast %3 : vector<1x8xf32> to vector<12x8xf32>
    %10 = arith.addf %8, %9 : vector<12x8xf32>
    %c0_5 = arith.constant 0 : index
    %c0_6 = arith.constant 0 : index
    %11 = vector.load %arg1[%c0_5, %c0_6] : memref<12x6xf32, #tpu.memory_space<vmem>>, vector<12x6xf32>
    %cst_7 = arith.constant dense<0.000000e+00> : vector<12x8xf32>
    %12 = tpu.matmul %11, %1, %cst_7 {dimension_numbers = #tpu.dot_dimension_numbers<[1], [0], [0], [1], [0, 0, 1, 1], [], []>, precision = #tpu.contract_precision<fp32>} : vector<12x6xf32>, vector<6x8xf32>, vector<12x8xf32> -> vector<12x8xf32>
    %13 = vector.broadcast %4 : vector<1x8xf32> to vector<12x8xf32>
    %14 = arith.addf %12, %13 : vector<12x8xf32>
    %c0_8 = arith.constant 0 : index
    %c0_9 = arith.constant 0 : index
    %15 = vector.load %arg2[%c0_8, %c0_9] : memref<144x25xf32, #tpu.memory_space<vmem>>, vector<144x12xf32>
    %c0_10 = arith.constant 0 : index
    %c12 = arith.constant 12 : index
    %16 = vector.load %arg2[%c0_10, %c12] : memref<144x25xf32, #tpu.memory_space<vmem>>, vector<144x12xf32>
    %c0_11 = arith.constant 0 : index
    %c24 = arith.constant 24 : index
    %17 = vector.load %arg2[%c0_11, %c24] : memref<144x25xf32, #tpu.memory_space<vmem>>, vector<144x1xf32>
    %cst_12 = arith.constant dense<0.000000e+00> : vector<144x8xf32>
    %18 = tpu.matmul %15, %10, %cst_12 {dimension_numbers = #tpu.dot_dimension_numbers<[1], [0], [0], [1], [0, 0, 1, 1], [], []>, precision = #tpu.contract_precision<fp32>} : vector<144x12xf32>, vector<12x8xf32>, vector<144x8xf32> -> vector<144x8xf32>
    %cst_13 = arith.constant dense<0.000000e+00> : vector<144x8xf32>
    %19 = tpu.matmul %16, %14, %cst_13 {dimension_numbers = #tpu.dot_dimension_numbers<[1], [0], [0], [1], [0, 0, 1, 1], [], []>, precision = #tpu.contract_precision<fp32>} : vector<144x12xf32>, vector<12x8xf32>, vector<144x8xf32> -> vector<144x8xf32>
    %20 = arith.addf %18, %19 : vector<144x8xf32>
    %cst_14 = arith.constant 2.000000e-01 : f32
    %21 = vector.broadcast %cst_14 : f32 to vector<144x8xf32>
    %22 = arith.mulf %21, %20 : vector<144x8xf32>
    %23 = arith.maximumf %20, %22 : vector<144x8xf32>
    %24 = vector.broadcast %6 : vector<1x8xf32> to vector<144x8xf32>
    %25 = arith.mulf %23, %24 : vector<144x8xf32>
    %c0_15 = arith.constant 0 : index
    %c0_16 = arith.constant 0 : index
    %26 = vector.load %arg3[%c0_15, %c0_16] : memref<12x144xf32, #tpu.memory_space<vmem>>, vector<12x144xf32>
    %27 = vector.extract_strided_slice %25 {offsets = [0, 0], sizes = [144, 2], strides = [1, 1]} : vector<144x8xf32> to vector<144x2xf32>
    %cst_17 = arith.constant dense<0.000000e+00> : vector<144xf32>
    %28 = vector.multi_reduction <add>, %27, %cst_17 [1] : vector<144x2xf32> to vector<144xf32>
    %29 = vector.shape_cast %28 : vector<144xf32> to vector<144x1xf32>
    %cst_18 = arith.constant 0.000000e+00 : f32
    %30 = vector.broadcast %cst_18 : f32 to vector<144x1xf32>
    %31 = arith.cmpf ogt, %17, %30 : vector<144x1xf32>
    %cst_19 = arith.constant -1.000000e+30 : f32
    %32 = vector.broadcast %cst_19 : f32 to vector<144x1xf32>
    %33 = arith.select %31, %29, %32 : vector<144x1xi1>, vector<144x1xf32>
    %cst_20 = arith.constant dense<0xFF800000> : vector<1xf32>
    %34 = vector.multi_reduction <maximumf>, %33, %cst_20 [0] : vector<144x1xf32> to vector<1xf32>
    %35 = vector.shape_cast %34 : vector<1xf32> to vector<1x1xf32>
    %36 = vector.broadcast %35 : vector<1x1xf32> to vector<144x1xf32>
    %37 = arith.subf %33, %36 : vector<144x1xf32>
    %38 = math.exp %37 : vector<144x1xf32>
    %39 = arith.mulf %38, %17 : vector<144x1xf32>
    %cst_21 = arith.constant dense<0.000000e+00> : vector<12x1xf32>
    %40 = tpu.matmul %26, %39, %cst_21 {dimension_numbers = #tpu.dot_dimension_numbers<[1], [0], [0], [1], [0, 0, 1, 1], [], []>, precision = #tpu.contract_precision<fp32>} : vector<12x144xf32>, vector<144x1xf32>, vector<12x1xf32> -> vector<12x1xf32>
    %cst_22 = arith.constant 1.000000e-30 : f32
    %41 = vector.broadcast %cst_22 : f32 to vector<12x1xf32>
    %42 = arith.maximumf %40, %41 : vector<12x1xf32>
    %cst_23 = arith.constant 1.000000e+00 : f32
    %43 = vector.broadcast %cst_23 : f32 to vector<12x1xf32>
    %44 = arith.divf %43, %42 : vector<12x1xf32>
    %45 = vector.extract_strided_slice %18 {offsets = [0, 0], sizes = [144, 2], strides = [1, 1]} : vector<144x8xf32> to vector<144x2xf32>
    %46 = vector.broadcast %39 : vector<144x1xf32> to vector<144x2xf32>
    %47 = arith.mulf %46, %45 : vector<144x2xf32>
    %cst_24 = arith.constant dense<0.000000e+00> : vector<12x2xf32>
    %48 = tpu.matmul %26, %47, %cst_24 {dimension_numbers = #tpu.dot_dimension_numbers<[1], [0], [0], [1], [0, 0, 1, 1], [], []>, precision = #tpu.contract_precision<fp32>} : vector<12x144xf32>, vector<144x2xf32>, vector<12x2xf32> -> vector<12x2xf32>
    %49 = vector.broadcast %44 : vector<12x1xf32> to vector<12x2xf32>
    %50 = arith.mulf %48, %49 : vector<12x2xf32>
    %51 = vector.extract_strided_slice %5 {offsets = [0, 0], sizes = [1, 2], strides = [1, 1]} : vector<1x8xf32> to vector<1x2xf32>
    %52 = vector.broadcast %51 : vector<1x2xf32> to vector<12x2xf32>
    %53 = arith.addf %50, %52 : vector<12x2xf32>
    %c0_25 = arith.constant 0 : index
    %c0_26 = arith.constant 0 : index
    %54 = vector.load %arg5[%c0_25, %c0_26] : memref<12x8xf32, #tpu.memory_space<vmem>>, vector<12x2xf32>
    tpu.vector_store %arg5[%c0_25, %c0_26], %53 {strides = array<i32>} : memref<12x8xf32, #tpu.memory_space<vmem>>, vector<12x2xf32>,
    %55 = vector.extract_strided_slice %25 {offsets = [0, 2], sizes = [144, 2], strides = [1, 1]} : vector<144x8xf32> to vector<144x2xf32>
    %cst_27 = arith.constant dense<0.000000e+00> : vector<144xf32>
    %56 = vector.multi_reduction <add>, %55, %cst_27 [1] : vector<144x2xf32> to vector<144xf32>
    %57 = vector.shape_cast %56 : vector<144xf32> to vector<144x1xf32>
    %cst_28 = arith.constant 0.000000e+00 : f32
    %58 = vector.broadcast %cst_28 : f32 to vector<144x1xf32>
    %59 = arith.cmpf ogt, %17, %58 : vector<144x1xf32>
    %cst_29 = arith.constant -1.000000e+30 : f32
    %60 = vector.broadcast %cst_29 : f32 to vector<144x1xf32>
    %61 = arith.select %59, %57, %60 : vector<144x1xi1>, vector<144x1xf32>
    %cst_30 = arith.constant dense<0xFF800000> : vector<1xf32>
    %62 = vector.multi_reduction <maximumf>, %61, %cst_30 [0] : vector<144x1xf32> to vector<1xf32>
    %63 = vector.shape_cast %62 : vector<1xf32> to vector<1x1xf32>
    %64 = vector.broadcast %63 : vector<1x1xf32> to vector<144x1xf32>
    %65 = arith.subf %61, %64 : vector<144x1xf32>
    %66 = math.exp %65 : vector<144x1xf32>
    %67 = arith.mulf %66, %17 : vector<144x1xf32>
    %cst_31 = arith.constant dense<0.000000e+00> : vector<12x1xf32>
    %68 = tpu.matmul %26, %67, %cst_31 {dimension_numbers = #tpu.dot_dimension_numbers<[1], [0], [0], [1], [0, 0, 1, 1], [], []>, precision = #tpu.contract_precision<fp32>} : vector<12x144xf32>, vector<144x1xf32>, vector<12x1xf32> -> vector<12x1xf32>
    %cst_32 = arith.constant 1.000000e-30 : f32
    %69 = vector.broadcast %cst_32 : f32 to vector<12x1xf32>
    %70 = arith.maximumf %68, %69 : vector<12x1xf32>
    %cst_33 = arith.constant 1.000000e+00 : f32
    %71 = vector.broadcast %cst_33 : f32 to vector<12x1xf32>
    %72 = arith.divf %71, %70 : vector<12x1xf32>
    %73 = vector.extract_strided_slice %18 {offsets = [0, 2], sizes = [144, 2], strides = [1, 1]} : vector<144x8xf32> to vector<144x2xf32>
    %74 = vector.broadcast %67 : vector<144x1xf32> to vector<144x2xf32>
    %75 = arith.mulf %74, %73 : vector<144x2xf32>
    %cst_34 = arith.constant dense<0.000000e+00> : vector<12x2xf32>
    %76 = tpu.matmul %26, %75, %cst_34 {dimension_numbers = #tpu.dot_dimension_numbers<[1], [0], [0], [1], [0, 0, 1, 1], [], []>, precision = #tpu.contract_precision<fp32>} : vector<12x144xf32>, vector<144x2xf32>, vector<12x2xf32> -> vector<12x2xf32>
    %77 = vector.broadcast %72 : vector<12x1xf32> to vector<12x2xf32>
    %78 = arith.mulf %76, %77 : vector<12x2xf32>
    %79 = vector.extract_strided_slice %5 {offsets = [0, 2], sizes = [1, 2], strides = [1, 1]} : vector<1x8xf32> to vector<1x2xf32>
    %80 = vector.broadcast %79 : vector<1x2xf32> to vector<12x2xf32>
    %81 = arith.addf %78, %80 : vector<12x2xf32>
    %c0_35 = arith.constant 0 : index
    %c2 = arith.constant 2 : index
    %82 = vector.load %arg5[%c0_35, %c2] : memref<12x8xf32, #tpu.memory_space<vmem>>, vector<12x2xf32>
    tpu.vector_store %arg5[%c0_35, %c2], %81 {strides = array<i32>} : memref<12x8xf32, #tpu.memory_space<vmem>>, vector<12x2xf32>,
    %83 = vector.extract_strided_slice %25 {offsets = [0, 4], sizes = [144, 2], strides = [1, 1]} : vector<144x8xf32> to vector<144x2xf32>
    %cst_36 = arith.constant dense<0.000000e+00> : vector<144xf32>
    %84 = vector.multi_reduction <add>, %83, %cst_36 [1] : vector<144x2xf32> to vector<144xf32>
    %85 = vector.shape_cast %84 : vector<144xf32> to vector<144x1xf32>
    %cst_37 = arith.constant 0.000000e+00 : f32
    %86 = vector.broadcast %cst_37 : f32 to vector<144x1xf32>
    %87 = arith.cmpf ogt, %17, %86 : vector<144x1xf32>
    %cst_38 = arith.constant -1.000000e+30 : f32
    %88 = vector.broadcast %cst_38 : f32 to vector<144x1xf32>
    %89 = arith.select %87, %85, %88 : vector<144x1xi1>, vector<144x1xf32>
    %cst_39 = arith.constant dense<0xFF800000> : vector<1xf32>
    %90 = vector.multi_reduction <maximumf>, %89, %cst_39 [0] : vector<144x1xf32> to vector<1xf32>
    %91 = vector.shape_cast %90 : vector<1xf32> to vector<1x1xf32>
    %92 = vector.broadcast %91 : vector<1x1xf32> to vector<144x1xf32>
    %93 = arith.subf %89, %92 : vector<144x1xf32>
    %94 = math.exp %93 : vector<144x1xf32>
    %95 = arith.mulf %94, %17 : vector<144x1xf32>
    %cst_40 = arith.constant dense<0.000000e+00> : vector<12x1xf32>
    %96 = tpu.matmul %26, %95, %cst_40 {dimension_numbers = #tpu.dot_dimension_numbers<[1], [0], [0], [1], [0, 0, 1, 1], [], []>, precision = #tpu.contract_precision<fp32>} : vector<12x144xf32>, vector<144x1xf32>, vector<12x1xf32> -> vector<12x1xf32>
    %cst_41 = arith.constant 1.000000e-30 : f32
    %97 = vector.broadcast %cst_41 : f32 to vector<12x1xf32>
    %98 = arith.maximumf %96, %97 : vector<12x1xf32>
    %cst_42 = arith.constant 1.000000e+00 : f32
    %99 = vector.broadcast %cst_42 : f32 to vector<12x1xf32>
    %100 = arith.divf %99, %98 : vector<12x1xf32>
    %101 = vector.extract_strided_slice %18 {offsets = [0, 4], sizes = [144, 2], strides = [1, 1]} : vector<144x8xf32> to vector<144x2xf32>
    %102 = vector.broadcast %95 : vector<144x1xf32> to vector<144x2xf32>
    %103 = arith.mulf %102, %101 : vector<144x2xf32>
    %cst_43 = arith.constant dense<0.000000e+00> : vector<12x2xf32>
    %104 = tpu.matmul %26, %103, %cst_43 {dimension_numbers = #tpu.dot_dimension_numbers<[1], [0], [0], [1], [0, 0, 1, 1], [], []>, precision = #tpu.contract_precision<fp32>} : vector<12x144xf32>, vector<144x2xf32>, vector<12x2xf32> -> vector<12x2xf32>
    %105 = vector.broadcast %100 : vector<12x1xf32> to vector<12x2xf32>
    %106 = arith.mulf %104, %105 : vector<12x2xf32>
    %107 = vector.extract_strided_slice %5 {offsets = [0, 4], sizes = [1, 2], strides = [1, 1]} : vector<1x8xf32> to vector<1x2xf32>
    %108 = vector.broadcast %107 : vector<1x2xf32> to vector<12x2xf32>
    %109 = arith.addf %106, %108 : vector<12x2xf32>
    %c0_44 = arith.constant 0 : index
    %c4 = arith.constant 4 : index
    %110 = vector.load %arg5[%c0_44, %c4] : memref<12x8xf32, #tpu.memory_space<vmem>>, vector<12x2xf32>
    tpu.vector_store %arg5[%c0_44, %c4], %109 {strides = array<i32>} : memref<12x8xf32, #tpu.memory_space<vmem>>, vector<12x2xf32>,
    %111 = vector.extract_strided_slice %25 {offsets = [0, 6], sizes = [144, 2], strides = [1, 1]} : vector<144x8xf32> to vector<144x2xf32>
    %cst_45 = arith.constant dense<0.000000e+00> : vector<144xf32>
    %112 = vector.multi_reduction <add>, %111, %cst_45 [1] : vector<144x2xf32> to vector<144xf32>
    %113 = vector.shape_cast %112 : vector<144xf32> to vector<144x1xf32>
    %cst_46 = arith.constant 0.000000e+00 : f32
    %114 = vector.broadcast %cst_46 : f32 to vector<144x1xf32>
    %115 = arith.cmpf ogt, %17, %114 : vector<144x1xf32>
    %cst_47 = arith.constant -1.000000e+30 : f32
    %116 = vector.broadcast %cst_47 : f32 to vector<144x1xf32>
    %117 = arith.select %115, %113, %116 : vector<144x1xi1>, vector<144x1xf32>
    %cst_48 = arith.constant dense<0xFF800000> : vector<1xf32>
    %118 = vector.multi_reduction <maximumf>, %117, %cst_48 [0] : vector<144x1xf32> to vector<1xf32>
    %119 = vector.shape_cast %118 : vector<1xf32> to vector<1x1xf32>
    %120 = vector.broadcast %119 : vector<1x1xf32> to vector<144x1xf32>
    %121 = arith.subf %117, %120 : vector<144x1xf32>
    %122 = math.exp %121 : vector<144x1xf32>
    %123 = arith.mulf %122, %17 : vector<144x1xf32>
    %cst_49 = arith.constant dense<0.000000e+00> : vector<12x1xf32>
    %124 = tpu.matmul %26, %123, %cst_49 {dimension_numbers = #tpu.dot_dimension_numbers<[1], [0], [0], [1], [0, 0, 1, 1], [], []>, precision = #tpu.contract_precision<fp32>} : vector<12x144xf32>, vector<144x1xf32>, vector<12x1xf32> -> vector<12x1xf32>
    %cst_50 = arith.constant 1.000000e-30 : f32
    %125 = vector.broadcast %cst_50 : f32 to vector<12x1xf32>
    %126 = arith.maximumf %124, %125 : vector<12x1xf32>
    %cst_51 = arith.constant 1.000000e+00 : f32
    %127 = vector.broadcast %cst_51 : f32 to vector<12x1xf32>
    %128 = arith.divf %127, %126 : vector<12x1xf32>
    %129 = vector.extract_strided_slice %18 {offsets = [0, 6], sizes = [144, 2], strides = [1, 1]} : vector<144x8xf32> to vector<144x2xf32>
    %130 = vector.broadcast %123 : vector<144x1xf32> to vector<144x2xf32>
    %131 = arith.mulf %130, %129 : vector<144x2xf32>
    %cst_52 = arith.constant dense<0.000000e+00> : vector<12x2xf32>
    %132 = tpu.matmul %26, %131, %cst_52 {dimension_numbers = #tpu.dot_dimension_numbers<[1], [0], [0], [1], [0, 0, 1, 1], [], []>, precision = #tpu.contract_precision<fp32>} : vector<12x144xf32>, vector<144x2xf32>, vector<12x2xf32> -> vector<12x2xf32>
    %133 = vector.broadcast %128 : vector<12x1xf32> to vector<12x2xf32>
    %134 = arith.mulf %132, %133 : vector<12x2xf32>
    %135 = vector.extract_strided_slice %5 {offsets = [0, 6], sizes = [1, 2], strides = [1, 1]} : vector<1x8xf32> to vector<1x2xf32>
    %136 = vector.broadcast %135 : vector<1x2xf32> to vector<12x2xf32>
    %137 = arith.addf %134, %136 : vector<12x2xf32>
    %c0_53 = arith.constant 0 : index
    %c6 = arith.constant 6 : index
    %138 = vector.load %arg5[%c0_53, %c6] : memref<12x8xf32, #tpu.memory_space<vmem>>, vector<12x2xf32>
    tpu.vector_store %arg5[%c0_53, %c6], %137 {strides = array<i32>} : memref<12x8xf32, #tpu.memory_space<vmem>>, vector<12x2xf32>,
    return
  }
}

</mosaic_0001>

<llo_original>
// kernel: tpu_custom_call.1
$region0: #{tpu_custom_call.1}
  #allocation0 [shape = 'u32[]', space=smem, size = 0x4, offset = 0x4, fixed_abs, tag = 'smem constant byte address 0x4 - core index']
  #allocation1 [shape = 'u32[144,128]{1,0:T(1,128)}', space=vmem, size = 0x12000, scoped, tag = 'internal scratch']
  %s0 = inlined_call_operand.vmem [shape: f32[12,6], index: 0, kind: input, shape index: {}]
  %s1 = inlined_call_operand.vmem [shape: f32[12,6], index: 1, kind: input, shape index: {}]
  %s2 = inlined_call_operand.vmem [shape: f32[144,25], index: 2, kind: input, shape index: {}]
  %s3 = inlined_call_operand.vmem [shape: f32[12,144], index: 3, kind: input, shape index: {}]
  %s4 = inlined_call_operand.vmem [shape: f32[24,8], index: 4, kind: input, shape index: {}]
  %s5 = inlined_call_operand.vmem [shape: f32[12,8], index: 5, kind: output, shape index: {}]
  %s6 = sld [smem:[#allocation0]]
  $region30: #{tpu_custom_call.1} parent=0
    _
  %s8 = ssub.s32 1, %s6
  %s9 = scalar_select 0, %s8, %s6
  // Predicated region
  $region2: #{tpu_custom_call.1} parent=0 // pred_check
    _
  $region3: #{tpu_custom_call.1} parent=0 // pred_check_branch
    %11 = sbr.rel (0) target = $region5
  $region4: #{tpu_custom_call.1} parent=0 // pred_region
    _
  $region5: #{tpu_custom_call.1} parent=0 // pred_fallthru
    _
  // Predicated region
  $region6: #{tpu_custom_call.1} parent=0 // pred_check
    _
  $region7: #{tpu_custom_call.1} parent=0 // pred_check_branch
    %13 = sbr.rel (0) target = $region9
  $region8: #{tpu_custom_call.1} parent=0 // pred_region
    _
  $region9: #{tpu_custom_call.1} parent=0 // pred_fallthru
    _
  // Predicated region
  $region10: #{tpu_custom_call.1} parent=0 // pred_check
    _
  $region11: #{tpu_custom_call.1} parent=0 // pred_check_branch
    %15 = sbr.rel (0) target = $region13
  $region12: #{tpu_custom_call.1} parent=0 // pred_region
    _
  $region13: #{tpu_custom_call.1} parent=0 // pred_fallthru
    _
  // Predicated region
  $region14: #{tpu_custom_call.1} parent=0 // pred_check
    _
  $region15: #{tpu_custom_call.1} parent=0 // pred_check_branch
    %17 = sbr.rel (0) target = $region17
  $region16: #{tpu_custom_call.1} parent=0 // pred_region
    _
  $region17: #{tpu_custom_call.1} parent=0 // pred_fallthru
    _
  // Predicated region
  $region18: #{tpu_custom_call.1} parent=0 // pred_check
    _
  $region19: #{tpu_custom_call.1} parent=0 // pred_check_branch
    %19 = sbr.rel (0) target = $region21
  $region20: #{tpu_custom_call.1} parent=0 // pred_region
    _
  $region21: #{tpu_custom_call.1} parent=0 // pred_fallthru
    _
  %v20 = vld [vmem:[%s4] sm:$0x3f]
  %v21 = vld [vmem:[%s4 + $0x8] sm:$0x3f]
  %v22 = vld [vmem:[%s4 + $0x10] sm:$0xff]
  %v23 = vld [vmem:[%s0] sm:$0xff]
  %v24 = vld [vmem:[%s0 + $0x8] sm:$0xf]
  %v25 = vlaneseq
  %v26 = vshrl.u32 %v25, 7
  %v27 = vsub.s32 0, %v26
  %v28 = vrot.slane %v22, %v27
  %vm29 = vcmask 48128
  %v31 = vsel %vm29, %v23, 0
  %v34 = vsel %vm29, %v24, 0
  %vm36 = vcmask 1045504
  %v38 = vsel %vm36, %v20, 0
  %40 = vmatprep.subr.mxu0 0.0
  %v41 = vand.u32 %v38, 4294901760
  %42 = vmatpush1.msra.mxu0 %v41
  %43 = vmatprep.subr.mxu0 0.0
  %44 = vmatpush1.msra.mxu0 0.0
  %45 = vmatprep.subr.mxu0 0.0
  %46 = vmatpush1.msra.mxu0 0.0
  %47 = vmatprep.subr.mxu0 0.0
  %48 = vmatpush1.msra.mxu0 0.0
  %49 = vmatprep.subr.mxu0 0.0
  %50 = vmatpush1.msra.mxu0 0.0
  %51 = vmatprep.subr.mxu0 0.0
  %52 = vmatpush1.msra.mxu0 0.0
  %53 = vmatprep.subr.mxu0 0.0
  %54 = vmatpush1.msra.mxu0 0.0
  %55 = vmatprep.subr.mxu0 0.0
  %56 = vmatpush1.msra.mxu0 0.0
  %57 = vmatprep.subr.mxu0 0.0
  %58 = vmatpush1.msra.mxu0 0.0
  %59 = vmatprep.subr.mxu0 0.0
  %60 = vmatpush1.msra.mxu0 0.0
  %61 = vmatprep.subr.mxu0 0.0
  %62 = vmatpush1.msra.mxu0 0.0
  %63 = vmatprep.subr.mxu0 0.0
  %64 = vmatpush1.msra.mxu0 0.0
  %65 = vmatprep.subr.mxu0 0.0
  %66 = vmatpush1.msra.mxu0 0.0
  %67 = vmatprep.subr.mxu0 0.0
  %68 = vmatpush1.msra.mxu0 0.0
  %69 = vmatprep.subr.mxu0 0.0
  %70 = vmatpush1.msra.mxu0 0.0
  %71 = vmatprep.subr.mxu0 0.0
  %72 = vmatpush1.msra.mxu0 0.0
  %73 = vmatprep.subr.mxu0 0.0
  %74 = vmatpush1.msra.mxu0 0.0
  %75 = vmatprep.subr.mxu0 0.0
  %76 = vmatpush1.msra.mxu0 0.0
  %77 = vmatprep.subr.mxu0 0.0
  %78 = vmatpush1.msra.mxu0 0.0
  %79 = vmatprep.subr.mxu0 0.0
  %80 = vmatpush1.msra.mxu0 0.0
  %81 = vmatprep.subr.mxu0 0.0
  %82 = vmatpush1.msra.mxu0 0.0
  %83 = vmatprep.subr.mxu0 0.0
  %84 = vmatpush1.msra.mxu0 0.0
  %85 = vmatprep.subr.mxu0 0.0
  %86 = vmatpush1.msra.mxu0 0.0
  %87 = vmatprep.subr.mxu0 0.0
  %88 = vmatpush1.msra.mxu0 0.0
  %89 = vmatprep.subr.mxu0 0.0
  %90 = vmatpush1.msra.mxu0 0.0
  %91 = vmatprep.subr.mxu0 0.0
  %92 = vmatpush1.msra.mxu0 0.0
  %93 = vmatprep.subr.mxu0 0.0
  %94 = vmatpush1.msra.mxu0 0.0
  %95 = vmatprep.subr.mxu0 0.0
  %96 = vmatpush1.msra.mxu0 0.0
  %97 = vmatprep.subr.mxu0 0.0
  %98 = vmatpush1.msra.mxu0 0.0
  %99 = vmatprep.subr.mxu0 0.0
  %100 = vmatpush1.msra.mxu0 0.0
  %101 = vmatprep.subr.mxu0 0.0
  %102 = vmatpush1.msra.mxu0 0.0
  %103 = vmatprep.subr.mxu0 0.0
  %104 = vmatpush1.msra.mxu0 0.0
  %105 = vmatprep.mubr.f32.mxu0 0.0
  %v106 = vand.u32 %v31, 4294901760
  %v107 = vsub.f32 %v31, %v106
  %v108 = vand.u32 %v107, 4294901760
  %v109 = vsub.f32 %v107, %v108
  %v110 = vand.u32 %v109, 4294901760
  %111 = vmatmul.mubr.f32.gmra.mrb[0].mxu0 %v110
  %v112 = vpop.f32.mrb[0].mxu0
  %v113 = vadd.f32 %v28, %v112
  %v114 = vpop.f32.mrb[0].mxu0
  %115 = vmatprep.mubr.f32.mxu0 0.0
  %v116 = vand.u32 %v34, 4294901760
  %v117 = vsub.f32 %v34, %v116
  %v118 = vand.u32 %v117, 4294901760
  %v119 = vsub.f32 %v117, %v118
  %v120 = vand.u32 %v119, 4294901760
  %121 = vmatmul.mubr.f32.gmra.mrb[0].mxu0 %v120
  %v122 = vpop.f32.mrb[0].mxu0
  %v123 = vadd.f32 %v28, %v122
  %v124 = vpop.f32.mrb[0].mxu0
  %125 = vdwg.mxu0
  %126 = vmatprep.subr.mxu0 0.0
  %v127 = vand.u32 %v38, 4294901760
  %v128 = vsub.f32 %v38, %v127
  %v129 = vand.u32 %v128, 4294901760
  %v130 = vsub.f32 %v128, %v129
  %v131 = vand.u32 %v130, 4294901760
  %132 = vmatpush1.msra.mxu0 %v131
  %133 = vmatprep.subr.mxu0 0.0
  %134 = vmatpush1.msra.mxu0 0.0
  %135 = vmatprep.subr.mxu0 0.0
  %136 = vmatpush1.msra.mxu0 0.0
  %137 = vmatprep.subr.mxu0 0.0
  %138 = vmatpush1.msra.mxu0 0.0
  %139 = vmatprep.subr.mxu0 0.0
  %140 = vmatpush1.msra.mxu0 0.0
  %141 = vmatprep.subr.mxu0 0.0
  %142 = vmatpush1.msra.mxu0 0.0
  %143 = vmatprep.subr.mxu0 0.0
  %144 = vmatpush1.msra.mxu0 0.0
  %145 = vmatprep.subr.mxu0 0.0
  %146 = vmatpush1.msra.mxu0 0.0
  %147 = vmatprep.subr.mxu0 0.0
  %148 = vmatpush1.msra.mxu0 0.0
  %149 = vmatprep.subr.mxu0 0.0
  %150 = vmatpush1.msra.mxu0 0.0
  %151 = vmatprep.subr.mxu0 0.0
  %152 = vmatpush1.msra.mxu0 0.0
  %153 = vmatprep.subr.mxu0 0.0
  %154 = vmatpush1.msra.mxu0 0.0
  %155 = vmatprep.subr.mxu0 0.0
  %156 = vmatpush1.msra.mxu0 0.0
  %157 = vmatprep.subr.mxu0 0.0
  %158 = vmatpush1.msra.mxu0 0.0
  %159 = vmatprep.subr.mxu0 0.0
  %160 = vmatpush1.msra.mxu0 0.0
  %161 = vmatprep.subr.mxu0 0.0
  %162 = vmatpush1.msra.mxu0 0.0
  %163 = vmatprep.subr.mxu0 0.0
  %164 = vmatpush1.msra.mxu0 0.0
  %165 = vmatprep.subr.mxu0 0.0
  %166 = vmatpush1.msra.mxu0 0.0
  %167 = vmatprep.subr.mxu0 0.0
  %168 = vmatpush1.msra.mxu0 0.0
  %169 = vmatprep.subr.mxu0 0.0
  %170 = vmatpush1.msra.mxu0 0.0
  %171 = vmatprep.subr.mxu0 0.0
  %172 = vmatpush1.msra.mxu0 0.0
  %173 = vmatprep.subr.mxu0 0.0
  %174 = vmatpush1.msra.mxu0 0.0
  %175 = vmatprep.subr.mxu0 0.0
  %176 = vmatpush1.msra.mxu0 0.0
  %177 = vmatprep.subr.mxu0 0.0
  %178 = vmatpush1.msra.mxu0 0.0
  %179 = vmatprep.subr.mxu0 0.0
  %180 = vmatpush1.msra.mxu0 0.0
  %181 = vmatprep.subr.mxu0 0.0
  %182 = vmatpush1.msra.mxu0 0.0
  %183 = vmatprep.subr.mxu0 0.0
  %184 = vmatpush1.msra.mxu0 0.0
  %185 = vmatprep.subr.mxu0 0.0
  %186 = vmatpush1.msra.mxu0 0.0
  %187 = vmatprep.subr.mxu0 0.0
  %188 = vmatpush1.msra.mxu0 0.0
  %189 = vmatprep.subr.mxu0 0.0
  %190 = vmatpush1.msra.mxu0 0.0
  %191 = vmatprep.subr.mxu0 0.0
  %192 = vmatpush1.msra.mxu0 0.0
  %193 = vmatprep.subr.mxu0 0.0
  %194 = vmatpush1.msra.mxu0 0.0
  %195 = vmatprep.mubr.f32.mxu0 0.0
  %v196 = vand.u32 %v31, 4294901760
  %197 = vmatmul.mubr.f32.gmra.mrb[0].mxu0 %v196
  %v198 = vpop.f32.mrb[0].mxu0
  %v199 = vadd.f32 %v113, %v198
  %v200 = vpop.f32.mrb[0].mxu0
  %201 = vmatprep.mubr.f32.mxu0 0.0
  %v202 = vand.u32 %v34, 4294901760
  %203 = vmatmul.mubr.f32.gmra.mrb[0].mxu0 %v202
  %v204 = vpop.f32.mrb[0].mxu0
  %v205 = vadd.f32 %v123, %v204
  %v206 = vpop.f32.mrb[0].mxu0
  %207 = vdwg.mxu0
  %208 = vmatprep.subr.mxu0 0.0
  %v209 = vand.u32 %v38, 4294901760
  %v210 = vsub.f32 %v38, %v209
  %211 = vmatpush1.msra.mxu0 %v210
  %212 = vmatprep.subr.mxu0 0.0
  %213 = vmatpush1.msra.mxu0 0.0
  %214 = vmatprep.subr.mxu0 0.0
  %215 = vmatpush1.msra.mxu0 0.0
  %216 = vmatprep.subr.mxu0 0.0
  %217 = vmatpush1.msra.mxu0 0.0
  %218 = vmatprep.subr.mxu0 0.0
  %219 = vmatpush1.msra.mxu0 0.0
  %220 = vmatprep.subr.mxu0 0.0
  %221 = vmatpush1.msra.mxu0 0.0
  %222 = vmatprep.subr.mxu0 0.0
  %223 = vmatpush1.msra.mxu0 0.0
  %224 = vmatprep.subr.mxu0 0.0
  %225 = vmatpush1.msra.mxu0 0.0
  %226 = vmatprep.subr.mxu0 0.0
  %227 = vmatpush1.msra.mxu0 0.0
  %228 = vmatprep.subr.mxu0 0.0
  %229 = vmatpush1.msra.mxu0 0.0
  %230 = vmatprep.subr.mxu0 0.0
  %231 = vmatpush1.msra.mxu0 0.0
  %232 = vmatprep.subr.mxu0 0.0
  %233 = vmatpush1.msra.mxu0 0.0
  %234 = vmatprep.subr.mxu0 0.0
  %235 = vmatpush1.msra.mxu0 0.0
  %236 = vmatprep.subr.mxu0 0.0
  %237 = vmatpush1.msra.mxu0 0.0
  %238 = vmatprep.subr.mxu0 0.0
  %239 = vmatpush1.msra.mxu0 0.0
  %240 = vmatprep.subr.mxu0 0.0
  %241 = vmatpush1.msra.mxu0 0.0
  %242 = vmatprep.subr.mxu0 0.0
  %243 = vmatpush1.msra.mxu0 0.0
  %244 = vmatprep.subr.mxu0 0.0
  %245 = vmatpush1.msra.mxu0 0.0
  %246 = vmatprep.subr.mxu0 0.0
  %247 = vmatpush1.msra.mxu0 0.0
  %248 = vmatprep.subr.mxu0 0.0
  %249 = vmatpush1.msra.mxu0 0.0
  %250 = vmatprep.subr.mxu0 0.0
  %251 = vmatpush1.msra.mxu0 0.0
  %252 = vmatprep.subr.mxu0 0.0
  %253 = vmatpush1.msra.mxu0 0.0
  %254 = vmatprep.subr.mxu0 0.0
  %255 = vmatpush1.msra.mxu0 0.0
  %256 = vmatprep.subr.mxu0 0.0
  %257 = vmatpush1.msra.mxu0 0.0
  %258 = vmatprep.subr.mxu0 0.0
  %259 = vmatpush1.msra.mxu0 0.0
  %260 = vmatprep.subr.mxu0 0.0
  %261 = vmatpush1.msra.mxu0 0.0
  %262 = vmatprep.subr.mxu0 0.0
  %263 = vmatpush1.msra.mxu0 0.0
  %264 = vmatprep.subr.mxu0 0.0
  %265 = vmatpush1.msra.mxu0 0.0
  %266 = vmatprep.subr.mxu0 0.0
  %267 = vmatpush1.msra.mxu0 0.0
  %268 = vmatprep.subr.mxu0 0.0
  %269 = vmatpush1.msra.mxu0 0.0
  %270 = vmatprep.subr.mxu0 0.0
  %271 = vmatpush1.msra.mxu0 0.0
  %272 = vmatprep.subr.mxu0 0.0
  %273 = vmatpush1.msra.mxu0 0.0
  %274 = vmatprep.mubr.f32.mxu0 0.0
  %v275 = vand.u32 %v31, 4294901760
  %v276 = vsub.f32 %v31, %v275
  %277 = vmatmul.mubr.f32.gmra.mrb[0].mxu0 %v276
  %v278 = vpop.f32.mrb[0].mxu0
  %v279 = vadd.f32 %v199, %v278
  %v280 = vpop.f32.mrb[0].mxu0
  %281 = vmatprep.mubr.f32.mxu0 0.0
  %v282 = vand.u32 %v34, 4294901760
  %v283 = vsub.f32 %v34, %v282
  %284 = vmatmul.mubr.f32.gmra.mrb[0].mxu0 %v283
  %v285 = vpop.f32.mrb[0].mxu0
  %v286 = vadd.f32 %v205, %v285
  %v287 = vpop.f32.mrb[0].mxu0
  %288 = vdwg.mxu0
  %289 = vmatprep.subr.mxu0 0.0
  %v290 = vand.u32 %v38, 4294901760
  %291 = vmatpush1.msra.mxu0 %v290
  %292 = vmatprep.subr.mxu0 0.0
  %293 = vmatpush1.msra.mxu0 0.0
  %294 = vmatprep.subr.mxu0 0.0
  %295 = vmatpush1.msra.mxu0 0.0
  %296 = vmatprep.subr.mxu0 0.0
  %297 = vmatpush1.msra.mxu0 0.0
  %298 = vmatprep.subr.mxu0 0.0
  %299 = vmatpush1.msra.mxu0 0.0
  %300 = vmatprep.subr.mxu0 0.0
  %301 = vmatpush1.msra.mxu0 0.0
  %302 = vmatprep.subr.mxu0 0.0
  %303 = vmatpush1.msra.mxu0 0.0
  %304 = vmatprep.subr.mxu0 0.0
  %305 = vmatpush1.msra.mxu0 0.0
  %306 = vmatprep.subr.mxu0 0.0
  %307 = vmatpush1.msra.mxu0 0.0
  %308 = vmatprep.subr.mxu0 0.0
  %309 = vmatpush1.msra.mxu0 0.0
  %310 = vmatprep.subr.mxu0 0.0
  %311 = vmatpush1.msra.mxu0 0.0
  %312 = vmatprep.subr.mxu0 0.0
  %313 = vmatpush1.msra.mxu0 0.0
  %314 = vmatprep.subr.mxu0 0.0
  %315 = vmatpush1.msra.mxu0 0.0
  %316 = vmatprep.subr.mxu0 0.0
  %317 = vmatpush1.msra.mxu0 0.0
  %318 = vmatprep.subr.mxu0 0.0
  %319 = vmatpush1.msra.mxu0 0.0
  %320 = vmatprep.subr.mxu0 0.0
  %321 = vmatpush1.msra.mxu0 0.0
  %322 = vmatprep.subr.mxu0 0.0
  %323 = vmatpush1.msra.mxu0 0.0
  %324 = vmatprep.subr.mxu0 0.0
  %325 = vmatpush1.msra.mxu0 0.0
  %326 = vmatprep.subr.mxu0 0.0
  %327 = vmatpush1.msra.mxu0 0.0
  %328 = vmatprep.subr.mxu0 0.0
  %329 = vmatpush1.msra.mxu0 0.0
  %330 = vmatprep.subr.mxu0 0.0
  %331 = vmatpush1.msra.mxu0 0.0
  %332 = vmatprep.subr.mxu0 0.0
  %333 = vmatpush1.msra.mxu0 0.0
  %334 = vmatprep.subr.mxu0 0.0
  %335 = vmatpush1.msra.mxu0 0.0
  %336 = vmatprep.subr.mxu0 0.0
  %337 = vmatpush1.msra.mxu0 0.0
  %338 = vmatprep.subr.mxu0 0.0
  %339 = vmatpush1.msra.mxu0 0.0
  %340 = vmatprep.subr.mxu0 0.0
  %341 = vmatpush1.msra.mxu0 0.0
  %342 = vmatprep.subr.mxu0 0.0
  %343 = vmatpush1.msra.mxu0 0.0
  %344 = vmatprep.subr.mxu0 0.0
  %345 = vmatpush1.msra.mxu0 0.0
  %346 = vmatprep.subr.mxu0 0.0
  %347 = vmatpush1.msra.mxu0 0.0
  %348 = vmatprep.subr.mxu0 0.0
  %349 = vmatpush1.msra.mxu0 0.0
  %350 = vmatprep.subr.mxu0 0.0
  %351 = vmatpush1.msra.mxu0 0.0
  %352 = vmatprep.subr.mxu0 0.0
  %353 = vmatpush1.msra.mxu0 0.0
  %354 = vmatprep.mubr.f32.mxu0 0.0
  %v355 = vand.u32 %v31, 4294901760
  %v356 = vsub.f32 %v31, %v355
  %v357 = vand.u32 %v356, 4294901760
  %358 = vmatmul.mubr.f32.gmra.mrb[0].mxu0 %v357
  %v359 = vpop.f32.mrb[0].mxu0
  %v360 = vadd.f32 %v279, %v359
  %v361 = vpop.f32.mrb[0].mxu0
  %362 = vmatprep.mubr.f32.mxu0 0.0
  %v363 = vand.u32 %v34, 4294901760
  %v364 = vsub.f32 %v34, %v363
  %v365 = vand.u32 %v364, 4294901760
  %366 = vmatmul.mubr.f32.gmra.mrb[0].mxu0 %v365
  %v367 = vpop.f32.mrb[0].mxu0
  %v368 = vadd.f32 %v286, %v367
  %v369 = vpop.f32.mrb[0].mxu0
  %370 = vdwg.mxu0
  %371 = vmatprep.subr.mxu0 0.0
  %v372 = vand.u32 %v38, 4294901760
  %v373 = vsub.f32 %v38, %v372
  %v374 = vand.u32 %v373, 4294901760
  %375 = vmatpush1.msra.mxu0 %v374
  %376 = vmatprep.subr.mxu0 0.0
  %377 = vmatpush1.msra.mxu0 0.0
  %378 = vmatprep.subr.mxu0 0.0
  %379 = vmatpush1.msra.mxu0 0.0
  %380 = vmatprep.subr.mxu0 0.0
  %381 = vmatpush1.msra.mxu0 0.0
  %382 = vmatprep.subr.mxu0 0.0
  %383 = vmatpush1.msra.mxu0 0.0
  %384 = vmatprep.subr.mxu0 0.0
  %385 = vmatpush1.msra.mxu0 0.0
  %386 = vmatprep.subr.mxu0 0.0
  %387 = vmatpush1.msra.mxu0 0.0
  %388 = vmatprep.subr.mxu0 0.0
  %389 = vmatpush1.msra.mxu0 0.0
  %390 = vmatprep.subr.mxu0 0.0
  %391 = vmatpush1.msra.mxu0 0.0
  %392 = vmatprep.subr.mxu0 0.0
  %393 = vmatpush1.msra.mxu0 0.0
  %394 = vmatprep.subr.mxu0 0.0
  %395 = vmatpush1.msra.mxu0 0.0
  %396 = vmatprep.subr.mxu0 0.0
  %397 = vmatpush1.msra.mxu0 0.0
  %398 = vmatprep.subr.mxu0 0.0
  %399 = vmatpush1.msra.mxu0 0.0
  %400 = vmatprep.subr.mxu0 0.0
  %401 = vmatpush1.msra.mxu0 0.0
  %402 = vmatprep.subr.mxu0 0.0
  %403 = vmatpush1.msra.mxu0 0.0
  %404 = vmatprep.subr.mxu0 0.0
  %405 = vmatpush1.msra.mxu0 0.0
  %406 = vmatprep.subr.mxu0 0.0
  %407 = vmatpush1.msra.mxu0 0.0
  %408 = vmatprep.subr.mxu0 0.0
  %409 = vmatpush1.msra.mxu0 0.0
  %410 = vmatprep.subr.mxu0 0.0
  %411 = vmatpush1.msra.mxu0 0.0
  %412 = vmatprep.subr.mxu0 0.0
  %413 = vmatpush1.msra.mxu0 0.0
  %414 = vmatprep.subr.mxu0 0.0
  %415 = vmatpush1.msra.mxu0 0.0
  %416 = vmatprep.subr.mxu0 0.0
  %417 = vmatpush1.msra.mxu0 0.0
  %418 = vmatprep.subr.mxu0 0.0
  %419 = vmatpush1.msra.mxu0 0.0
  %420 = vmatprep.subr.mxu0 0.0
  %421 = vmatpush1.msra.mxu0 0.0
  %422 = vmatprep.subr.mxu0 0.0
  %423 = vmatpush1.msra.mxu0 0.0
  %424 = vmatprep.subr.mxu0 0.0
  %425 = vmatpush1.msra.mxu0 0.0
  %426 = vmatprep.subr.mxu0 0.0
  %427 = vmatpush1.msra.mxu0 0.0
  %428 = vmatprep.subr.mxu0 0.0
  %429 = vmatpush1.msra.mxu0 0.0
  %430 = vmatprep.subr.mxu0 0.0
  %431 = vmatpush1.msra.mxu0 0.0
  %432 = vmatprep.subr.mxu0 0.0
  %433 = vmatpush1.msra.mxu0 0.0
  %434 = vmatprep.subr.mxu0 0.0
  %435 = vmatpush1.msra.mxu0 0.0
  %436 = vmatprep.subr.mxu0 0.0
  %437 = vmatpush1.msra.mxu0 0.0
  %438 = vmatprep.mubr.f32.mxu0 0.0
  %v439 = vand.u32 %v31, 4294901760
  %440 = vmatmul.mubr.f32.gmra.mrb[0].mxu0 %v439
  %v441 = vpop.f32.mrb[0].mxu0
  %v442 = vadd.f32 %v360, %v441
  %v443 = vpop.f32.mrb[0].mxu0
  %444 = vmatprep.mubr.f32.mxu0 0.0
  %v445 = vand.u32 %v34, 4294901760
  %446 = vmatmul.mubr.f32.gmra.mrb[0].mxu0 %v445
  %v447 = vpop.f32.mrb[0].mxu0
  %v448 = vadd.f32 %v368, %v447
  %v449 = vpop.f32.mrb[0].mxu0
  %450 = vdwg.mxu0
  %451 = vmatprep.subr.mxu0 0.0
  %v452 = vand.u32 %v38, 4294901760
  %453 = vmatpush1.msra.mxu0 %v452
  %454 = vmatprep.subr.mxu0 0.0
  %455 = vmatpush1.msra.mxu0 0.0
  %456 = vmatprep.subr.mxu0 0.0
  %457 = vmatpush1.msra.mxu0 0.0
  %458 = vmatprep.subr.mxu0 0.0
  %459 = vmatpush1.msra.mxu0 0.0
  %460 = vmatprep.subr.mxu0 0.0
  %461 = vmatpush1.msra.mxu0 0.0
  %462 = vmatprep.subr.mxu0 0.0
  %463 = vmatpush1.msra.mxu0 0.0
  %464 = vmatprep.subr.mxu0 0.0
  %465 = vmatpush1.msra.mxu0 0.0
  %466 = vmatprep.subr.mxu0 0.0
  %467 = vmatpush1.msra.mxu0 0.0
  %468 = vmatprep.subr.mxu0 0.0
  %469 = vmatpush1.msra.mxu0 0.0
  %470 = vmatprep.subr.mxu0 0.0
  %471 = vmatpush1.msra.mxu0 0.0
  %472 = vmatprep.subr.mxu0 0.0
  %473 = vmatpush1.msra.mxu0 0.0
  %474 = vmatprep.subr.mxu0 0.0
  %475 = vmatpush1.msra.mxu0 0.0
  %476 = vmatprep.subr.mxu0 0.0
  %477 = vmatpush1.msra.mxu0 0.0
  %478 = vmatprep.subr.mxu0 0.0
  %479 = vmatpush1.msra.mxu0 0.0
  %480 = vmatprep.subr.mxu0 0.0
  %481 = vmatpush1.msra.mxu0 0.0
  %482 = vmatprep.subr.mxu0 0.0
  %483 = vmatpush1.msra.mxu0 0.0
  %484 = vmatprep.subr.mxu0 0.0
  %485 = vmatpush1.msra.mxu0 0.0
  %486 = vmatprep.subr.mxu0 0.0
  %487 = vmatpush1.msra.mxu0 0.0
  %488 = vmatprep.subr.mxu0 0.0
  %489 = vmatpush1.msra.mxu0 0.0
  %490 = vmatprep.subr.mxu0 0.0
  %491 = vmatpush1.msra.mxu0 0.0
  %492 = vmatprep.subr.mxu0 0.0
  %493 = vmatpush1.msra.mxu0 0.0
  %494 = vmatprep.subr.mxu0 0.0
  %495 = vmatpush1.msra.mxu0 0.0
  %496 = vmatprep.subr.mxu0 0.0
  %497 = vmatpush1.msra.mxu0 0.0
  %498 = vmatprep.subr.mxu0 0.0
  %499 = vmatpush1.msra.mxu0 0.0
  %500 = vmatprep.subr.mxu0 0.0
  %501 = vmatpush1.msra.mxu0 0.0
  %502 = vmatprep.subr.mxu0 0.0
  %503 = vmatpush1.msra.mxu0 0.0
  %504 = vmatprep.subr.mxu0 0.0
  %505 = vmatpush1.msra.mxu0 0.0
  %506 = vmatprep.subr.mxu0 0.0
  %507 = vmatpush1.msra.mxu0 0.0
  %508 = vmatprep.subr.mxu0 0.0
  %509 = vmatpush1.msra.mxu0 0.0
  %510 = vmatprep.subr.mxu0 0.0
  %511 = vmatpush1.msra.mxu0 0.0
  %512 = vmatprep.subr.mxu0 0.0
  %513 = vmatpush1.msra.mxu0 0.0
  %514 = vmatprep.subr.mxu0 0.0
  %515 = vmatpush1.msra.mxu0 0.0
  %516 = vmatprep.mubr.f32.mxu0 0.0
  %v517 = vand.u32 %v31, 4294901760
  %518 = vmatmul.mubr.f32.gmra.mrb[0].mxu0 %v517
  %v519 = vpop.f32.mrb[0].mxu0
  %v520 = vadd.f32 %v442, %v519
  %v521 = vpop.f32.mrb[0].mxu0
  %522 = vmatprep.mubr.f32.mxu0 0.0
  %v523 = vand.u32 %v34, 4294901760
  %524 = vmatmul.mubr.f32.gmra.mrb[0].mxu0 %v523
  %v525 = vpop.f32.mrb[0].mxu0
  %v526 = vadd.f32 %v448, %v525
  %v527 = vpop.f32.mrb[0].mxu0
  %528 = vdwg.mxu0
  %v529 = vld [vmem:[%s1] sm:$0xff]
  %v530 = vld [vmem:[%s1 + $0x8] sm:$0xf]
  %v531 = vlaneseq
  %v532 = vshrl.u32 %v531, 7
  %v533 = vsub.s32 1, %v532
  %v534 = vrot.slane %v22, %v533
  %v536 = vsel %vm29, %v529, 0
  %v539 = vsel %vm29, %v530, 0
  %v542 = vsel %vm36, %v21, 0
  %544 = vmatprep.subr.mxu0 0.0
  %v545 = vand.u32 %v542, 4294901760
  %546 = vmatpush1.msra.mxu0 %v545
  %547 = vmatprep.subr.mxu0 0.0
  %548 = vmatpush1.msra.mxu0 0.0
  %549 = vmatprep.subr.mxu0 0.0
  %550 = vmatpush1.msra.mxu0 0.0
  %551 = vmatprep.subr.mxu0 0.0
  %552 = vmatpush1.msra.mxu0 0.0
  %553 = vmatprep.subr.mxu0 0.0
  %554 = vmatpush1.msra.mxu0 0.0
  %555 = vmatprep.subr.mxu0 0.0
  %556 = vmatpush1.msra.mxu0 0.0
  %557 = vmatprep.subr.mxu0 0.0
  %558 = vmatpush1.msra.mxu0 0.0
  %559 = vmatprep.subr.mxu0 0.0
  %560 = vmatpush1.msra.mxu0 0.0
  %561 = vmatprep.subr.mxu0 0.0
  %562 = vmatpush1.msra.mxu0 0.0
  %563 = vmatprep.subr.mxu0 0.0
  %564 = vmatpush1.msra.mxu0 0.0
  %565 = vmatprep.subr.mxu0 0.0
  %566 = vmatpush1.msra.mxu0 0.0
  %567 = vmatprep.subr.mxu0 0.0
  %568 = vmatpush1.msra.mxu0 0.0
  %569 = vmatprep.subr.mxu0 0.0
  %570 = vmatpush1.msra.mxu0 0.0
  %571 = vmatprep.subr.mxu0 0.0
  %572 = vmatpush1.msra.mxu0 0.0
  %573 = vmatprep.subr.mxu0 0.0
  %574 = vmatpush1.msra.mxu0 0.0
  %575 = vmatprep.subr.mxu0 0.0
  %576 = vmatpush1.msra.mxu0 0.0
  %577 = vmatprep.subr.mxu0 0.0
  %578 = vmatpush1.msra.mxu0 0.0
  %579 = vmatprep.subr.mxu0 0.0
  %580 = vmatpush1.msra.mxu0 0.0
  %581 = vmatprep.subr.mxu0 0.0
  %582 = vmatpush1.msra.mxu0 0.0
  %583 = vmatprep.subr.mxu0 0.0
  %584 = vmatpush1.msra.mxu0 0.0
  %585 = vmatprep.subr.mxu0 0.0
  %586 = vmatpush1.msra.mxu0 0.0
  %587 = vmatprep.subr.mxu0 0.0
  %588 = vmatpush1.msra.mxu0 0.0
  %589 = vmatprep.subr.mxu0 0.0
  %590 = vmatpush1.msra.mxu0 0.0
  %591 = vmatprep.subr.mxu0 0.0
  %592 = vmatpush1.msra.mxu0 0.0
  %593 = vmatprep.subr.mxu0 0.0
  %594 = vmatpush1.msra.mxu0 0.0
  %595 = vmatprep.subr.mxu0 0.0
  %596 = vmatpush1.msra.mxu0 0.0
  %597 = vmatprep.subr.mxu0 0.0
  %598 = vmatpush1.msra.mxu0 0.0
  %599 = vmatprep.subr.mxu0 0.0
  %600 = vmatpush1.msra.mxu0 0.0
  %601 = vmatprep.subr.mxu0 0.0
  %602 = vmatpush1.msra.mxu0 0.0
  %603 = vmatprep.subr.mxu0 0.0
  %604 = vmatpush1.msra.mxu0 0.0
  %605 = vmatprep.subr.mxu0 0.0
  %606 = vmatpush1.msra.mxu0 0.0
  %607 = vmatprep.subr.mxu0 0.0
  %608 = vmatpush1.msra.mxu0 0.0
  %609 = vmatprep.mubr.f32.mxu0 0.0
  %v610 = vand.u32 %v536, 4294901760
  %v611 = vsub.f32 %v536, %v610
  %v612 = vand.u32 %v611, 4294901760
  %v613 = vsub.f32 %v611, %v612
  %v614 = vand.u32 %v613, 4294901760
  %615 = vmatmul.mubr.f32.gmra.mrb[0].mxu0 %v614
  %v616 = vpop.f32.mrb[0].mxu0
  %v617 = vadd.f32 %v534, %v616
  %v618 = vpop.f32.mrb[0].mxu0
  %619 = vmatprep.mubr.f32.mxu0 0.0
  %v620 = vand.u32 %v539, 4294901760
  %v621 = vsub.f32 %v539, %v620
  %v622 = vand.u32 %v621, 4294901760
  %v623 = vsub.f32 %v621, %v622
  %v624 = vand.u32 %v623, 4294901760
  %625 = vmatmul.mubr.f32.gmra.mrb[0].mxu0 %v624
  %v626 = vpop.f32.mrb[0].mxu0
  %v627 = vadd.f32 %v534, %v626
  %v628 = vpop.f32.mrb[0].mxu0
  %629 = vdwg.mxu0
  %630 = vmatprep.subr.mxu0 0.0
  %v631 = vand.u32 %v542, 4294901760
  %v632 = vsub.f32 %v542, %v631
  %v633 = vand.u32 %v632, 4294901760
  %v634 = vsub.f32 %v632, %v633
  %v635 = vand.u32 %v634, 4294901760
  %636 = vmatpush1.msra.mxu0 %v635
  %637 = vmatprep.subr.mxu0 0.0
  %638 = vmatpush1.msra.mxu0 0.0
  %639 = vmatprep.subr.mxu0 0.0
  %640 = vmatpush1.msra.mxu0 0.0
  %641 = vmatprep.subr.mxu0 0.0
  %642 = vmatpush1.msra.mxu0 0.0
  %643 = vmatprep.subr.mxu0 0.0
  %644 = vmatpush1.msra.mxu0 0.0
  %645 = vmatprep.subr.mxu0 0.0
  %646 = vmatpush1.msra.mxu0 0.0
  %647 = vmatprep.subr.mxu0 0.0
  %648 = vmatpush1.msra.mxu0 0.0
  %649 = vmatprep.subr.mxu0 0.0
  %650 = vmatpush1.msra.mxu0 0.0
  %651 = vmatprep.subr.mxu0 0.0
  %652 = vmatpush1.msra.mxu0 0.0
  %653 = vmatprep.subr.mxu0 0.0
  %654 = vmatpush1.msra.mxu0 0.0
  %655 = vmatprep.subr.mxu0 0.0
  %656 = vmatpush1.msra.mxu0 0.0
  %657 = vmatprep.subr.mxu0 0.0
  %658 = vmatpush1.msra.mxu0 0.0
  %659 = vmatprep.subr.mxu0 0.0
  %660 = vmatpush1.msra.mxu0 0.0
  %661 = vmatprep.subr.mxu0 0.0
  %662 = vmatpush1.msra.mxu0 0.0
  %663 = vmatprep.subr.mxu0 0.0
  %664 = vmatpush1.msra.mxu0 0.0
  %665 = vmatprep.subr.mxu0 0.0
  %666 = vmatpush1.msra.mxu0 0.0
  %667 = vmatprep.subr.mxu0 0.0
  %668 = vmatpush1.msra.mxu0 0.0
  %669 = vmatprep.subr.mxu0 0.0
  %670 = vmatpush1.msra.mxu0 0.0
  %671 = vmatprep.subr.mxu0 0.0
  %672 = vmatpush1.msra.mxu0 0.0
  %673 = vmatprep.subr.mxu0 0.0
  %674 = vmatpush1.msra.mxu0 0.0
  %675 = vmatprep.subr.mxu0 0.0
  %676 = vmatpush1.msra.mxu0 0.0
  %677 = vmatprep.subr.mxu0 0.0
  %678 = vmatpush1.msra.mxu0 0.0
  %679 = vmatprep.subr.mxu0 0.0
  %680 = vmatpush1.msra.mxu0 0.0
  %681 = vmatprep.subr.mxu0 0.0
  %682 = vmatpush1.msra.mxu0 0.0
  %683 = vmatprep.subr.mxu0 0.0
  %684 = vmatpush1.msra.mxu0 0.0
  %685 = vmatprep.subr.mxu0 0.0
  %686 = vmatpush1.msra.mxu0 0.0
  %687 = vmatprep.subr.mxu0 0.0
  %688 = vmatpush1.msra.mxu0 0.0
  %689 = vmatprep.subr.mxu0 0.0
  %690 = vmatpush1.msra.mxu0 0.0
  %691 = vmatprep.subr.mxu0 0.0
  %692 = vmatpush1.msra.mxu0 0.0
  %693 = vmatprep.subr.mxu0 0.0
  %694 = vmatpush1.msra.mxu0 0.0
  %695 = vmatprep.subr.mxu0 0.0
  %696 = vmatpush1.msra.mxu0 0.0
  %697 = vmatprep.subr.mxu0 0.0
  %698 = vmatpush1.msra.mxu0 0.0
  %699 = vmatprep.mubr.f32.mxu0 0.0
  %v700 = vand.u32 %v536, 4294901760
  %701 = vmatmul.mubr.f32.gmra.mrb[0].mxu0 %v700
  %v702 = vpop.f32.mrb[0].mxu0
  %v703 = vadd.f32 %v617, %v702
  %v704 = vpop.f32.mrb[0].mxu0
  %705 = vmatprep.mubr.f32.mxu0 0.0
  %v706 = vand.u32 %v539, 4294901760
  %707 = vmatmul.mubr.f32.gmra.mrb[0].mxu0 %v706
  %v708 = vpop.f32.mrb[0].mxu0
  %v709 = vadd.f32 %v627, %v708
  %v710 = vpop.f32.mrb[0].mxu0
  %711 = vdwg.mxu0
  %712 = vmatprep.subr.mxu0 0.0
  %v713 = vand.u32 %v542, 4294901760
  %v714 = vsub.f32 %v542, %v713
  %715 = vmatpush1.msra.mxu0 %v714
  %716 = vmatprep.subr.mxu0 0.0
  %717 = vmatpush1.msra.mxu0 0.0
  %718 = vmatprep.subr.mxu0 0.0
  %719 = vmatpush1.msra.mxu0 0.0
  %720 = vmatprep.subr.mxu0 0.0
  %721 = vmatpush1.msra.mxu0 0.0
  %722 = vmatprep.subr.mxu0 0.0
  %723 = vmatpush1.msra.mxu0 0.0
  %724 = vmatprep.subr.mxu0 0.0
  %725 = vmatpush1.msra.mxu0 0.0
  %726 = vmatprep.subr.mxu0 0.0
  %727 = vmatpush1.msra.mxu0 0.0
  %728 = vmatprep.subr.mxu0 0.0
  %729 = vmatpush1.msra.mxu0 0.0
  %730 = vmatprep.subr.mxu0 0.0
  %731 = vmatpush1.msra.mxu0 0.0
  %732 = vmatprep.subr.mxu0 0.0
  %733 = vmatpush1.msra.mxu0 0.0
  %734 = vmatprep.subr.mxu0 0.0
  %735 = vmatpush1.msra.mxu0 0.0
  %736 = vmatprep.subr.mxu0 0.0
  %737 = vmatpush1.msra.mxu0 0.0
  %738 = vmatprep.subr.mxu0 0.0
  %739 = vmatpush1.msra.mxu0 0.0
  %740 = vmatprep.subr.mxu0 0.0
  %741 = vmatpush1.msra.mxu0 0.0
  %742 = vmatprep.subr.mxu0 0.0
  %743 = vmatpush1.msra.mxu0 0.0
  %744 = vmatprep.subr.mxu0 0.0
  %745 = vmatpush1.msra.mxu0 0.0
  %746 = vmatprep.subr.mxu0 0.0
  %747 = vmatpush1.msra.mxu0 0.0
  %748 = vmatprep.subr.mxu0 0.0
  %749 = vmatpush1.msra.mxu0 0.0
  %750 = vmatprep.subr.mxu0 0.0
  %751 = vmatpush1.msra.mxu0 0.0
  %752 = vmatprep.subr.mxu0 0.0
  %753 = vmatpush1.msra.mxu0 0.0
  %754 = vmatprep.subr.mxu0 0.0
  %755 = vmatpush1.msra.mxu0 0.0
  %756 = vmatprep.subr.mxu0 0.0
  %757 = vmatpush1.msra.mxu0 0.0
  %758 = vmatprep.subr.mxu0 0.0
  %759 = vmatpush1.msra.mxu0 0.0
  %760 = vmatprep.subr.mxu0 0.0
  %761 = vmatpush1.msra.mxu0 0.0
  %762 = vmatprep.subr.mxu0 0.0
  %763 = vmatpush1.msra.mxu0 0.0
  %764 = vmatprep.subr.mxu0 0.0
  %765 = vmatpush1.msra.mxu0 0.0
  %766 = vmatprep.subr.mxu0 0.0
  %767 = vmatpush1.msra.mxu0 0.0
  %768 = vmatprep.subr.mxu0 0.0
  %769 = vmatpush1.msra.mxu0 0.0
  %770 = vmatprep.subr.mxu0 0.0
  %771 = vmatpush1.msra.mxu0 0.0
  %772 = vmatprep.subr.mxu0 0.0
  %773 = vmatpush1.msra.mxu0 0.0
  %774 = vmatprep.subr.mxu0 0.0
  %775 = vmatpush1.msra.mxu0 0.0
  %776 = vmatprep.subr.mxu0 0.0
  %777 = vmatpush1.msra.mxu0 0.0
  %778 = vmatprep.mubr.f32.mxu0 0.0
  %v779 = vand.u32 %v536, 4294901760
  %v780 = vsub.f32 %v536, %v779
  %781 = vmatmul.mubr.f32.gmra.mrb[0].mxu0 %v780
  %v782 = vpop.f32.mrb[0].mxu0
  %v783 = vadd.f32 %v703, %v782
  %v784 = vpop.f32.mrb[0].mxu0
  %785 = vmatprep.mubr.f32.mxu0 0.0
  %v786 = vand.u32 %v539, 4294901760
  %v787 = vsub.f32 %v539, %v786
  %788 = vmatmul.mubr.f32.gmra.mrb[0].mxu0 %v787
  %v789 = vpop.f32.mrb[0].mxu0
  %v790 = vadd.f32 %v709, %v789
  %v791 = vpop.f32.mrb[0].mxu0
  %792 = vdwg.mxu0
  %793 = vmatprep.subr.mxu0 0.0
  %v794 = vand.u32 %v542, 4294901760
  %795 = vmatpush1.msra.mxu0 %v794
  %796 = vmatprep.subr.mxu0 0.0
  %797 = vmatpush1.msra.mxu0 0.0
  %798 = vmatprep.subr.mxu0 0.0
  %799 = vmatpush1.msra.mxu0 0.0
  %800 = vmatprep.subr.mxu0 0.0
  %801 = vmatpush1.msra.mxu0 0.0
  %802 = vmatprep.subr.mxu0 0.0
  %803 = vmatpush1.msra.mxu0 0.0
  %804 = vmatprep.subr.mxu0 0.0
  %805 = vmatpush1.msra.mxu0 0.0
  %806 = vmatprep.subr.mxu0 0.0
  %807 = vmatpush1.msra.mxu0 0.0
  %808 = vmatprep.subr.mxu0 0.0
  %809 = vmatpush1.msra.mxu0 0.0
  %810 = vmatprep.subr.mxu0 0.0
  %811 = vmatpush1.msra.mxu0 0.0
  %812 = vmatprep.subr.mxu0 0.0
  %813 = vmatpush1.msra.mxu0 0.0
  %814 = vmatprep.subr.mxu0 0.0
  %815 = vmatpush1.msra.mxu0 0.0
  %816 = vmatprep.subr.mxu0 0.0
  %817 = vmatpush1.msra.mxu0 0.0
  %818 = vmatprep.subr.mxu0 0.0
  %819 = vmatpush1.msra.mxu0 0.0
  %820 = vmatprep.subr.mxu0 0.0
  %821 = vmatpush1.msra.mxu0 0.0
  %822 = vmatprep.subr.mxu0 0.0
  %823 = vmatpush1.msra.mxu0 0.0
  %824 = vmatprep.subr.mxu0 0.0
  %825 = vmatpush1.msra.mxu0 0.0
  %826 = vmatprep.subr.mxu0 0.0
  %827 = vmatpush1.msra.mxu0 0.0
  %828 = vmatprep.subr.mxu0 0.0
  %829 = vmatpush1.msra.mxu0 0.0
  %830 = vmatprep.subr.mxu0 0.0
  %831 = vmatpush1.msra.mxu0 0.0
  %832 = vmatprep.subr.mxu0 0.0
  %833 = vmatpush1.msra.mxu0 0.0
  %834 = vmatprep.subr.mxu0 0.0
  %835 = vmatpush1.msra.mxu0 0.0
  %836 = vmatprep.subr.mxu0 0.0
  %837 = vmatpush1.msra.mxu0 0.0
  %838 = vmatprep.subr.mxu0 0.0
  %839 = vmatpush1.msra.mxu0 0.0
  %840 = vmatprep.subr.mxu0 0.0
  %841 = vmatpush1.msra.mxu0 0.0
  %842 = vmatprep.subr.mxu0 0.0
  %843 = vmatpush1.msra.mxu0 0.0
  %844 = vmatprep.subr.mxu0 0.0
  %845 = vmatpush1.msra.mxu0 0.0
  %846 = vmatprep.subr.mxu0 0.0
  %847 = vmatpush1.msra.mxu0 0.0
  %848 = vmatprep.subr.mxu0 0.0
  %849 = vmatpush1.msra.mxu0 0.0
  %850 = vmatprep.subr.mxu0 0.0
  %851 = vmatpush1.msra.mxu0 0.0
  %852 = vmatprep.subr.mxu0 0.0
  %853 = vmatpush1.msra.mxu0 0.0
  %854 = vmatprep.subr.mxu0 0.0
  %855 = vmatpush1.msra.mxu0 0.0
  %856 = vmatprep.subr.mxu0 0.0
  %857 = vmatpush1.msra.mxu0 0.0
  %858 = vmatprep.mubr.f32.mxu0 0.0
  %v859 = vand.u32 %v536, 4294901760
  %v860 = vsub.f32 %v536, %v859
  %v861 = vand.u32 %v860, 4294901760
  %862 = vmatmul.mubr.f32.gmra.mrb[0].mxu0 %v861
  %v863 = vpop.f32.mrb[0].mxu0
  %v864 = vadd.f32 %v783, %v863
  %v865 = vpop.f32.mrb[0].mxu0
  %866 = vmatprep.mubr.f32.mxu0 0.0
  %v867 = vand.u32 %v539, 4294901760
  %v868 = vsub.f32 %v539, %v867
  %v869 = vand.u32 %v868, 4294901760
  %870 = vmatmul.mubr.f32.gmra.mrb[0].mxu0 %v869
  %v871 = vpop.f32.mrb[0].mxu0
  %v872 = vadd.f32 %v790, %v871
  %v873 = vpop.f32.mrb[0].mxu0
  %874 = vdwg.mxu0
  %875 = vmatprep.subr.mxu0 0.0
  %v876 = vand.u32 %v542, 4294901760
  %v877 = vsub.f32 %v542, %v876
  %v878 = vand.u32 %v877, 4294901760
  %879 = vmatpush1.msra.mxu0 %v878
  %880 = vmatprep.subr.mxu0 0.0
  %881 = vmatpush1.msra.mxu0 0.0
  %882 = vmatprep.subr.mxu0 0.0
  %883 = vmatpush1.msra.mxu0 0.0
  %884 = vmatprep.subr.mxu0 0.0
  %885 = vmatpush1.msra.mxu0 0.0
  %886 = vmatprep.subr.mxu0 0.0
  %887 = vmatpush1.msra.mxu0 0.0
  %888 = vmatprep.subr.mxu0 0.0
  %889 = vmatpush1.msra.mxu0 0.0
  %890 = vmatprep.subr.mxu0 0.0
  %891 = vmatpush1.msra.mxu0 0.0
  %892 = vmatprep.subr.mxu0 0.0
  %893 = vmatpush1.msra.mxu0 0.0
  %894 = vmatprep.subr.mxu0 0.0
  %895 = vmatpush1.msra.mxu0 0.0
  %896 = vmatprep.subr.mxu0 0.0
  %897 = vmatpush1.msra.mxu0 0.0
  %898 = vmatprep.subr.mxu0 0.0
  %899 = vmatpush1.msra.mxu0 0.0
  %900 = vmatprep.subr.mxu0 0.0
  %901 = vmatpush1.msra.mxu0 0.0
  %902 = vmatprep.subr.mxu0 0.0
  %903 = vmatpush1.msra.mxu0 0.0
  %904 = vmatprep.subr.mxu0 0.0
  %905 = vmatpush1.msra.mxu0 0.0
  %906 = vmatprep.subr.mxu0 0.0
  %907 = vmatpush1.msra.mxu0 0.0
  %908 = vmatprep.subr.mxu0 0.0
  %909 = vmatpush1.msra.mxu0 0.0
  %910 = vmatprep.subr.mxu0 0.0
  %911 = vmatpush1.msra.mxu0 0.0
  %912 = vmatprep.subr.mxu0 0.0
  %913 = vmatpush1.msra.mxu0 0.0
  %914 = vmatprep.subr.mxu0 0.0
  %915 = vmatpush1.msra.mxu0 0.0
  %916 = vmatprep.subr.mxu0 0.0
  %917 = vmatpush1.msra.mxu0 0.0
  %918 = vmatprep.subr.mxu0 0.0
  %919 = vmatpush1.msra.mxu0 0.0
  %920 = vmatprep.subr.mxu0 0.0
  %921 = vmatpush1.msra.mxu0 0.0
  %922 = vmatprep.subr.mxu0 0.0
  %923 = vmatpush1.msra.mxu0 0.0
  %924 = vmatprep.subr.mxu0 0.0
  %925 = vmatpush1.msra.mxu0 0.0
  %926 = vmatprep.subr.mxu0 0.0
  %927 = vmatpush1.msra.mxu0 0.0
  %928 = vmatprep.subr.mxu0 0.0
  %929 = vmatpush1.msra.mxu0 0.0
  %930 = vmatprep.subr.mxu0 0.0
  %931 = vmatpush1.msra.mxu0 0.0
  %932 = vmatprep.subr.mxu0 0.0
  %933 = vmatpush1.msra.mxu0 0.0
  %934 = vmatprep.subr.mxu0 0.0
  %935 = vmatpush1.msra.mxu0 0.0
  %936 = vmatprep.subr.mxu0 0.0
  %937 = vmatpush1.msra.mxu0 0.0
  %938 = vmatprep.subr.mxu0 0.0
  %939 = vmatpush1.msra.mxu0 0.0
  %940 = vmatprep.subr.mxu0 0.0
  %941 = vmatpush1.msra.mxu0 0.0
  %942 = vmatprep.mubr.f32.mxu0 0.0
  %v943 = vand.u32 %v536, 4294901760
  %944 = vmatmul.mubr.f32.gmra.mrb[0].mxu0 %v943
  %v945 = vpop.f32.mrb[0].mxu0
  %v946 = vadd.f32 %v864, %v945
  %v947 = vpop.f32.mrb[0].mxu0
  %948 = vmatprep.mubr.f32.mxu0 0.0
  %v949 = vand.u32 %v539, 4294901760
  %950 = vmatmul.mubr.f32.gmra.mrb[0].mxu0 %v949
  %v951 = vpop.f32.mrb[0].mxu0
  %v952 = vadd.f32 %v872, %v951
  %v953 = vpop.f32.mrb[0].mxu0
  %954 = vdwg.mxu0
  %955 = vmatprep.subr.mxu0 0.0
  %v956 = vand.u32 %v542, 4294901760
  %957 = vmatpush1.msra.mxu0 %v956
  %958 = vmatprep.subr.mxu0 0.0
  %959 = vmatpush1.msra.mxu0 0.0
  %960 = vmatprep.subr.mxu0 0.0
  %961 = vmatpush1.msra.mxu0 0.0
  %962 = vmatprep.subr.mxu0 0.0
  %963 = vmatpush1.msra.mxu0 0.0
  %964 = vmatprep.subr.mxu0 0.0
  %965 = vmatpush1.msra.mxu0 0.0
  %966 = vmatprep.subr.mxu0 0.0
  %967 = vmatpush1.msra.mxu0 0.0
  %968 = vmatprep.subr.mxu0 0.0
  %969 = vmatpush1.msra.mxu0 0.0
  %970 = vmatprep.subr.mxu0 0.0
  %971 = vmatpush1.msra.mxu0 0.0
  %972 = vmatprep.subr.mxu0 0.0
  %973 = vmatpush1.msra.mxu0 0.0
  %974 = vmatprep.subr.mxu0 0.0
  %975 = vmatpush1.msra.mxu0 0.0
  %976 = vmatprep.subr.mxu0 0.0
  %977 = vmatpush1.msra.mxu0 0.0
  %978 = vmatprep.subr.mxu0 0.0
  %979 = vmatpush1.msra.mxu0 0.0
  %980 = vmatprep.subr.mxu0 0.0
  %981 = vmatpush1.msra.mxu0 0.0
  %982 = vmatprep.subr.mxu0 0.0
  %983 = vmatpush1.msra.mxu0 0.0
  %984 = vmatprep.subr.mxu0 0.0
  %985 = vmatpush1.msra.mxu0 0.0
  %986 = vmatprep.subr.mxu0 0.0
  %987 = vmatpush1.msra.mxu0 0.0
  %988 = vmatprep.subr.mxu0 0.0
  %989 = vmatpush1.msra.mxu0 0.0
  %990 = vmatprep.subr.mxu0 0.0
  %991 = vmatpush1.msra.mxu0 0.0
  %992 = vmatprep.subr.mxu0 0.0
  %993 = vmatpush1.msra.mxu0 0.0
  %994 = vmatprep.subr.mxu0 0.0
  %995 = vmatpush1.msra.mxu0 0.0
  %996 = vmatprep.subr.mxu0 0.0
  %997 = vmatpush1.msra.mxu0 0.0
  %998 = vmatprep.subr.mxu0 0.0
  %999 = vmatpush1.msra.mxu0 0.0
  %1000 = vmatprep.subr.mxu0 0.0
  %1001 = vmatpush1.msra.mxu0 0.0
  %1002 = vmatprep.subr.mxu0 0.0
  %1003 = vmatpush1.msra.mxu0 0.0
  %1004 = vmatprep.subr.mxu0 0.0
  %1005 = vmatpush1.msra.mxu0 0.0
  %1006 = vmatprep.subr.mxu0 0.0
  %1007 = vmatpush1.msra.mxu0 0.0
  %1008 = vmatprep.subr.mxu0 0.0
  %1009 = vmatpush1.msra.mxu0 0.0
  %1010 = vmatprep.subr.mxu0 0.0
  %1011 = vmatpush1.msra.mxu0 0.0
  %1012 = vmatprep.subr.mxu0 0.0
  %1013 = vmatpush1.msra.mxu0 0.0
  %1014 = vmatprep.subr.mxu0 0.0
  %1015 = vmatpush1.msra.mxu0 0.0
  %1016 = vmatprep.subr.mxu0 0.0
  %1017 = vmatpush1.msra.mxu0 0.0
  %1018 = vmatprep.subr.mxu0 0.0
  %1019 = vmatpush1.msra.mxu0 0.0
  %1020 = vmatprep.mubr.f32.mxu0 0.0
  %v1021 = vand.u32 %v536, 4294901760
  %1022 = vmatmul.mubr.f32.gmra.mrb[0].mxu0 %v1021
  %v1023 = vpop.f32.mrb[0].mxu0
  %v1024 = vadd.f32 %v946, %v1023
  %v1025 = vpop.f32.mrb[0].mxu0
  %1026 = vmatprep.mubr.f32.mxu0 0.0
  %v1027 = vand.u32 %v539, 4294901760
  %1028 = vmatmul.mubr.f32.gmra.mrb[0].mxu0 %v1027
  %v1029 = vpop.f32.mrb[0].mxu0
  %v1030 = vadd.f32 %v952, %v1029
  %v1031 = vpop.f32.mrb[0].mxu0
  %1032 = vdwg.mxu0
  %v1033 = vld [vmem:[%s2] sm:$0xff]
  %v1034 = vld [vmem:[%s2 + $0x8] sm:$0xff]
  %v1035 = vld [vmem:[%s2 + $0x10] sm:$0xff]
  %v1036 = vld [vmem:[%s2 + $0x18] sm:$0xff]
  %v1037 = vld [vmem:[%s2 + $0x20] sm:$0xff]
  %v1038 = vld [vmem:[%s2 + $0x28] sm:$0xff]
  %v1039 = vld [vmem:[%s2 + $0x30] sm:$0xff]
  %v1040 = vld [vmem:[%s2 + $0x38] sm:$0xff]
  %v1041 = vld [vmem:[%s2 + $0x40] sm:$0xff]
  %v1042 = vld [vmem:[%s2 + $0x48] sm:$0xff]
  %v1043 = vld [vmem:[%s2 + $0x50] sm:$0xff]
  %v1044 = vld [vmem:[%s2 + $0x58] sm:$0xff]
  %v1045 = vld [vmem:[%s2 + $0x60] sm:$0xff]
  %v1046 = vld [vmem:[%s2 + $0x68] sm:$0xff]
  %v1047 = vld [vmem:[%s2 + $0x70] sm:$0xff]
  %v1048 = vld [vmem:[%s2 + $0x78] sm:$0xff]
  %v1049 = vld [vmem:[%s2 + $0x80] sm:$0xff]
  %v1050 = vld [vmem:[%s2 + $0x88] sm:$0xff]
  %vm1051 = vcmask 97280
  %v1053 = vsel %vm1051, %v1033, 0
  %v1056 = vsel %vm1051, %v1034, 0
  %v1059 = vsel %vm1051, %v1035, 0
  %v1062 = vsel %vm1051, %v1036, 0
  %v1065 = vsel %vm1051, %v1037, 0
  %v1068 = vsel %vm1051, %v1038, 0
  %v1071 = vsel %vm1051, %v1039, 0
  %v1074 = vsel %vm1051, %v1040, 0
  %v1077 = vsel %vm1051, %v1041, 0
  %v1080 = vsel %vm1051, %v1042, 0
  %v1083 = vsel %vm1051, %v1043, 0
  %v1086 = vsel %vm1051, %v1044, 0
  %v1089 = vsel %vm1051, %v1045, 0
  %v1092 = vsel %vm1051, %v1046, 0
  %v1095 = vsel %vm1051, %v1047, 0
  %v1098 = vsel %vm1051, %v1048, 0
  %v1101 = vsel %vm1051, %v1049, 0
  %v1104 = vsel %vm1051, %v1050, 0
  %vm1106 = vcmask 1043456
  %v1108 = vsel %vm1106, %v526, 0
  %1110 = vmatprep.subr.mxu0 0.0
  %v1111 = vand.u32 %v520, 4294901760
  %1112 = vmatpush1.msra.mxu0 %v1111
  %1113 = vmatprep.subr.mxu0 0.0
  %v1114 = vand.u32 %v1108, 4294901760
  %1115 = vmatpush1.msra.mxu0 %v1114
  %1116 = vmatprep.subr.mxu0 0.0
  %1117 = vmatpush1.msra.mxu0 0.0
  %1118 = vmatprep.subr.mxu0 0.0
  %1119 = vmatpush1.msra.mxu0 0.0
  %1120 = vmatprep.subr.mxu0 0.0
  %1121 = vmatpush1.msra.mxu0 0.0
  %1122 = vmatprep.subr.mxu0 0.0
  %1123 = vmatpush1.msra.mxu0 0.0
  %1124 = vmatprep.subr.mxu0 0.0
  %1125 = vmatpush1.msra.mxu0 0.0
  %1126 = vmatprep.subr.mxu0 0.0
  %1127 = vmatpush1.msra.mxu0 0.0
  %1128 = vmatprep.subr.mxu0 0.0
  %1129 = vmatpush1.msra.mxu0 0.0
  %1130 = vmatprep.subr.mxu0 0.0
  %1131 = vmatpush1.msra.mxu0 0.0
  %1132 = vmatprep.subr.mxu0 0.0
  %1133 = vmatpush1.msra.mxu0 0.0
  %1134 = vmatprep.subr.mxu0 0.0
  %1135 = vmatpush1.msra.mxu0 0.0
  %1136 = vmatprep.subr.mxu0 0.0
  %1137 = vmatpush1.msra.mxu0 0.0
  %1138 = vmatprep.subr.mxu0 0.0
  %1139 = vmatpush1.msra.mxu0 0.0
  %1140 = vmatprep.subr.mxu0 0.0
  %1141 = vmatpush1.msra.mxu0 0.0
  %1142 = vmatprep.subr.mxu0 0.0
  %1143 = vmatpush1.msra.mxu0 0.0
  %1144 = vmatprep.subr.mxu0 0.0
  %1145 = vmatpush1.msra.mxu0 0.0
  %1146 = vmatprep.subr.mxu0 0.0
  %1147 = vmatpush1.msra.mxu0 0.0
  %1148 = vmatprep.subr.mxu0 0.0
  %1149 = vmatpush1.msra.mxu0 0.0
  %1150 = vmatprep.subr.mxu0 0.0
  %1151 = vmatpush1.msra.mxu0 0.0
  %1152 = vmatprep.subr.mxu0 0.0
  %1153 = vmatpush1.msra.mxu0 0.0
  %1154 = vmatprep.subr.mxu0 0.0
  %1155 = vmatpush1.msra.mxu0 0.0
  %1156 = vmatprep.subr.mxu0 0.0
  %1157 = vmatpush1.msra.mxu0 0.0
  %1158 = vmatprep.subr.mxu0 0.0
  %1159 = vmatpush1.msra.mxu0 0.0
  %1160 = vmatprep.subr.mxu0 0.0
  %1161 = vmatpush1.msra.mxu0 0.0
  %1162 = vmatprep.subr.mxu0 0.0
  %1163 = vmatpush1.msra.mxu0 0.0
  %1164 = vmatprep.subr.mxu0 0.0
  %1165 = vmatpush1.msra.mxu0 0.0
  %1166 = vmatprep.subr.mxu0 0.0
  %1167 = vmatpush1.msra.mxu0 0.0
  %1168 = vmatprep.subr.mxu0 0.0
  %1169 = vmatpush1.msra.mxu0 0.0
  %1170 = vmatprep.subr.mxu0 0.0
  %1171 = vmatpush1.msra.mxu0 0.0
  %1172 = vmatprep.subr.mxu0 0.0
  %1173 = vmatpush1.msra.mxu0 0.0
  %1174 = vmatprep.subr.mxu0 0.0
  %1175 = vmatpush1.msra.mxu0 0.0
  %1176 = vmatprep.mubr.f32.mxu0 0.0
  %v1177 = vand.u32 %v1053, 4294901760
  %v1178 = vsub.f32 %v1053, %v1177
  %v1179 = vand.u32 %v1178, 4294901760
  %v1180 = vsub.f32 %v1178, %v1179
  %v1181 = vand.u32 %v1180, 4294901760
  %1182 = vmatmul.mubr.f32.gmra.mrb[0].mxu0 %v1181
  %v1183 = vpop.f32.mrb[0].mxu0
  %v1184 = vadd.f32 0.0, %v1183
  %v1185 = vpop.f32.mrb[0].mxu0
  %1186 = vmatprep.mubr.f32.mxu0 0.0
  %v1187 = vand.u32 %v1056, 4294901760
  %v1188 = vsub.f32 %v1056, %v1187
  %v1189 = vand.u32 %v1188, 4294901760
  %v1190 = vsub.f32 %v1188, %v1189
  %v1191 = vand.u32 %v1190, 4294901760
  %1192 = vmatmul.mubr.f32.gmra.mrb[0].mxu0 %v1191
  %v1193 = vpop.f32.mrb[0].mxu0
  %v1194 = vadd.f32 0.0, %v1193
  %v1195 = vpop.f32.mrb[0].mxu0
  %1196 = vmatprep.mubr.f32.mxu0 0.0
  %v1197 = vand.u32 %v1059, 4294901760
  %v1198 = vsub.f32 %v1059, %v1197
  %v1199 = vand.u32 %v1198, 4294901760
  %v1200 = vsub.f32 %v1198, %v1199
  %v1201 = vand.u32 %v1200, 4294901760
  %1202 = vmatmul.mubr.f32.gmra.mrb[0].mxu0 %v1201
  %v1203 = vpop.f32.mrb[0].mxu0
  %v1204 = vadd.f32 0.0, %v1203
  %v1205 = vpop.f32.mrb[0].mxu0
  %1206 = vmatprep.mubr.f32.mxu0 0.0
  %v1207 = vand.u32 %v1062, 4294901760
  %v1208 = vsub.f32 %v1062, %v1207
  %v1209 = vand.u32 %v1208, 4294901760
  %v1210 = vsub.f32 %v1208, %v1209
  %v1211 = vand.u32 %v1210, 4294901760
  %1212 = vmatmul.mubr.f32.gmra.mrb[0].mxu0 %v1211
  %v1213 = vpop.f32.mrb[0].mxu0
  %v1214 = vadd.f32 0.0, %v1213
  %v1215 = vpop.f32.mrb[0].mxu0
  %1216 = vmatprep.mubr.f32.mxu0 0.0
  %v1217 = vand.u32 %v1065, 4294901760
  %v1218 = vsub.f32 %v1065, %v1217
  %v1219 = vand.u32 %v1218, 4294901760
  %v1220 = vsub.f32 %v1218, %v1219
  %v1221 = vand.u32 %v1220, 4294901760
  %1222 = vmatmul.mubr.f32.gmra.mrb[0].mxu0 %v1221
  %v1223 = vpop.f32.mrb[0].mxu0
  %v1224 = vadd.f32 0.0, %v1223
  %v1225 = vpop.f32.mrb[0].mxu0
  %1226 = vmatprep.mubr.f32.mxu0 0.0
  %v1227 = vand.u32 %v1068, 4294901760
  %v1228 = vsub.f32 %v1068, %v1227
  %v1229 = vand.u32 %v1228, 4294901760
  %v1230 = vsub.f32 %v1228, %v1229
  %v1231 = vand.u32 %v1230, 4294901760
  %1232 = vmatmul.mubr.f32.gmra.mrb[0].mxu0 %v1231
  %v1233 = vpop.f32.mrb[0].mxu0
  %v1234 = vadd.f32 0.0, %v1233
  %v1235 = vpop.f32.mrb[0].mxu0
  %1236 = vmatprep.mubr.f32.mxu0 0.0
  %v1237 = vand.u32 %v1071, 4294901760
  %v1238 = vsub.f32 %v1071, %v1237
  %v1239 = vand.u32 %v1238, 4294901760
  %v1240 = vsub.f32 %v1238, %v1239
  %v1241 = vand.u32 %v1240, 4294901760
  %1242 = vmatmul.mubr.f32.gmra.mrb[0].mxu0 %v1241
  %v1243 = vpop.f32.mrb[0].mxu0
  %v1244 = vadd.f32 0.0, %v1243
  %v1245 = vpop.f32.mrb[0].mxu0
  %1246 = vmatprep.mubr.f32.mxu0 0.0
  %v1247 = vand.u32 %v1074, 4294901760
  %v1248 = vsub.f32 %v1074, %v1247
  %v1249 = vand.u32 %v1248, 4294901760
  %v1250 = vsub.f32 %v1248, %v1249
  %v1251 = vand.u32 %v1250, 4294901760
  %1252 = vmatmul.mubr.f32.gmra.mrb[0].mxu0 %v1251
  %v1253 = vpop.f32.mrb[0].mxu0
  %v1254 = vadd.f32 0.0, %v1253
  %v1255 = vpop.f32.mrb[0].mxu0
  %1256 = vmatprep.mubr.f32.mxu0 0.0
  %v1257 = vand.u32 %v1077, 4294901760
  %v1258 = vsub.f32 %v1077, %v1257
  %v1259 = vand.u32 %v1258, 4294901760
  %v1260 = vsub.f32 %v1258, %v1259
  %v1261 = vand.u32 %v1260, 4294901760
  %1262 = vmatmul.mubr.f32.gmra.mrb[0].mxu0 %v1261
  %v1263 = vpop.f32.mrb[0].mxu0
  %v1264 = vadd.f32 0.0, %v1263
  %v1265 = vpop.f32.mrb[0].mxu0
  %1266 = vmatprep.mubr.f32.mxu0 0.0
  %v1267 = vand.u32 %v1080, 4294901760
  %v1268 = vsub.f32 %v1080, %v1267
  %v1269 = vand.u32 %v1268, 4294901760
  %v1270 = vsub.f32 %v1268, %v1269
  %v1271 = vand.u32 %v1270, 4294901760
  %1272 = vmatmul.mubr.f32.gmra.mrb[0].mxu0 %v1271
  %v1273 = vpop.f32.mrb[0].mxu0
  %v1274 = vadd.f32 0.0, %v1273
  %v1275 = vpop.f32.mrb[0].mxu0
  %1276 = vmatprep.mubr.f32.mxu0 0.0
  %v1277 = vand.u32 %v1083, 4294901760
  %v1278 = vsub.f32 %v1083, %v1277
  %v1279 = vand.u32 %v1278, 4294901760
  %v1280 = vsub.f32 %v1278, %v1279
  %v1281 = vand.u32 %v1280, 4294901760
  %1282 = vmatmul.mubr.f32.gmra.mrb[0].mxu0 %v1281
  %v1283 = vpop.f32.mrb[0].mxu0
  %v1284 = vadd.f32 0.0, %v1283
  %v1285 = vpop.f32.mrb[0].mxu0
  %1286 = vmatprep.mubr.f32.mxu0 0.0
  %v1287 = vand.u32 %v1086, 4294901760
  %v1288 = vsub.f32 %v1086, %v1287
  %v1289 = vand.u32 %v1288, 4294901760
  %v1290 = vsub.f32 %v1288, %v1289
  %v1291 = vand.u32 %v1290, 4294901760
  %1292 = vmatmul.mubr.f32.gmra.mrb[0].mxu0 %v1291
  %v1293 = vpop.f32.mrb[0].mxu0
  %v1294 = vadd.f32 0.0, %v1293
  %v1295 = vpop.f32.mrb[0].mxu0
  %1296 = vmatprep.mubr.f32.mxu0 0.0
  %v1297 = vand.u32 %v1089, 4294901760
  %v1298 = vsub.f32 %v1089, %v1297
  %v1299 = vand.u32 %v1298, 4294901760
  %v1300 = vsub.f32 %v1298, %v1299
  %v1301 = vand.u32 %v1300, 4294901760
  %1302 = vmatmul.mubr.f32.gmra.mrb[0].mxu0 %v1301
  %v1303 = vpop.f32.mrb[0].mxu0
  %v1304 = vadd.f32 0.0, %v1303
  %v1305 = vpop.f32.mrb[0].mxu0
  %1306 = vmatprep.mubr.f32.mxu0 0.0
  %v1307 = vand.u32 %v1092, 4294901760
  %v1308 = vsub.f32 %v1092, %v1307
  %v1309 = vand.u32 %v1308, 4294901760
  %v1310 = vsub.f32 %v1308, %v1309
  %v1311 = vand.u32 %v1310, 4294901760
  %1312 = vmatmul.mubr.f32.gmra.mrb[0].mxu0 %v1311
  %v1313 = vpop.f32.mrb[0].mxu0
  %v1314 = vadd.f32 0.0, %v1313
  %v1315 = vpop.f32.mrb[0].mxu0
  %1316 = vmatprep.mubr.f32.mxu0 0.0
  %v1317 = vand.u32 %v1095, 4294901760
  %v1318 = vsub.f32 %v1095, %v1317
  %v1319 = vand.u32 %v1318, 4294901760
  %v1320 = vsub.f32 %v1318, %v1319
  %v1321 = vand.u32 %v1320, 4294901760
  %1322 = vmatmul.mubr.f32.gmra.mrb[0].mxu0 %v1321
  %v1323 = vpop.f32.mrb[0].mxu0
  %v1324 = vadd.f32 0.0, %v1323
  %v1325 = vpop.f32.mrb[0].mxu0
  %1326 = vmatprep.mubr.f32.mxu0 0.0
  %v1327 = vand.u32 %v1098, 4294901760
  %v1328 = vsub.f32 %v1098, %v1327
  %v1329 = vand.u32 %v1328, 4294901760
  %v1330 = vsub.f32 %v1328, %v1329
  %v1331 = vand.u32 %v1330, 4294901760
  %1332 = vmatmul.mubr.f32.gmra.mrb[0].mxu0 %v1331
  %v1333 = vpop.f32.mrb[0].mxu0
  %v1334 = vadd.f32 0.0, %v1333
  %v1335 = vpop.f32.mrb[0].mxu0
  %1336 = vmatprep.mubr.f32.mxu0 0.0
  %v1337 = vand.u32 %v1101, 4294901760
  %v1338 = vsub.f32 %v1101, %v1337
  %v1339 = vand.u32 %v1338, 4294901760
  %v1340 = vsub.f32 %v1338, %v1339
  %v1341 = vand.u32 %v1340, 4294901760
  %1342 = vmatmul.mubr.f32.gmra.mrb[0].mxu0 %v1341
  %v1343 = vpop.f32.mrb[0].mxu0
  %v1344 = vadd.f32 0.0, %v1343
  %v1345 = vpop.f32.mrb[0].mxu0
  %1346 = vmatprep.mubr.f32.mxu0 0.0
  %v1347 = vand.u32 %v1104, 4294901760
  %v1348 = vsub.f32 %v1104, %v1347
  %v1349 = vand.u32 %v1348, 4294901760
  %v1350 = vsub.f32 %v1348, %v1349
  %v1351 = vand.u32 %v1350, 4294901760
  %1352 = vmatmul.mubr.f32.gmra.mrb[0].mxu0 %v1351
  %v1353 = vpop.f32.mrb[0].mxu0
  %v1354 = vadd.f32 0.0, %v1353
  %v1355 = vpop.f32.mrb[0].mxu0
  %1356 = vdwg.mxu0
  %1357 = vmatprep.subr.mxu0 0.0
  %v1358 = vand.u32 %v520, 4294901760
  %v1359 = vsub.f32 %v520, %v1358
  %v1360 = vand.u32 %v1359, 4294901760
  %v1361 = vsub.f32 %v1359, %v1360
  %v1362 = vand.u32 %v1361, 4294901760
  %1363 = vmatpush1.msra.mxu0 %v1362
  %1364 = vmatprep.subr.mxu0 0.0
  %v1365 = vand.u32 %v1108, 4294901760
  %v1366 = vsub.f32 %v1108, %v1365
  %v1367 = vand.u32 %v1366, 4294901760
  %v1368 = vsub.f32 %v1366, %v1367
  %v1369 = vand.u32 %v1368, 4294901760
  %1370 = vmatpush1.msra.mxu0 %v1369
  %1371 = vmatprep.subr.mxu0 0.0
  %1372 = vmatpush1.msra.mxu0 0.0
  %1373 = vmatprep.subr.mxu0 0.0
  %1374 = vmatpush1.msra.mxu0 0.0
  %1375 = vmatprep.subr.mxu0 0.0
  %1376 = vmatpush1.msra.mxu0 0.0
  %1377 = vmatprep.subr.mxu0 0.0
  %1378 = vmatpush1.msra.mxu0 0.0
  %1379 = vmatprep.subr.mxu0 0.0
  %1380 = vmatpush1.msra.mxu0 0.0
  %1381 = vmatprep.subr.mxu0 0.0
  %1382 = vmatpush1.msra.mxu0 0.0
  %1383 = vmatprep.subr.mxu0 0.0
  %1384 = vmatpush1.msra.mxu0 0.0
  %1385 = vmatprep.subr.mxu0 0.0
  %1386 = vmatpush1.msra.mxu0 0.0
  %1387 = vmatprep.subr.mxu0 0.0
  %1388 = vmatpush1.msra.mxu0 0.0
  %1389 = vmatprep.subr.mxu0 0.0
  %1390 = vmatpush1.msra.mxu0 0.0
  %1391 = vmatprep.subr.mxu0 0.0
  %1392 = vmatpush1.msra.mxu0 0.0
  %1393 = vmatprep.subr.mxu0 0.0
  %1394 = vmatpush1.msra.mxu0 0.0
  %1395 = vmatprep.subr.mxu0 0.0
  %1396 = vmatpush1.msra.mxu0 0.0
  %1397 = vmatprep.subr.mxu0 0.0
  %1398 = vmatpush1.msra.mxu0 0.0
  %1399 = vmatprep.subr.mxu0 0.0
  %1400 = vmatpush1.msra.mxu0 0.0
  %1401 = vmatprep.subr.mxu0 0.0
  %1402 = vmatpush1.msra.mxu0 0.0
  %1403 = vmatprep.subr.mxu0 0.0
  %1404 = vmatpush1.msra.mxu0 0.0
  %1405 = vmatprep.subr.mxu0 0.0
  %1406 = vmatpush1.msra.mxu0 0.0
  %1407 = vmatprep.subr.mxu0 0.0
  %1408 = vmatpush1.msra.mxu0 0.0
  %1409 = vmatprep.subr.mxu0 0.0
  %1410 = vmatpush1.msra.mxu0 0.0
  %1411 = vmatprep.subr.mxu0 0.0
  %1412 = vmatpush1.msra.mxu0 0.0
  %1413 = vmatprep.subr.mxu0 0.0
  %1414 = vmatpush1.msra.mxu0 0.0
  %1415 = vmatprep.subr.mxu0 0.0
  %1416 = vmatpush1.msra.mxu0 0.0
  %1417 = vmatprep.subr.mxu0 0.0
  %1418 = vmatpush1.msra.mxu0 0.0
  %1419 = vmatprep.subr.mxu0 0.0
  %1420 = vmatpush1.msra.mxu0 0.0
  %1421 = vmatprep.subr.mxu0 0.0
  %1422 = vmatpush1.msra.mxu0 0.0
  %1423 = vmatprep.subr.mxu0 0.0
  %1424 = vmatpush1.msra.mxu0 0.0
  %1425 = vmatprep.subr.mxu0 0.0
  %1426 = vmatpush1.msra.mxu0 0.0
  %1427 = vmatprep.subr.mxu0 0.0
  %1428 = vmatpush1.msra.mxu0 0.0
  %1429 = vmatprep.subr.mxu0 0.0
  %1430 = vmatpush1.msra.mxu0 0.0
  %1431 = vmatprep.mubr.f32.mxu0 0.0
  %v1432 = vand.u32 %v1053, 4294901760
  %1433 = vmatmul.mubr.f32.gmra.mrb[0].mxu0 %v1432
  %v1434 = vpop.f32.mrb[0].mxu0
  %v1435 = vadd.f32 %v1184, %v1434
  %v1436 = vpop.f32.mrb[0].mxu0
  %1437 = vmatprep.mubr.f32.mxu0 0.0
  %v1438 = vand.u32 %v1056, 4294901760
  %1439 = vmatmul.mubr.f32.gmra.mrb[0].mxu0 %v1438
  %v1440 = vpop.f32.mrb[0].mxu0
  %v1441 = vadd.f32 %v1194, %v1440
  %v1442 = vpop.f32.mrb[0].mxu0
  %1443 = vmatprep.mubr.f32.mxu0 0.0
  %v1444 = vand.u32 %v1059, 4294901760
  %1445 = vmatmul.mubr.f32.gmra.mrb[0].mxu0 %v1444
  %v1446 = vpop.f32.mrb[0].mxu0
  %v1447 = vadd.f32 %v1204, %v1446
  %v1448 = vpop.f32.mrb[0].mxu0
  %1449 = vmatprep.mubr.f32.mxu0 0.0
  %v1450 = vand.u32 %v1062, 4294901760
  %1451 = vmatmul.mubr.f32.gmra.mrb[0].mxu0 %v1450
  %v1452 = vpop.f32.mrb[0].mxu0
  %v1453 = vadd.f32 %v1214, %v1452
  %v1454 = vpop.f32.mrb[0].mxu0
  %1455 = vmatprep.mubr.f32.mxu0 0.0
  %v1456 = vand.u32 %v1065, 4294901760
  %1457 = vmatmul.mubr.f32.gmra.mrb[0].mxu0 %v1456
  %v1458 = vpop.f32.mrb[0].mxu0
  %v1459 = vadd.f32 %v1224, %v1458
  %v1460 = vpop.f32.mrb[0].mxu0
  %1461 = vmatprep.mubr.f32.mxu0 0.0
  %v1462 = vand.u32 %v1068, 4294901760
  %1463 = vmatmul.mubr.f32.gmra.mrb[0].mxu0 %v1462
  %v1464 = vpop.f32.mrb[0].mxu0
  %v1465 = vadd.f32 %v1234, %v1464
  %v1466 = vpop.f32.mrb[0].mxu0
  %1467 = vmatprep.mubr.f32.mxu0 0.0
  %v1468 = vand.u32 %v1071, 4294901760
  %1469 = vmatmul.mubr.f32.gmra.mrb[0].mxu0 %v1468
  %v1470 = vpop.f32.mrb[0].mxu0
  %v1471 = vadd.f32 %v1244, %v1470
  %v1472 = vpop.f32.mrb[0].mxu0
  %1473 = vmatprep.mubr.f32.mxu0 0.0
  %v1474 = vand.u32 %v1074, 4294901760
  %1475 = vmatmul.mubr.f32.gmra.mrb[0].mxu0 %v1474
  %v1476 = vpop.f32.mrb[0].mxu0
  %v1477 = vadd.f32 %v1254, %v1476
  %v1478 = vpop.f32.mrb[0].mxu0
  %1479 = vmatprep.mubr.f32.mxu0 0.0
  %v1480 = vand.u32 %v1077, 4294901760
  %1481 = vmatmul.mubr.f32.gmra.mrb[0].mxu0 %v1480
  %v1482 = vpop.f32.mrb[0].mxu0
  %v1483 = vadd.f32 %v1264, %v1482
  %v1484 = vpop.f32.mrb[0].mxu0
  %1485 = vmatprep.mubr.f32.mxu0 0.0
  %v1486 = vand.u32 %v1080, 4294901760
  %1487 = vmatmul.mubr.f32.gmra.mrb[0].mxu0 %v1486
  %v1488 = vpop.f32.mrb[0].mxu0
  %v1489 = vadd.f32 %v1274, %v1488
  %v1490 = vpop.f32.mrb[0].mxu0
  %1491 = vmatprep.mubr.f32.mxu0 0.0
  %v1492 = vand.u32 %v1083, 4294901760
  %1493 = vmatmul.mubr.f32.gmra.mrb[0].mxu0 %v1492
  %v1494 = vpop.f32.mrb[0].mxu0
  %v1495 = vadd.f32 %v1284, %v1494
  %v1496 = vpop.f32.mrb[0].mxu0
  %1497 = vmatprep.mubr.f32.mxu0 0.0
  %v1498 = vand.u32 %v1086, 4294901760
  %1499 = vmatmul.mubr.f32.gmra.mrb[0].mxu0 %v1498
  %v1500 = vpop.f32.mrb[0].mxu0
  %v1501 = vadd.f32 %v1294, %v1500
  %v1502 = vpop.f32.mrb[0].mxu0
  %1503 = vmatprep.mubr.f32.mxu0 0.0
  %v1504 = vand.u32 %v1089, 4294901760
  %1505 = vmatmul.mubr.f32.gmra.mrb[0].mxu0 %v1504
  %v1506 = vpop.f32.mrb[0].mxu0
  %v1507 = vadd.f32 %v1304, %v1506
  %v1508 = vpop.f32.mrb[0].mxu0
  %1509 = vmatprep.mubr.f32.mxu0 0.0
  %v1510 = vand.u32 %v1092, 4294901760
  %1511 = vmatmul.mubr.f32.gmra.mrb[0].mxu0 %v1510
  %v1512 = vpop.f32.mrb[0].mxu0
  %v1513 = vadd.f32 %v1314, %v1512
  %v1514 = vpop.f32.mrb[0].mxu0
  %1515 = vmatprep.mubr.f32.mxu0 0.0
  %v1516 = vand.u32 %v1095, 4294901760
  %1517 = vmatmul.mubr.f32.gmra.mrb[0].mxu0 %v1516
  %v1518 = vpop.f32.mrb[0].mxu0
  %v1519 = vadd.f32 %v1324, %v1518
  %v1520 = vpop.f32.mrb[0].mxu0
  %1521 = vmatprep.mubr.f32.mxu0 0.0
  %v1522 = vand.u32 %v1098, 4294901760
  %1523 = vmatmul.mubr.f32.gmra.mrb[0].mxu0 %v1522
  %v1524 = vpop.f32.mrb[0].mxu0
  %v1525 = vadd.f32 %v1334, %v1524
  %v1526 = vpop.f32.mrb[0].mxu0
  %1527 = vmatprep.mubr.f32.mxu0 0.0
  %v1528 = vand.u32 %v1101, 4294901760
  %1529 = vmatmul.mubr.f32.gmra.mrb[0].mxu0 %v1528
  %v1530 = vpop.f32.mrb[0].mxu0
  %v1531 = vadd.f32 %v1344, %v1530
  %v1532 = vpop.f32.mrb[0].mxu0
  %1533 = vmatprep.mubr.f32.mxu0 0.0
  %v1534 = vand.u32 %v1104, 4294901760
  %1535 = vmatmul.mubr.f32.gmra.mrb[0].mxu0 %v1534
  %v1536 = vpop.f32.mrb[0].mxu0
  %v1537 = vadd.f32 %v1354, %v1536
  %v1538 = vpop.f32.mrb[0].mxu0
  %1539 = vdwg.mxu0
  %1540 = vmatprep.subr.mxu0 0.0
  %v1541 = vand.u32 %v520, 4294901760
  %v1542 = vsub.f32 %v520, %v1541
  %1543 = vmatpush1.msra.mxu0 %v1542
  %1544 = vmatprep.subr.mxu0 0.0
  %v1545 = vand.u32 %v1108, 4294901760
  %v1546 = vsub.f32 %v1108, %v1545
  %1547 = vmatpush1.msra.mxu0 %v1546
  %1548 = vmatprep.subr.mxu0 0.0
  %1549 = vmatpush1.msra.mxu0 0.0
  %1550 = vmatprep.subr.mxu0 0.0
  %1551 = vmatpush1.msra.mxu0 0.0
  %1552 = vmatprep.subr.mxu0 0.0
  %1553 = vmatpush1.msra.mxu0 0.0
  %1554 = vmatprep.subr.mxu0 0.0
  %1555 = vmatpush1.msra.mxu0 0.0
  %1556 = vmatprep.subr.mxu0 0.0
  %1557 = vmatpush1.msra.mxu0 0.0
  %1558 = vmatprep.subr.mxu0 0.0
  %1559 = vmatpush1.msra.mxu0 0.0
  %1560 = vmatprep.subr.mxu0 0.0
  %1561 = vmatpush1.msra.mxu0 0.0
  %1562 = vmatprep.subr.mxu0 0.0
  %1563 = vmatpush1.msra.mxu0 0.0
  %1564 = vmatprep.subr.mxu0 0.0
  %1565 = vmatpush1.msra.mxu0 0.0
  %1566 = vmatprep.subr.mxu0 0.0
  %1567 = vmatpush1.msra.mxu0 0.0
  %1568 = vmatprep.subr.mxu0 0.0
  %1569 = vmatpush1.msra.mxu0 0.0
  %1570 = vmatprep.subr.mxu0 0.0
  %1571 = vmatpush1.msra.mxu0 0.0
  %1572 = vmatprep.subr.mxu0 0.0
  %1573 = vmatpush1.msra.mxu0 0.0
  %1574 = vmatprep.subr.mxu0 0.0
  %1575 = vmatpush1.msra.mxu0 0.0
  %1576 = vmatprep.subr.mxu0 0.0
  %1577 = vmatpush1.msra.mxu0 0.0
  %1578 = vmatprep.subr.mxu0 0.0
  %1579 = vmatpush1.msra.mxu0 0.0
  %1580 = vmatprep.subr.mxu0 0.0
  %1581 = vmatpush1.msra.mxu0 0.0
  %1582 = vmatprep.subr.mxu0 0.0
  %1583 = vmatpush1.msra.mxu0 0.0
  %1584 = vmatprep.subr.mxu0 0.0
  %1585 = vmatpush1.msra.mxu0 0.0
  %1586 = vmatprep.subr.mxu0 0.0
  %1587 = vmatpush1.msra.mxu0 0.0
  %1588 = vmatprep.subr.mxu0 0.0
  %1589 = vmatpush1.msra.mxu0 0.0
  %1590 = vmatprep.subr.mxu0 0.0
  %1591 = vmatpush1.msra.mxu0 0.0
  %1592 = vmatprep.subr.mxu0 0.0
  %1593 = vmatpush1.msra.mxu0 0.0
  %1594 = vmatprep.subr.mxu0 0.0
  %1595 = vmatpush1.msra.mxu0 0.0
  %1596 = vmatprep.subr.mxu0 0.0
  %1597 = vmatpush1.msra.mxu0 0.0
  %1598 = vmatprep.subr.mxu0 0.0
  %1599 = vmatpush1.msra.mxu0 0.0
  %1600 = vmatprep.subr.mxu0 0.0
  %1601 = vmatpush1.msra.mxu0 0.0
  %1602 = vmatprep.subr.mxu0 0.0
  %1603 = vmatpush1.msra.mxu0 0.0
  %1604 = vmatprep.subr.mxu0 0.0
  %1605 = vmatpush1.msra.mxu0 0.0
  %1606 = vmatprep.subr.mxu0 0.0
  %1607 = vmatpush1.msra.mxu0 0.0
  %1608 = vmatprep.mubr.f32.mxu0 0.0
  %v1609 = vand.u32 %v1053, 4294901760
  %v1610 = vsub.f32 %v1053, %v1609
  %1611 = vmatmul.mubr.f32.gmra.mrb[0].mxu0 %v1610
  %v1612 = vpop.f32.mrb[0].mxu0
  %v1613 = vadd.f32 %v1435, %v1612
  %v1614 = vpop.f32.mrb[0].mxu0
  %1615 = vmatprep.mubr.f32.mxu0 0.0
  %v1616 = vand.u32 %v1056, 4294901760
  %v1617 = vsub.f32 %v1056, %v1616
  %1618 = vmatmul.mubr.f32.gmra.mrb[0].mxu0 %v1617
  %v1619 = vpop.f32.mrb[0].mxu0
  %v1620 = vadd.f32 %v1441, %v1619
  %v1621 = vpop.f32.mrb[0].mxu0
  %1622 = vmatprep.mubr.f32.mxu0 0.0
  %v1623 = vand.u32 %v1059, 4294901760
  %v1624 = vsub.f32 %v1059, %v1623
  %1625 = vmatmul.mubr.f32.gmra.mrb[0].mxu0 %v1624
  %v1626 = vpop.f32.mrb[0].mxu0
  %v1627 = vadd.f32 %v1447, %v1626
  %v1628 = vpop.f32.mrb[0].mxu0
  %1629 = vmatprep.mubr.f32.mxu0 0.0
  %v1630 = vand.u32 %v1062, 4294901760
  %v1631 = vsub.f32 %v1062, %v1630
  %1632 = vmatmul.mubr.f32.gmra.mrb[0].mxu0 %v1631
  %v1633 = vpop.f32.mrb[0].mxu0
  %v1634 = vadd.f32 %v1453, %v1633
  %v1635 = vpop.f32.mrb[0].mxu0
  %1636 = vmatprep.mubr.f32.mxu0 0.0
  %v1637 = vand.u32 %v1065, 4294901760
  %v1638 = vsub.f32 %v1065, %v1637
  %1639 = vmatmul.mubr.f32.gmra.mrb[0].mxu0 %v1638
  %v1640 = vpop.f32.mrb[0].mxu0
  %v1641 = vadd.f32 %v1459, %v1640
  %v1642 = vpop.f32.mrb[0].mxu0
  %1643 = vmatprep.mubr.f32.mxu0 0.0
  %v1644 = vand.u32 %v1068, 4294901760
  %v1645 = vsub.f32 %v1068, %v1644
  %1646 = vmatmul.mubr.f32.gmra.mrb[0].mxu0 %v1645
  %v1647 = vpop.f32.mrb[0].mxu0
  %v1648 = vadd.f32 %v1465, %v1647
  %v1649 = vpop.f32.mrb[0].mxu0
  %1650 = vmatprep.mubr.f32.mxu0 0.0
  %v1651 = vand.u32 %v1071, 4294901760
  %v1652 = vsub.f32 %v1071, %v1651
  %1653 = vmatmul.mubr.f32.gmra.mrb[0].mxu0 %v1652
  %v1654 = vpop.f32.mrb[0].mxu0
  %v1655 = vadd.f32 %v1471, %v1654
  %v1656 = vpop.f32.mrb[0].mxu0
  %1657 = vmatprep.mubr.f32.mxu0 0.0
  %v1658 = vand.u32 %v1074, 4294901760
  %v1659 = vsub.f32 %v1074, %v1658
  %1660 = vmatmul.mubr.f32.gmra.mrb[0].mxu0 %v1659
  %v1661 = vpop.f32.mrb[0].mxu0
  %v1662 = vadd.f32 %v1477, %v1661
  %v1663 = vpop.f32.mrb[0].mxu0
  %1664 = vmatprep.mubr.f32.mxu0 0.0
  %v1665 = vand.u32 %v1077, 4294901760
  %v1666 = vsub.f32 %v1077, %v1665
  %1667 = vmatmul.mubr.f32.gmra.mrb[0].mxu0 %v1666
  %v1668 = vpop.f32.mrb[0].mxu0
  %v1669 = vadd.f32 %v1483, %v1668
  %v1670 = vpop.f32.mrb[0].mxu0
  %1671 = vmatprep.mubr.f32.mxu0 0.0
  %v1672 = vand.u32 %v1080, 4294901760
  %v1673 = vsub.f32 %v1080, %v1672
  %1674 = vmatmul.mubr.f32.gmra.mrb[0].mxu0 %v1673
  %v1675 = vpop.f32.mrb[0].mxu0
  %v1676 = vadd.f32 %v1489, %v1675
  %v1677 = vpop.f32.mrb[0].mxu0
  %1678 = vmatprep.mubr.f32.mxu0 0.0
  %v1679 = vand.u32 %v1083, 4294901760
  %v1680 = vsub.f32 %v1083, %v1679
  %1681 = vmatmul.mubr.f32.gmra.mrb[0].mxu0 %v1680
  %v1682 = vpop.f32.mrb[0].mxu0
  %v1683 = vadd.f32 %v1495, %v1682
  %v1684 = vpop.f32.mrb[0].mxu0
  %1685 = vmatprep.mubr.f32.mxu0 0.0
  %v1686 = vand.u32 %v1086, 4294901760
  %v1687 = vsub.f32 %v1086, %v1686
  %1688 = vmatmul.mubr.f32.gmra.mrb[0].mxu0 %v1687
  %v1689 = vpop.f32.mrb[0].mxu0
  %v1690 = vadd.f32 %v1501, %v1689
  %v1691 = vpop.f32.mrb[0].mxu0
  %1692 = vmatprep.mubr.f32.mxu0 0.0
  %v1693 = vand.u32 %v1089, 4294901760
  %v1694 = vsub.f32 %v1089, %v1693
  %1695 = vmatmul.mubr.f32.gmra.mrb[0].mxu0 %v1694
  %v1696 = vpop.f32.mrb[0].mxu0
  %v1697 = vadd.f32 %v1507, %v1696
  %v1698 = vpop.f32.mrb[0].mxu0
  %1699 = vmatprep.mubr.f32.mxu0 0.0
  %v1700 = vand.u32 %v1092, 4294901760
  %v1701 = vsub.f32 %v1092, %v1700
  %1702 = vmatmul.mubr.f32.gmra.mrb[0].mxu0 %v1701
  %v1703 = vpop.f32.mrb[0].mxu0
  %v1704 = vadd.f32 %v1513, %v1703
  %v1705 = vpop.f32.mrb[0].mxu0
  %1706 = vmatprep.mubr.f32.mxu0 0.0
  %v1707 = vand.u32 %v1095, 4294901760
  %v1708 = vsub.f32 %v1095, %v1707
  %1709 = vmatmul.mubr.f32.gmra.mrb[0].mxu0 %v1708
  %v1710 = vpop.f32.mrb[0].mxu0
  %v1711 = vadd.f32 %v1519, %v1710
  %v1712 = vpop.f32.mrb[0].mxu0
  %1713 = vmatprep.mubr.f32.mxu0 0.0
  %v1714 = vand.u32 %v1098, 4294901760
  %v1715 = vsub.f32 %v1098, %v1714
  %1716 = vmatmul.mubr.f32.gmra.mrb[0].mxu0 %v1715
  %v1717 = vpop.f32.mrb[0].mxu0
  %v1718 = vadd.f32 %v1525, %v1717
  %v1719 = vpop.f32.mrb[0].mxu0
  %1720 = vmatprep.mubr.f32.mxu0 0.0
  %v1721 = vand.u32 %v1101, 4294901760
  %v1722 = vsub.f32 %v1101, %v1721
  %1723 = vmatmul.mubr.f32.gmra.mrb[0].mxu0 %v1722
  %v1724 = vpop.f32.mrb[0].mxu0
  %v1725 = vadd.f32 %v1531, %v1724
  %v1726 = vpop.f32.mrb[0].mxu0
  %1727 = vmatprep.mubr.f32.mxu0 0.0
  %v1728 = vand.u32 %v1104, 4294901760
  %v1729 = vsub.f32 %v1104, %v1728
  %1730 = vmatmul.mubr.f32.gmra.mrb[0].mxu0 %v1729
  %v1731 = vpop.f32.mrb[0].mxu0
  %v1732 = vadd.f32 %v1537, %v1731
  %v1733 = vpop.f32.mrb[0].mxu0
  %1734 = vdwg.mxu0
  %1735 = vmatprep.subr.mxu0 0.0
  %v1736 = vand.u32 %v520, 4294901760
  %1737 = vmatpush1.msra.mxu0 %v1736
  %1738 = vmatprep.subr.mxu0 0.0
  %v1739 = vand.u32 %v1108, 4294901760
  %1740 = vmatpush1.msra.mxu0 %v1739
  %1741 = vmatprep.subr.mxu0 0.0
  %1742 = vmatpush1.msra.mxu0 0.0
  %1743 = vmatprep.subr.mxu0 0.0
  %1744 = vmatpush1.msra.mxu0 0.0
  %1745 = vmatprep.subr.mxu0 0.0
  %1746 = vmatpush1.msra.mxu0 0.0
  %1747 = vmatprep.subr.mxu0 0.0
  %1748 = vmatpush1.msra.mxu0 0.0
  %1749 = vmatprep.subr.mxu0 0.0
  %1750 = vmatpush1.msra.mxu0 0.0
  %1751 = vmatprep.subr.mxu0 0.0
  %1752 = vmatpush1.msra.mxu0 0.0
  %1753 = vmatprep.subr.mxu0 0.0
  %1754 = vmatpush1.msra.mxu0 0.0
  %1755 = vmatprep.subr.mxu0 0.0
  %1756 = vmatpush1.msra.mxu0 0.0
  %1757 = vmatprep.subr.mxu0 0.0
  %1758 = vmatpush1.msra.mxu0 0.0
  %1759 = vmatprep.subr.mxu0 0.0
  %1760 = vmatpush1.msra.mxu0 0.0
  %1761 = vmatprep.subr.mxu0 0.0
  %1762 = vmatpush1.msra.mxu0 0.0
  %1763 = vmatprep.subr.mxu0 0.0
  %1764 = vmatpush1.msra.mxu0 0.0
  %1765 = vmatprep.subr.mxu0 0.0
  %1766 = vmatpush1.msra.mxu0 0.0
  %1767 = vmatprep.subr.mxu0 0.0
  %1768 = vmatpush1.msra.mxu0 0.0
  %1769 = vmatprep.subr.mxu0 0.0
  %1770 = vmatpush1.msra.mxu0 0.0
  %1771 = vmatprep.subr.mxu0 0.0
  %1772 = vmatpush1.msra.mxu0 0.0
  %1773 = vmatprep.subr.mxu0 0.0
  %1774 = vmatpush1.msra.mxu0 0.0
  %1775 = vmatprep.subr.mxu0 0.0
  %1776 = vmatpush1.msra.mxu0 0.0
  %1777 = vmatprep.subr.mxu0 0.0
  %1778 = vmatpush1.msra.mxu0 0.0
  %1779 = vmatprep.subr.mxu0 0.0
  %1780 = vmatpush1.msra.mxu0 0.0
  %1781 = vmatprep.subr.mxu0 0.0
  %1782 = vmatpush1.msra.mxu0 0.0
  %1783 = vmatprep.subr.mxu0 0.0
  %1784 = vmatpush1.msra.mxu0 0.0
  %1785 = vmatprep.subr.mxu0 0.0
  %1786 = vmatpush1.msra.mxu0 0.0
  %1787 = vmatprep.subr.mxu0 0.0
  %1788 = vmatpush1.msra.mxu0 0.0
  %1789 = vmatprep.subr.mxu0 0.0
  %1790 = vmatpush1.msra.mxu0 0.0
  %1791 = vmatprep.subr.mxu0 0.0
  %1792 = vmatpush1.msra.mxu0 0.0
  %1793 = vmatprep.subr.mxu0 0.0
  %1794 = vmatpush1.msra.mxu0 0.0
  %1795 = vmatprep.subr.mxu0 0.0
  %1796 = vmatpush1.msra.mxu0 0.0
  %1797 = vmatprep.subr.mxu0 0.0
  %1798 = vmatpush1.msra.mxu0 0.0
  %1799 = vmatprep.subr.mxu0 0.0
  %1800 = vmatpush1.msra.mxu0 0.0
  %1801 = vmatprep.mubr.f32.mxu0 0.0
  %v1802 = vand.u32 %v1053, 4294901760
  %v1803 = vsub.f32 %v1053, %v1802
  %v1804 = vand.u32 %v1803, 4294901760
  %1805 = vmatmul.mubr.f32.gmra.mrb[0].mxu0 %v1804
  %v1806 = vpop.f32.mrb[0].mxu0
  %v1807 = vadd.f32 %v1613, %v1806
  %v1808 = vpop.f32.mrb[0].mxu0
  %1809 = vmatprep.mubr.f32.mxu0 0.0
  %v1810 = vand.u32 %v1056, 4294901760
  %v1811 = vsub.f32 %v1056, %v1810
  %v1812 = vand.u32 %v1811, 4294901760
  %1813 = vmatmul.mubr.f32.gmra.mrb[0].mxu0 %v1812
  %v1814 = vpop.f32.mrb[0].mxu0
  %v1815 = vadd.f32 %v1620, %v1814
  %v1816 = vpop.f32.mrb[0].mxu0
  %1817 = vmatprep.mubr.f32.mxu0 0.0
  %v1818 = vand.u32 %v1059, 4294901760
  %v1819 = vsub.f32 %v1059, %v1818
  %v1820 = vand.u32 %v1819, 4294901760
  %1821 = vmatmul.mubr.f32.gmra.mrb[0].mxu0 %v1820
  %v1822 = vpop.f32.mrb[0].mxu0
  %v1823 = vadd.f32 %v1627, %v1822
  %v1824 = vpop.f32.mrb[0].mxu0
  %1825 = vmatprep.mubr.f32.mxu0 0.0
  %v1826 = vand.u32 %v1062, 4294901760
  %v1827 = vsub.f32 %v1062, %v1826
  %v1828 = vand.u32 %v1827, 4294901760
  %1829 = vmatmul.mubr.f32.gmra.mrb[0].mxu0 %v1828
  %v1830 = vpop.f32.mrb[0].mxu0
  %v1831 = vadd.f32 %v1634, %v1830
  %v1832 = vpop.f32.mrb[0].mxu0
  %1833 = vmatprep.mubr.f32.mxu0 0.0
  %v1834 = vand.u32 %v1065, 4294901760
  %v1835 = vsub.f32 %v1065, %v1834
  %v1836 = vand.u32 %v1835, 4294901760
  %1837 = vmatmul.mubr.f32.gmra.mrb[0].mxu0 %v1836
  %v1838 = vpop.f32.mrb[0].mxu0
  %v1839 = vadd.f32 %v1641, %v1838
  %v1840 = vpop.f32.mrb[0].mxu0
  %1841 = vmatprep.mubr.f32.mxu0 0.0
  %v1842 = vand.u32 %v1068, 4294901760
  %v1843 = vsub.f32 %v1068, %v1842
  %v1844 = vand.u32 %v1843, 4294901760
  %1845 = vmatmul.mubr.f32.gmra.mrb[0].mxu0 %v1844
  %v1846 = vpop.f32.mrb[0].mxu0
  %v1847 = vadd.f32 %v1648, %v1846
  %v1848 = vpop.f32.mrb[0].mxu0
  %1849 = vmatprep.mubr.f32.mxu0 0.0
  %v1850 = vand.u32 %v1071, 4294901760
  %v1851 = vsub.f32 %v1071, %v1850
  %v1852 = vand.u32 %v1851, 4294901760
  %1853 = vmatmul.mubr.f32.gmra.mrb[0].mxu0 %v1852
  %v1854 = vpop.f32.mrb[0].mxu0
  %v1855 = vadd.f32 %v1655, %v1854
  %v1856 = vpop.f32.mrb[0].mxu0
  %1857 = vmatprep.mubr.f32.mxu0 0.0
  %v1858 = vand.u32 %v1074, 4294901760
  %v1859 = vsub.f32 %v1074, %v1858
  %v1860 = vand.u32 %v1859, 4294901760
  %1861 = vmatmul.mubr.f32.gmra.mrb[0].mxu0 %v1860
  %v1862 = vpop.f32.mrb[0].mxu0
  %v1863 = vadd.f32 %v1662, %v1862
  %v1864 = vpop.f32.mrb[0].mxu0
  %1865 = vmatprep.mubr.f32.mxu0 0.0
  %v1866 = vand.u32 %v1077, 4294901760
  %v1867 = vsub.f32 %v1077, %v1866
  %v1868 = vand.u32 %v1867, 4294901760
  %1869 = vmatmul.mubr.f32.gmra.mrb[0].mxu0 %v1868
  %v1870 = vpop.f32.mrb[0].mxu0
  %v1871 = vadd.f32 %v1669, %v1870
  %v1872 = vpop.f32.mrb[0].mxu0
  %1873 = vmatprep.mubr.f32.mxu0 0.0
  %v1874 = vand.u32 %v1080, 4294901760
  %v1875 = vsub.f32 %v1080, %v1874
  %v1876 = vand.u32 %v1875, 4294901760
  %1877 = vmatmul.mubr.f32.gmra.mrb[0].mxu0 %v1876
  %v1878 = vpop.f32.mrb[0].mxu0
  %v1879 = vadd.f32 %v1676, %v1878
  %v1880 = vpop.f32.mrb[0].mxu0
  %1881 = vmatprep.mubr.f32.mxu0 0.0
  %v1882 = vand.u32 %v1083, 4294901760
  %v1883 = vsub.f32 %v1083, %v1882
  %v1884 = vand.u32 %v1883, 4294901760
  %1885 = vmatmul.mubr.f32.gmra.mrb[0].mxu0 %v1884
  %v1886 = vpop.f32.mrb[0].mxu0
  %v1887 = vadd.f32 %v1683, %v1886
  %v1888 = vpop.f32.mrb[0].mxu0
  %1889 = vmatprep.mubr.f32.mxu0 0.0
  %v1890 = vand.u32 %v1086, 4294901760
  %v1891 = vsub.f32 %v1086, %v1890
  %v1892 = vand.u32 %v1891, 4294901760
  %1893 = vmatmul.mubr.f32.gmra.mrb[0].mxu0 %v1892
  %v1894 = vpop.f32.mrb[0].mxu0
  %v1895 = vadd.f32 %v1690, %v1894
  %v1896 = vpop.f32.mrb[0].mxu0
  %1897 = vmatprep.mubr.f32.mxu0 0.0
  %v1898 = vand.u32 %v1089, 4294901760
  %v1899 = vsub.f32 %v1089, %v1898
  %v1900 = vand.u32 %v1899, 4294901760
  %1901 = vmatmul.mubr.f32.gmra.mrb[0].mxu0 %v1900
  %v1902 = vpop.f32.mrb[0].mxu0
  %v1903 = vadd.f32 %v1697, %v1902
  %v1904 = vpop.f32.mrb[0].mxu0
  %1905 = vmatprep.mubr.f32.mxu0 0.0
  %v1906 = vand.u32 %v1092, 4294901760
  %v1907 = vsub.f32 %v1092, %v1906
  %v1908 = vand.u32 %v1907, 4294901760
  %1909 = vmatmul.mubr.f32.gmra.mrb[0].mxu0 %v1908
  %v1910 = vpop.f32.mrb[0].mxu0
  %v1911 = vadd.f32 %v1704, %v1910
  %v1912 = vpop.f32.mrb[0].mxu0
  %1913 = vmatprep.mubr.f32.mxu0 0.0
  %v1914 = vand.u32 %v1095, 4294901760
  %v1915 = vsub.f32 %v1095, %v1914
  %v1916 = vand.u32 %v1915, 4294901760
  %1917 = vmatmul.mubr.f32.gmra.mrb[0].mxu0 %v1916
  %v1918 = vpop.f32.mrb[0].mxu0
  %v1919 = vadd.f32 %v1711, %v1918
  %v1920 = vpop.f32.mrb[0].mxu0
  %1921 = vmatprep.mubr.f32.mxu0 0.0
  %v1922 = vand.u32 %v1098, 4294901760
  %v1923 = vsub.f32 %v1098, %v1922
  %v1924 = vand.u32 %v1923, 4294901760
  %1925 = vmatmul.mubr.f32.gmra.mrb[0].mxu0 %v1924
  %v1926 = vpop.f32.mrb[0].mxu0
  %v1927 = vadd.f32 %v1718, %v1926
  %v1928 = vpop.f32.mrb[0].mxu0
  %1929 = vmatprep.mubr.f32.mxu0 0.0
  %v1930 = vand.u32 %v1101, 4294901760
  %v1931 = vsub.f32 %v1101, %v1930
  %v1932 = vand.u32 %v1931, 4294901760
  %1933 = vmatmul.mubr.f32.gmra.mrb[0].mxu0 %v1932
  %v1934 = vpop.f32.mrb[0].mxu0
  %v1935 = vadd.f32 %v1725, %v1934
  %v1936 = vpop.f32.mrb[0].mxu0
  %1937 = vmatprep.mubr.f32.mxu0 0.0
  %v1938 = vand.u32 %v1104, 4294901760
  %v1939 = vsub.f32 %v1104, %v1938
  %v1940 = vand.u32 %v1939, 4294901760
  %1941 = vmatmul.mubr.f32.gmra.mrb[0].mxu0 %v1940
  %v1942 = vpop.f32.mrb[0].mxu0
  %v1943 = vadd.f32 %v1732, %v1942
  %v1944 = vpop.f32.mrb[0].mxu0
  %1945 = vdwg.mxu0
  %1946 = vmatprep.subr.mxu0 0.0
  %v1947 = vand.u32 %v520, 4294901760
  %v1948 = vsub.f32 %v520, %v1947
  %v1949 = vand.u32 %v1948, 4294901760
  %1950 = vmatpush1.msra.mxu0 %v1949
  %1951 = vmatprep.subr.mxu0 0.0
  %v1952 = vand.u32 %v1108, 4294901760
  %v1953 = vsub.f32 %v1108, %v1952
  %v1954 = vand.u32 %v1953, 4294901760
  %1955 = vmatpush1.msra.mxu0 %v1954
  %1956 = vmatprep.subr.mxu0 0.0
  %1957 = vmatpush1.msra.mxu0 0.0
  %1958 = vmatprep.subr.mxu0 0.0
  %1959 = vmatpush1.msra.mxu0 0.0
  %1960 = vmatprep.subr.mxu0 0.0
  %1961 = vmatpush1.msra.mxu0 0.0
  %1962 = vmatprep.subr.mxu0 0.0
  %1963 = vmatpush1.msra.mxu0 0.0
  %1964 = vmatprep.subr.mxu0 0.0
  %1965 = vmatpush1.msra.mxu0 0.0
  %1966 = vmatprep.subr.mxu0 0.0
  %1967 = vmatpush1.msra.mxu0 0.0
  %1968 = vmatprep.subr.mxu0 0.0
  %1969 = vmatpush1.msra.mxu0 0.0
  %1970 = vmatprep.subr.mxu0 0.0
  %1971 = vmatpush1.msra.mxu0 0.0
  %1972 = vmatprep.subr.mxu0 0.0
  %1973 = vmatpush1.msra.mxu0 0.0
  %1974 = vmatprep.subr.mxu0 0.0
  %1975 = vmatpush1.msra.mxu0 0.0
  %1976 = vmatprep.subr.mxu0 0.0
  %1977 = vmatpush1.msra.mxu0 0.0
  %1978 = vmatprep.subr.mxu0 0.0
  %1979 = vmatpush1.msra.mxu0 0.0
  %1980 = vmatprep.subr.mxu0 0.0
  %1981 = vmatpush1.msra.mxu0 0.0
  %1982 = vmatprep.subr.mxu0 0.0
  %1983 = vmatpush1.msra.mxu0 0.0
  %1984 = vmatprep.subr.mxu0 0.0
  %1985 = vmatpush1.msra.mxu0 0.0
  %1986 = vmatprep.subr.mxu0 0.0
  %1987 = vmatpush1.msra.mxu0 0.0
  %1988 = vmatprep.subr.mxu0 0.0
  %1989 = vmatpush1.msra.mxu0 0.0
  %1990 = vmatprep.subr.mxu0 0.0
  %1991 = vmatpush1.msra.mxu0 0.0
  %1992 = vmatprep.subr.mxu0 0.0
  %1993 = vmatpush1.msra.mxu0 0.0
  %1994 = vmatprep.subr.mxu0 0.0
  %1995 = vmatpush1.msra.mxu0 0.0
  %1996 = vmatprep.subr.mxu0 0.0
  %1997 = vmatpush1.msra.mxu0 0.0
  %1998 = vmatprep.subr.mxu0 0.0
  %1999 = vmatpush1.msra.mxu0 0.0
  %2000 = vmatprep.subr.mxu0 0.0
  %2001 = vmatpush1.msra.mxu0 0.0
  %2002 = vmatprep.subr.mxu0 0.0
  %2003 = vmatpush1.msra.mxu0 0.0
  %2004 = vmatprep.subr.mxu0 0.0
  %2005 = vmatpush1.msra.mxu0 0.0
  %2006 = vmatprep.subr.mxu0 0.0
  %2007 = vmatpush1.msra.mxu0 0.0
  %2008 = vmatprep.subr.mxu0 0.0
  %2009 = vmatpush1.msra.mxu0 0.0
  %2010 = vmatprep.subr.mxu0 0.0
  %2011 = vmatpush1.msra.mxu0 0.0
  %2012 = vmatprep.subr.mxu0 0.0
  %2013 = vmatpush1.msra.mxu0 0.0
  %2014 = vmatprep.subr.mxu0 0.0
  %2015 = vmatpush1.msra.mxu0 0.0
  %2016 = vmatprep.mubr.f32.mxu0 0.0
  %v2017 = vand.u32 %v1053, 4294901760
  %2018 = vmatmul.mubr.f32.gmra.mrb[0].mxu0 %v2017
  %v2019 = vpop.f32.mrb[0].mxu0
  %v2020 = vadd.f32 %v1807, %v2019
  %v2021 = vpop.f32.mrb[0].mxu0
  %2022 = vmatprep.mubr.f32.mxu0 0.0
  %v2023 = vand.u32 %v1056, 4294901760
  %2024 = vmatmul.mubr.f32.gmra.mrb[0].mxu0 %v2023
  %v2025 = vpop.f32.mrb[0].mxu0
  %v2026 = vadd.f32 %v1815, %v2025
  %v2027 = vpop.f32.mrb[0].mxu0
  %2028 = vmatprep.mubr.f32.mxu0 0.0
  %v2029 = vand.u32 %v1059, 4294901760
  %2030 = vmatmul.mubr.f32.gmra.mrb[0].mxu0 %v2029
  %v2031 = vpop.f32.mrb[0].mxu0
  %v2032 = vadd.f32 %v1823, %v2031
  %v2033 = vpop.f32.mrb[0].mxu0
  %2034 = vmatprep.mubr.f32.mxu0 0.0
  %v2035 = vand.u32 %v1062, 4294901760
  %2036 = vmatmul.mubr.f32.gmra.mrb[0].mxu0 %v2035
  %v2037 = vpop.f32.mrb[0].mxu0
  %v2038 = vadd.f32 %v1831, %v2037
  %v2039 = vpop.f32.mrb[0].mxu0
  %2040 = vmatprep.mubr.f32.mxu0 0.0
  %v2041 = vand.u32 %v1065, 4294901760
  %2042 = vmatmul.mubr.f32.gmra.mrb[0].mxu0 %v2041
  %v2043 = vpop.f32.mrb[0].mxu0
  %v2044 = vadd.f32 %v1839, %v2043
  %v2045 = vpop.f32.mrb[0].mxu0
  %2046 = vmatprep.mubr.f32.mxu0 0.0
  %v2047 = vand.u32 %v1068, 4294901760
  %2048 = vmatmul.mubr.f32.gmra.mrb[0].mxu0 %v2047
  %v2049 = vpop.f32.mrb[0].mxu0
  %v2050 = vadd.f32 %v1847, %v2049
  %v2051 = vpop.f32.mrb[0].mxu0
  %2052 = vmatprep.mubr.f32.mxu0 0.0
  %v2053 = vand.u32 %v1071, 4294901760
  %2054 = vmatmul.mubr.f32.gmra.mrb[0].mxu0 %v2053
  %v2055 = vpop.f32.mrb[0].mxu0
  %v2056 = vadd.f32 %v1855, %v2055
  %v2057 = vpop.f32.mrb[0].mxu0
  %2058 = vmatprep.mubr.f32.mxu0 0.0
  %v2059 = vand.u32 %v1074, 4294901760
  %2060 = vmatmul.mubr.f32.gmra.mrb[0].mxu0 %v2059
  %v2061 = vpop.f32.mrb[0].mxu0
  %v2062 = vadd.f32 %v1863, %v2061
  %v2063 = vpop.f32.mrb[0].mxu0
  %2064 = vmatprep.mubr.f32.mxu0 0.0
  %v2065 = vand.u32 %v1077, 4294901760
  %2066 = vmatmul.mubr.f32.gmra.mrb[0].mxu0 %v2065
  %v2067 = vpop.f32.mrb[0].mxu0
  %v2068 = vadd.f32 %v1871, %v2067
  %v2069 = vpop.f32.mrb[0].mxu0
  %2070 = vmatprep.mubr.f32.mxu0 0.0
  %v2071 = vand.u32 %v1080, 4294901760
  %2072 = vmatmul.mubr.f32.gmra.mrb[0].mxu0 %v2071
  %v2073 = vpop.f32.mrb[0].mxu0
  %v2074 = vadd.f32 %v1879, %v2073
  %v2075 = vpop.f32.mrb[0].mxu0
  %2076 = vmatprep.mubr.f32.mxu0 0.0
  %v2077 = vand.u32 %v1083, 4294901760
  %2078 = vmatmul.mubr.f32.gmra.mrb[0].mxu0 %v2077
  %v2079 = vpop.f32.mrb[0].mxu0
  %v2080 = vadd.f32 %v1887, %v2079
  %v2081 = vpop.f32.mrb[0].mxu0
  %2082 = vmatprep.mubr.f32.mxu0 0.0
  %v2083 = vand.u32 %v1086, 4294901760
  %2084 = vmatmul.mubr.f32.gmra.mrb[0].mxu0 %v2083
  %v2085 = vpop.f32.mrb[0].mxu0
  %v2086 = vadd.f32 %v1895, %v2085
  %v2087 = vpop.f32.mrb[0].mxu0
  %2088 = vmatprep.mubr.f32.mxu0 0.0
  %v2089 = vand.u32 %v1089, 4294901760
  %2090 = vmatmul.mubr.f32.gmra.mrb[0].mxu0 %v2089
  %v2091 = vpop.f32.mrb[0].mxu0
  %v2092 = vadd.f32 %v1903, %v2091
  %v2093 = vpop.f32.mrb[0].mxu0
  %2094 = vmatprep.mubr.f32.mxu0 0.0
  %v2095 = vand.u32 %v1092, 4294901760
  %2096 = vmatmul.mubr.f32.gmra.mrb[0].mxu0 %v2095
  %v2097 = vpop.f32.mrb[0].mxu0
  %v2098 = vadd.f32 %v1911, %v2097
  %v2099 = vpop.f32.mrb[0].mxu0
  %2100 = vmatprep.mubr.f32.mxu0 0.0
  %v2101 = vand.u32 %v1095, 4294901760
  %2102 = vmatmul.mubr.f32.gmra.mrb[0].mxu0 %v2101
  %v2103 = vpop.f32.mrb[0].mxu0
  %v2104 = vadd.f32 %v1919, %v2103
  %v2105 = vpop.f32.mrb[0].mxu0
  %2106 = vmatprep.mubr.f32.mxu0 0.0
  %v2107 = vand.u32 %v1098, 4294901760
  %2108 = vmatmul.mubr.f32.gmra.mrb[0].mxu0 %v2107
  %v2109 = vpop.f32.mrb[0].mxu0
  %v2110 = vadd.f32 %v1927, %v2109
  %v2111 = vpop.f32.mrb[0].mxu0
  %2112 = vmatprep.mubr.f32.mxu0 0.0
  %v2113 = vand.u32 %v1101, 4294901760
  %2114 = vmatmul.mubr.f32.gmra.mrb[0].mxu0 %v2113
  %v2115 = vpop.f32.mrb[0].mxu0
  %v2116 = vadd.f32 %v1935, %v2115
  %v2117 = vpop.f32.mrb[0].mxu0
  %2118 = vmatprep.mubr.f32.mxu0 0.0
  %v2119 = vand.u32 %v1104, 4294901760
  %2120 = vmatmul.mubr.f32.gmra.mrb[0].mxu0 %v2119
  %v2121 = vpop.f32.mrb[0].mxu0
  %v2122 = vadd.f32 %v1943, %v2121
  %v2123 = vpop.f32.mrb[0].mxu0
  %2124 = vdwg.mxu0
  %2125 = vmatprep.subr.mxu0 0.0
  %v2126 = vand.u32 %v520, 4294901760
  %2127 = vmatpush1.msra.mxu0 %v2126
  %2128 = vmatprep.subr.mxu0 0.0
  %v2129 = vand.u32 %v1108, 4294901760
  %2130 = vmatpush1.msra.mxu0 %v2129
  %2131 = vmatprep.subr.mxu0 0.0
  %2132 = vmatpush1.msra.mxu0 0.0
  %2133 = vmatprep.subr.mxu0 0.0
  %2134 = vmatpush1.msra.mxu0 0.0
  %2135 = vmatprep.subr.mxu0 0.0
  %2136 = vmatpush1.msra.mxu0 0.0
  %2137 = vmatprep.subr.mxu0 0.0
  %2138 = vmatpush1.msra.mxu0 0.0
  %2139 = vmatprep.subr.mxu0 0.0
  %2140 = vmatpush1.msra.mxu0 0.0
  %2141 = vmatprep.subr.mxu0 0.0
  %2142 = vmatpush1.msra.mxu0 0.0
  %2143 = vmatprep.subr.mxu0 0.0
  %2144 = vmatpush1.msra.mxu0 0.0
  %2145 = vmatprep.subr.mxu0 0.0
  %2146 = vmatpush1.msra.mxu0 0.0
  %2147 = vmatprep.subr.mxu0 0.0
  %2148 = vmatpush1.msra.mxu0 0.0
  %2149 = vmatprep.subr.mxu0 0.0
  %2150 = vmatpush1.msra.mxu0 0.0
  %2151 = vmatprep.subr.mxu0 0.0
  %2152 = vmatpush1.msra.mxu0 0.0
  %2153 = vmatprep.subr.mxu0 0.0
  %2154 = vmatpush1.msra.mxu0 0.0
  %2155 = vmatprep.subr.mxu0 0.0
  %2156 = vmatpush1.msra.mxu0 0.0
  %2157 = vmatprep.subr.mxu0 0.0
  %2158 = vmatpush1.msra.mxu0 0.0
  %2159 = vmatprep.subr.mxu0 0.0
  %2160 = vmatpush1.msra.mxu0 0.0
  %2161 = vmatprep.subr.mxu0 0.0
  %2162 = vmatpush1.msra.mxu0 0.0
  %2163 = vmatprep.subr.mxu0 0.0
  %2164 = vmatpush1.msra.mxu0 0.0
  %2165 = vmatprep.subr.mxu0 0.0
  %2166 = vmatpush1.msra.mxu0 0.0
  %2167 = vmatprep.subr.mxu0 0.0
  %2168 = vmatpush1.msra.mxu0 0.0
  %2169 = vmatprep.subr.mxu0 0.0
  %2170 = vmatpush1.msra.mxu0 0.0
  %2171 = vmatprep.subr.mxu0 0.0
  %2172 = vmatpush1.msra.mxu0 0.0
  %2173 = vmatprep.subr.mxu0 0.0
  %2174 = vmatpush1.msra.mxu0 0.0
  %2175 = vmatprep.subr.mxu0 0.0
  %2176 = vmatpush1.msra.mxu0 0.0
  %2177 = vmatprep.subr.mxu0 0.0
  %2178 = vmatpush1.msra.mxu0 0.0
  %2179 = vmatprep.subr.mxu0 0.0
  %2180 = vmatpush1.msra.mxu0 0.0
  %2181 = vmatprep.subr.mxu0 0.0
  %2182 = vmatpush1.msra.mxu0 0.0
  %2183 = vmatprep.subr.mxu0 0.0
  %2184 = vmatpush1.msra.mxu0 0.0
  %2185 = vmatprep.subr.mxu0 0.0
  %2186 = vmatpush1.msra.mxu0 0.0
  %2187 = vmatprep.subr.mxu0 0.0
  %2188 = vmatpush1.msra.mxu0 0.0
  %2189 = vmatprep.subr.mxu0 0.0
  %2190 = vmatpush1.msra.mxu0 0.0
  %2191 = vmatprep.mubr.f32.mxu0 0.0
  %v2192 = vand.u32 %v1053, 4294901760
  %2193 = vmatmul.mubr.f32.gmra.mrb[0].mxu0 %v2192
  %v2194 = vpop.f32.mrb[0].mxu0
  %v2195 = vadd.f32 %v2020, %v2194
  %v2196 = vpop.f32.mrb[0].mxu0
  %2197 = vmatprep.mubr.f32.mxu0 0.0
  %v2198 = vand.u32 %v1056, 4294901760
  %2199 = vmatmul.mubr.f32.gmra.mrb[0].mxu0 %v2198
  %v2200 = vpop.f32.mrb[0].mxu0
  %v2201 = vadd.f32 %v2026, %v2200
  %v2202 = vpop.f32.mrb[0].mxu0
  %2203 = vmatprep.mubr.f32.mxu0 0.0
  %v2204 = vand.u32 %v1059, 4294901760
  %2205 = vmatmul.mubr.f32.gmra.mrb[0].mxu0 %v2204
  %v2206 = vpop.f32.mrb[0].mxu0
  %v2207 = vadd.f32 %v2032, %v2206
  %v2208 = vpop.f32.mrb[0].mxu0
  %2209 = vmatprep.mubr.f32.mxu0 0.0
  %v2210 = vand.u32 %v1062, 4294901760
  %2211 = vmatmul.mubr.f32.gmra.mrb[0].mxu0 %v2210
  %v2212 = vpop.f32.mrb[0].mxu0
  %v2213 = vadd.f32 %v2038, %v2212
  %v2214 = vpop.f32.mrb[0].mxu0
  %2215 = vmatprep.mubr.f32.mxu0 0.0
  %v2216 = vand.u32 %v1065, 4294901760
  %2217 = vmatmul.mubr.f32.gmra.mrb[0].mxu0 %v2216
  %v2218 = vpop.f32.mrb[0].mxu0
  %v2219 = vadd.f32 %v2044, %v2218
  %v2220 = vpop.f32.mrb[0].mxu0
  %2221 = vmatprep.mubr.f32.mxu0 0.0
  %v2222 = vand.u32 %v1068, 4294901760
  %2223 = vmatmul.mubr.f32.gmra.mrb[0].mxu0 %v2222
  %v2224 = vpop.f32.mrb[0].mxu0
  %v2225 = vadd.f32 %v2050, %v2224
  %v2226 = vpop.f32.mrb[0].mxu0
  %2227 = vmatprep.mubr.f32.mxu0 0.0
  %v2228 = vand.u32 %v1071, 4294901760
  %2229 = vmatmul.mubr.f32.gmra.mrb[0].mxu0 %v2228
  %v2230 = vpop.f32.mrb[0].mxu0
  %v2231 = vadd.f32 %v2056, %v2230
  %v2232 = vpop.f32.mrb[0].mxu0
  %2233 = vmatprep.mubr.f32.mxu0 0.0
  %v2234 = vand.u32 %v1074, 4294901760
  %2235 = vmatmul.mubr.f32.gmra.mrb[0].mxu0 %v2234
  %v2236 = vpop.f32.mrb[0].mxu0
  %v2237 = vadd.f32 %v2062, %v2236
  %v2238 = vpop.f32.mrb[0].mxu0
  %2239 = vmatprep.mubr.f32.mxu0 0.0
  %v2240 = vand.u32 %v1077, 4294901760
  %2241 = vmatmul.mubr.f32.gmra.mrb[0].mxu0 %v2240
  %v2242 = vpop.f32.mrb[0].mxu0
  %v2243 = vadd.f32 %v2068, %v2242
  %v2244 = vpop.f32.mrb[0].mxu0
  %2245 = vmatprep.mubr.f32.mxu0 0.0
  %v2246 = vand.u32 %v1080, 4294901760
  %2247 = vmatmul.mubr.f32.gmra.mrb[0].mxu0 %v2246
  %v2248 = vpop.f32.mrb[0].mxu0
  %v2249 = vadd.f32 %v2074, %v2248
  %v2250 = vpop.f32.mrb[0].mxu0
  %2251 = vmatprep.mubr.f32.mxu0 0.0
  %v2252 = vand.u32 %v1083, 4294901760
  %2253 = vmatmul.mubr.f32.gmra.mrb[0].mxu0 %v2252
  %v2254 = vpop.f32.mrb[0].mxu0
  %v2255 = vadd.f32 %v2080, %v2254
  %v2256 = vpop.f32.mrb[0].mxu0
  %2257 = vmatprep.mubr.f32.mxu0 0.0
  %v2258 = vand.u32 %v1086, 4294901760
  %2259 = vmatmul.mubr.f32.gmra.mrb[0].mxu0 %v2258
  %v2260 = vpop.f32.mrb[0].mxu0
  %v2261 = vadd.f32 %v2086, %v2260
  %v2262 = vpop.f32.mrb[0].mxu0
  %2263 = vmatprep.mubr.f32.mxu0 0.0
  %v2264 = vand.u32 %v1089, 4294901760
  %2265 = vmatmul.mubr.f32.gmra.mrb[0].mxu0 %v2264
  %v2266 = vpop.f32.mrb[0].mxu0
  %v2267 = vadd.f32 %v2092, %v2266
  %v2268 = vpop.f32.mrb[0].mxu0
  %2269 = vmatprep.mubr.f32.mxu0 0.0
  %v2270 = vand.u32 %v1092, 4294901760
  %2271 = vmatmul.mubr.f32.gmra.mrb[0].mxu0 %v2270
  %v2272 = vpop.f32.mrb[0].mxu0
  %v2273 = vadd.f32 %v2098, %v2272
  %v2274 = vpop.f32.mrb[0].mxu0
  %2275 = vmatprep.mubr.f32.mxu0 0.0
  %v2276 = vand.u32 %v1095, 4294901760
  %2277 = vmatmul.mubr.f32.gmra.mrb[0].mxu0 %v2276
  %v2278 = vpop.f32.mrb[0].mxu0
  %v2279 = vadd.f32 %v2104, %v2278
  %v2280 = vpop.f32.mrb[0].mxu0
  %2281 = vmatprep.mubr.f32.mxu0 0.0
  %v2282 = vand.u32 %v1098, 4294901760
  %2283 = vmatmul.mubr.f32.gmra.mrb[0].mxu0 %v2282
  %v2284 = vpop.f32.mrb[0].mxu0
  %v2285 = vadd.f32 %v2110, %v2284
  %v2286 = vpop.f32.mrb[0].mxu0
  %2287 = vmatprep.mubr.f32.mxu0 0.0
  %v2288 = vand.u32 %v1101, 4294901760
  %2289 = vmatmul.mubr.f32.gmra.mrb[0].mxu0 %v2288
  %v2290 = vpop.f32.mrb[0].mxu0
  %v2291 = vadd.f32 %v2116, %v2290
  %v2292 = vpop.f32.mrb[0].mxu0
  %2293 = vmatprep.mubr.f32.mxu0 0.0
  %v2294 = vand.u32 %v1104, 4294901760
  %2295 = vmatmul.mubr.f32.gmra.mrb[0].mxu0 %v2294
  %v2296 = vpop.f32.mrb[0].mxu0
  %v2297 = vadd.f32 %v2122, %v2296
  %v2298 = vpop.f32.mrb[0].mxu0
  %2299 = vdwg.mxu0
  %2300 = vrot.lane.b32.xlu0 %v1033, 116
  %v2301 = vpop.permute.xlu0 %2300
  %2302 = vrot.lane.b32.xlu0 %v1034, 116
  %v2303 = vpop.permute.xlu0 %2302
  %2304 = vrot.lane.b32.xlu0 %v1035, 116
  %v2305 = vpop.permute.xlu0 %2304
  %2306 = vrot.lane.b32.xlu0 %v1036, 116
  %v2307 = vpop.permute.xlu0 %2306
  %2308 = vrot.lane.b32.xlu0 %v1037, 116
  %v2309 = vpop.permute.xlu0 %2308
  %2310 = vrot.lane.b32.xlu0 %v1038, 116
  %v2311 = vpop.permute.xlu0 %2310
  %2312 = vrot.lane.b32.xlu0 %v1039, 116
  %v2313 = vpop.permute.xlu0 %2312
  %2314 = vrot.lane.b32.xlu0 %v1040, 116
  %v2315 = vpop.permute.xlu0 %2314
  %2316 = vrot.lane.b32.xlu0 %v1041, 116
  %v2317 = vpop.permute.xlu0 %2316
  %2318 = vrot.lane.b32.xlu0 %v1042, 116
  %v2319 = vpop.permute.xlu0 %2318
  %2320 = vrot.lane.b32.xlu0 %v1043, 116
  %v2321 = vpop.permute.xlu0 %2320
  %2322 = vrot.lane.b32.xlu0 %v1044, 116
  %v2323 = vpop.permute.xlu0 %2322
  %2324 = vrot.lane.b32.xlu0 %v1045, 116
  %v2325 = vpop.permute.xlu0 %2324
  %2326 = vrot.lane.b32.xlu0 %v1046, 116
  %v2327 = vpop.permute.xlu0 %2326
  %2328 = vrot.lane.b32.xlu0 %v1047, 116
  %v2329 = vpop.permute.xlu0 %2328
  %2330 = vrot.lane.b32.xlu0 %v1048, 116
  %v2331 = vpop.permute.xlu0 %2330
  %2332 = vrot.lane.b32.xlu0 %v1049, 116
  %v2333 = vpop.permute.xlu0 %2332
  %2334 = vrot.lane.b32.xlu0 %v1050, 116
  %v2335 = vpop.permute.xlu0 %2334
  %v2336 = vsel %vm1051, %v2301, 0
  %v2338 = vsel %vm1051, %v2303, 0
  %v2340 = vsel %vm1051, %v2305, 0
  %v2342 = vsel %vm1051, %v2307, 0
  %v2344 = vsel %vm1051, %v2309, 0
  %v2346 = vsel %vm1051, %v2311, 0
  %v2348 = vsel %vm1051, %v2313, 0
  %v2350 = vsel %vm1051, %v2315, 0
  %v2352 = vsel %vm1051, %v2317, 0
  %v2354 = vsel %vm1051, %v2319, 0
  %v2356 = vsel %vm1051, %v2321, 0
  %v2358 = vsel %vm1051, %v2323, 0
  %v2360 = vsel %vm1051, %v2325, 0
  %v2362 = vsel %vm1051, %v2327, 0
  %v2364 = vsel %vm1051, %v2329, 0
  %v2366 = vsel %vm1051, %v2331, 0
  %v2368 = vsel %vm1051, %v2333, 0
  %v2370 = vsel %vm1051, %v2335, 0
  %v2373 = vsel %vm1106, %v1030, 0
  %2375 = vmatprep.subr.mxu0 0.0
  %v2376 = vand.u32 %v1024, 4294901760
  %2377 = vmatpush1.msra.mxu0 %v2376
  %2378 = vmatprep.subr.mxu0 0.0
  %v2379 = vand.u32 %v2373, 4294901760
  %2380 = vmatpush1.msra.mxu0 %v2379
  %2381 = vmatprep.subr.mxu0 0.0
  %2382 = vmatpush1.msra.mxu0 0.0
  %2383 = vmatprep.subr.mxu0 0.0
  %2384 = vmatpush1.msra.mxu0 0.0
  %2385 = vmatprep.subr.mxu0 0.0
  %2386 = vmatpush1.msra.mxu0 0.0
  %2387 = vmatprep.subr.mxu0 0.0
  %2388 = vmatpush1.msra.mxu0 0.0
  %2389 = vmatprep.subr.mxu0 0.0
  %2390 = vmatpush1.msra.mxu0 0.0
  %2391 = vmatprep.subr.mxu0 0.0
  %2392 = vmatpush1.msra.mxu0 0.0
  %2393 = vmatprep.subr.mxu0 0.0
  %2394 = vmatpush1.msra.mxu0 0.0
  %2395 = vmatprep.subr.mxu0 0.0
  %2396 = vmatpush1.msra.mxu0 0.0
  %2397 = vmatprep.subr.mxu0 0.0
  %2398 = vmatpush1.msra.mxu0 0.0
  %2399 = vmatprep.subr.mxu0 0.0
  %2400 = vmatpush1.msra.mxu0 0.0
  %2401 = vmatprep.subr.mxu0 0.0
  %2402 = vmatpush1.msra.mxu0 0.0
  %2403 = vmatprep.subr.mxu0 0.0
  %2404 = vmatpush1.msra.mxu0 0.0
  %2405 = vmatprep.subr.mxu0 0.0
  %2406 = vmatpush1.msra.mxu0 0.0
  %2407 = vmatprep.subr.mxu0 0.0
  %2408 = vmatpush1.msra.mxu0 0.0
  %2409 = vmatprep.subr.mxu0 0.0
  %2410 = vmatpush1.msra.mxu0 0.0
  %2411 = vmatprep.subr.mxu0 0.0
  %2412 = vmatpush1.msra.mxu0 0.0
  %2413 = vmatprep.subr.mxu0 0.0
  %2414 = vmatpush1.msra.mxu0 0.0
  %2415 = vmatprep.subr.mxu0 0.0
  %2416 = vmatpush1.msra.mxu0 0.0
  %2417 = vmatprep.subr.mxu0 0.0
  %2418 = vmatpush1.msra.mxu0 0.0
  %2419 = vmatprep.subr.mxu0 0.0
  %2420 = vmatpush1.msra.mxu0 0.0
  %2421 = vmatprep.subr.mxu0 0.0
  %2422 = vmatpush1.msra.mxu0 0.0
  %2423 = vmatprep.subr.mxu0 0.0
  %2424 = vmatpush1.msra.mxu0 0.0
  %2425 = vmatprep.subr.mxu0 0.0
  %2426 = vmatpush1.msra.mxu0 0.0
  %2427 = vmatprep.subr.mxu0 0.0
  %2428 = vmatpush1.msra.mxu0 0.0
  %2429 = vmatprep.subr.mxu0 0.0
  %2430 = vmatpush1.msra.mxu0 0.0
  %2431 = vmatprep.subr.mxu0 0.0
  %2432 = vmatpush1.msra.mxu0 0.0
  %2433 = vmatprep.subr.mxu0 0.0
  %2434 = vmatpush1.msra.mxu0 0.0
  %2435 = vmatprep.subr.mxu0 0.0
  %2436 = vmatpush1.msra.mxu0 0.0
  %2437 = vmatprep.subr.mxu0 0.0
  %2438 = vmatpush1.msra.mxu0 0.0
  %2439 = vmatprep.subr.mxu0 0.0
  %2440 = vmatpush1.msra.mxu0 0.0
  %2441 = vmatprep.mubr.f32.mxu0 0.0
  %v2442 = vand.u32 %v2336, 4294901760
  %v2443 = vsub.f32 %v2336, %v2442
  %v2444 = vand.u32 %v2443, 4294901760
  %v2445 = vsub.f32 %v2443, %v2444
  %v2446 = vand.u32 %v2445, 4294901760
  %2447 = vmatmul.mubr.f32.gmra.mrb[0].mxu0 %v2446
  %v2448 = vpop.f32.mrb[0].mxu0
  %v2449 = vadd.f32 0.0, %v2448
  %v2450 = vpop.f32.mrb[0].mxu0
  %2451 = vmatprep.mubr.f32.mxu0 0.0
  %v2452 = vand.u32 %v2338, 4294901760
  %v2453 = vsub.f32 %v2338, %v2452
  %v2454 = vand.u32 %v2453, 4294901760
  %v2455 = vsub.f32 %v2453, %v2454
  %v2456 = vand.u32 %v2455, 4294901760
  %2457 = vmatmul.mubr.f32.gmra.mrb[0].mxu0 %v2456
  %v2458 = vpop.f32.mrb[0].mxu0
  %v2459 = vadd.f32 0.0, %v2458
  %v2460 = vpop.f32.mrb[0].mxu0
  %2461 = vmatprep.mubr.f32.mxu0 0.0
  %v2462 = vand.u32 %v2340, 4294901760
  %v2463 = vsub.f32 %v2340, %v2462
  %v2464 = vand.u32 %v2463, 4294901760
  %v2465 = vsub.f32 %v2463, %v2464
  %v2466 = vand.u32 %v2465, 4294901760
  %2467 = vmatmul.mubr.f32.gmra.mrb[0].mxu0 %v2466
  %v2468 = vpop.f32.mrb[0].mxu0
  %v2469 = vadd.f32 0.0, %v2468
  %v2470 = vpop.f32.mrb[0].mxu0
  %2471 = vmatprep.mubr.f32.mxu0 0.0
  %v2472 = vand.u32 %v2342, 4294901760
  %v2473 = vsub.f32 %v2342, %v2472
  %v2474 = vand.u32 %v2473, 4294901760
  %v2475 = vsub.f32 %v2473, %v2474
  %v2476 = vand.u32 %v2475, 4294901760
  %2477 = vmatmul.mubr.f32.gmra.mrb[0].mxu0 %v2476
  %v2478 = vpop.f32.mrb[0].mxu0
  %v2479 = vadd.f32 0.0, %v2478
  %v2480 = vpop.f32.mrb[0].mxu0
  %2481 = vmatprep.mubr.f32.mxu0 0.0
  %v2482 = vand.u32 %v2344, 4294901760
  %v2483 = vsub.f32 %v2344, %v2482
  %v2484 = vand.u32 %v2483, 4294901760
  %v2485 = vsub.f32 %v2483, %v2484
  %v2486 = vand.u32 %v2485, 4294901760
  %2487 = vmatmul.mubr.f32.gmra.mrb[0].mxu0 %v2486
  %v2488 = vpop.f32.mrb[0].mxu0
  %v2489 = vadd.f32 0.0, %v2488
  %v2490 = vpop.f32.mrb[0].mxu0
  %2491 = vmatprep.mubr.f32.mxu0 0.0
  %v2492 = vand.u32 %v2346, 4294901760
  %v2493 = vsub.f32 %v2346, %v2492
  %v2494 = vand.u32 %v2493, 4294901760
  %v2495 = vsub.f32 %v2493, %v2494
  %v2496 = vand.u32 %v2495, 4294901760
  %2497 = vmatmul.mubr.f32.gmra.mrb[0].mxu0 %v2496
  %v2498 = vpop.f32.mrb[0].mxu0
  %v2499 = vadd.f32 0.0, %v2498
  %v2500 = vpop.f32.mrb[0].mxu0
  %2501 = vmatprep.mubr.f32.mxu0 0.0
  %v2502 = vand.u32 %v2348, 4294901760
  %v2503 = vsub.f32 %v2348, %v2502
  %v2504 = vand.u32 %v2503, 4294901760
  %v2505 = vsub.f32 %v2503, %v2504
  %v2506 = vand.u32 %v2505, 4294901760
  %2507 = vmatmul.mubr.f32.gmra.mrb[0].mxu0 %v2506
  %v2508 = vpop.f32.mrb[0].mxu0
  %v2509 = vadd.f32 0.0, %v2508
  %v2510 = vpop.f32.mrb[0].mxu0
  %2511 = vmatprep.mubr.f32.mxu0 0.0
  %v2512 = vand.u32 %v2350, 4294901760
  %v2513 = vsub.f32 %v2350, %v2512
  %v2514 = vand.u32 %v2513, 4294901760
  %v2515 = vsub.f32 %v2513, %v2514
  %v2516 = vand.u32 %v2515, 4294901760
  %2517 = vmatmul.mubr.f32.gmra.mrb[0].mxu0 %v2516
  %v2518 = vpop.f32.mrb[0].mxu0
  %v2519 = vadd.f32 0.0, %v2518
  %v2520 = vpop.f32.mrb[0].mxu0
  %2521 = vmatprep.mubr.f32.mxu0 0.0
  %v2522 = vand.u32 %v2352, 4294901760
  %v2523 = vsub.f32 %v2352, %v2522
  %v2524 = vand.u32 %v2523, 4294901760
  %v2525 = vsub.f32 %v2523, %v2524
  %v2526 = vand.u32 %v2525, 4294901760
  %2527 = vmatmul.mubr.f32.gmra.mrb[0].mxu0 %v2526
  %v2528 = vpop.f32.mrb[0].mxu0
  %v2529 = vadd.f32 0.0, %v2528
  %v2530 = vpop.f32.mrb[0].mxu0
  %2531 = vmatprep.mubr.f32.mxu0 0.0
  %v2532 = vand.u32 %v2354, 4294901760
  %v2533 = vsub.f32 %v2354, %v2532
  %v2534 = vand.u32 %v2533, 4294901760
  %v2535 = vsub.f32 %v2533, %v2534
  %v2536 = vand.u32 %v2535, 4294901760
  %2537 = vmatmul.mubr.f32.gmra.mrb[0].mxu0 %v2536
  %v2538 = vpop.f32.mrb[0].mxu0
  %v2539 = vadd.f32 0.0, %v2538
  %v2540 = vpop.f32.mrb[0].mxu0
  %2541 = vmatprep.mubr.f32.mxu0 0.0
  %v2542 = vand.u32 %v2356, 4294901760
  %v2543 = vsub.f32 %v2356, %v2542
  %v2544 = vand.u32 %v2543, 4294901760
  %v2545 = vsub.f32 %v2543, %v2544
  %v2546 = vand.u32 %v2545, 4294901760
  %2547 = vmatmul.mubr.f32.gmra.mrb[0].mxu0 %v2546
  %v2548 = vpop.f32.mrb[0].mxu0
  %v2549 = vadd.f32 0.0, %v2548
  %v2550 = vpop.f32.mrb[0].mxu0
  %2551 = vmatprep.mubr.f32.mxu0 0.0
  %v2552 = vand.u32 %v2358, 4294901760
  %v2553 = vsub.f32 %v2358, %v2552
  %v2554 = vand.u32 %v2553, 4294901760
  %v2555 = vsub.f32 %v2553, %v2554
  %v2556 = vand.u32 %v2555, 4294901760
  %2557 = vmatmul.mubr.f32.gmra.mrb[0].mxu0 %v2556
  %v2558 = vpop.f32.mrb[0].mxu0
  %v2559 = vadd.f32 0.0, %v2558
  %v2560 = vpop.f32.mrb[0].mxu0
  %2561 = vmatprep.mubr.f32.mxu0 0.0
  %v2562 = vand.u32 %v2360, 4294901760
  %v2563 = vsub.f32 %v2360, %v2562
  %v2564 = vand.u32 %v2563, 4294901760
  %v2565 = vsub.f32 %v2563, %v2564
  %v2566 = vand.u32 %v2565, 4294901760
  %2567 = vmatmul.mubr.f32.gmra.mrb[0].mxu0 %v2566
  %v2568 = vpop.f32.mrb[0].mxu0
  %v2569 = vadd.f32 0.0, %v2568
  %v2570 = vpop.f32.mrb[0].mxu0
  %2571 = vmatprep.mubr.f32.mxu0 0.0
  %v2572 = vand.u32 %v2362, 4294901760
  %v2573 = vsub.f32 %v2362, %v2572
  %v2574 = vand.u32 %v2573, 4294901760
  %v2575 = vsub.f32 %v2573, %v2574
  %v2576 = vand.u32 %v2575, 4294901760
  %2577 = vmatmul.mubr.f32.gmra.mrb[0].mxu0 %v2576
  %v2578 = vpop.f32.mrb[0].mxu0
  %v2579 = vadd.f32 0.0, %v2578
  %v2580 = vpop.f32.mrb[0].mxu0
  %2581 = vmatprep.mubr.f32.mxu0 0.0
  %v2582 = vand.u32 %v2364, 4294901760
  %v2583 = vsub.f32 %v2364, %v2582
  %v2584 = vand.u32 %v2583, 4294901760
  %v2585 = vsub.f32 %v2583, %v2584
  %v2586 = vand.u32 %v2585, 4294901760
  %2587 = vmatmul.mubr.f32.gmra.mrb[0].mxu0 %v2586
  %v2588 = vpop.f32.mrb[0].mxu0
  %v2589 = vadd.f32 0.0, %v2588
  %v2590 = vpop.f32.mrb[0].mxu0
  %2591 = vmatprep.mubr.f32.mxu0 0.0
  %v2592 = vand.u32 %v2366, 4294901760
  %v2593 = vsub.f32 %v2366, %v2592
  %v2594 = vand.u32 %v2593, 4294901760
  %v2595 = vsub.f32 %v2593, %v2594
  %v2596 = vand.u32 %v2595, 4294901760
  %2597 = vmatmul.mubr.f32.gmra.mrb[0].mxu0 %v2596
  %v2598 = vpop.f32.mrb[0].mxu0
  %v2599 = vadd.f32 0.0, %v2598
  %v2600 = vpop.f32.mrb[0].mxu0
  %2601 = vmatprep.mubr.f32.mxu0 0.0
  %v2602 = vand.u32 %v2368, 4294901760
  %v2603 = vsub.f32 %v2368, %v2602
  %v2604 = vand.u32 %v2603, 4294901760
  %v2605 = vsub.f32 %v2603, %v2604
  %v2606 = vand.u32 %v2605, 4294901760
  %2607 = vmatmul.mubr.f32.gmra.mrb[0].mxu0 %v2606
  %v2608 = vpop.f32.mrb[0].mxu0
  %v2609 = vadd.f32 0.0, %v2608
  %v2610 = vpop.f32.mrb[0].mxu0
  %2611 = vmatprep.mubr.f32.mxu0 0.0
  %v2612 = vand.u32 %v2370, 4294901760
  %v2613 = vsub.f32 %v2370, %v2612
  %v2614 = vand.u32 %v2613, 4294901760
  %v2615 = vsub.f32 %v2613, %v2614
  %v2616 = vand.u32 %v2615, 4294901760
  %2617 = vmatmul.mubr.f32.gmra.mrb[0].mxu0 %v2616
  %v2618 = vpop.f32.mrb[0].mxu0
  %v2619 = vadd.f32 0.0, %v2618
  %v2620 = vpop.f32.mrb[0].mxu0
  %2621 = vdwg.mxu0
  %2622 = vmatprep.subr.mxu0 0.0
  %v2623 = vand.u32 %v1024, 4294901760
  %v2624 = vsub.f32 %v1024, %v2623
  %v2625 = vand.u32 %v2624, 4294901760
  %v2626 = vsub.f32 %v2624, %v2625
  %v2627 = vand.u32 %v2626, 4294901760
  %2628 = vmatpush1.msra.mxu0 %v2627
  %2629 = vmatprep.subr.mxu0 0.0
  %v2630 = vand.u32 %v2373, 4294901760
  %v2631 = vsub.f32 %v2373, %v2630
  %v2632 = vand.u32 %v2631, 4294901760
  %v2633 = vsub.f32 %v2631, %v2632
  %v2634 = vand.u32 %v2633, 4294901760
  %2635 = vmatpush1.msra.mxu0 %v2634
  %2636 = vmatprep.subr.mxu0 0.0
  %2637 = vmatpush1.msra.mxu0 0.0
  %2638 = vmatprep.subr.mxu0 0.0
  %2639 = vmatpush1.msra.mxu0 0.0
  %2640 = vmatprep.subr.mxu0 0.0
  %2641 = vmatpush1.msra.mxu0 0.0
  %2642 = vmatprep.subr.mxu0 0.0
  %2643 = vmatpush1.msra.mxu0 0.0
  %2644 = vmatprep.subr.mxu0 0.0
  %2645 = vmatpush1.msra.mxu0 0.0
  %2646 = vmatprep.subr.mxu0 0.0
  %2647 = vmatpush1.msra.mxu0 0.0
  %2648 = vmatprep.subr.mxu0 0.0
  %2649 = vmatpush1.msra.mxu0 0.0
  %2650 = vmatprep.subr.mxu0 0.0
  %2651 = vmatpush1.msra.mxu0 0.0
  %2652 = vmatprep.subr.mxu0 0.0
  %2653 = vmatpush1.msra.mxu0 0.0
  %2654 = vmatprep.subr.mxu0 0.0
  %2655 = vmatpush1.msra.mxu0 0.0
  %2656 = vmatprep.subr.mxu0 0.0
  %2657 = vmatpush1.msra.mxu0 0.0
  %2658 = vmatprep.subr.mxu0 0.0
  %2659 = vmatpush1.msra.mxu0 0.0
  %2660 = vmatprep.subr.mxu0 0.0
  %2661 = vmatpush1.msra.mxu0 0.0
  %2662 = vmatprep.subr.mxu0 0.0
  %2663 = vmatpush1.msra.mxu0 0.0
  %2664 = vmatprep.subr.mxu0 0.0
  %2665 = vmatpush1.msra.mxu0 0.0
  %2666 = vmatprep.subr.mxu0 0.0
  %2667 = vmatpush1.msra.mxu0 0.0
  %2668 = vmatprep.subr.mxu0 0.0
  %2669 = vmatpush1.msra.mxu0 0.0
  %2670 = vmatprep.subr.mxu0 0.0
  %2671 = vmatpush1.msra.mxu0 0.0
  %2672 = vmatprep.subr.mxu0 0.0
  %2673 = vmatpush1.msra.mxu0 0.0
  %2674 = vmatprep.subr.mxu0 0.0
  %2675 = vmatpush1.msra.mxu0 0.0
  %2676 = vmatprep.subr.mxu0 0.0
  %2677 = vmatpush1.msra.mxu0 0.0
  %2678 = vmatprep.subr.mxu0 0.0
  %2679 = vmatpush1.msra.mxu0 0.0
  %2680 = vmatprep.subr.mxu0 0.0
  %2681 = vmatpush1.msra.mxu0 0.0
  %2682 = vmatprep.subr.mxu0 0.0
  %2683 = vmatpush1.msra.mxu0 0.0
  %2684 = vmatprep.subr.mxu0 0.0
  %2685 = vmatpush1.msra.mxu0 0.0
  %2686 = vmatprep.subr.mxu0 0.0
  %2687 = vmatpush1.msra.mxu0 0.0
  %2688 = vmatprep.subr.mxu0 0.0
  %2689 = vmatpush1.msra.mxu0 0.0
  %2690 = vmatprep.subr.mxu0 0.0
  %2691 = vmatpush1.msra.mxu0 0.0
  %2692 = vmatprep.subr.mxu0 0.0
  %2693 = vmatpush1.msra.mxu0 0.0
  %2694 = vmatprep.subr.mxu0 0.0
  %2695 = vmatpush1.msra.mxu0 0.0
  %2696 = vmatprep.mubr.f32.mxu0 0.0
  %v2697 = vand.u32 %v2336, 4294901760
  %2698 = vmatmul.mubr.f32.gmra.mrb[0].mxu0 %v2697
  %v2699 = vpop.f32.mrb[0].mxu0
  %v2700 = vadd.f32 %v2449, %v2699
  %v2701 = vpop.f32.mrb[0].mxu0
  %2702 = vmatprep.mubr.f32.mxu0 0.0
  %v2703 = vand.u32 %v2338, 4294901760
  %2704 = vmatmul.mubr.f32.gmra.mrb[0].mxu0 %v2703
  %v2705 = vpop.f32.mrb[0].mxu0
  %v2706 = vadd.f32 %v2459, %v2705
  %v2707 = vpop.f32.mrb[0].mxu0
  %2708 = vmatprep.mubr.f32.mxu0 0.0
  %v2709 = vand.u32 %v2340, 4294901760
  %2710 = vmatmul.mubr.f32.gmra.mrb[0].mxu0 %v2709
  %v2711 = vpop.f32.mrb[0].mxu0
  %v2712 = vadd.f32 %v2469, %v2711
  %v2713 = vpop.f32.mrb[0].mxu0
  %2714 = vmatprep.mubr.f32.mxu0 0.0
  %v2715 = vand.u32 %v2342, 4294901760
  %2716 = vmatmul.mubr.f32.gmra.mrb[0].mxu0 %v2715
  %v2717 = vpop.f32.mrb[0].mxu0
  %v2718 = vadd.f32 %v2479, %v2717
  %v2719 = vpop.f32.mrb[0].mxu0
  %2720 = vmatprep.mubr.f32.mxu0 0.0
  %v2721 = vand.u32 %v2344, 4294901760
  %2722 = vmatmul.mubr.f32.gmra.mrb[0].mxu0 %v2721
  %v2723 = vpop.f32.mrb[0].mxu0
  %v2724 = vadd.f32 %v2489, %v2723
  %v2725 = vpop.f32.mrb[0].mxu0
  %2726 = vmatprep.mubr.f32.mxu0 0.0
  %v2727 = vand.u32 %v2346, 4294901760
  %2728 = vmatmul.mubr.f32.gmra.mrb[0].mxu0 %v2727
  %v2729 = vpop.f32.mrb[0].mxu0
  %v2730 = vadd.f32 %v2499, %v2729
  %v2731 = vpop.f32.mrb[0].mxu0
  %2732 = vmatprep.mubr.f32.mxu0 0.0
  %v2733 = vand.u32 %v2348, 4294901760
  %2734 = vmatmul.mubr.f32.gmra.mrb[0].mxu0 %v2733
  %v2735 = vpop.f32.mrb[0].mxu0
  %v2736 = vadd.f32 %v2509, %v2735
  %v2737 = vpop.f32.mrb[0].mxu0
  %2738 = vmatprep.mubr.f32.mxu0 0.0
  %v2739 = vand.u32 %v2350, 4294901760
  %2740 = vmatmul.mubr.f32.gmra.mrb[0].mxu0 %v2739
  %v2741 = vpop.f32.mrb[0].mxu0
  %v2742 = vadd.f32 %v2519, %v2741
  %v2743 = vpop.f32.mrb[0].mxu0
  %2744 = vmatprep.mubr.f32.mxu0 0.0
  %v2745 = vand.u32 %v2352, 4294901760
  %2746 = vmatmul.mubr.f32.gmra.mrb[0].mxu0 %v2745
  %v2747 = vpop.f32.mrb[0].mxu0
  %v2748 = vadd.f32 %v2529, %v2747
  %v2749 = vpop.f32.mrb[0].mxu0
  %2750 = vmatprep.mubr.f32.mxu0 0.0
  %v2751 = vand.u32 %v2354, 4294901760
  %2752 = vmatmul.mubr.f32.gmra.mrb[0].mxu0 %v2751
  %v2753 = vpop.f32.mrb[0].mxu0
  %v2754 = vadd.f32 %v2539, %v2753
  %v2755 = vpop.f32.mrb[0].mxu0
  %2756 = vmatprep.mubr.f32.mxu0 0.0
  %v2757 = vand.u32 %v2356, 4294901760
  %2758 = vmatmul.mubr.f32.gmra.mrb[0].mxu0 %v2757
  %v2759 = vpop.f32.mrb[0].mxu0
  %v2760 = vadd.f32 %v2549, %v2759
  %v2761 = vpop.f32.mrb[0].mxu0
  %2762 = vmatprep.mubr.f32.mxu0 0.0
  %v2763 = vand.u32 %v2358, 4294901760
  %2764 = vmatmul.mubr.f32.gmra.mrb[0].mxu0 %v2763
  %v2765 = vpop.f32.mrb[0].mxu0
  %v2766 = vadd.f32 %v2559, %v2765
  %v2767 = vpop.f32.mrb[0].mxu0
  %2768 = vmatprep.mubr.f32.mxu0 0.0
  %v2769 = vand.u32 %v2360, 4294901760
  %2770 = vmatmul.mubr.f32.gmra.mrb[0].mxu0 %v2769
  %v2771 = vpop.f32.mrb[0].mxu0
  %v2772 = vadd.f32 %v2569, %v2771
  %v2773 = vpop.f32.mrb[0].mxu0
  %2774 = vmatprep.mubr.f32.mxu0 0.0
  %v2775 = vand.u32 %v2362, 4294901760
  %2776 = vmatmul.mubr.f32.gmra.mrb[0].mxu0 %v2775
  %v2777 = vpop.f32.mrb[0].mxu0
  %v2778 = vadd.f32 %v2579, %v2777
  %v2779 = vpop.f32.mrb[0].mxu0
  %2780 = vmatprep.mubr.f32.mxu0 0.0
  %v2781 = vand.u32 %v2364, 4294901760
  %2782 = vmatmul.mubr.f32.gmra.mrb[0].mxu0 %v2781
  %v2783 = vpop.f32.mrb[0].mxu0
  %v2784 = vadd.f32 %v2589, %v2783
  %v2785 = vpop.f32.mrb[0].mxu0
  %2786 = vmatprep.mubr.f32.mxu0 0.0
  %v2787 = vand.u32 %v2366, 4294901760
  %2788 = vmatmul.mubr.f32.gmra.mrb[0].mxu0 %v2787
  %v2789 = vpop.f32.mrb[0].mxu0
  %v2790 = vadd.f32 %v2599, %v2789
  %v2791 = vpop.f32.mrb[0].mxu0
  %2792 = vmatprep.mubr.f32.mxu0 0.0
  %v2793 = vand.u32 %v2368, 4294901760
  %2794 = vmatmul.mubr.f32.gmra.mrb[0].mxu0 %v2793
  %v2795 = vpop.f32.mrb[0].mxu0
  %v2796 = vadd.f32 %v2609, %v2795
  %v2797 = vpop.f32.mrb[0].mxu0
  %2798 = vmatprep.mubr.f32.mxu0 0.0
  %v2799 = vand.u32 %v2370, 4294901760
  %2800 = vmatmul.mubr.f32.gmra.mrb[0].mxu0 %v2799
  %v2801 = vpop.f32.mrb[0].mxu0
  %v2802 = vadd.f32 %v2619, %v2801
  %v2803 = vpop.f32.mrb[0].mxu0
  %2804 = vdwg.mxu0
  %2805 = vmatprep.subr.mxu0 0.0
  %v2806 = vand.u32 %v1024, 4294901760
  %v2807 = vsub.f32 %v1024, %v2806
  %2808 = vmatpush1.msra.mxu0 %v2807
  %2809 = vmatprep.subr.mxu0 0.0
  %v2810 = vand.u32 %v2373, 4294901760
  %v2811 = vsub.f32 %v2373, %v2810
  %2812 = vmatpush1.msra.mxu0 %v2811
  %2813 = vmatprep.subr.mxu0 0.0
  %2814 = vmatpush1.msra.mxu0 0.0
  %2815 = vmatprep.subr.mxu0 0.0
  %2816 = vmatpush1.msra.mxu0 0.0
  %2817 = vmatprep.subr.mxu0 0.0
  %2818 = vmatpush1.msra.mxu0 0.0
  %2819 = vmatprep.subr.mxu0 0.0
  %2820 = vmatpush1.msra.mxu0 0.0
  %2821 = vmatprep.subr.mxu0 0.0
  %2822 = vmatpush1.msra.mxu0 0.0
  %2823 = vmatprep.subr.mxu0 0.0
  %2824 = vmatpush1.msra.mxu0 0.0
  %2825 = vmatprep.subr.mxu0 0.0
  %2826 = vmatpush1.msra.mxu0 0.0
  %2827 = vmatprep.subr.mxu0 0.0
  %2828 = vmatpush1.msra.mxu0 0.0
  %2829 = vmatprep.subr.mxu0 0.0
  %2830 = vmatpush1.msra.mxu0 0.0
  %2831 = vmatprep.subr.mxu0 0.0
  %2832 = vmatpush1.msra.mxu0 0.0
  %2833 = vmatprep.subr.mxu0 0.0
  %2834 = vmatpush1.msra.mxu0 0.0
  %2835 = vmatprep.subr.mxu0 0.0
  %2836 = vmatpush1.msra.mxu0 0.0
  %2837 = vmatprep.subr.mxu0 0.0
  %2838 = vmatpush1.msra.mxu0 0.0
  %2839 = vmatprep.subr.mxu0 0.0
  %2840 = vmatpush1.msra.mxu0 0.0
  %2841 = vmatprep.subr.mxu0 0.0
  %2842 = vmatpush1.msra.mxu0 0.0
  %2843 = vmatprep.subr.mxu0 0.0
  %2844 = vmatpush1.msra.mxu0 0.0
  %2845 = vmatprep.subr.mxu0 0.0
  %2846 = vmatpush1.msra.mxu0 0.0
  %2847 = vmatprep.subr.mxu0 0.0
  %2848 = vmatpush1.msra.mxu0 0.0
  %2849 = vmatprep.subr.mxu0 0.0
  %2850 = vmatpush1.msra.mxu0 0.0
  %2851 = vmatprep.subr.mxu0 0.0
  %2852 = vmatpush1.msra.mxu0 0.0
  %2853 = vmatprep.subr.mxu0 0.0
  %2854 = vmatpush1.msra.mxu0 0.0
  %2855 = vmatprep.subr.mxu0 0.0
  %2856 = vmatpush1.msra.mxu0 0.0
  %2857 = vmatprep.subr.mxu0 0.0
  %2858 = vmatpush1.msra.mxu0 0.0
  %2859 = vmatprep.subr.mxu0 0.0
  %2860 = vmatpush1.msra.mxu0 0.0
  %2861 = vmatprep.subr.mxu0 0.0
  %2862 = vmatpush1.msra.mxu0 0.0
  %2863 = vmatprep.subr.mxu0 0.0
  %2864 = vmatpush1.msra.mxu0 0.0
  %2865 = vmatprep.subr.mxu0 0.0
  %2866 = vmatpush1.msra.mxu0 0.0
  %2867 = vmatprep.subr.mxu0 0.0
  %2868 = vmatpush1.msra.mxu0 0.0
  %2869 = vmatprep.subr.mxu0 0.0
  %2870 = vmatpush1.msra.mxu0 0.0
  %2871 = vmatprep.subr.mxu0 0.0
  %2872 = vmatpush1.msra.mxu0 0.0
  %2873 = vmatprep.mubr.f32.mxu0 0.0
  %v2874 = vand.u32 %v2336, 4294901760
  %v2875 = vsub.f32 %v2336, %v2874
  %2876 = vmatmul.mubr.f32.gmra.mrb[0].mxu0 %v2875
  %v2877 = vpop.f32.mrb[0].mxu0
  %v2878 = vadd.f32 %v2700, %v2877
  %v2879 = vpop.f32.mrb[0].mxu0
  %2880 = vmatprep.mubr.f32.mxu0 0.0
  %v2881 = vand.u32 %v2338, 4294901760
  %v2882 = vsub.f32 %v2338, %v2881
  %2883 = vmatmul.mubr.f32.gmra.mrb[0].mxu0 %v2882
  %v2884 = vpop.f32.mrb[0].mxu0
  %v2885 = vadd.f32 %v2706, %v2884
  %v2886 = vpop.f32.mrb[0].mxu0
  %2887 = vmatprep.mubr.f32.mxu0 0.0
  %v2888 = vand.u32 %v2340, 4294901760
  %v2889 = vsub.f32 %v2340, %v2888
  %2890 = vmatmul.mubr.f32.gmra.mrb[0].mxu0 %v2889
  %v2891 = vpop.f32.mrb[0].mxu0
  %v2892 = vadd.f32 %v2712, %v2891
  %v2893 = vpop.f32.mrb[0].mxu0
  %2894 = vmatprep.mubr.f32.mxu0 0.0
  %v2895 = vand.u32 %v2342, 4294901760
  %v2896 = vsub.f32 %v2342, %v2895
  %2897 = vmatmul.mubr.f32.gmra.mrb[0].mxu0 %v2896
  %v2898 = vpop.f32.mrb[0].mxu0
  %v2899 = vadd.f32 %v2718, %v2898
  %v2900 = vpop.f32.mrb[0].mxu0
  %2901 = vmatprep.mubr.f32.mxu0 0.0
  %v2902 = vand.u32 %v2344, 4294901760
  %v2903 = vsub.f32 %v2344, %v2902
  %2904 = vmatmul.mubr.f32.gmra.mrb[0].mxu0 %v2903
  %v2905 = vpop.f32.mrb[0].mxu0
  %v2906 = vadd.f32 %v2724, %v2905
  %v2907 = vpop.f32.mrb[0].mxu0
  %2908 = vmatprep.mubr.f32.mxu0 0.0
  %v2909 = vand.u32 %v2346, 4294901760
  %v2910 = vsub.f32 %v2346, %v2909
  %2911 = vmatmul.mubr.f32.gmra.mrb[0].mxu0 %v2910
  %v2912 = vpop.f32.mrb[0].mxu0
  %v2913 = vadd.f32 %v2730, %v2912
  %v2914 = vpop.f32.mrb[0].mxu0
  %2915 = vmatprep.mubr.f32.mxu0 0.0
  %v2916 = vand.u32 %v2348, 4294901760
  %v2917 = vsub.f32 %v2348, %v2916
  %2918 = vmatmul.mubr.f32.gmra.mrb[0].mxu0 %v2917
  %v2919 = vpop.f32.mrb[0].mxu0
  %v2920 = vadd.f32 %v2736, %v2919
  %v2921 = vpop.f32.mrb[0].mxu0
  %2922 = vmatprep.mubr.f32.mxu0 0.0
  %v2923 = vand.u32 %v2350, 4294901760
  %v2924 = vsub.f32 %v2350, %v2923
  %2925 = vmatmul.mubr.f32.gmra.mrb[0].mxu0 %v2924
  %v2926 = vpop.f32.mrb[0].mxu0
  %v2927 = vadd.f32 %v2742, %v2926
  %v2928 = vpop.f32.mrb[0].mxu0
  %2929 = vmatprep.mubr.f32.mxu0 0.0
  %v2930 = vand.u32 %v2352, 4294901760
  %v2931 = vsub.f32 %v2352, %v2930
  %2932 = vmatmul.mubr.f32.gmra.mrb[0].mxu0 %v2931
  %v2933 = vpop.f32.mrb[0].mxu0
  %v2934 = vadd.f32 %v2748, %v2933
  %v2935 = vpop.f32.mrb[0].mxu0
  %2936 = vmatprep.mubr.f32.mxu0 0.0
  %v2937 = vand.u32 %v2354, 4294901760
  %v2938 = vsub.f32 %v2354, %v2937
  %2939 = vmatmul.mubr.f32.gmra.mrb[0].mxu0 %v2938
  %v2940 = vpop.f32.mrb[0].mxu0
  %v2941 = vadd.f32 %v2754, %v2940
  %v2942 = vpop.f32.mrb[0].mxu0
  %2943 = vmatprep.mubr.f32.mxu0 0.0
  %v2944 = vand.u32 %v2356, 4294901760
  %v2945 = vsub.f32 %v2356, %v2944
  %2946 = vmatmul.mubr.f32.gmra.mrb[0].mxu0 %v2945
  %v2947 = vpop.f32.mrb[0].mxu0
  %v2948 = vadd.f32 %v2760, %v2947
  %v2949 = vpop.f32.mrb[0].mxu0
  %2950 = vmatprep.mubr.f32.mxu0 0.0
  %v2951 = vand.u32 %v2358, 4294901760
  %v2952 = vsub.f32 %v2358, %v2951
  %2953 = vmatmul.mubr.f32.gmra.mrb[0].mxu0 %v2952
  %v2954 = vpop.f32.mrb[0].mxu0
  %v2955 = vadd.f32 %v2766, %v2954
  %v2956 = vpop.f32.mrb[0].mxu0
  %2957 = vmatprep.mubr.f32.mxu0 0.0
  %v2958 = vand.u32 %v2360, 4294901760
  %v2959 = vsub.f32 %v2360, %v2958
  %2960 = vmatmul.mubr.f32.gmra.mrb[0].mxu0 %v2959
  %v2961 = vpop.f32.mrb[0].mxu0
  %v2962 = vadd.f32 %v2772, %v2961
  %v2963 = vpop.f32.mrb[0].mxu0
  %2964 = vmatprep.mubr.f32.mxu0 0.0
  %v2965 = vand.u32 %v2362, 4294901760
  %v2966 = vsub.f32 %v2362, %v2965
  %2967 = vmatmul.mubr.f32.gmra.mrb[0].mxu0 %v2966
  %v2968 = vpop.f32.mrb[0].mxu0
  %v2969 = vadd.f32 %v2778, %v2968
  %v2970 = vpop.f32.mrb[0].mxu0
  %2971 = vmatprep.mubr.f32.mxu0 0.0
  %v2972 = vand.u32 %v2364, 4294901760
  %v2973 = vsub.f32 %v2364, %v2972
  %2974 = vmatmul.mubr.f32.gmra.mrb[0].mxu0 %v2973
  %v2975 = vpop.f32.mrb[0].mxu0
  %v2976 = vadd.f32 %v2784, %v2975
  %v2977 = vpop.f32.mrb[0].mxu0
  %2978 = vmatprep.mubr.f32.mxu0 0.0
  %v2979 = vand.u32 %v2366, 4294901760
  %v2980 = vsub.f32 %v2366, %v2979
  %2981 = vmatmul.mubr.f32.gmra.mrb[0].mxu0 %v2980
  %v2982 = vpop.f32.mrb[0].mxu0
  %v2983 = vadd.f32 %v2790, %v2982
  %v2984 = vpop.f32.mrb[0].mxu0
  %2985 = vmatprep.mubr.f32.mxu0 0.0
  %v2986 = vand.u32 %v2368, 4294901760
  %v2987 = vsub.f32 %v2368, %v2986
  %2988 = vmatmul.mubr.f32.gmra.mrb[0].mxu0 %v2987
  %v2989 = vpop.f32.mrb[0].mxu0
  %v2990 = vadd.f32 %v2796, %v2989
  %v2991 = vpop.f32.mrb[0].mxu0
  %2992 = vmatprep.mubr.f32.mxu0 0.0
  %v2993 = vand.u32 %v2370, 4294901760
  %v2994 = vsub.f32 %v2370, %v2993
  %2995 = vmatmul.mubr.f32.gmra.mrb[0].mxu0 %v2994
  %v2996 = vpop.f32.mrb[0].mxu0
  %v2997 = vadd.f32 %v2802, %v2996
  %v2998 = vpop.f32.mrb[0].mxu0
  %2999 = vdwg.mxu0
  %3000 = vmatprep.subr.mxu0 0.0
  %v3001 = vand.u32 %v1024, 4294901760
  %3002 = vmatpush1.msra.mxu0 %v3001
  %3003 = vmatprep.subr.mxu0 0.0
  %v3004 = vand.u32 %v2373, 4294901760
  %3005 = vmatpush1.msra.mxu0 %v3004
  %3006 = vmatprep.subr.mxu0 0.0
  %3007 = vmatpush1.msra.mxu0 0.0
  %3008 = vmatprep.subr.mxu0 0.0
  %3009 = vmatpush1.msra.mxu0 0.0
  %3010 = vmatprep.subr.mxu0 0.0
  %3011 = vmatpush1.msra.mxu0 0.0
  %3012 = vmatprep.subr.mxu0 0.0
  %3013 = vmatpush1.msra.mxu0 0.0
  %3014 = vmatprep.subr.mxu0 0.0
  %3015 = vmatpush1.msra.mxu0 0.0
  %3016 = vmatprep.subr.mxu0 0.0
  %3017 = vmatpush1.msra.mxu0 0.0
  %3018 = vmatprep.subr.mxu0 0.0
  %3019 = vmatpush1.msra.mxu0 0.0
  %3020 = vmatprep.subr.mxu0 0.0
  %3021 = vmatpush1.msra.mxu0 0.0
  %3022 = vmatprep.subr.mxu0 0.0
  %3023 = vmatpush1.msra.mxu0 0.0
  %3024 = vmatprep.subr.mxu0 0.0
  %3025 = vmatpush1.msra.mxu0 0.0
  %3026 = vmatprep.subr.mxu0 0.0
  %3027 = vmatpush1.msra.mxu0 0.0
  %3028 = vmatprep.subr.mxu0 0.0
  %3029 = vmatpush1.msra.mxu0 0.0
  %3030 = vmatprep.subr.mxu0 0.0
  %3031 = vmatpush1.msra.mxu0 0.0
  %3032 = vmatprep.subr.mxu0 0.0
  %3033 = vmatpush1.msra.mxu0 0.0
  %3034 = vmatprep.subr.mxu0 0.0
  %3035 = vmatpush1.msra.mxu0 0.0
  %3036 = vmatprep.subr.mxu0 0.0
  %3037 = vmatpush1.msra.mxu0 0.0
  %3038 = vmatprep.subr.mxu0 0.0
  %3039 = vmatpush1.msra.mxu0 0.0
  %3040 = vmatprep.subr.mxu0 0.0
  %3041 = vmatpush1.msra.mxu0 0.0
  %3042 = vmatprep.subr.mxu0 0.0
  %3043 = vmatpush1.msra.mxu0 0.0
  %3044 = vmatprep.subr.mxu0 0.0
  %3045 = vmatpush1.msra.mxu0 0.0
  %3046 = vmatprep.subr.mxu0 0.0
  %3047 = vmatpush1.msra.mxu0 0.0
  %3048 = vmatprep.subr.mxu0 0.0
  %3049 = vmatpush1.msra.mxu0 0.0
  %3050 = vmatprep.subr.mxu0 0.0
  %3051 = vmatpush1.msra.mxu0 0.0
  %3052 = vmatprep.subr.mxu0 0.0
  %3053 = vmatpush1.msra.mxu0 0.0
  %3054 = vmatprep.subr.mxu0 0.0
  %3055 = vmatpush1.msra.mxu0 0.0
  %3056 = vmatprep.subr.mxu0 0.0
  %3057 = vmatpush1.msra.mxu0 0.0
  %3058 = vmatprep.subr.mxu0 0.0
  %3059 = vmatpush1.msra.mxu0 0.0
  %3060 = vmatprep.subr.mxu0 0.0
  %3061 = vmatpush1.msra.mxu0 0.0
  %3062 = vmatprep.subr.mxu0 0.0
  %3063 = vmatpush1.msra.mxu0 0.0
  %3064 = vmatprep.subr.mxu0 0.0
  %3065 = vmatpush1.msra.mxu0 0.0
  %3066 = vmatprep.mubr.f32.mxu0 0.0
  %v3067 = vand.u32 %v2336, 4294901760
  %v3068 = vsub.f32 %v2336, %v3067
  %v3069 = vand.u32 %v3068, 4294901760
  %3070 = vmatmul.mubr.f32.gmra.mrb[0].mxu0 %v3069
  %v3071 = vpop.f32.mrb[0].mxu0
  %v3072 = vadd.f32 %v2878, %v3071
  %v3073 = vpop.f32.mrb[0].mxu0
  %3074 = vmatprep.mubr.f32.mxu0 0.0
  %v3075 = vand.u32 %v2338, 4294901760
  %v3076 = vsub.f32 %v2338, %v3075
  %v3077 = vand.u32 %v3076, 4294901760
  %3078 = vmatmul.mubr.f32.gmra.mrb[0].mxu0 %v3077
  %v3079 = vpop.f32.mrb[0].mxu0
  %v3080 = vadd.f32 %v2885, %v3079
  %v3081 = vpop.f32.mrb[0].mxu0
  %3082 = vmatprep.mubr.f32.mxu0 0.0
  %v3083 = vand.u32 %v2340, 4294901760
  %v3084 = vsub.f32 %v2340, %v3083
  %v3085 = vand.u32 %v3084, 4294901760
  %3086 = vmatmul.mubr.f32.gmra.mrb[0].mxu0 %v3085
  %v3087 = vpop.f32.mrb[0].mxu0
  %v3088 = vadd.f32 %v2892, %v3087
  %v3089 = vpop.f32.mrb[0].mxu0
  %3090 = vmatprep.mubr.f32.mxu0 0.0
  %v3091 = vand.u32 %v2342, 4294901760
  %v3092 = vsub.f32 %v2342, %v3091
  %v3093 = vand.u32 %v3092, 4294901760
  %3094 = vmatmul.mubr.f32.gmra.mrb[0].mxu0 %v3093
  %v3095 = vpop.f32.mrb[0].mxu0
  %v3096 = vadd.f32 %v2899, %v3095
  %v3097 = vpop.f32.mrb[0].mxu0
  %3098 = vmatprep.mubr.f32.mxu0 0.0
  %v3099 = vand.u32 %v2344, 4294901760
  %v3100 = vsub.f32 %v2344, %v3099
  %v3101 = vand.u32 %v3100, 4294901760
  %3102 = vmatmul.mubr.f32.gmra.mrb[0].mxu0 %v3101
  %v3103 = vpop.f32.mrb[0].mxu0
  %v3104 = vadd.f32 %v2906, %v3103
  %v3105 = vpop.f32.mrb[0].mxu0
  %3106 = vmatprep.mubr.f32.mxu0 0.0
  %v3107 = vand.u32 %v2346, 4294901760
  %v3108 = vsub.f32 %v2346, %v3107
  %v3109 = vand.u32 %v3108, 4294901760
  %3110 = vmatmul.mubr.f32.gmra.mrb[0].mxu0 %v3109
  %v3111 = vpop.f32.mrb[0].mxu0
  %v3112 = vadd.f32 %v2913, %v3111
  %v3113 = vpop.f32.mrb[0].mxu0
  %3114 = vmatprep.mubr.f32.mxu0 0.0
  %v3115 = vand.u32 %v2348, 4294901760
  %v3116 = vsub.f32 %v2348, %v3115
  %v3117 = vand.u32 %v3116, 4294901760
  %3118 = vmatmul.mubr.f32.gmra.mrb[0].mxu0 %v3117
  %v3119 = vpop.f32.mrb[0].mxu0
  %v3120 = vadd.f32 %v2920, %v3119
  %v3121 = vpop.f32.mrb[0].mxu0
  %3122 = vmatprep.mubr.f32.mxu0 0.0
  %v3123 = vand.u32 %v2350, 4294901760
  %v3124 = vsub.f32 %v2350, %v3123
  %v3125 = vand.u32 %v3124, 4294901760
  %3126 = vmatmul.mubr.f32.gmra.mrb[0].mxu0 %v3125
  %v3127 = vpop.f32.mrb[0].mxu0
  %v3128 = vadd.f32 %v2927, %v3127
  %v3129 = vpop.f32.mrb[0].mxu0
  %3130 = vmatprep.mubr.f32.mxu0 0.0
  %v3131 = vand.u32 %v2352, 4294901760
  %v3132 = vsub.f32 %v2352, %v3131
  %v3133 = vand.u32 %v3132, 4294901760
  %3134 = vmatmul.mubr.f32.gmra.mrb[0].mxu0 %v3133
  %v3135 = vpop.f32.mrb[0].mxu0
  %v3136 = vadd.f32 %v2934, %v3135
  %v3137 = vpop.f32.mrb[0].mxu0
  %3138 = vmatprep.mubr.f32.mxu0 0.0
  %v3139 = vand.u32 %v2354, 4294901760
  %v3140 = vsub.f32 %v2354, %v3139
  %v3141 = vand.u32 %v3140, 4294901760
  %3142 = vmatmul.mubr.f32.gmra.mrb[0].mxu0 %v3141
  %v3143 = vpop.f32.mrb[0].mxu0
  %v3144 = vadd.f32 %v2941, %v3143
  %v3145 = vpop.f32.mrb[0].mxu0
  %3146 = vmatprep.mubr.f32.mxu0 0.0
  %v3147 = vand.u32 %v2356, 4294901760
  %v3148 = vsub.f32 %v2356, %v3147
  %v3149 = vand.u32 %v3148, 4294901760
  %3150 = vmatmul.mubr.f32.gmra.mrb[0].mxu0 %v3149
  %v3151 = vpop.f32.mrb[0].mxu0
  %v3152 = vadd.f32 %v2948, %v3151
  %v3153 = vpop.f32.mrb[0].mxu0
  %3154 = vmatprep.mubr.f32.mxu0 0.0
  %v3155 = vand.u32 %v2358, 4294901760
  %v3156 = vsub.f32 %v2358, %v3155
  %v3157 = vand.u32 %v3156, 4294901760
  %3158 = vmatmul.mubr.f32.gmra.mrb[0].mxu0 %v3157
  %v3159 = vpop.f32.mrb[0].mxu0
  %v3160 = vadd.f32 %v2955, %v3159
  %v3161 = vpop.f32.mrb[0].mxu0
  %3162 = vmatprep.mubr.f32.mxu0 0.0
  %v3163 = vand.u32 %v2360, 4294901760
  %v3164 = vsub.f32 %v2360, %v3163
  %v3165 = vand.u32 %v3164, 4294901760
  %3166 = vmatmul.mubr.f32.gmra.mrb[0].mxu0 %v3165
  %v3167 = vpop.f32.mrb[0].mxu0
  %v3168 = vadd.f32 %v2962, %v3167
  %v3169 = vpop.f32.mrb[0].mxu0
  %3170 = vmatprep.mubr.f32.mxu0 0.0
  %v3171 = vand.u32 %v2362, 4294901760
  %v3172 = vsub.f32 %v2362, %v3171
  %v3173 = vand.u32 %v3172, 4294901760
  %3174 = vmatmul.mubr.f32.gmra.mrb[0].mxu0 %v3173
  %v3175 = vpop.f32.mrb[0].mxu0
  %v3176 = vadd.f32 %v2969, %v3175
  %v3177 = vpop.f32.mrb[0].mxu0
  %3178 = vmatprep.mubr.f32.mxu0 0.0
  %v3179 = vand.u32 %v2364, 4294901760
  %v3180 = vsub.f32 %v2364, %v3179
  %v3181 = vand.u32 %v3180, 4294901760
  %3182 = vmatmul.mubr.f32.gmra.mrb[0].mxu0 %v3181
  %v3183 = vpop.f32.mrb[0].mxu0
  %v3184 = vadd.f32 %v2976, %v3183
  %v3185 = vpop.f32.mrb[0].mxu0
  %3186 = vmatprep.mubr.f32.mxu0 0.0
  %v3187 = vand.u32 %v2366, 4294901760
  %v3188 = vsub.f32 %v2366, %v3187
  %v3189 = vand.u32 %v3188, 4294901760
  %3190 = vmatmul.mubr.f32.gmra.mrb[0].mxu0 %v3189
  %v3191 = vpop.f32.mrb[0].mxu0
  %v3192 = vadd.f32 %v2983, %v3191
  %v3193 = vpop.f32.mrb[0].mxu0
  %3194 = vmatprep.mubr.f32.mxu0 0.0
  %v3195 = vand.u32 %v2368, 4294901760
  %v3196 = vsub.f32 %v2368, %v3195
  %v3197 = vand.u32 %v3196, 4294901760
  %3198 = vmatmul.mubr.f32.gmra.mrb[0].mxu0 %v3197
  %v3199 = vpop.f32.mrb[0].mxu0
  %v3200 = vadd.f32 %v2990, %v3199
  %v3201 = vpop.f32.mrb[0].mxu0
  %3202 = vmatprep.mubr.f32.mxu0 0.0
  %v3203 = vand.u32 %v2370, 4294901760
  %v3204 = vsub.f32 %v2370, %v3203
  %v3205 = vand.u32 %v3204, 4294901760
  %3206 = vmatmul.mubr.f32.gmra.mrb[0].mxu0 %v3205
  %v3207 = vpop.f32.mrb[0].mxu0
  %v3208 = vadd.f32 %v2997, %v3207
  %v3209 = vpop.f32.mrb[0].mxu0
  %3210 = vdwg.mxu0
  %3211 = vmatprep.subr.mxu0 0.0
  %v3212 = vand.u32 %v1024, 4294901760
  %v3213 = vsub.f32 %v1024, %v3212
  %v3214 = vand.u32 %v3213, 4294901760
  %3215 = vmatpush1.msra.mxu0 %v3214
  %3216 = vmatprep.subr.mxu0 0.0
  %v3217 = vand.u32 %v2373, 4294901760
  %v3218 = vsub.f32 %v2373, %v3217
  %v3219 = vand.u32 %v3218, 4294901760
  %3220 = vmatpush1.msra.mxu0 %v3219
  %3221 = vmatprep.subr.mxu0 0.0
  %3222 = vmatpush1.msra.mxu0 0.0
  %3223 = vmatprep.subr.mxu0 0.0
  %3224 = vmatpush1.msra.mxu0 0.0
  %3225 = vmatprep.subr.mxu0 0.0
  %3226 = vmatpush1.msra.mxu0 0.0
  %3227 = vmatprep.subr.mxu0 0.0
  %3228 = vmatpush1.msra.mxu0 0.0
  %3229 = vmatprep.subr.mxu0 0.0
  %3230 = vmatpush1.msra.mxu0 0.0
  %3231 = vmatprep.subr.mxu0 0.0
  %3232 = vmatpush1.msra.mxu0 0.0
  %3233 = vmatprep.subr.mxu0 0.0
  %3234 = vmatpush1.msra.mxu0 0.0
  %3235 = vmatprep.subr.mxu0 0.0
  %3236 = vmatpush1.msra.mxu0 0.0
  %3237 = vmatprep.subr.mxu0 0.0
  %3238 = vmatpush1.msra.mxu0 0.0
  %3239 = vmatprep.subr.mxu0 0.0
  %3240 = vmatpush1.msra.mxu0 0.0
  %3241 = vmatprep.subr.mxu0 0.0
  %3242 = vmatpush1.msra.mxu0 0.0
  %3243 = vmatprep.subr.mxu0 0.0
  %3244 = vmatpush1.msra.mxu0 0.0
  %3245 = vmatprep.subr.mxu0 0.0
  %3246 = vmatpush1.msra.mxu0 0.0
  %3247 = vmatprep.subr.mxu0 0.0
  %3248 = vmatpush1.msra.mxu0 0.0
  %3249 = vmatprep.subr.mxu0 0.0
  %3250 = vmatpush1.msra.mxu0 0.0
  %3251 = vmatprep.subr.mxu0 0.0
  %3252 = vmatpush1.msra.mxu0 0.0
  %3253 = vmatprep.subr.mxu0 0.0
  %3254 = vmatpush1.msra.mxu0 0.0
  %3255 = vmatprep.subr.mxu0 0.0
  %3256 = vmatpush1.msra.mxu0 0.0
  %3257 = vmatprep.subr.mxu0 0.0
  %3258 = vmatpush1.msra.mxu0 0.0
  %3259 = vmatprep.subr.mxu0 0.0
  %3260 = vmatpush1.msra.mxu0 0.0
  %3261 = vmatprep.subr.mxu0 0.0
  %3262 = vmatpush1.msra.mxu0 0.0
  %3263 = vmatprep.subr.mxu0 0.0
  %3264 = vmatpush1.msra.mxu0 0.0
  %3265 = vmatprep.subr.mxu0 0.0
  %3266 = vmatpush1.msra.mxu0 0.0
  %3267 = vmatprep.subr.mxu0 0.0
  %3268 = vmatpush1.msra.mxu0 0.0
  %3269 = vmatprep.subr.mxu0 0.0
  %3270 = vmatpush1.msra.mxu0 0.0
  %3271 = vmatprep.subr.mxu0 0.0
  %3272 = vmatpush1.msra.mxu0 0.0
  %3273 = vmatprep.subr.mxu0 0.0
  %3274 = vmatpush1.msra.mxu0 0.0
  %3275 = vmatprep.subr.mxu0 0.0
  %3276 = vmatpush1.msra.mxu0 0.0
  %3277 = vmatprep.subr.mxu0 0.0
  %3278 = vmatpush1.msra.mxu0 0.0
  %3279 = vmatprep.subr.mxu0 0.0
  %3280 = vmatpush1.msra.mxu0 0.0
  %3281 = vmatprep.mubr.f32.mxu0 0.0
  %v3282 = vand.u32 %v2336, 4294901760
  %3283 = vmatmul.mubr.f32.gmra.mrb[0].mxu0 %v3282
  %v3284 = vpop.f32.mrb[0].mxu0
  %v3285 = vadd.f32 %v3072, %v3284
  %v3286 = vpop.f32.mrb[0].mxu0
  %3287 = vmatprep.mubr.f32.mxu0 0.0
  %v3288 = vand.u32 %v2338, 4294901760
  %3289 = vmatmul.mubr.f32.gmra.mrb[0].mxu0 %v3288
  %v3290 = vpop.f32.mrb[0].mxu0
  %v3291 = vadd.f32 %v3080, %v3290
  %v3292 = vpop.f32.mrb[0].mxu0
  %3293 = vmatprep.mubr.f32.mxu0 0.0
  %v3294 = vand.u32 %v2340, 4294901760
  %3295 = vmatmul.mubr.f32.gmra.mrb[0].mxu0 %v3294
  %v3296 = vpop.f32.mrb[0].mxu0
  %v3297 = vadd.f32 %v3088, %v3296
  %v3298 = vpop.f32.mrb[0].mxu0
  %3299 = vmatprep.mubr.f32.mxu0 0.0
  %v3300 = vand.u32 %v2342, 4294901760
  %3301 = vmatmul.mubr.f32.gmra.mrb[0].mxu0 %v3300
  %v3302 = vpop.f32.mrb[0].mxu0
  %v3303 = vadd.f32 %v3096, %v3302
  %v3304 = vpop.f32.mrb[0].mxu0
  %3305 = vmatprep.mubr.f32.mxu0 0.0
  %v3306 = vand.u32 %v2344, 4294901760
  %3307 = vmatmul.mubr.f32.gmra.mrb[0].mxu0 %v3306
  %v3308 = vpop.f32.mrb[0].mxu0
  %v3309 = vadd.f32 %v3104, %v3308
  %v3310 = vpop.f32.mrb[0].mxu0
  %3311 = vmatprep.mubr.f32.mxu0 0.0
  %v3312 = vand.u32 %v2346, 4294901760
  %3313 = vmatmul.mubr.f32.gmra.mrb[0].mxu0 %v3312
  %v3314 = vpop.f32.mrb[0].mxu0
  %v3315 = vadd.f32 %v3112, %v3314
  %v3316 = vpop.f32.mrb[0].mxu0
  %3317 = vmatprep.mubr.f32.mxu0 0.0
  %v3318 = vand.u32 %v2348, 4294901760
  %3319 = vmatmul.mubr.f32.gmra.mrb[0].mxu0 %v3318
  %v3320 = vpop.f32.mrb[0].mxu0
  %v3321 = vadd.f32 %v3120, %v3320
  %v3322 = vpop.f32.mrb[0].mxu0
  %3323 = vmatprep.mubr.f32.mxu0 0.0
  %v3324 = vand.u32 %v2350, 4294901760
  %3325 = vmatmul.mubr.f32.gmra.mrb[0].mxu0 %v3324
  %v3326 = vpop.f32.mrb[0].mxu0
  %v3327 = vadd.f32 %v3128, %v3326
  %v3328 = vpop.f32.mrb[0].mxu0
  %3329 = vmatprep.mubr.f32.mxu0 0.0
  %v3330 = vand.u32 %v2352, 4294901760
  %3331 = vmatmul.mubr.f32.gmra.mrb[0].mxu0 %v3330
  %v3332 = vpop.f32.mrb[0].mxu0
  %v3333 = vadd.f32 %v3136, %v3332
  %v3334 = vpop.f32.mrb[0].mxu0
  %3335 = vmatprep.mubr.f32.mxu0 0.0
  %v3336 = vand.u32 %v2354, 4294901760
  %3337 = vmatmul.mubr.f32.gmra.mrb[0].mxu0 %v3336
  %v3338 = vpop.f32.mrb[0].mxu0
  %v3339 = vadd.f32 %v3144, %v3338
  %v3340 = vpop.f32.mrb[0].mxu0
  %3341 = vmatprep.mubr.f32.mxu0 0.0
  %v3342 = vand.u32 %v2356, 4294901760
  %3343 = vmatmul.mubr.f32.gmra.mrb[0].mxu0 %v3342
  %v3344 = vpop.f32.mrb[0].mxu0
  %v3345 = vadd.f32 %v3152, %v3344
  %v3346 = vpop.f32.mrb[0].mxu0
  %3347 = vmatprep.mubr.f32.mxu0 0.0
  %v3348 = vand.u32 %v2358, 4294901760
  %3349 = vmatmul.mubr.f32.gmra.mrb[0].mxu0 %v3348
  %v3350 = vpop.f32.mrb[0].mxu0
  %v3351 = vadd.f32 %v3160, %v3350
  %v3352 = vpop.f32.mrb[0].mxu0
  %3353 = vmatprep.mubr.f32.mxu0 0.0
  %v3354 = vand.u32 %v2360, 4294901760
  %3355 = vmatmul.mubr.f32.gmra.mrb[0].mxu0 %v3354
  %v3356 = vpop.f32.mrb[0].mxu0
  %v3357 = vadd.f32 %v3168, %v3356
  %v3358 = vpop.f32.mrb[0].mxu0
  %3359 = vmatprep.mubr.f32.mxu0 0.0
  %v3360 = vand.u32 %v2362, 4294901760
  %3361 = vmatmul.mubr.f32.gmra.mrb[0].mxu0 %v3360
  %v3362 = vpop.f32.mrb[0].mxu0
  %v3363 = vadd.f32 %v3176, %v3362
  %v3364 = vpop.f32.mrb[0].mxu0
  %3365 = vmatprep.mubr.f32.mxu0 0.0
  %v3366 = vand.u32 %v2364, 4294901760
  %3367 = vmatmul.mubr.f32.gmra.mrb[0].mxu0 %v3366
  %v3368 = vpop.f32.mrb[0].mxu0
  %v3369 = vadd.f32 %v3184, %v3368
  %v3370 = vpop.f32.mrb[0].mxu0
  %3371 = vmatprep.mubr.f32.mxu0 0.0
  %v3372 = vand.u32 %v2366, 4294901760
  %3373 = vmatmul.mubr.f32.gmra.mrb[0].mxu0 %v3372
  %v3374 = vpop.f32.mrb[0].mxu0
  %v3375 = vadd.f32 %v3192, %v3374
  %v3376 = vpop.f32.mrb[0].mxu0
  %3377 = vmatprep.mubr.f32.mxu0 0.0
  %v3378 = vand.u32 %v2368, 4294901760
  %3379 = vmatmul.mubr.f32.gmra.mrb[0].mxu0 %v3378
  %v3380 = vpop.f32.mrb[0].mxu0
  %v3381 = vadd.f32 %v3200, %v3380
  %v3382 = vpop.f32.mrb[0].mxu0
  %3383 = vmatprep.mubr.f32.mxu0 0.0
  %v3384 = vand.u32 %v2370, 4294901760
  %3385 = vmatmul.mubr.f32.gmra.mrb[0].mxu0 %v3384
  %v3386 = vpop.f32.mrb[0].mxu0
  %v3387 = vadd.f32 %v3208, %v3386
  %v3388 = vpop.f32.mrb[0].mxu0
  %3389 = vdwg.mxu0
  %3390 = vmatprep.subr.mxu0 0.0
  %v3391 = vand.u32 %v1024, 4294901760
  %3392 = vmatpush1.msra.mxu0 %v3391
  %3393 = vmatprep.subr.mxu0 0.0
  %v3394 = vand.u32 %v2373, 4294901760
  %3395 = vmatpush1.msra.mxu0 %v3394
  %3396 = vmatprep.subr.mxu0 0.0
  %3397 = vmatpush1.msra.mxu0 0.0
  %3398 = vmatprep.subr.mxu0 0.0
  %3399 = vmatpush1.msra.mxu0 0.0
  %3400 = vmatprep.subr.mxu0 0.0
  %3401 = vmatpush1.msra.mxu0 0.0
  %3402 = vmatprep.subr.mxu0 0.0
  %3403 = vmatpush1.msra.mxu0 0.0
  %3404 = vmatprep.subr.mxu0 0.0
  %3405 = vmatpush1.msra.mxu0 0.0
  %3406 = vmatprep.subr.mxu0 0.0
  %3407 = vmatpush1.msra.mxu0 0.0
  %3408 = vmatprep.subr.mxu0 0.0
  %3409 = vmatpush1.msra.mxu0 0.0
  %3410 = vmatprep.subr.mxu0 0.0
  %3411 = vmatpush1.msra.mxu0 0.0
  %3412 = vmatprep.subr.mxu0 0.0
  %3413 = vmatpush1.msra.mxu0 0.0
  %3414 = vmatprep.subr.mxu0 0.0
  %3415 = vmatpush1.msra.mxu0 0.0
  %3416 = vmatprep.subr.mxu0 0.0
  %3417 = vmatpush1.msra.mxu0 0.0
  %3418 = vmatprep.subr.mxu0 0.0
  %3419 = vmatpush1.msra.mxu0 0.0
  %3420 = vmatprep.subr.mxu0 0.0
  %3421 = vmatpush1.msra.mxu0 0.0
  %3422 = vmatprep.subr.mxu0 0.0
  %3423 = vmatpush1.msra.mxu0 0.0
  %3424 = vmatprep.subr.mxu0 0.0
  %3425 = vmatpush1.msra.mxu0 0.0
  %3426 = vmatprep.subr.mxu0 0.0
  %3427 = vmatpush1.msra.mxu0 0.0
  %3428 = vmatprep.subr.mxu0 0.0
  %3429 = vmatpush1.msra.mxu0 0.0
  %3430 = vmatprep.subr.mxu0 0.0
  %3431 = vmatpush1.msra.mxu0 0.0
  %3432 = vmatprep.subr.mxu0 0.0
  %3433 = vmatpush1.msra.mxu0 0.0
  %3434 = vmatprep.subr.mxu0 0.0
  %3435 = vmatpush1.msra.mxu0 0.0
  %3436 = vmatprep.subr.mxu0 0.0
  %3437 = vmatpush1.msra.mxu0 0.0
  %3438 = vmatprep.subr.mxu0 0.0
  %3439 = vmatpush1.msra.mxu0 0.0
  %3440 = vmatprep.subr.mxu0 0.0
  %3441 = vmatpush1.msra.mxu0 0.0
  %3442 = vmatprep.subr.mxu0 0.0
  %3443 = vmatpush1.msra.mxu0 0.0
  %3444 = vmatprep.subr.mxu0 0.0
  %3445 = vmatpush1.msra.mxu0 0.0
  %3446 = vmatprep.subr.mxu0 0.0
  %3447 = vmatpush1.msra.mxu0 0.0
  %3448 = vmatprep.subr.mxu0 0.0
  %3449 = vmatpush1.msra.mxu0 0.0
  %3450 = vmatprep.subr.mxu0 0.0
  %3451 = vmatpush1.msra.mxu0 0.0
  %3452 = vmatprep.subr.mxu0 0.0
  %3453 = vmatpush1.msra.mxu0 0.0
  %3454 = vmatprep.subr.mxu0 0.0
  %3455 = vmatpush1.msra.mxu0 0.0
  %3456 = vmatprep.mubr.f32.mxu0 0.0
  %v3457 = vand.u32 %v2336, 4294901760
  %3458 = vmatmul.mubr.f32.gmra.mrb[0].mxu0 %v3457
  %v3459 = vpop.f32.mrb[0].mxu0
  %v3460 = vadd.f32 %v3285, %v3459
  %v3461 = vpop.f32.mrb[0].mxu0
  %3462 = vmatprep.mubr.f32.mxu0 0.0
  %v3463 = vand.u32 %v2338, 4294901760
  %3464 = vmatmul.mubr.f32.gmra.mrb[0].mxu0 %v3463
  %v3465 = vpop.f32.mrb[0].mxu0
  %v3466 = vadd.f32 %v3291, %v3465
  %v3467 = vpop.f32.mrb[0].mxu0
  %3468 = vmatprep.mubr.f32.mxu0 0.0
  %v3469 = vand.u32 %v2340, 4294901760
  %3470 = vmatmul.mubr.f32.gmra.mrb[0].mxu0 %v3469
  %v3471 = vpop.f32.mrb[0].mxu0
  %v3472 = vadd.f32 %v3297, %v3471
  %v3473 = vpop.f32.mrb[0].mxu0
  %3474 = vmatprep.mubr.f32.mxu0 0.0
  %v3475 = vand.u32 %v2342, 4294901760
  %3476 = vmatmul.mubr.f32.gmra.mrb[0].mxu0 %v3475
  %v3477 = vpop.f32.mrb[0].mxu0
  %v3478 = vadd.f32 %v3303, %v3477
  %v3479 = vpop.f32.mrb[0].mxu0
  %3480 = vmatprep.mubr.f32.mxu0 0.0
  %v3481 = vand.u32 %v2344, 4294901760
  %3482 = vmatmul.mubr.f32.gmra.mrb[0].mxu0 %v3481
  %v3483 = vpop.f32.mrb[0].mxu0
  %v3484 = vadd.f32 %v3309, %v3483
  %v3485 = vpop.f32.mrb[0].mxu0
  %3486 = vmatprep.mubr.f32.mxu0 0.0
  %v3487 = vand.u32 %v2346, 4294901760
  %3488 = vmatmul.mubr.f32.gmra.mrb[0].mxu0 %v3487
  %v3489 = vpop.f32.mrb[0].mxu0
  %v3490 = vadd.f32 %v3315, %v3489
  %v3491 = vpop.f32.mrb[0].mxu0
  %3492 = vmatprep.mubr.f32.mxu0 0.0
  %v3493 = vand.u32 %v2348, 4294901760
  %3494 = vmatmul.mubr.f32.gmra.mrb[0].mxu0 %v3493
  %v3495 = vpop.f32.mrb[0].mxu0
  %v3496 = vadd.f32 %v3321, %v3495
  %v3497 = vpop.f32.mrb[0].mxu0
  %3498 = vmatprep.mubr.f32.mxu0 0.0
  %v3499 = vand.u32 %v2350, 4294901760
  %3500 = vmatmul.mubr.f32.gmra.mrb[0].mxu0 %v3499
  %v3501 = vpop.f32.mrb[0].mxu0
  %v3502 = vadd.f32 %v3327, %v3501
  %v3503 = vpop.f32.mrb[0].mxu0
  %3504 = vmatprep.mubr.f32.mxu0 0.0
  %v3505 = vand.u32 %v2352, 4294901760
  %3506 = vmatmul.mubr.f32.gmra.mrb[0].mxu0 %v3505
  %v3507 = vpop.f32.mrb[0].mxu0
  %v3508 = vadd.f32 %v3333, %v3507
  %v3509 = vpop.f32.mrb[0].mxu0
  %3510 = vmatprep.mubr.f32.mxu0 0.0
  %v3511 = vand.u32 %v2354, 4294901760
  %3512 = vmatmul.mubr.f32.gmra.mrb[0].mxu0 %v3511
  %v3513 = vpop.f32.mrb[0].mxu0
  %v3514 = vadd.f32 %v3339, %v3513
  %v3515 = vpop.f32.mrb[0].mxu0
  %3516 = vmatprep.mubr.f32.mxu0 0.0
  %v3517 = vand.u32 %v2356, 4294901760
  %3518 = vmatmul.mubr.f32.gmra.mrb[0].mxu0 %v3517
  %v3519 = vpop.f32.mrb[0].mxu0
  %v3520 = vadd.f32 %v3345, %v3519
  %v3521 = vpop.f32.mrb[0].mxu0
  %3522 = vmatprep.mubr.f32.mxu0 0.0
  %v3523 = vand.u32 %v2358, 4294901760
  %3524 = vmatmul.mubr.f32.gmra.mrb[0].mxu0 %v3523
  %v3525 = vpop.f32.mrb[0].mxu0
  %v3526 = vadd.f32 %v3351, %v3525
  %v3527 = vpop.f32.mrb[0].mxu0
  %3528 = vmatprep.mubr.f32.mxu0 0.0
  %v3529 = vand.u32 %v2360, 4294901760
  %3530 = vmatmul.mubr.f32.gmra.mrb[0].mxu0 %v3529
  %v3531 = vpop.f32.mrb[0].mxu0
  %v3532 = vadd.f32 %v3357, %v3531
  %v3533 = vpop.f32.mrb[0].mxu0
  %3534 = vmatprep.mubr.f32.mxu0 0.0
  %v3535 = vand.u32 %v2362, 4294901760
  %3536 = vmatmul.mubr.f32.gmra.mrb[0].mxu0 %v3535
  %v3537 = vpop.f32.mrb[0].mxu0
  %v3538 = vadd.f32 %v3363, %v3537
  %v3539 = vpop.f32.mrb[0].mxu0
  %3540 = vmatprep.mubr.f32.mxu0 0.0
  %v3541 = vand.u32 %v2364, 4294901760
  %3542 = vmatmul.mubr.f32.gmra.mrb[0].mxu0 %v3541
  %v3543 = vpop.f32.mrb[0].mxu0
  %v3544 = vadd.f32 %v3369, %v3543
  %v3545 = vpop.f32.mrb[0].mxu0
  %3546 = vmatprep.mubr.f32.mxu0 0.0
  %v3547 = vand.u32 %v2366, 4294901760
  %3548 = vmatmul.mubr.f32.gmra.mrb[0].mxu0 %v3547
  %v3549 = vpop.f32.mrb[0].mxu0
  %v3550 = vadd.f32 %v3375, %v3549
  %v3551 = vpop.f32.mrb[0].mxu0
  %3552 = vmatprep.mubr.f32.mxu0 0.0
  %v3553 = vand.u32 %v2368, 4294901760
  %3554 = vmatmul.mubr.f32.gmra.mrb[0].mxu0 %v3553
  %v3555 = vpop.f32.mrb[0].mxu0
  %v3556 = vadd.f32 %v3381, %v3555
  %v3557 = vpop.f32.mrb[0].mxu0
  %3558 = vmatprep.mubr.f32.mxu0 0.0
  %v3559 = vand.u32 %v2370, 4294901760
  %3560 = vmatmul.mubr.f32.gmra.mrb[0].mxu0 %v3559
  %v3561 = vpop.f32.mrb[0].mxu0
  %v3562 = vadd.f32 %v3387, %v3561
  %v3563 = vpop.f32.mrb[0].mxu0
  %3564 = vdwg.mxu0
  %v3565 = vadd.f32 %v2195, %v3460
  %v3566 = vadd.f32 %v2201, %v3466
  %v3567 = vadd.f32 %v2207, %v3472
  %v3568 = vadd.f32 %v2213, %v3478
  %v3569 = vadd.f32 %v2219, %v3484
  %v3570 = vadd.f32 %v2225, %v3490
  %v3571 = vadd.f32 %v2231, %v3496
  %v3572 = vadd.f32 %v2237, %v3502
  %v3573 = vadd.f32 %v2243, %v3508
  %v3574 = vadd.f32 %v2249, %v3514
  %v3575 = vadd.f32 %v2255, %v3520
  %v3576 = vadd.f32 %v2261, %v3526
  %v3577 = vadd.f32 %v2267, %v3532
  %v3578 = vadd.f32 %v2273, %v3538
  %v3579 = vadd.f32 %v2279, %v3544
  %v3580 = vadd.f32 %v2285, %v3550
  %v3581 = vadd.f32 %v2291, %v3556
  %v3582 = vadd.f32 %v2297, %v3562
  %v3583 = vmul.f32 %v3565, 0.2
  %v3584 = vmul.f32 %v3566, 0.2
  %v3585 = vmul.f32 %v3567, 0.2
  %v3586 = vmul.f32 %v3568, 0.2
  %v3587 = vmul.f32 %v3569, 0.2
  %v3588 = vmul.f32 %v3570, 0.2
  %v3589 = vmul.f32 %v3571, 0.2
  %v3590 = vmul.f32 %v3572, 0.2
  %v3591 = vmul.f32 %v3573, 0.2
  %v3592 = vmul.f32 %v3574, 0.2
  %v3593 = vmul.f32 %v3575, 0.2
  %v3594 = vmul.f32 %v3576, 0.2
  %v3595 = vmul.f32 %v3577, 0.2
  %v3596 = vmul.f32 %v3578, 0.2
  %v3597 = vmul.f32 %v3579, 0.2
  %v3598 = vmul.f32 %v3580, 0.2
  %v3599 = vmul.f32 %v3581, 0.2
  %v3600 = vmul.f32 %v3582, 0.2
  %v3601 = vmax.f32 %v3565, %v3583
  %v3602 = vmax.f32 %v3566, %v3584
  %v3603 = vmax.f32 %v3567, %v3585
  %v3604 = vmax.f32 %v3568, %v3586
  %v3605 = vmax.f32 %v3569, %v3587
  %v3606 = vmax.f32 %v3570, %v3588
  %v3607 = vmax.f32 %v3571, %v3589
  %v3608 = vmax.f32 %v3572, %v3590
  %v3609 = vmax.f32 %v3573, %v3591
  %v3610 = vmax.f32 %v3574, %v3592
  %v3611 = vmax.f32 %v3575, %v3593
  %v3612 = vmax.f32 %v3576, %v3594
  %v3613 = vmax.f32 %v3577, %v3595
  %v3614 = vmax.f32 %v3578, %v3596
  %v3615 = vmax.f32 %v3579, %v3597
  %v3616 = vmax.f32 %v3580, %v3598
  %v3617 = vmax.f32 %v3581, %v3599
  %v3618 = vmax.f32 %v3582, %v3600
  %v3619 = vlaneseq
  %v3620 = vshrl.u32 %v3619, 7
  %v3621 = vsub.s32 3, %v3620
  %v3622 = vrot.slane %v22, %v3621
  %v3623 = vmul.f32 %v3601, %v3622
  %v3624 = vmul.f32 %v3602, %v3622
  %v3625 = vmul.f32 %v3603, %v3622
  %v3626 = vmul.f32 %v3604, %v3622
  %v3627 = vmul.f32 %v3605, %v3622
  %v3628 = vmul.f32 %v3606, %v3622
  %v3629 = vmul.f32 %v3607, %v3622
  %v3630 = vmul.f32 %v3608, %v3622
  %v3631 = vmul.f32 %v3609, %v3622
  %v3632 = vmul.f32 %v3610, %v3622
  %v3633 = vmul.f32 %v3611, %v3622
  %v3634 = vmul.f32 %v3612, %v3622
  %v3635 = vmul.f32 %v3613, %v3622
  %v3636 = vmul.f32 %v3614, %v3622
  %v3637 = vmul.f32 %v3615, %v3622
  %v3638 = vmul.f32 %v3616, %v3622
  %v3639 = vmul.f32 %v3617, %v3622
  %v3640 = vmul.f32 %v3618, %v3622
  %v3641 = vld [vmem:[%s3] sm:$0xff]
  %v3642 = vld [vmem:[%s3 + $0x8] sm:$0xff]
  %v3643 = vld [vmem:[%s3 + $0x10] sm:$0xf]
  %v3644 = vld [vmem:[%s3 + $0x18] sm:$0xf]
  %vm3645 = vcmask 15360
  %v3646 = vsel %vm3645, %v3623, 0.0
  %3647 = vadd.xlane.f32.xlu0 %v3646
  %v3648 = vpop.xlane.xlu0 %3647
  %v3649 = vsel %vm3645, %v3624, 0.0
  %3650 = vadd.xlane.f32.xlu0 %v3649
  %v3651 = vpop.xlane.xlu0 %3650
  %v3652 = vsel %vm3645, %v3625, 0.0
  %3653 = vadd.xlane.f32.xlu0 %v3652
  %v3654 = vpop.xlane.xlu0 %3653
  %v3655 = vsel %vm3645, %v3626, 0.0
  %3656 = vadd.xlane.f32.xlu0 %v3655
  %v3657 = vpop.xlane.xlu0 %3656
  %v3658 = vsel %vm3645, %v3627, 0.0
  %3659 = vadd.xlane.f32.xlu0 %v3658
  %v3660 = vpop.xlane.xlu0 %3659
  %v3661 = vsel %vm3645, %v3628, 0.0
  %3662 = vadd.xlane.f32.xlu0 %v3661
  %v3663 = vpop.xlane.xlu0 %3662
  %v3664 = vsel %vm3645, %v3629, 0.0
  %3665 = vadd.xlane.f32.xlu0 %v3664
  %v3666 = vpop.xlane.xlu0 %3665
  %v3667 = vsel %vm3645, %v3630, 0.0
  %3668 = vadd.xlane.f32.xlu0 %v3667
  %v3669 = vpop.xlane.xlu0 %3668
  %v3670 = vsel %vm3645, %v3631, 0.0
  %3671 = vadd.xlane.f32.xlu0 %v3670
  %v3672 = vpop.xlane.xlu0 %3671
  %v3673 = vsel %vm3645, %v3632, 0.0
  %3674 = vadd.xlane.f32.xlu0 %v3673
  %v3675 = vpop.xlane.xlu0 %3674
  %v3676 = vsel %vm3645, %v3633, 0.0
  %3677 = vadd.xlane.f32.xlu0 %v3676
  %v3678 = vpop.xlane.xlu0 %3677
  %v3679 = vsel %vm3645, %v3634, 0.0
  %3680 = vadd.xlane.f32.xlu0 %v3679
  %v3681 = vpop.xlane.xlu0 %3680
  %v3682 = vsel %vm3645, %v3635, 0.0
  %3683 = vadd.xlane.f32.xlu0 %v3682
  %v3684 = vpop.xlane.xlu0 %3683
  %v3685 = vsel %vm3645, %v3636, 0.0
  %3686 = vadd.xlane.f32.xlu0 %v3685
  %v3687 = vpop.xlane.xlu0 %3686
  %v3688 = vsel %vm3645, %v3637, 0.0
  %3689 = vadd.xlane.f32.xlu0 %v3688
  %v3690 = vpop.xlane.xlu0 %3689
  %v3691 = vsel %vm3645, %v3638, 0.0
  %3692 = vadd.xlane.f32.xlu0 %v3691
  %v3693 = vpop.xlane.xlu0 %3692
  %v3694 = vsel %vm3645, %v3639, 0.0
  %3695 = vadd.xlane.f32.xlu0 %v3694
  %v3696 = vpop.xlane.xlu0 %3695
  %v3697 = vsel %vm3645, %v3640, 0.0
  %3698 = vadd.xlane.f32.xlu0 %v3697
  %v3699 = vpop.xlane.xlu0 %3698
  %vm3700 = vcmp.gt.f32.partialorder %v1033, 0.0
  %vm3701 = vcmp.gt.f32.partialorder %v1034, 0.0
  %vm3702 = vcmp.gt.f32.partialorder %v1035, 0.0
  %vm3703 = vcmp.gt.f32.partialorder %v1036, 0.0
  %vm3704 = vcmp.gt.f32.partialorder %v1037, 0.0
  %vm3705 = vcmp.gt.f32.partialorder %v1038, 0.0
  %vm3706 = vcmp.gt.f32.partialorder %v1039, 0.0
  %vm3707 = vcmp.gt.f32.partialorder %v1040, 0.0
  %vm3708 = vcmp.gt.f32.partialorder %v1041, 0.0
  %vm3709 = vcmp.gt.f32.partialorder %v1042, 0.0
  %vm3710 = vcmp.gt.f32.partialorder %v1043, 0.0
  %vm3711 = vcmp.gt.f32.partialorder %v1044, 0.0
  %vm3712 = vcmp.gt.f32.partialorder %v1045, 0.0
  %vm3713 = vcmp.gt.f32.partialorder %v1046, 0.0
  %vm3714 = vcmp.gt.f32.partialorder %v1047, 0.0
  %vm3715 = vcmp.gt.f32.partialorder %v1048, 0.0
  %vm3716 = vcmp.gt.f32.partialorder %v1049, 0.0
  %vm3717 = vcmp.gt.f32.partialorder %v1050, 0.0
  %v3718 = vsel %vm3700, %v3648, -1e+30
  %v3719 = vsel %vm3701, %v3651, -1e+30
  %v3720 = vsel %vm3702, %v3654, -1e+30
  %v3721 = vsel %vm3703, %v3657, -1e+30
  %v3722 = vsel %vm3704, %v3660, -1e+30
  %v3723 = vsel %vm3705, %v3663, -1e+30
  %v3724 = vsel %vm3706, %v3666, -1e+30
  %v3725 = vsel %vm3707, %v3669, -1e+30
  %v3726 = vsel %vm3708, %v3672, -1e+30
  %v3727 = vsel %vm3709, %v3675, -1e+30
  %v3728 = vsel %vm3710, %v3678, -1e+30
  %v3729 = vsel %vm3711, %v3681, -1e+30
  %v3730 = vsel %vm3712, %v3684, -1e+30
  %v3731 = vsel %vm3713, %v3687, -1e+30
  %v3732 = vsel %vm3714, %v3690, -1e+30
  %v3733 = vsel %vm3715, %v3693, -1e+30
  %v3734 = vsel %vm3716, %v3696, -1e+30
  %v3735 = vsel %vm3717, %v3699, -1e+30
  %vm3736 = vcmask 203968
  %v3737 = vsel %vm3736, %v3718, -inf
  %v3738 = vsel %vm3736, %v3719, -inf
  %v3739 = vsel %vm3736, %v3720, -inf
  %v3740 = vsel %vm3736, %v3721, -inf
  %v3741 = vsel %vm3736, %v3722, -inf
  %v3742 = vmax.f32 %v3737, %v3741
  %v3743 = vsel %vm3736, %v3723, -inf
  %v3744 = vmax.f32 %v3738, %v3743
  %v3745 = vsel %vm3736, %v3724, -inf
  %v3746 = vmax.f32 %v3739, %v3745
  %v3747 = vsel %vm3736, %v3725, -inf
  %v3748 = vmax.f32 %v3740, %v3747
  %v3749 = vsel %vm3736, %v3726, -inf
  %v3750 = vmax.f32 %v3742, %v3749
  %v3751 = vsel %vm3736, %v3727, -inf
  %v3752 = vmax.f32 %v3744, %v3751
  %v3753 = vsel %vm3736, %v3728, -inf
  %v3754 = vmax.f32 %v3746, %v3753
  %v3755 = vsel %vm3736, %v3729, -inf
  %v3756 = vmax.f32 %v3748, %v3755
  %v3757 = vsel %vm3736, %v3730, -inf
  %v3758 = vmax.f32 %v3750, %v3757
  %v3759 = vsel %vm3736, %v3731, -inf
  %v3760 = vmax.f32 %v3752, %v3759
  %v3761 = vsel %vm3736, %v3732, -inf
  %v3762 = vmax.f32 %v3754, %v3761
  %v3763 = vsel %vm3736, %v3733, -inf
  %v3764 = vmax.f32 %v3756, %v3763
  %v3765 = vsel %vm3736, %v3734, -inf
  %v3766 = vmax.f32 %v3758, %v3765
  %v3767 = vsel %vm3736, %v3735, -inf
  %v3768 = vmax.f32 %v3760, %v3767
  %v3769 = vmax.f32 %v3766, %v3768
  %v3770 = vmax.f32 %v3762, %v3764
  %v3771 = vmax.f32 %v3769, %v3770
  %v3772 = vrot.slane %v3771, 4
  %v3773 = vmax.f32 %v3771, %v3772
  %v3774 = vrot.slane %v3773, 2
  %v3775 = vmax.f32 %v3773, %v3774
  %v3776 = vrot.slane %v3775, 1
  %v3777 = vmax.f32 %v3775, %v3776
  %v3778 = vsub.f32 %v3718, %v3777
  %v3779 = vsub.f32 %v3719, %v3777
  %v3780 = vsub.f32 %v3720, %v3777
  %v3781 = vsub.f32 %v3721, %v3777
  %v3782 = vsub.f32 %v3722, %v3777
  %v3783 = vsub.f32 %v3723, %v3777
  %v3784 = vsub.f32 %v3724, %v3777
  %v3785 = vsub.f32 %v3725, %v3777
  %v3786 = vsub.f32 %v3726, %v3777
  %v3787 = vsub.f32 %v3727, %v3777
  %v3788 = vsub.f32 %v3728, %v3777
  %v3789 = vsub.f32 %v3729, %v3777
  %v3790 = vsub.f32 %v3730, %v3777
  %v3791 = vsub.f32 %v3731, %v3777
  %v3792 = vsub.f32 %v3732, %v3777
  %v3793 = vsub.f32 %v3733, %v3777
  %v3794 = vsub.f32 %v3734, %v3777
  %v3795 = vsub.f32 %v3735, %v3777
  %v3796 = vmul.f32 %v3778, 1.442695
  %v3797 = vpow.pop %v3796
  %v3798 = vmul.f32 %v3779, 1.442695
  %v3799 = vpow.pop %v3798
  %v3800 = vmul.f32 %v3780, 1.442695
  %v3801 = vpow.pop %v3800
  %v3802 = vmul.f32 %v3781, 1.442695
  %v3803 = vpow.pop %v3802
  %v3804 = vmul.f32 %v3782, 1.442695
  %v3805 = vpow.pop %v3804
  %v3806 = vmul.f32 %v3783, 1.442695
  %v3807 = vpow.pop %v3806
  %v3808 = vmul.f32 %v3784, 1.442695
  %v3809 = vpow.pop %v3808
  %v3810 = vmul.f32 %v3785, 1.442695
  %v3811 = vpow.pop %v3810
  %v3812 = vmul.f32 %v3786, 1.442695
  %v3813 = vpow.pop %v3812
  %v3814 = vmul.f32 %v3787, 1.442695
  %v3815 = vpow.pop %v3814
  %v3816 = vmul.f32 %v3788, 1.442695
  %v3817 = vpow.pop %v3816
  %v3818 = vmul.f32 %v3789, 1.442695
  %v3819 = vpow.pop %v3818
  %v3820 = vmul.f32 %v3790, 1.442695
  %v3821 = vpow.pop %v3820
  %v3822 = vmul.f32 %v3791, 1.442695
  %v3823 = vpow.pop %v3822
  %v3824 = vmul.f32 %v3792, 1.442695
  %v3825 = vpow.pop %v3824
  %v3826 = vmul.f32 %v3793, 1.442695
  %v3827 = vpow.pop %v3826
  %v3828 = vmul.f32 %v3794, 1.442695
  %v3829 = vpow.pop %v3828
  %v3830 = vmul.f32 %v3795, 1.442695
  %v3831 = vpow.pop %v3830
  %v3832 = vmul.f32 %v3797, %v1033
  %v3833 = vmul.f32 %v3799, %v1034
  %v3834 = vmul.f32 %v3801, %v1035
  %v3835 = vmul.f32 %v3803, %v1036
  %v3836 = vmul.f32 %v3805, %v1037
  %v3837 = vmul.f32 %v3807, %v1038
  %v3838 = vmul.f32 %v3809, %v1039
  %v3839 = vmul.f32 %v3811, %v1040
  %v3840 = vmul.f32 %v3813, %v1041
  %v3841 = vmul.f32 %v3815, %v1042
  %v3842 = vmul.f32 %v3817, %v1043
  %v3843 = vmul.f32 %v3819, %v1044
  %v3844 = vmul.f32 %v3821, %v1045
  %v3845 = vmul.f32 %v3823, %v1046
  %v3846 = vmul.f32 %v3825, %v1047
  %v3847 = vmul.f32 %v3827, %v1048
  %v3848 = vmul.f32 %v3829, %v1049
  %v3849 = vmul.f32 %v3831, %v1050
  %3868 = vrot.lane.b32.xlu0 %v3832, 104
  %v3869 = vpop.permute.xlu0 %3868
  %3870 = vrot.lane.b32.xlu0 %v3833, 104
  %v3871 = vpop.permute.xlu0 %3870
  %3872 = vrot.lane.b32.xlu0 %v3834, 104
  %v3873 = vpop.permute.xlu0 %3872
  %3874 = vrot.lane.b32.xlu0 %v3835, 104
  %v3875 = vpop.permute.xlu0 %3874
  %3876 = vrot.lane.b32.xlu0 %v3836, 104
  %v3877 = vpop.permute.xlu0 %3876
  %3878 = vrot.lane.b32.xlu0 %v3837, 104
  %v3879 = vpop.permute.xlu0 %3878
  %3880 = vrot.lane.b32.xlu0 %v3838, 104
  %v3881 = vpop.permute.xlu0 %3880
  %3882 = vrot.lane.b32.xlu0 %v3839, 104
  %v3883 = vpop.permute.xlu0 %3882
  %3884 = vrot.lane.b32.xlu0 %v3840, 104
  %v3885 = vpop.permute.xlu0 %3884
  %3886 = vrot.lane.b32.xlu0 %v3841, 104
  %v3887 = vpop.permute.xlu0 %3886
  %3888 = vrot.lane.b32.xlu0 %v3842, 104
  %v3889 = vpop.permute.xlu0 %3888
  %3890 = vrot.lane.b32.xlu0 %v3843, 104
  %v3891 = vpop.permute.xlu0 %3890
  %3892 = vrot.lane.b32.xlu0 %v3844, 104
  %v3893 = vpop.permute.xlu0 %3892
  %3894 = vrot.lane.b32.xlu0 %v3845, 104
  %v3895 = vpop.permute.xlu0 %3894
  %3896 = vrot.lane.b32.xlu0 %v3846, 104
  %v3897 = vpop.permute.xlu0 %3896
  %3898 = vrot.lane.b32.xlu0 %v3847, 104
  %v3899 = vpop.permute.xlu0 %3898
  %3900 = vrot.lane.b32.xlu0 %v3848, 104
  %v3901 = vpop.permute.xlu0 %3900
  %3902 = vrot.lane.b32.xlu0 %v3849, 104
  %v3903 = vpop.permute.xlu0 %3902
  %vm3922 = vcmask 130048
  %v3924 = vsel %vm3922, %v3642, 0
  %v3927 = vsel %vm3922, %v3644, 0
  %3929 = vmatprep.subr.mxu0 0.0
  %v3930 = vand.u32 %v3869, 4294901760
  %3931 = vmatpush1.msra.mxu0 %v3930
  %3932 = vmatprep.subr.mxu0 0.0
  %v3933 = vand.u32 %v3871, 4294901760
  %3934 = vmatpush1.msra.mxu0 %v3933
  %3935 = vmatprep.subr.mxu0 0.0
  %v3936 = vand.u32 %v3873, 4294901760
  %3937 = vmatpush1.msra.mxu0 %v3936
  %3938 = vmatprep.subr.mxu0 0.0
  %v3939 = vand.u32 %v3875, 4294901760
  %3940 = vmatpush1.msra.mxu0 %v3939
  %3941 = vmatprep.subr.mxu0 0.0
  %v3942 = vand.u32 %v3877, 4294901760
  %3943 = vmatpush1.msra.mxu0 %v3942
  %3944 = vmatprep.subr.mxu0 0.0
  %v3945 = vand.u32 %v3879, 4294901760
  %3946 = vmatpush1.msra.mxu0 %v3945
  %3947 = vmatprep.subr.mxu0 0.0
  %v3948 = vand.u32 %v3881, 4294901760
  %3949 = vmatpush1.msra.mxu0 %v3948
  %3950 = vmatprep.subr.mxu0 0.0
  %v3951 = vand.u32 %v3883, 4294901760
  %3952 = vmatpush1.msra.mxu0 %v3951
  %3953 = vmatprep.subr.mxu0 0.0
  %v3954 = vand.u32 %v3885, 4294901760
  %3955 = vmatpush1.msra.mxu0 %v3954
  %3956 = vmatprep.subr.mxu0 0.0
  %v3957 = vand.u32 %v3887, 4294901760
  %3958 = vmatpush1.msra.mxu0 %v3957
  %3959 = vmatprep.subr.mxu0 0.0
  %v3960 = vand.u32 %v3889, 4294901760
  %3961 = vmatpush1.msra.mxu0 %v3960
  %3962 = vmatprep.subr.mxu0 0.0
  %v3963 = vand.u32 %v3891, 4294901760
  %3964 = vmatpush1.msra.mxu0 %v3963
  %3965 = vmatprep.subr.mxu0 0.0
  %v3966 = vand.u32 %v3893, 4294901760
  %3967 = vmatpush1.msra.mxu0 %v3966
  %3968 = vmatprep.subr.mxu0 0.0
  %v3969 = vand.u32 %v3895, 4294901760
  %3970 = vmatpush1.msra.mxu0 %v3969
  %3971 = vmatprep.subr.mxu0 0.0
  %v3972 = vand.u32 %v3897, 4294901760
  %3973 = vmatpush1.msra.mxu0 %v3972
  %3974 = vmatprep.subr.mxu0 0.0
  %v3975 = vand.u32 %v3899, 4294901760
  %3976 = vmatpush1.msra.mxu0 %v3975
  %3977 = vmatprep.subr.mxu0 0.0
  %v3978 = vand.u32 %v3901, 4294901760
  %3979 = vmatpush1.msra.mxu0 %v3978
  %3980 = vmatprep.subr.mxu0 0.0
  %v3981 = vand.u32 %v3903, 4294901760
  %3982 = vmatpush1.msra.mxu0 %v3981
  %3983 = vmatprep.subr.mxu0 0.0
  %3984 = vmatpush1.msra.mxu0 0.0
  %3985 = vmatprep.subr.mxu0 0.0
  %3986 = vmatpush1.msra.mxu0 0.0
  %3987 = vmatprep.subr.mxu0 0.0
  %3988 = vmatpush1.msra.mxu0 0.0
  %3989 = vmatprep.subr.mxu0 0.0
  %3990 = vmatpush1.msra.mxu0 0.0
  %3991 = vmatprep.subr.mxu0 0.0
  %3992 = vmatpush1.msra.mxu0 0.0
  %3993 = vmatprep.subr.mxu0 0.0
  %3994 = vmatpush1.msra.mxu0 0.0
  %3995 = vmatprep.subr.mxu0 0.0
  %3996 = vmatpush1.msra.mxu0 0.0
  %3997 = vmatprep.subr.mxu0 0.0
  %3998 = vmatpush1.msra.mxu0 0.0
  %3999 = vmatprep.subr.mxu0 0.0
  %4000 = vmatpush1.msra.mxu0 0.0
  %4001 = vmatprep.subr.mxu0 0.0
  %4002 = vmatpush1.msra.mxu0 0.0
  %4003 = vmatprep.subr.mxu0 0.0
  %4004 = vmatpush1.msra.mxu0 0.0
  %4005 = vmatprep.subr.mxu0 0.0
  %4006 = vmatpush1.msra.mxu0 0.0
  %4007 = vmatprep.subr.mxu0 0.0
  %4008 = vmatpush1.msra.mxu0 0.0
  %4009 = vmatprep.subr.mxu0 0.0
  %4010 = vmatpush1.msra.mxu0 0.0
  %v4011 = vand.u32 %v3924, 4294901760
  %v4012 = vsub.f32 %v3924, %v4011
  %v4013 = vand.u32 %v4012, 4294901760
  %v4014 = vsub.f32 %v4012, %v4013
  %v4015 = vand.u32 %v4014, 4294901760
  %4016 = vmatprep.mubr.f32.mxu0 %v4015
  %v4017 = vand.u32 %v3641, 4294901760
  %v4018 = vsub.f32 %v3641, %v4017
  %v4019 = vand.u32 %v4018, 4294901760
  %v4020 = vsub.f32 %v4018, %v4019
  %v4021 = vand.u32 %v4020, 4294901760
  %4022 = vmatmul.mubr.f32.gmra.mrb[0].mxu0 %v4021
  %v4023 = vpop.f32.mrb[0].mxu0
  %v4024 = vadd.f32 0.0, %v4023
  %v4025 = vpop.f32.mrb[0].mxu0
  %v4026 = vand.u32 %v3927, 4294901760
  %v4027 = vsub.f32 %v3927, %v4026
  %v4028 = vand.u32 %v4027, 4294901760
  %v4029 = vsub.f32 %v4027, %v4028
  %v4030 = vand.u32 %v4029, 4294901760
  %4031 = vmatprep.mubr.f32.mxu0 %v4030
  %v4032 = vand.u32 %v3643, 4294901760
  %v4033 = vsub.f32 %v3643, %v4032
  %v4034 = vand.u32 %v4033, 4294901760
  %v4035 = vsub.f32 %v4033, %v4034
  %v4036 = vand.u32 %v4035, 4294901760
  %4037 = vmatmul.mubr.f32.gmra.mrb[0].mxu0 %v4036
  %v4038 = vpop.f32.mrb[0].mxu0
  %v4039 = vadd.f32 0.0, %v4038
  %v4040 = vpop.f32.mrb[0].mxu0
  %4041 = vdwg.mxu0
  %4042 = vmatprep.subr.mxu0 0.0
  %v4043 = vand.u32 %v3869, 4294901760
  %v4044 = vsub.f32 %v3869, %v4043
  %v4045 = vand.u32 %v4044, 4294901760
  %v4046 = vsub.f32 %v4044, %v4045
  %v4047 = vand.u32 %v4046, 4294901760
  %4048 = vmatpush1.msra.mxu0 %v4047
  %4049 = vmatprep.subr.mxu0 0.0
  %v4050 = vand.u32 %v3871, 4294901760
  %v4051 = vsub.f32 %v3871, %v4050
  %v4052 = vand.u32 %v4051, 4294901760
  %v4053 = vsub.f32 %v4051, %v4052
  %v4054 = vand.u32 %v4053, 4294901760
  %4055 = vmatpush1.msra.mxu0 %v4054
  %4056 = vmatprep.subr.mxu0 0.0
  %v4057 = vand.u32 %v3873, 4294901760
  %v4058 = vsub.f32 %v3873, %v4057
  %v4059 = vand.u32 %v4058, 4294901760
  %v4060 = vsub.f32 %v4058, %v4059
  %v4061 = vand.u32 %v4060, 4294901760
  %4062 = vmatpush1.msra.mxu0 %v4061
  %4063 = vmatprep.subr.mxu0 0.0
  %v4064 = vand.u32 %v3875, 4294901760
  %v4065 = vsub.f32 %v3875, %v4064
  %v4066 = vand.u32 %v4065, 4294901760
  %v4067 = vsub.f32 %v4065, %v4066
  %v4068 = vand.u32 %v4067, 4294901760
  %4069 = vmatpush1.msra.mxu0 %v4068
  %4070 = vmatprep.subr.mxu0 0.0
  %v4071 = vand.u32 %v3877, 4294901760
  %v4072 = vsub.f32 %v3877, %v4071
  %v4073 = vand.u32 %v4072, 4294901760
  %v4074 = vsub.f32 %v4072, %v4073
  %v4075 = vand.u32 %v4074, 4294901760
  %4076 = vmatpush1.msra.mxu0 %v4075
  %4077 = vmatprep.subr.mxu0 0.0
  %v4078 = vand.u32 %v3879, 4294901760
  %v4079 = vsub.f32 %v3879, %v4078
  %v4080 = vand.u32 %v4079, 4294901760
  %v4081 = vsub.f32 %v4079, %v4080
  %v4082 = vand.u32 %v4081, 4294901760
  %4083 = vmatpush1.msra.mxu0 %v4082
  %4084 = vmatprep.subr.mxu0 0.0
  %v4085 = vand.u32 %v3881, 4294901760
  %v4086 = vsub.f32 %v3881, %v4085
  %v4087 = vand.u32 %v4086, 4294901760
  %v4088 = vsub.f32 %v4086, %v4087
  %v4089 = vand.u32 %v4088, 4294901760
  %4090 = vmatpush1.msra.mxu0 %v4089
  %4091 = vmatprep.subr.mxu0 0.0
  %v4092 = vand.u32 %v3883, 4294901760
  %v4093 = vsub.f32 %v3883, %v4092
  %v4094 = vand.u32 %v4093, 4294901760
  %v4095 = vsub.f32 %v4093, %v4094
  %v4096 = vand.u32 %v4095, 4294901760
  %4097 = vmatpush1.msra.mxu0 %v4096
  %4098 = vmatprep.subr.mxu0 0.0
  %v4099 = vand.u32 %v3885, 4294901760
  %v4100 = vsub.f32 %v3885, %v4099
  %v4101 = vand.u32 %v4100, 4294901760
  %v4102 = vsub.f32 %v4100, %v4101
  %v4103 = vand.u32 %v4102, 4294901760
  %4104 = vmatpush1.msra.mxu0 %v4103
  %4105 = vmatprep.subr.mxu0 0.0
  %v4106 = vand.u32 %v3887, 4294901760
  %v4107 = vsub.f32 %v3887, %v4106
  %v4108 = vand.u32 %v4107, 4294901760
  %v4109 = vsub.f32 %v4107, %v4108
  %v4110 = vand.u32 %v4109, 4294901760
  %4111 = vmatpush1.msra.mxu0 %v4110
  %4112 = vmatprep.subr.mxu0 0.0
  %v4113 = vand.u32 %v3889, 4294901760
  %v4114 = vsub.f32 %v3889, %v4113
  %v4115 = vand.u32 %v4114, 4294901760
  %v4116 = vsub.f32 %v4114, %v4115
  %v4117 = vand.u32 %v4116, 4294901760
  %4118 = vmatpush1.msra.mxu0 %v4117
  %4119 = vmatprep.subr.mxu0 0.0
  %v4120 = vand.u32 %v3891, 4294901760
  %v4121 = vsub.f32 %v3891, %v4120
  %v4122 = vand.u32 %v4121, 4294901760
  %v4123 = vsub.f32 %v4121, %v4122
  %v4124 = vand.u32 %v4123, 4294901760
  %4125 = vmatpush1.msra.mxu0 %v4124
  %4126 = vmatprep.subr.mxu0 0.0
  %v4127 = vand.u32 %v3893, 4294901760
  %v4128 = vsub.f32 %v3893, %v4127
  %v4129 = vand.u32 %v4128, 4294901760
  %v4130 = vsub.f32 %v4128, %v4129
  %v4131 = vand.u32 %v4130, 4294901760
  %4132 = vmatpush1.msra.mxu0 %v4131
  %4133 = vmatprep.subr.mxu0 0.0
  %v4134 = vand.u32 %v3895, 4294901760
  %v4135 = vsub.f32 %v3895, %v4134
  %v4136 = vand.u32 %v4135, 4294901760
  %v4137 = vsub.f32 %v4135, %v4136
  %v4138 = vand.u32 %v4137, 4294901760
  %4139 = vmatpush1.msra.mxu0 %v4138
  %4140 = vmatprep.subr.mxu0 0.0
  %v4141 = vand.u32 %v3897, 4294901760
  %v4142 = vsub.f32 %v3897, %v4141
  %v4143 = vand.u32 %v4142, 4294901760
  %v4144 = vsub.f32 %v4142, %v4143
  %v4145 = vand.u32 %v4144, 4294901760
  %4146 = vmatpush1.msra.mxu0 %v4145
  %4147 = vmatprep.subr.mxu0 0.0
  %v4148 = vand.u32 %v3899, 4294901760
  %v4149 = vsub.f32 %v3899, %v4148
  %v4150 = vand.u32 %v4149, 4294901760
  %v4151 = vsub.f32 %v4149, %v4150
  %v4152 = vand.u32 %v4151, 4294901760
  %4153 = vmatpush1.msra.mxu0 %v4152
  %4154 = vmatprep.subr.mxu0 0.0
  %v4155 = vand.u32 %v3901, 4294901760
  %v4156 = vsub.f32 %v3901, %v4155
  %v4157 = vand.u32 %v4156, 4294901760
  %v4158 = vsub.f32 %v4156, %v4157
  %v4159 = vand.u32 %v4158, 4294901760
  %4160 = vmatpush1.msra.mxu0 %v4159
  %4161 = vmatprep.subr.mxu0 0.0
  %v4162 = vand.u32 %v3903, 4294901760
  %v4163 = vsub.f32 %v3903, %v4162
  %v4164 = vand.u32 %v4163, 4294901760
  %v4165 = vsub.f32 %v4163, %v4164
  %v4166 = vand.u32 %v4165, 4294901760
  %4167 = vmatpush1.msra.mxu0 %v4166
  %4168 = vmatprep.subr.mxu0 0.0
  %4169 = vmatpush1.msra.mxu0 0.0
  %4170 = vmatprep.subr.mxu0 0.0
  %4171 = vmatpush1.msra.mxu0 0.0
  %4172 = vmatprep.subr.mxu0 0.0
  %4173 = vmatpush1.msra.mxu0 0.0
  %4174 = vmatprep.subr.mxu0 0.0
  %4175 = vmatpush1.msra.mxu0 0.0
  %4176 = vmatprep.subr.mxu0 0.0
  %4177 = vmatpush1.msra.mxu0 0.0
  %4178 = vmatprep.subr.mxu0 0.0
  %4179 = vmatpush1.msra.mxu0 0.0
  %4180 = vmatprep.subr.mxu0 0.0
  %4181 = vmatpush1.msra.mxu0 0.0
  %4182 = vmatprep.subr.mxu0 0.0
  %4183 = vmatpush1.msra.mxu0 0.0
  %4184 = vmatprep.subr.mxu0 0.0
  %4185 = vmatpush1.msra.mxu0 0.0
  %4186 = vmatprep.subr.mxu0 0.0
  %4187 = vmatpush1.msra.mxu0 0.0
  %4188 = vmatprep.subr.mxu0 0.0
  %4189 = vmatpush1.msra.mxu0 0.0
  %4190 = vmatprep.subr.mxu0 0.0
  %4191 = vmatpush1.msra.mxu0 0.0
  %4192 = vmatprep.subr.mxu0 0.0
  %4193 = vmatpush1.msra.mxu0 0.0
  %4194 = vmatprep.subr.mxu0 0.0
  %4195 = vmatpush1.msra.mxu0 0.0
  %v4196 = vand.u32 %v3924, 4294901760
  %4197 = vmatprep.mubr.f32.mxu0 %v4196
  %v4198 = vand.u32 %v3641, 4294901760
  %4199 = vmatmul.mubr.f32.gmra.mrb[0].mxu0 %v4198
  %v4200 = vpop.f32.mrb[0].mxu0
  %v4201 = vadd.f32 %v4024, %v4200
  %v4202 = vpop.f32.mrb[0].mxu0
  %v4203 = vand.u32 %v3927, 4294901760
  %4204 = vmatprep.mubr.f32.mxu0 %v4203
  %v4205 = vand.u32 %v3643, 4294901760
  %4206 = vmatmul.mubr.f32.gmra.mrb[0].mxu0 %v4205
  %v4207 = vpop.f32.mrb[0].mxu0
  %v4208 = vadd.f32 %v4039, %v4207
  %v4209 = vpop.f32.mrb[0].mxu0
  %4210 = vdwg.mxu0
  %4211 = vmatprep.subr.mxu0 0.0
  %v4212 = vand.u32 %v3869, 4294901760
  %v4213 = vsub.f32 %v3869, %v4212
  %4214 = vmatpush1.msra.mxu0 %v4213
  %4215 = vmatprep.subr.mxu0 0.0
  %v4216 = vand.u32 %v3871, 4294901760
  %v4217 = vsub.f32 %v3871, %v4216
  %4218 = vmatpush1.msra.mxu0 %v4217
  %4219 = vmatprep.subr.mxu0 0.0
  %v4220 = vand.u32 %v3873, 4294901760
  %v4221 = vsub.f32 %v3873, %v4220
  %4222 = vmatpush1.msra.mxu0 %v4221
  %4223 = vmatprep.subr.mxu0 0.0
  %v4224 = vand.u32 %v3875, 4294901760
  %v4225 = vsub.f32 %v3875, %v4224
  %4226 = vmatpush1.msra.mxu0 %v4225
  %4227 = vmatprep.subr.mxu0 0.0
  %v4228 = vand.u32 %v3877, 4294901760
  %v4229 = vsub.f32 %v3877, %v4228
  %4230 = vmatpush1.msra.mxu0 %v4229
  %4231 = vmatprep.subr.mxu0 0.0
  %v4232 = vand.u32 %v3879, 4294901760
  %v4233 = vsub.f32 %v3879, %v4232
  %4234 = vmatpush1.msra.mxu0 %v4233
  %4235 = vmatprep.subr.mxu0 0.0
  %v4236 = vand.u32 %v3881, 4294901760
  %v4237 = vsub.f32 %v3881, %v4236
  %4238 = vmatpush1.msra.mxu0 %v4237
  %4239 = vmatprep.subr.mxu0 0.0
  %v4240 = vand.u32 %v3883, 4294901760
  %v4241 = vsub.f32 %v3883, %v4240
  %4242 = vmatpush1.msra.mxu0 %v4241
  %4243 = vmatprep.subr.mxu0 0.0
  %v4244 = vand.u32 %v3885, 4294901760
  %v4245 = vsub.f32 %v3885, %v4244
  %4246 = vmatpush1.msra.mxu0 %v4245
  %4247 = vmatprep.subr.mxu0 0.0
  %v4248 = vand.u32 %v3887, 4294901760
  %v4249 = vsub.f32 %v3887, %v4248
  %4250 = vmatpush1.msra.mxu0 %v4249
  %4251 = vmatprep.subr.mxu0 0.0
  %v4252 = vand.u32 %v3889, 4294901760
  %v4253 = vsub.f32 %v3889, %v4252
  %4254 = vmatpush1.msra.mxu0 %v4253
  %4255 = vmatprep.subr.mxu0 0.0
  %v4256 = vand.u32 %v3891, 4294901760
  %v4257 = vsub.f32 %v3891, %v4256
  %4258 = vmatpush1.msra.mxu0 %v4257
  %4259 = vmatprep.subr.mxu0 0.0
  %v4260 = vand.u32 %v3893, 4294901760
  %v4261 = vsub.f32 %v3893, %v4260
  %4262 = vmatpush1.msra.mxu0 %v4261
  %4263 = vmatprep.subr.mxu0 0.0
  %v4264 = vand.u32 %v3895, 4294901760
  %v4265 = vsub.f32 %v3895, %v4264
  %4266 = vmatpush1.msra.mxu0 %v4265
  %4267 = vmatprep.subr.mxu0 0.0
  %v4268 = vand.u32 %v3897, 4294901760
  %v4269 = vsub.f32 %v3897, %v4268
  %4270 = vmatpush1.msra.mxu0 %v4269
  %4271 = vmatprep.subr.mxu0 0.0
  %v4272 = vand.u32 %v3899, 4294901760
  %v4273 = vsub.f32 %v3899, %v4272
  %4274 = vmatpush1.msra.mxu0 %v4273
  %4275 = vmatprep.subr.mxu0 0.0
  %v4276 = vand.u32 %v3901, 4294901760
  %v4277 = vsub.f32 %v3901, %v4276
  %4278 = vmatpush1.msra.mxu0 %v4277
  %4279 = vmatprep.subr.mxu0 0.0
  %v4280 = vand.u32 %v3903, 4294901760
  %v4281 = vsub.f32 %v3903, %v4280
  %4282 = vmatpush1.msra.mxu0 %v4281
  %4283 = vmatprep.subr.mxu0 0.0
  %4284 = vmatpush1.msra.mxu0 0.0
  %4285 = vmatprep.subr.mxu0 0.0
  %4286 = vmatpush1.msra.mxu0 0.0
  %4287 = vmatprep.subr.mxu0 0.0
  %4288 = vmatpush1.msra.mxu0 0.0
  %4289 = vmatprep.subr.mxu0 0.0
  %4290 = vmatpush1.msra.mxu0 0.0
  %4291 = vmatprep.subr.mxu0 0.0
  %4292 = vmatpush1.msra.mxu0 0.0
  %4293 = vmatprep.subr.mxu0 0.0
  %4294 = vmatpush1.msra.mxu0 0.0
  %4295 = vmatprep.subr.mxu0 0.0
  %4296 = vmatpush1.msra.mxu0 0.0
  %4297 = vmatprep.subr.mxu0 0.0
  %4298 = vmatpush1.msra.mxu0 0.0
  %4299 = vmatprep.subr.mxu0 0.0
  %4300 = vmatpush1.msra.mxu0 0.0
  %4301 = vmatprep.subr.mxu0 0.0
  %4302 = vmatpush1.msra.mxu0 0.0
  %4303 = vmatprep.subr.mxu0 0.0
  %4304 = vmatpush1.msra.mxu0 0.0
  %4305 = vmatprep.subr.mxu0 0.0
  %4306 = vmatpush1.msra.mxu0 0.0
  %4307 = vmatprep.subr.mxu0 0.0
  %4308 = vmatpush1.msra.mxu0 0.0
  %4309 = vmatprep.subr.mxu0 0.0
  %4310 = vmatpush1.msra.mxu0 0.0
  %v4311 = vand.u32 %v3924, 4294901760
  %v4312 = vsub.f32 %v3924, %v4311
  %4313 = vmatprep.mubr.f32.mxu0 %v4312
  %v4314 = vand.u32 %v3641, 4294901760
  %v4315 = vsub.f32 %v3641, %v4314
  %4316 = vmatmul.mubr.f32.gmra.mrb[0].mxu0 %v4315
  %v4317 = vpop.f32.mrb[0].mxu0
  %v4318 = vadd.f32 %v4201, %v4317
  %v4319 = vpop.f32.mrb[0].mxu0
  %v4320 = vand.u32 %v3927, 4294901760
  %v4321 = vsub.f32 %v3927, %v4320
  %4322 = vmatprep.mubr.f32.mxu0 %v4321
  %v4323 = vand.u32 %v3643, 4294901760
  %v4324 = vsub.f32 %v3643, %v4323
  %4325 = vmatmul.mubr.f32.gmra.mrb[0].mxu0 %v4324
  %v4326 = vpop.f32.mrb[0].mxu0
  %v4327 = vadd.f32 %v4208, %v4326
  %v4328 = vpop.f32.mrb[0].mxu0
  %4329 = vdwg.mxu0
  %4330 = vmatprep.subr.mxu0 0.0
  %v4331 = vand.u32 %v3869, 4294901760
  %4332 = vmatpush1.msra.mxu0 %v4331
  %4333 = vmatprep.subr.mxu0 0.0
  %v4334 = vand.u32 %v3871, 4294901760
  %4335 = vmatpush1.msra.mxu0 %v4334
  %4336 = vmatprep.subr.mxu0 0.0
  %v4337 = vand.u32 %v3873, 4294901760
  %4338 = vmatpush1.msra.mxu0 %v4337
  %4339 = vmatprep.subr.mxu0 0.0
  %v4340 = vand.u32 %v3875, 4294901760
  %4341 = vmatpush1.msra.mxu0 %v4340
  %4342 = vmatprep.subr.mxu0 0.0
  %v4343 = vand.u32 %v3877, 4294901760
  %4344 = vmatpush1.msra.mxu0 %v4343
  %4345 = vmatprep.subr.mxu0 0.0
  %v4346 = vand.u32 %v3879, 4294901760
  %4347 = vmatpush1.msra.mxu0 %v4346
  %4348 = vmatprep.subr.mxu0 0.0
  %v4349 = vand.u32 %v3881, 4294901760
  %4350 = vmatpush1.msra.mxu0 %v4349
  %4351 = vmatprep.subr.mxu0 0.0
  %v4352 = vand.u32 %v3883, 4294901760
  %4353 = vmatpush1.msra.mxu0 %v4352
  %4354 = vmatprep.subr.mxu0 0.0
  %v4355 = vand.u32 %v3885, 4294901760
  %4356 = vmatpush1.msra.mxu0 %v4355
  %4357 = vmatprep.subr.mxu0 0.0
  %v4358 = vand.u32 %v3887, 4294901760
  %4359 = vmatpush1.msra.mxu0 %v4358
  %4360 = vmatprep.subr.mxu0 0.0
  %v4361 = vand.u32 %v3889, 4294901760
  %4362 = vmatpush1.msra.mxu0 %v4361
  %4363 = vmatprep.subr.mxu0 0.0
  %v4364 = vand.u32 %v3891, 4294901760
  %4365 = vmatpush1.msra.mxu0 %v4364
  %4366 = vmatprep.subr.mxu0 0.0
  %v4367 = vand.u32 %v3893, 4294901760
  %4368 = vmatpush1.msra.mxu0 %v4367
  %4369 = vmatprep.subr.mxu0 0.0
  %v4370 = vand.u32 %v3895, 4294901760
  %4371 = vmatpush1.msra.mxu0 %v4370
  %4372 = vmatprep.subr.mxu0 0.0
  %v4373 = vand.u32 %v3897, 4294901760
  %4374 = vmatpush1.msra.mxu0 %v4373
  %4375 = vmatprep.subr.mxu0 0.0
  %v4376 = vand.u32 %v3899, 4294901760
  %4377 = vmatpush1.msra.mxu0 %v4376
  %4378 = vmatprep.subr.mxu0 0.0
  %v4379 = vand.u32 %v3901, 4294901760
  %4380 = vmatpush1.msra.mxu0 %v4379
  %4381 = vmatprep.subr.mxu0 0.0
  %v4382 = vand.u32 %v3903, 4294901760
  %4383 = vmatpush1.msra.mxu0 %v4382
  %4384 = vmatprep.subr.mxu0 0.0
  %4385 = vmatpush1.msra.mxu0 0.0
  %4386 = vmatprep.subr.mxu0 0.0
  %4387 = vmatpush1.msra.mxu0 0.0
  %4388 = vmatprep.subr.mxu0 0.0
  %4389 = vmatpush1.msra.mxu0 0.0
  %4390 = vmatprep.subr.mxu0 0.0
  %4391 = vmatpush1.msra.mxu0 0.0
  %4392 = vmatprep.subr.mxu0 0.0
  %4393 = vmatpush1.msra.mxu0 0.0
  %4394 = vmatprep.subr.mxu0 0.0
  %4395 = vmatpush1.msra.mxu0 0.0
  %4396 = vmatprep.subr.mxu0 0.0
  %4397 = vmatpush1.msra.mxu0 0.0
  %4398 = vmatprep.subr.mxu0 0.0
  %4399 = vmatpush1.msra.mxu0 0.0
  %4400 = vmatprep.subr.mxu0 0.0
  %4401 = vmatpush1.msra.mxu0 0.0
  %4402 = vmatprep.subr.mxu0 0.0
  %4403 = vmatpush1.msra.mxu0 0.0
  %4404 = vmatprep.subr.mxu0 0.0
  %4405 = vmatpush1.msra.mxu0 0.0
  %4406 = vmatprep.subr.mxu0 0.0
  %4407 = vmatpush1.msra.mxu0 0.0
  %4408 = vmatprep.subr.mxu0 0.0
  %4409 = vmatpush1.msra.mxu0 0.0
  %4410 = vmatprep.subr.mxu0 0.0
  %4411 = vmatpush1.msra.mxu0 0.0
  %v4412 = vand.u32 %v3924, 4294901760
  %v4413 = vsub.f32 %v3924, %v4412
  %v4414 = vand.u32 %v4413, 4294901760
  %4415 = vmatprep.mubr.f32.mxu0 %v4414
  %v4416 = vand.u32 %v3641, 4294901760
  %v4417 = vsub.f32 %v3641, %v4416
  %v4418 = vand.u32 %v4417, 4294901760
  %4419 = vmatmul.mubr.f32.gmra.mrb[0].mxu0 %v4418
  %v4420 = vpop.f32.mrb[0].mxu0
  %v4421 = vadd.f32 %v4318, %v4420
  %v4422 = vpop.f32.mrb[0].mxu0
  %v4423 = vand.u32 %v3927, 4294901760
  %v4424 = vsub.f32 %v3927, %v4423
  %v4425 = vand.u32 %v4424, 4294901760
  %4426 = vmatprep.mubr.f32.mxu0 %v4425
  %v4427 = vand.u32 %v3643, 4294901760
  %v4428 = vsub.f32 %v3643, %v4427
  %v4429 = vand.u32 %v4428, 4294901760
  %4430 = vmatmul.mubr.f32.gmra.mrb[0].mxu0 %v4429
  %v4431 = vpop.f32.mrb[0].mxu0
  %v4432 = vadd.f32 %v4327, %v4431
  %v4433 = vpop.f32.mrb[0].mxu0
  %4434 = vdwg.mxu0
  %4435 = vmatprep.subr.mxu0 0.0
  %v4436 = vand.u32 %v3869, 4294901760
  %v4437 = vsub.f32 %v3869, %v4436
  %v4438 = vand.u32 %v4437, 4294901760
  %4439 = vmatpush1.msra.mxu0 %v4438
  %4440 = vmatprep.subr.mxu0 0.0
  %v4441 = vand.u32 %v3871, 4294901760
  %v4442 = vsub.f32 %v3871, %v4441
  %v4443 = vand.u32 %v4442, 4294901760
  %4444 = vmatpush1.msra.mxu0 %v4443
  %4445 = vmatprep.subr.mxu0 0.0
  %v4446 = vand.u32 %v3873, 4294901760
  %v4447 = vsub.f32 %v3873, %v4446
  %v4448 = vand.u32 %v4447, 4294901760
  %4449 = vmatpush1.msra.mxu0 %v4448
  %4450 = vmatprep.subr.mxu0 0.0
  %v4451 = vand.u32 %v3875, 4294901760
  %v4452 = vsub.f32 %v3875, %v4451
  %v4453 = vand.u32 %v4452, 4294901760
  %4454 = vmatpush1.msra.mxu0 %v4453
  %4455 = vmatprep.subr.mxu0 0.0
  %v4456 = vand.u32 %v3877, 4294901760
  %v4457 = vsub.f32 %v3877, %v4456
  %v4458 = vand.u32 %v4457, 4294901760
  %4459 = vmatpush1.msra.mxu0 %v4458
  %4460 = vmatprep.subr.mxu0 0.0
  %v4461 = vand.u32 %v3879, 4294901760
  %v4462 = vsub.f32 %v3879, %v4461
  %v4463 = vand.u32 %v4462, 4294901760
  %4464 = vmatpush1.msra.mxu0 %v4463
  %4465 = vmatprep.subr.mxu0 0.0
  %v4466 = vand.u32 %v3881, 4294901760
  %v4467 = vsub.f32 %v3881, %v4466
  %v4468 = vand.u32 %v4467, 4294901760
  %4469 = vmatpush1.msra.mxu0 %v4468
  %4470 = vmatprep.subr.mxu0 0.0
  %v4471 = vand.u32 %v3883, 4294901760
  %v4472 = vsub.f32 %v3883, %v4471
  %v4473 = vand.u32 %v4472, 4294901760
  %4474 = vmatpush1.msra.mxu0 %v4473
  %4475 = vmatprep.subr.mxu0 0.0
  %v4476 = vand.u32 %v3885, 4294901760
  %v4477 = vsub.f32 %v3885, %v4476
  %v4478 = vand.u32 %v4477, 4294901760
  %4479 = vmatpush1.msra.mxu0 %v4478
  %4480 = vmatprep.subr.mxu0 0.0
  %v4481 = vand.u32 %v3887, 4294901760
  %v4482 = vsub.f32 %v3887, %v4481
  %v4483 = vand.u32 %v4482, 4294901760
  %4484 = vmatpush1.msra.mxu0 %v4483
  %4485 = vmatprep.subr.mxu0 0.0
  %v4486 = vand.u32 %v3889, 4294901760
  %v4487 = vsub.f32 %v3889, %v4486
  %v4488 = vand.u32 %v4487, 4294901760
  %4489 = vmatpush1.msra.mxu0 %v4488
  %4490 = vmatprep.subr.mxu0 0.0
  %v4491 = vand.u32 %v3891, 4294901760
  %v4492 = vsub.f32 %v3891, %v4491
  %v4493 = vand.u32 %v4492, 4294901760
  %4494 = vmatpush1.msra.mxu0 %v4493
  %4495 = vmatprep.subr.mxu0 0.0
  %v4496 = vand.u32 %v3893, 4294901760
  %v4497 = vsub.f32 %v3893, %v4496
  %v4498 = vand.u32 %v4497, 4294901760
  %4499 = vmatpush1.msra.mxu0 %v4498
  %4500 = vmatprep.subr.mxu0 0.0
  %v4501 = vand.u32 %v3895, 4294901760
  %v4502 = vsub.f32 %v3895, %v4501
  %v4503 = vand.u32 %v4502, 4294901760
  %4504 = vmatpush1.msra.mxu0 %v4503
  %4505 = vmatprep.subr.mxu0 0.0
  %v4506 = vand.u32 %v3897, 4294901760
  %v4507 = vsub.f32 %v3897, %v4506
  %v4508 = vand.u32 %v4507, 4294901760
  %4509 = vmatpush1.msra.mxu0 %v4508
  %4510 = vmatprep.subr.mxu0 0.0
  %v4511 = vand.u32 %v3899, 4294901760
  %v4512 = vsub.f32 %v3899, %v4511
  %v4513 = vand.u32 %v4512, 4294901760
  %4514 = vmatpush1.msra.mxu0 %v4513
  %4515 = vmatprep.subr.mxu0 0.0
  %v4516 = vand.u32 %v3901, 4294901760
  %v4517 = vsub.f32 %v3901, %v4516
  %v4518 = vand.u32 %v4517, 4294901760
  %4519 = vmatpush1.msra.mxu0 %v4518
  %4520 = vmatprep.subr.mxu0 0.0
  %v4521 = vand.u32 %v3903, 4294901760
  %v4522 = vsub.f32 %v3903, %v4521
  %v4523 = vand.u32 %v4522, 4294901760
  %4524 = vmatpush1.msra.mxu0 %v4523
  %4525 = vmatprep.subr.mxu0 0.0
  %4526 = vmatpush1.msra.mxu0 0.0
  %4527 = vmatprep.subr.mxu0 0.0
  %4528 = vmatpush1.msra.mxu0 0.0
  %4529 = vmatprep.subr.mxu0 0.0
  %4530 = vmatpush1.msra.mxu0 0.0
  %4531 = vmatprep.subr.mxu0 0.0
  %4532 = vmatpush1.msra.mxu0 0.0
  %4533 = vmatprep.subr.mxu0 0.0
  %4534 = vmatpush1.msra.mxu0 0.0
  %4535 = vmatprep.subr.mxu0 0.0
  %4536 = vmatpush1.msra.mxu0 0.0
  %4537 = vmatprep.subr.mxu0 0.0
  %4538 = vmatpush1.msra.mxu0 0.0
  %4539 = vmatprep.subr.mxu0 0.0
  %4540 = vmatpush1.msra.mxu0 0.0
  %4541 = vmatprep.subr.mxu0 0.0
  %4542 = vmatpush1.msra.mxu0 0.0
  %4543 = vmatprep.subr.mxu0 0.0
  %4544 = vmatpush1.msra.mxu0 0.0
  %4545 = vmatprep.subr.mxu0 0.0
  %4546 = vmatpush1.msra.mxu0 0.0
  %4547 = vmatprep.subr.mxu0 0.0
  %4548 = vmatpush1.msra.mxu0 0.0
  %4549 = vmatprep.subr.mxu0 0.0
  %4550 = vmatpush1.msra.mxu0 0.0
  %4551 = vmatprep.subr.mxu0 0.0
  %4552 = vmatpush1.msra.mxu0 0.0
  %v4553 = vand.u32 %v3924, 4294901760
  %4554 = vmatprep.mubr.f32.mxu0 %v4553
  %v4555 = vand.u32 %v3641, 4294901760
  %4556 = vmatmul.mubr.f32.gmra.mrb[0].mxu0 %v4555
  %v4557 = vpop.f32.mrb[0].mxu0
  %v4558 = vadd.f32 %v4421, %v4557
  %v4559 = vpop.f32.mrb[0].mxu0
  %v4560 = vand.u32 %v3927, 4294901760
  %4561 = vmatprep.mubr.f32.mxu0 %v4560
  %v4562 = vand.u32 %v3643, 4294901760
  %4563 = vmatmul.mubr.f32.gmra.mrb[0].mxu0 %v4562
  %v4564 = vpop.f32.mrb[0].mxu0
  %v4565 = vadd.f32 %v4432, %v4564
  %v4566 = vpop.f32.mrb[0].mxu0
  %4567 = vdwg.mxu0
  %4568 = vmatprep.subr.mxu0 0.0
  %v4569 = vand.u32 %v3869, 4294901760
  %4570 = vmatpush1.msra.mxu0 %v4569
  %4571 = vmatprep.subr.mxu0 0.0
  %v4572 = vand.u32 %v3871, 4294901760
  %4573 = vmatpush1.msra.mxu0 %v4572
  %4574 = vmatprep.subr.mxu0 0.0
  %v4575 = vand.u32 %v3873, 4294901760
  %4576 = vmatpush1.msra.mxu0 %v4575
  %4577 = vmatprep.subr.mxu0 0.0
  %v4578 = vand.u32 %v3875, 4294901760
  %4579 = vmatpush1.msra.mxu0 %v4578
  %4580 = vmatprep.subr.mxu0 0.0
  %v4581 = vand.u32 %v3877, 4294901760
  %4582 = vmatpush1.msra.mxu0 %v4581
  %4583 = vmatprep.subr.mxu0 0.0
  %v4584 = vand.u32 %v3879, 4294901760
  %4585 = vmatpush1.msra.mxu0 %v4584
  %4586 = vmatprep.subr.mxu0 0.0
  %v4587 = vand.u32 %v3881, 4294901760
  %4588 = vmatpush1.msra.mxu0 %v4587
  %4589 = vmatprep.subr.mxu0 0.0
  %v4590 = vand.u32 %v3883, 4294901760
  %4591 = vmatpush1.msra.mxu0 %v4590
  %4592 = vmatprep.subr.mxu0 0.0
  %v4593 = vand.u32 %v3885, 4294901760
  %4594 = vmatpush1.msra.mxu0 %v4593
  %4595 = vmatprep.subr.mxu0 0.0
  %v4596 = vand.u32 %v3887, 4294901760
  %4597 = vmatpush1.msra.mxu0 %v4596
  %4598 = vmatprep.subr.mxu0 0.0
  %v4599 = vand.u32 %v3889, 4294901760
  %4600 = vmatpush1.msra.mxu0 %v4599
  %4601 = vmatprep.subr.mxu0 0.0
  %v4602 = vand.u32 %v3891, 4294901760
  %4603 = vmatpush1.msra.mxu0 %v4602
  %4604 = vmatprep.subr.mxu0 0.0
  %v4605 = vand.u32 %v3893, 4294901760
  %4606 = vmatpush1.msra.mxu0 %v4605
  %4607 = vmatprep.subr.mxu0 0.0
  %v4608 = vand.u32 %v3895, 4294901760
  %4609 = vmatpush1.msra.mxu0 %v4608
  %4610 = vmatprep.subr.mxu0 0.0
  %v4611 = vand.u32 %v3897, 4294901760
  %4612 = vmatpush1.msra.mxu0 %v4611
  %4613 = vmatprep.subr.mxu0 0.0
  %v4614 = vand.u32 %v3899, 4294901760
  %4615 = vmatpush1.msra.mxu0 %v4614
  %4616 = vmatprep.subr.mxu0 0.0
  %v4617 = vand.u32 %v3901, 4294901760
  %4618 = vmatpush1.msra.mxu0 %v4617
  %4619 = vmatprep.subr.mxu0 0.0
  %v4620 = vand.u32 %v3903, 4294901760
  %4621 = vmatpush1.msra.mxu0 %v4620
  %4622 = vmatprep.subr.mxu0 0.0
  %4623 = vmatpush1.msra.mxu0 0.0
  %4624 = vmatprep.subr.mxu0 0.0
  %4625 = vmatpush1.msra.mxu0 0.0
  %4626 = vmatprep.subr.mxu0 0.0
  %4627 = vmatpush1.msra.mxu0 0.0
  %4628 = vmatprep.subr.mxu0 0.0
  %4629 = vmatpush1.msra.mxu0 0.0
  %4630 = vmatprep.subr.mxu0 0.0
  %4631 = vmatpush1.msra.mxu0 0.0
  %4632 = vmatprep.subr.mxu0 0.0
  %4633 = vmatpush1.msra.mxu0 0.0
  %4634 = vmatprep.subr.mxu0 0.0
  %4635 = vmatpush1.msra.mxu0 0.0
  %4636 = vmatprep.subr.mxu0 0.0
  %4637 = vmatpush1.msra.mxu0 0.0
  %4638 = vmatprep.subr.mxu0 0.0
  %4639 = vmatpush1.msra.mxu0 0.0
  %4640 = vmatprep.subr.mxu0 0.0
  %4641 = vmatpush1.msra.mxu0 0.0
  %4642 = vmatprep.subr.mxu0 0.0
  %4643 = vmatpush1.msra.mxu0 0.0
  %4644 = vmatprep.subr.mxu0 0.0
  %4645 = vmatpush1.msra.mxu0 0.0
  %4646 = vmatprep.subr.mxu0 0.0
  %4647 = vmatpush1.msra.mxu0 0.0
  %4648 = vmatprep.subr.mxu0 0.0
  %4649 = vmatpush1.msra.mxu0 0.0
  %v4650 = vand.u32 %v3924, 4294901760
  %4651 = vmatprep.mubr.f32.mxu0 %v4650
  %v4652 = vand.u32 %v3641, 4294901760
  %4653 = vmatmul.mubr.f32.gmra.mrb[0].mxu0 %v4652
  %v4654 = vpop.f32.mrb[0].mxu0
  %v4655 = vadd.f32 %v4558, %v4654
  %v4656 = vpop.f32.mrb[0].mxu0
  %v4657 = vand.u32 %v3927, 4294901760
  %4658 = vmatprep.mubr.f32.mxu0 %v4657
  %v4659 = vand.u32 %v3643, 4294901760
  %4660 = vmatmul.mubr.f32.gmra.mrb[0].mxu0 %v4659
  %v4661 = vpop.f32.mrb[0].mxu0
  %v4662 = vadd.f32 %v4565, %v4661
  %v4663 = vpop.f32.mrb[0].mxu0
  %4664 = vdwg.mxu0
  %v4665 = vmax.f32 %v4655, 1e-30
  %v4666 = vmax.f32 %v4662, 1e-30
  %v4667 = vrcp.pop %v4665
  %v4668 = vmul.f32 1.0, %v4667
  %v4669 = vrcp.pop %v4666
  %v4670 = vmul.f32 1.0, %v4669
  %4671 = vset.pattern.permute.xlu0 24
  %4672 = vperm.xlu0 %4671, %v3832
  %v4673 = vpop.permute.xlu0 %4672
  %4675 = vset.pattern.permute.xlu0 24
  %4676 = vperm.xlu0 %4675, %v3833
  %v4677 = vpop.permute.xlu0 %4676
  %4679 = vset.pattern.permute.xlu0 24
  %4680 = vperm.xlu0 %4679, %v3834
  %v4681 = vpop.permute.xlu0 %4680
  %4683 = vset.pattern.permute.xlu0 24
  %4684 = vperm.xlu0 %4683, %v3835
  %v4685 = vpop.permute.xlu0 %4684
  %4687 = vset.pattern.permute.xlu0 24
  %4688 = vperm.xlu0 %4687, %v3836
  %v4689 = vpop.permute.xlu0 %4688
  %4691 = vset.pattern.permute.xlu0 24
  %4692 = vperm.xlu0 %4691, %v3837
  %v4693 = vpop.permute.xlu0 %4692
  %4695 = vset.pattern.permute.xlu0 24
  %4696 = vperm.xlu0 %4695, %v3838
  %v4697 = vpop.permute.xlu0 %4696
  %4699 = vset.pattern.permute.xlu0 24
  %4700 = vperm.xlu0 %4699, %v3839
  %v4701 = vpop.permute.xlu0 %4700
  %4703 = vset.pattern.permute.xlu0 24
  %4704 = vperm.xlu0 %4703, %v3840
  %v4705 = vpop.permute.xlu0 %4704
  %4707 = vset.pattern.permute.xlu0 24
  %4708 = vperm.xlu0 %4707, %v3841
  %v4709 = vpop.permute.xlu0 %4708
  %4711 = vset.pattern.permute.xlu0 24
  %4712 = vperm.xlu0 %4711, %v3842
  %v4713 = vpop.permute.xlu0 %4712
  %4715 = vset.pattern.permute.xlu0 24
  %4716 = vperm.xlu0 %4715, %v3843
  %v4717 = vpop.permute.xlu0 %4716
  %4719 = vset.pattern.permute.xlu0 24
  %4720 = vperm.xlu0 %4719, %v3844
  %v4721 = vpop.permute.xlu0 %4720
  %4723 = vset.pattern.permute.xlu0 24
  %4724 = vperm.xlu0 %4723, %v3845
  %v4725 = vpop.permute.xlu0 %4724
  %4727 = vset.pattern.permute.xlu0 24
  %4728 = vperm.xlu0 %4727, %v3846
  %v4729 = vpop.permute.xlu0 %4728
  %4731 = vset.pattern.permute.xlu0 24
  %4732 = vperm.xlu0 %4731, %v3847
  %v4733 = vpop.permute.xlu0 %4732
  %4735 = vset.pattern.permute.xlu0 24
  %4736 = vperm.xlu0 %4735, %v3848
  %v4737 = vpop.permute.xlu0 %4736
  %4739 = vset.pattern.permute.xlu0 24
  %4740 = vperm.xlu0 %4739, %v3849
  %v4741 = vpop.permute.xlu0 %4740
  %v4743 = vmul.f32 %v4673, %v2195
  %v4744 = vmul.f32 %v4677, %v2201
  %v4745 = vmul.f32 %v4681, %v2207
  %v4746 = vmul.f32 %v4685, %v2213
  %v4747 = vmul.f32 %v4689, %v2219
  %v4748 = vmul.f32 %v4693, %v2225
  %v4749 = vmul.f32 %v4697, %v2231
  %v4750 = vmul.f32 %v4701, %v2237
  %v4751 = vmul.f32 %v4705, %v2243
  %v4752 = vmul.f32 %v4709, %v2249
  %v4753 = vmul.f32 %v4713, %v2255
  %v4754 = vmul.f32 %v4717, %v2261
  %v4755 = vmul.f32 %v4721, %v2267
  %v4756 = vmul.f32 %v4725, %v2273
  %v4757 = vmul.f32 %v4729, %v2279
  %v4758 = vmul.f32 %v4733, %v2285
  %v4759 = vmul.f32 %v4737, %v2291
  %v4760 = vmul.f32 %v4741, %v2297
  %4761 = vmatprep.subr.mxu0 0.0
  %v4762 = vand.u32 %v4743, 4294901760
  %4763 = vmatpush1.msra.mxu0 %v4762
  %4764 = vmatprep.subr.mxu0 0.0
  %v4765 = vand.u32 %v4744, 4294901760
  %4766 = vmatpush1.msra.mxu0 %v4765
  %4767 = vmatprep.subr.mxu0 0.0
  %v4768 = vand.u32 %v4745, 4294901760
  %4769 = vmatpush1.msra.mxu0 %v4768
  %4770 = vmatprep.subr.mxu0 0.0
  %v4771 = vand.u32 %v4746, 4294901760
  %4772 = vmatpush1.msra.mxu0 %v4771
  %4773 = vmatprep.subr.mxu0 0.0
  %v4774 = vand.u32 %v4747, 4294901760
  %4775 = vmatpush1.msra.mxu0 %v4774
  %4776 = vmatprep.subr.mxu0 0.0
  %v4777 = vand.u32 %v4748, 4294901760
  %4778 = vmatpush1.msra.mxu0 %v4777
  %4779 = vmatprep.subr.mxu0 0.0
  %v4780 = vand.u32 %v4749, 4294901760
  %4781 = vmatpush1.msra.mxu0 %v4780
  %4782 = vmatprep.subr.mxu0 0.0
  %v4783 = vand.u32 %v4750, 4294901760
  %4784 = vmatpush1.msra.mxu0 %v4783
  %4785 = vmatprep.subr.mxu0 0.0
  %v4786 = vand.u32 %v4751, 4294901760
  %4787 = vmatpush1.msra.mxu0 %v4786
  %4788 = vmatprep.subr.mxu0 0.0
  %v4789 = vand.u32 %v4752, 4294901760
  %4790 = vmatpush1.msra.mxu0 %v4789
  %4791 = vmatprep.subr.mxu0 0.0
  %v4792 = vand.u32 %v4753, 4294901760
  %4793 = vmatpush1.msra.mxu0 %v4792
  %4794 = vmatprep.subr.mxu0 0.0
  %v4795 = vand.u32 %v4754, 4294901760
  %4796 = vmatpush1.msra.mxu0 %v4795
  %4797 = vmatprep.subr.mxu0 0.0
  %v4798 = vand.u32 %v4755, 4294901760
  %4799 = vmatpush1.msra.mxu0 %v4798
  %4800 = vmatprep.subr.mxu0 0.0
  %v4801 = vand.u32 %v4756, 4294901760
  %4802 = vmatpush1.msra.mxu0 %v4801
  %4803 = vmatprep.subr.mxu0 0.0
  %v4804 = vand.u32 %v4757, 4294901760
  %4805 = vmatpush1.msra.mxu0 %v4804
  %4806 = vmatprep.subr.mxu0 0.0
  %v4807 = vand.u32 %v4758, 4294901760
  %4808 = vmatpush1.msra.mxu0 %v4807
  %4809 = vmatprep.subr.mxu0 0.0
  %v4810 = vand.u32 %v4759, 4294901760
  %4811 = vmatpush1.msra.mxu0 %v4810
  %4812 = vmatprep.subr.mxu0 0.0
  %v4813 = vand.u32 %v4760, 4294901760
  %4814 = vmatpush1.msra.mxu0 %v4813
  %4815 = vmatprep.subr.mxu0 0.0
  %4816 = vmatpush1.msra.mxu0 0.0
  %4817 = vmatprep.subr.mxu0 0.0
  %4818 = vmatpush1.msra.mxu0 0.0
  %4819 = vmatprep.subr.mxu0 0.0
  %4820 = vmatpush1.msra.mxu0 0.0
  %4821 = vmatprep.subr.mxu0 0.0
  %4822 = vmatpush1.msra.mxu0 0.0
  %4823 = vmatprep.subr.mxu0 0.0
  %4824 = vmatpush1.msra.mxu0 0.0
  %4825 = vmatprep.subr.mxu0 0.0
  %4826 = vmatpush1.msra.mxu0 0.0
  %4827 = vmatprep.subr.mxu0 0.0
  %4828 = vmatpush1.msra.mxu0 0.0
  %4829 = vmatprep.subr.mxu0 0.0
  %4830 = vmatpush1.msra.mxu0 0.0
  %4831 = vmatprep.subr.mxu0 0.0
  %4832 = vmatpush1.msra.mxu0 0.0
  %4833 = vmatprep.subr.mxu0 0.0
  %4834 = vmatpush1.msra.mxu0 0.0
  %4835 = vmatprep.subr.mxu0 0.0
  %4836 = vmatpush1.msra.mxu0 0.0
  %4837 = vmatprep.subr.mxu0 0.0
  %4838 = vmatpush1.msra.mxu0 0.0
  %4839 = vmatprep.subr.mxu0 0.0
  %4840 = vmatpush1.msra.mxu0 0.0
  %4841 = vmatprep.subr.mxu0 0.0
  %4842 = vmatpush1.msra.mxu0 0.0
  %v4843 = vand.u32 %v3924, 4294901760
  %v4844 = vsub.f32 %v3924, %v4843
  %v4845 = vand.u32 %v4844, 4294901760
  %v4846 = vsub.f32 %v4844, %v4845
  %v4847 = vand.u32 %v4846, 4294901760
  %4848 = vmatprep.mubr.f32.mxu0 %v4847
  %v4849 = vand.u32 %v3641, 4294901760
  %v4850 = vsub.f32 %v3641, %v4849
  %v4851 = vand.u32 %v4850, 4294901760
  %v4852 = vsub.f32 %v4850, %v4851
  %v4853 = vand.u32 %v4852, 4294901760
  %4854 = vmatmul.mubr.f32.gmra.mrb[0].mxu0 %v4853
  %v4855 = vpop.f32.mrb[0].mxu0
  %v4856 = vadd.f32 0.0, %v4855
  %v4857 = vpop.f32.mrb[0].mxu0
  %v4858 = vand.u32 %v3927, 4294901760
  %v4859 = vsub.f32 %v3927, %v4858
  %v4860 = vand.u32 %v4859, 4294901760
  %v4861 = vsub.f32 %v4859, %v4860
  %v4862 = vand.u32 %v4861, 4294901760
  %4863 = vmatprep.mubr.f32.mxu0 %v4862
  %v4864 = vand.u32 %v3643, 4294901760
  %v4865 = vsub.f32 %v3643, %v4864
  %v4866 = vand.u32 %v4865, 4294901760
  %v4867 = vsub.f32 %v4865, %v4866
  %v4868 = vand.u32 %v4867, 4294901760
  %4869 = vmatmul.mubr.f32.gmra.mrb[0].mxu0 %v4868
  %v4870 = vpop.f32.mrb[0].mxu0
  %v4871 = vadd.f32 0.0, %v4870
  %v4872 = vpop.f32.mrb[0].mxu0
  %4873 = vdwg.mxu0
  %4874 = vmatprep.subr.mxu0 0.0
  %v4875 = vand.u32 %v4743, 4294901760
  %v4876 = vsub.f32 %v4743, %v4875
  %v4877 = vand.u32 %v4876, 4294901760
  %v4878 = vsub.f32 %v4876, %v4877
  %v4879 = vand.u32 %v4878, 4294901760
  %4880 = vmatpush1.msra.mxu0 %v4879
  %4881 = vmatprep.subr.mxu0 0.0
  %v4882 = vand.u32 %v4744, 4294901760
  %v4883 = vsub.f32 %v4744, %v4882
  %v4884 = vand.u32 %v4883, 4294901760
  %v4885 = vsub.f32 %v4883, %v4884
  %v4886 = vand.u32 %v4885, 4294901760
  %4887 = vmatpush1.msra.mxu0 %v4886
  %4888 = vmatprep.subr.mxu0 0.0
  %v4889 = vand.u32 %v4745, 4294901760
  %v4890 = vsub.f32 %v4745, %v4889
  %v4891 = vand.u32 %v4890, 4294901760
  %v4892 = vsub.f32 %v4890, %v4891
  %v4893 = vand.u32 %v4892, 4294901760
  %4894 = vmatpush1.msra.mxu0 %v4893
  %4895 = vmatprep.subr.mxu0 0.0
  %v4896 = vand.u32 %v4746, 4294901760
  %v4897 = vsub.f32 %v4746, %v4896
  %v4898 = vand.u32 %v4897, 4294901760
  %v4899 = vsub.f32 %v4897, %v4898
  %v4900 = vand.u32 %v4899, 4294901760
  %4901 = vmatpush1.msra.mxu0 %v4900
  %4902 = vmatprep.subr.mxu0 0.0
  %v4903 = vand.u32 %v4747, 4294901760
  %v4904 = vsub.f32 %v4747, %v4903
  %v4905 = vand.u32 %v4904, 4294901760
  %v4906 = vsub.f32 %v4904, %v4905
  %v4907 = vand.u32 %v4906, 4294901760
  %4908 = vmatpush1.msra.mxu0 %v4907
  %4909 = vmatprep.subr.mxu0 0.0
  %v4910 = vand.u32 %v4748, 4294901760
  %v4911 = vsub.f32 %v4748, %v4910
  %v4912 = vand.u32 %v4911, 4294901760
  %v4913 = vsub.f32 %v4911, %v4912
  %v4914 = vand.u32 %v4913, 4294901760
  %4915 = vmatpush1.msra.mxu0 %v4914
  %4916 = vmatprep.subr.mxu0 0.0
  %v4917 = vand.u32 %v4749, 4294901760
  %v4918 = vsub.f32 %v4749, %v4917
  %v4919 = vand.u32 %v4918, 4294901760
  %v4920 = vsub.f32 %v4918, %v4919
  %v4921 = vand.u32 %v4920, 4294901760
  %4922 = vmatpush1.msra.mxu0 %v4921
  %4923 = vmatprep.subr.mxu0 0.0
  %v4924 = vand.u32 %v4750, 4294901760
  %v4925 = vsub.f32 %v4750, %v4924
  %v4926 = vand.u32 %v4925, 4294901760
  %v4927 = vsub.f32 %v4925, %v4926
  %v4928 = vand.u32 %v4927, 4294901760
  %4929 = vmatpush1.msra.mxu0 %v4928
  %4930 = vmatprep.subr.mxu0 0.0
  %v4931 = vand.u32 %v4751, 4294901760
  %v4932 = vsub.f32 %v4751, %v4931
  %v4933 = vand.u32 %v4932, 4294901760
  %v4934 = vsub.f32 %v4932, %v4933
  %v4935 = vand.u32 %v4934, 4294901760
  %4936 = vmatpush1.msra.mxu0 %v4935
  %4937 = vmatprep.subr.mxu0 0.0
  %v4938 = vand.u32 %v4752, 4294901760
  %v4939 = vsub.f32 %v4752, %v4938
  %v4940 = vand.u32 %v4939, 4294901760
  %v4941 = vsub.f32 %v4939, %v4940
  %v4942 = vand.u32 %v4941, 4294901760
  %4943 = vmatpush1.msra.mxu0 %v4942
  %4944 = vmatprep.subr.mxu0 0.0
  %v4945 = vand.u32 %v4753, 4294901760
  %v4946 = vsub.f32 %v4753, %v4945
  %v4947 = vand.u32 %v4946, 4294901760
  %v4948 = vsub.f32 %v4946, %v4947
  %v4949 = vand.u32 %v4948, 4294901760
  %4950 = vmatpush1.msra.mxu0 %v4949
  %4951 = vmatprep.subr.mxu0 0.0
  %v4952 = vand.u32 %v4754, 4294901760
  %v4953 = vsub.f32 %v4754, %v4952
  %v4954 = vand.u32 %v4953, 4294901760
  %v4955 = vsub.f32 %v4953, %v4954
  %v4956 = vand.u32 %v4955, 4294901760
  %4957 = vmatpush1.msra.mxu0 %v4956
  %4958 = vmatprep.subr.mxu0 0.0
  %v4959 = vand.u32 %v4755, 4294901760
  %v4960 = vsub.f32 %v4755, %v4959
  %v4961 = vand.u32 %v4960, 4294901760
  %v4962 = vsub.f32 %v4960, %v4961
  %v4963 = vand.u32 %v4962, 4294901760
  %4964 = vmatpush1.msra.mxu0 %v4963
  %4965 = vmatprep.subr.mxu0 0.0
  %v4966 = vand.u32 %v4756, 4294901760
  %v4967 = vsub.f32 %v4756, %v4966
  %v4968 = vand.u32 %v4967, 4294901760
  %v4969 = vsub.f32 %v4967, %v4968
  %v4970 = vand.u32 %v4969, 4294901760
  %4971 = vmatpush1.msra.mxu0 %v4970
  %4972 = vmatprep.subr.mxu0 0.0
  %v4973 = vand.u32 %v4757, 4294901760
  %v4974 = vsub.f32 %v4757, %v4973
  %v4975 = vand.u32 %v4974, 4294901760
  %v4976 = vsub.f32 %v4974, %v4975
  %v4977 = vand.u32 %v4976, 4294901760
  %4978 = vmatpush1.msra.mxu0 %v4977
  %4979 = vmatprep.subr.mxu0 0.0
  %v4980 = vand.u32 %v4758, 4294901760
  %v4981 = vsub.f32 %v4758, %v4980
  %v4982 = vand.u32 %v4981, 4294901760
  %v4983 = vsub.f32 %v4981, %v4982
  %v4984 = vand.u32 %v4983, 4294901760
  %4985 = vmatpush1.msra.mxu0 %v4984
  %4986 = vmatprep.subr.mxu0 0.0
  %v4987 = vand.u32 %v4759, 4294901760
  %v4988 = vsub.f32 %v4759, %v4987
  %v4989 = vand.u32 %v4988, 4294901760
  %v4990 = vsub.f32 %v4988, %v4989
  %v4991 = vand.u32 %v4990, 4294901760
  %4992 = vmatpush1.msra.mxu0 %v4991
  %4993 = vmatprep.subr.mxu0 0.0
  %v4994 = vand.u32 %v4760, 4294901760
  %v4995 = vsub.f32 %v4760, %v4994
  %v4996 = vand.u32 %v4995, 4294901760
  %v4997 = vsub.f32 %v4995, %v4996
  %v4998 = vand.u32 %v4997, 4294901760
  %4999 = vmatpush1.msra.mxu0 %v4998
  %5000 = vmatprep.subr.mxu0 0.0
  %5001 = vmatpush1.msra.mxu0 0.0
  %5002 = vmatprep.subr.mxu0 0.0
  %5003 = vmatpush1.msra.mxu0 0.0
  %5004 = vmatprep.subr.mxu0 0.0
  %5005 = vmatpush1.msra.mxu0 0.0
  %5006 = vmatprep.subr.mxu0 0.0
  %5007 = vmatpush1.msra.mxu0 0.0
  %5008 = vmatprep.subr.mxu0 0.0
  %5009 = vmatpush1.msra.mxu0 0.0
  %5010 = vmatprep.subr.mxu0 0.0
  %5011 = vmatpush1.msra.mxu0 0.0
  %5012 = vmatprep.subr.mxu0 0.0
  %5013 = vmatpush1.msra.mxu0 0.0
  %5014 = vmatprep.subr.mxu0 0.0
  %5015 = vmatpush1.msra.mxu0 0.0
  %5016 = vmatprep.subr.mxu0 0.0
  %5017 = vmatpush1.msra.mxu0 0.0
  %5018 = vmatprep.subr.mxu0 0.0
  %5019 = vmatpush1.msra.mxu0 0.0
  %5020 = vmatprep.subr.mxu0 0.0
  %5021 = vmatpush1.msra.mxu0 0.0
  %5022 = vmatprep.subr.mxu0 0.0
  %5023 = vmatpush1.msra.mxu0 0.0
  %5024 = vmatprep.subr.mxu0 0.0
  %5025 = vmatpush1.msra.mxu0 0.0
  %5026 = vmatprep.subr.mxu0 0.0
  %5027 = vmatpush1.msra.mxu0 0.0
  %v5028 = vand.u32 %v3924, 4294901760
  %5029 = vmatprep.mubr.f32.mxu0 %v5028
  %v5030 = vand.u32 %v3641, 4294901760
  %5031 = vmatmul.mubr.f32.gmra.mrb[0].mxu0 %v5030
  %v5032 = vpop.f32.mrb[0].mxu0
  %v5033 = vadd.f32 %v4856, %v5032
  %v5034 = vpop.f32.mrb[0].mxu0
  %v5035 = vand.u32 %v3927, 4294901760
  %5036 = vmatprep.mubr.f32.mxu0 %v5035
  %v5037 = vand.u32 %v3643, 4294901760
  %5038 = vmatmul.mubr.f32.gmra.mrb[0].mxu0 %v5037
  %v5039 = vpop.f32.mrb[0].mxu0
  %v5040 = vadd.f32 %v4871, %v5039
  %v5041 = vpop.f32.mrb[0].mxu0
  %5042 = vdwg.mxu0
  %5043 = vmatprep.subr.mxu0 0.0
  %v5044 = vand.u32 %v4743, 4294901760
  %v5045 = vsub.f32 %v4743, %v5044
  %5046 = vmatpush1.msra.mxu0 %v5045
  %5047 = vmatprep.subr.mxu0 0.0
  %v5048 = vand.u32 %v4744, 4294901760
  %v5049 = vsub.f32 %v4744, %v5048
  %5050 = vmatpush1.msra.mxu0 %v5049
  %5051 = vmatprep.subr.mxu0 0.0
  %v5052 = vand.u32 %v4745, 4294901760
  %v5053 = vsub.f32 %v4745, %v5052
  %5054 = vmatpush1.msra.mxu0 %v5053
  %5055 = vmatprep.subr.mxu0 0.0
  %v5056 = vand.u32 %v4746, 4294901760
  %v5057 = vsub.f32 %v4746, %v5056
  %5058 = vmatpush1.msra.mxu0 %v5057
  %5059 = vmatprep.subr.mxu0 0.0
  %v5060 = vand.u32 %v4747, 4294901760
  %v5061 = vsub.f32 %v4747, %v5060
  %5062 = vmatpush1.msra.mxu0 %v5061
  %5063 = vmatprep.subr.mxu0 0.0
  %v5064 = vand.u32 %v4748, 4294901760
  %v5065 = vsub.f32 %v4748, %v5064
  %5066 = vmatpush1.msra.mxu0 %v5065
  %5067 = vmatprep.subr.mxu0 0.0
  %v5068 = vand.u32 %v4749, 4294901760
  %v5069 = vsub.f32 %v4749, %v5068
  %5070 = vmatpush1.msra.mxu0 %v5069
  %5071 = vmatprep.subr.mxu0 0.0
  %v5072 = vand.u32 %v4750, 4294901760
  %v5073 = vsub.f32 %v4750, %v5072
  %5074 = vmatpush1.msra.mxu0 %v5073
  %5075 = vmatprep.subr.mxu0 0.0
  %v5076 = vand.u32 %v4751, 4294901760
  %v5077 = vsub.f32 %v4751, %v5076
  %5078 = vmatpush1.msra.mxu0 %v5077
  %5079 = vmatprep.subr.mxu0 0.0
  %v5080 = vand.u32 %v4752, 4294901760
  %v5081 = vsub.f32 %v4752, %v5080
  %5082 = vmatpush1.msra.mxu0 %v5081
  %5083 = vmatprep.subr.mxu0 0.0
  %v5084 = vand.u32 %v4753, 4294901760
  %v5085 = vsub.f32 %v4753, %v5084
  %5086 = vmatpush1.msra.mxu0 %v5085
  %5087 = vmatprep.subr.mxu0 0.0
  %v5088 = vand.u32 %v4754, 4294901760
  %v5089 = vsub.f32 %v4754, %v5088
  %5090 = vmatpush1.msra.mxu0 %v5089
  %5091 = vmatprep.subr.mxu0 0.0
  %v5092 = vand.u32 %v4755, 4294901760
  %v5093 = vsub.f32 %v4755, %v5092
  %5094 = vmatpush1.msra.mxu0 %v5093
  %5095 = vmatprep.subr.mxu0 0.0
  %v5096 = vand.u32 %v4756, 4294901760
  %v5097 = vsub.f32 %v4756, %v5096
  %5098 = vmatpush1.msra.mxu0 %v5097
  %5099 = vmatprep.subr.mxu0 0.0
  %v5100 = vand.u32 %v4757, 4294901760
  %v5101 = vsub.f32 %v4757, %v5100
  %5102 = vmatpush1.msra.mxu0 %v5101
  %5103 = vmatprep.subr.mxu0 0.0
  %v5104 = vand.u32 %v4758, 4294901760
  %v5105 = vsub.f32 %v4758, %v5104
  %5106 = vmatpush1.msra.mxu0 %v5105
  %5107 = vmatprep.subr.mxu0 0.0
  %v5108 = vand.u32 %v4759, 4294901760
  %v5109 = vsub.f32 %v4759, %v5108
  %5110 = vmatpush1.msra.mxu0 %v5109
  %5111 = vmatprep.subr.mxu0 0.0
  %v5112 = vand.u32 %v4760, 4294901760
  %v5113 = vsub.f32 %v4760, %v5112
  %5114 = vmatpush1.msra.mxu0 %v5113
  %5115 = vmatprep.subr.mxu0 0.0
  %5116 = vmatpush1.msra.mxu0 0.0
  %5117 = vmatprep.subr.mxu0 0.0
  %5118 = vmatpush1.msra.mxu0 0.0
  %5119 = vmatprep.subr.mxu0 0.0
  %5120 = vmatpush1.msra.mxu0 0.0
  %5121 = vmatprep.subr.mxu0 0.0
  %5122 = vmatpush1.msra.mxu0 0.0
  %5123 = vmatprep.subr.mxu0 0.0
  %5124 = vmatpush1.msra.mxu0 0.0
  %5125 = vmatprep.subr.mxu0 0.0
  %5126 = vmatpush1.msra.mxu0 0.0
  %5127 = vmatprep.subr.mxu0 0.0
  %5128 = vmatpush1.msra.mxu0 0.0
  %5129 = vmatprep.subr.mxu0 0.0
  %5130 = vmatpush1.msra.mxu0 0.0
  %5131 = vmatprep.subr.mxu0 0.0
  %5132 = vmatpush1.msra.mxu0 0.0
  %5133 = vmatprep.subr.mxu0 0.0
  %5134 = vmatpush1.msra.mxu0 0.0
  %5135 = vmatprep.subr.mxu0 0.0
  %5136 = vmatpush1.msra.mxu0 0.0
  %5137 = vmatprep.subr.mxu0 0.0
  %5138 = vmatpush1.msra.mxu0 0.0
  %5139 = vmatprep.subr.mxu0 0.0
  %5140 = vmatpush1.msra.mxu0 0.0
  %5141 = vmatprep.subr.mxu0 0.0
  %5142 = vmatpush1.msra.mxu0 0.0
  %v5143 = vand.u32 %v3924, 4294901760
  %v5144 = vsub.f32 %v3924, %v5143
  %5145 = vmatprep.mubr.f32.mxu0 %v5144
  %v5146 = vand.u32 %v3641, 4294901760
  %v5147 = vsub.f32 %v3641, %v5146
  %5148 = vmatmul.mubr.f32.gmra.mrb[0].mxu0 %v5147
  %v5149 = vpop.f32.mrb[0].mxu0
  %v5150 = vadd.f32 %v5033, %v5149
  %v5151 = vpop.f32.mrb[0].mxu0
  %v5152 = vand.u32 %v3927, 4294901760
  %v5153 = vsub.f32 %v3927, %v5152
  %5154 = vmatprep.mubr.f32.mxu0 %v5153
  %v5155 = vand.u32 %v3643, 4294901760
  %v5156 = vsub.f32 %v3643, %v5155
  %5157 = vmatmul.mubr.f32.gmra.mrb[0].mxu0 %v5156
  %v5158 = vpop.f32.mrb[0].mxu0
  %v5159 = vadd.f32 %v5040, %v5158
  %v5160 = vpop.f32.mrb[0].mxu0
  %5161 = vdwg.mxu0
  %5162 = vmatprep.subr.mxu0 0.0
  %v5163 = vand.u32 %v4743, 4294901760
  %5164 = vmatpush1.msra.mxu0 %v5163
  %5165 = vmatprep.subr.mxu0 0.0
  %v5166 = vand.u32 %v4744, 4294901760
  %5167 = vmatpush1.msra.mxu0 %v5166
  %5168 = vmatprep.subr.mxu0 0.0
  %v5169 = vand.u32 %v4745, 4294901760
  %5170 = vmatpush1.msra.mxu0 %v5169
  %5171 = vmatprep.subr.mxu0 0.0
  %v5172 = vand.u32 %v4746, 4294901760
  %5173 = vmatpush1.msra.mxu0 %v5172
  %5174 = vmatprep.subr.mxu0 0.0
  %v5175 = vand.u32 %v4747, 4294901760
  %5176 = vmatpush1.msra.mxu0 %v5175
  %5177 = vmatprep.subr.mxu0 0.0
  %v5178 = vand.u32 %v4748, 4294901760
  %5179 = vmatpush1.msra.mxu0 %v5178
  %5180 = vmatprep.subr.mxu0 0.0
  %v5181 = vand.u32 %v4749, 4294901760
  %5182 = vmatpush1.msra.mxu0 %v5181
  %5183 = vmatprep.subr.mxu0 0.0
  %v5184 = vand.u32 %v4750, 4294901760
  %5185 = vmatpush1.msra.mxu0 %v5184
  %5186 = vmatprep.subr.mxu0 0.0
  %v5187 = vand.u32 %v4751, 4294901760
  %5188 = vmatpush1.msra.mxu0 %v5187
  %5189 = vmatprep.subr.mxu0 0.0
  %v5190 = vand.u32 %v4752, 4294901760
  %5191 = vmatpush1.msra.mxu0 %v5190
  %5192 = vmatprep.subr.mxu0 0.0
  %v5193 = vand.u32 %v4753, 4294901760
  %5194 = vmatpush1.msra.mxu0 %v5193
  %5195 = vmatprep.subr.mxu0 0.0
  %v5196 = vand.u32 %v4754, 4294901760
  %5197 = vmatpush1.msra.mxu0 %v5196
  %5198 = vmatprep.subr.mxu0 0.0
  %v5199 = vand.u32 %v4755, 4294901760
  %5200 = vmatpush1.msra.mxu0 %v5199
  %5201 = vmatprep.subr.mxu0 0.0
  %v5202 = vand.u32 %v4756, 4294901760
  %5203 = vmatpush1.msra.mxu0 %v5202
  %5204 = vmatprep.subr.mxu0 0.0
  %v5205 = vand.u32 %v4757, 4294901760
  %5206 = vmatpush1.msra.mxu0 %v5205
  %5207 = vmatprep.subr.mxu0 0.0
  %v5208 = vand.u32 %v4758, 4294901760
  %5209 = vmatpush1.msra.mxu0 %v5208
  %5210 = vmatprep.subr.mxu0 0.0
  %v5211 = vand.u32 %v4759, 4294901760
  %5212 = vmatpush1.msra.mxu0 %v5211
  %5213 = vmatprep.subr.mxu0 0.0
  %v5214 = vand.u32 %v4760, 4294901760
  %5215 = vmatpush1.msra.mxu0 %v5214
  %5216 = vmatprep.subr.mxu0 0.0
  %5217 = vmatpush1.msra.mxu0 0.0
  %5218 = vmatprep.subr.mxu0 0.0
  %5219 = vmatpush1.msra.mxu0 0.0
  %5220 = vmatprep.subr.mxu0 0.0
  %5221 = vmatpush1.msra.mxu0 0.0
  %5222 = vmatprep.subr.mxu0 0.0
  %5223 = vmatpush1.msra.mxu0 0.0
  %5224 = vmatprep.subr.mxu0 0.0
  %5225 = vmatpush1.msra.mxu0 0.0
  %5226 = vmatprep.subr.mxu0 0.0
  %5227 = vmatpush1.msra.mxu0 0.0
  %5228 = vmatprep.subr.mxu0 0.0
  %5229 = vmatpush1.msra.mxu0 0.0
  %5230 = vmatprep.subr.mxu0 0.0
  %5231 = vmatpush1.msra.mxu0 0.0
  %5232 = vmatprep.subr.mxu0 0.0
  %5233 = vmatpush1.msra.mxu0 0.0
  %5234 = vmatprep.subr.mxu0 0.0
  %5235 = vmatpush1.msra.mxu0 0.0
  %5236 = vmatprep.subr.mxu0 0.0
  %5237 = vmatpush1.msra.mxu0 0.0
  %5238 = vmatprep.subr.mxu0 0.0
  %5239 = vmatpush1.msra.mxu0 0.0
  %5240 = vmatprep.subr.mxu0 0.0
  %5241 = vmatpush1.msra.mxu0 0.0
  %5242 = vmatprep.subr.mxu0 0.0
  %5243 = vmatpush1.msra.mxu0 0.0
  %v5244 = vand.u32 %v3924, 4294901760
  %v5245 = vsub.f32 %v3924, %v5244
  %v5246 = vand.u32 %v5245, 4294901760
  %5247 = vmatprep.mubr.f32.mxu0 %v5246
  %v5248 = vand.u32 %v3641, 4294901760
  %v5249 = vsub.f32 %v3641, %v5248
  %v5250 = vand.u32 %v5249, 4294901760
  %5251 = vmatmul.mubr.f32.gmra.mrb[0].mxu0 %v5250
  %v5252 = vpop.f32.mrb[0].mxu0
  %v5253 = vadd.f32 %v5150, %v5252
  %v5254 = vpop.f32.mrb[0].mxu0
  %v5255 = vand.u32 %v3927, 4294901760
  %v5256 = vsub.f32 %v3927, %v5255
  %v5257 = vand.u32 %v5256, 4294901760
  %5258 = vmatprep.mubr.f32.mxu0 %v5257
  %v5259 = vand.u32 %v3643, 4294901760
  %v5260 = vsub.f32 %v3643, %v5259
  %v5261 = vand.u32 %v5260, 4294901760
  %5262 = vmatmul.mubr.f32.gmra.mrb[0].mxu0 %v5261
  %v5263 = vpop.f32.mrb[0].mxu0
  %v5264 = vadd.f32 %v5159, %v5263
  %v5265 = vpop.f32.mrb[0].mxu0
  %5266 = vdwg.mxu0
  %5267 = vmatprep.subr.mxu0 0.0
  %v5268 = vand.u32 %v4743, 4294901760
  %v5269 = vsub.f32 %v4743, %v5268
  %v5270 = vand.u32 %v5269, 4294901760
  %5271 = vmatpush1.msra.mxu0 %v5270
  %5272 = vmatprep.subr.mxu0 0.0
  %v5273 = vand.u32 %v4744, 4294901760
  %v5274 = vsub.f32 %v4744, %v5273
  %v5275 = vand.u32 %v5274, 4294901760
  %5276 = vmatpush1.msra.mxu0 %v5275
  %5277 = vmatprep.subr.mxu0 0.0
  %v5278 = vand.u32 %v4745, 4294901760
  %v5279 = vsub.f32 %v4745, %v5278
  %v5280 = vand.u32 %v5279, 4294901760
  %5281 = vmatpush1.msra.mxu0 %v5280
  %5282 = vmatprep.subr.mxu0 0.0
  %v5283 = vand.u32 %v4746, 4294901760
  %v5284 = vsub.f32 %v4746, %v5283
  %v5285 = vand.u32 %v5284, 4294901760
  %5286 = vmatpush1.msra.mxu0 %v5285
  %5287 = vmatprep.subr.mxu0 0.0
  %v5288 = vand.u32 %v4747, 4294901760
  %v5289 = vsub.f32 %v4747, %v5288
  %v5290 = vand.u32 %v5289, 4294901760
  %5291 = vmatpush1.msra.mxu0 %v5290
  %5292 = vmatprep.subr.mxu0 0.0
  %v5293 = vand.u32 %v4748, 4294901760
  %v5294 = vsub.f32 %v4748, %v5293
  %v5295 = vand.u32 %v5294, 4294901760
  %5296 = vmatpush1.msra.mxu0 %v5295
  %5297 = vmatprep.subr.mxu0 0.0
  %v5298 = vand.u32 %v4749, 4294901760
  %v5299 = vsub.f32 %v4749, %v5298
  %v5300 = vand.u32 %v5299, 4294901760
  %5301 = vmatpush1.msra.mxu0 %v5300
  %5302 = vmatprep.subr.mxu0 0.0
  %v5303 = vand.u32 %v4750, 4294901760
  %v5304 = vsub.f32 %v4750, %v5303
  %v5305 = vand.u32 %v5304, 4294901760
  %5306 = vmatpush1.msra.mxu0 %v5305
  %5307 = vmatprep.subr.mxu0 0.0
  %v5308 = vand.u32 %v4751, 4294901760
  %v5309 = vsub.f32 %v4751, %v5308
  %v5310 = vand.u32 %v5309, 4294901760
  %5311 = vmatpush1.msra.mxu0 %v5310
  %5312 = vmatprep.subr.mxu0 0.0
  %v5313 = vand.u32 %v4752, 4294901760
  %v5314 = vsub.f32 %v4752, %v5313
  %v5315 = vand.u32 %v5314, 4294901760
  %5316 = vmatpush1.msra.mxu0 %v5315
  %5317 = vmatprep.subr.mxu0 0.0
  %v5318 = vand.u32 %v4753, 4294901760
  %v5319 = vsub.f32 %v4753, %v5318
  %v5320 = vand.u32 %v5319, 4294901760
  %5321 = vmatpush1.msra.mxu0 %v5320
  %5322 = vmatprep.subr.mxu0 0.0
  %v5323 = vand.u32 %v4754, 4294901760
  %v5324 = vsub.f32 %v4754, %v5323
  %v5325 = vand.u32 %v5324, 4294901760
  %5326 = vmatpush1.msra.mxu0 %v5325
  %5327 = vmatprep.subr.mxu0 0.0
  %v5328 = vand.u32 %v4755, 4294901760
  %v5329 = vsub.f32 %v4755, %v5328
  %v5330 = vand.u32 %v5329, 4294901760
  %5331 = vmatpush1.msra.mxu0 %v5330
  %5332 = vmatprep.subr.mxu0 0.0
  %v5333 = vand.u32 %v4756, 4294901760
  %v5334 = vsub.f32 %v4756, %v5333
  %v5335 = vand.u32 %v5334, 4294901760
  %5336 = vmatpush1.msra.mxu0 %v5335
  %5337 = vmatprep.subr.mxu0 0.0
  %v5338 = vand.u32 %v4757, 4294901760
  %v5339 = vsub.f32 %v4757, %v5338
  %v5340 = vand.u32 %v5339, 4294901760
  %5341 = vmatpush1.msra.mxu0 %v5340
  %5342 = vmatprep.subr.mxu0 0.0
  %v5343 = vand.u32 %v4758, 4294901760
  %v5344 = vsub.f32 %v4758, %v5343
  %v5345 = vand.u32 %v5344, 4294901760
  %5346 = vmatpush1.msra.mxu0 %v5345
  %5347 = vmatprep.subr.mxu0 0.0
  %v5348 = vand.u32 %v4759, 4294901760
  %v5349 = vsub.f32 %v4759, %v5348
  %v5350 = vand.u32 %v5349, 4294901760
  %5351 = vmatpush1.msra.mxu0 %v5350
  %5352 = vmatprep.subr.mxu0 0.0
  %v5353 = vand.u32 %v4760, 4294901760
  %v5354 = vsub.f32 %v4760, %v5353
  %v5355 = vand.u32 %v5354, 4294901760
  %5356 = vmatpush1.msra.mxu0 %v5355
  %5357 = vmatprep.subr.mxu0 0.0
  %5358 = vmatpush1.msra.mxu0 0.0
  %5359 = vmatprep.subr.mxu0 0.0
  %5360 = vmatpush1.msra.mxu0 0.0
  %5361 = vmatprep.subr.mxu0 0.0
  %5362 = vmatpush1.msra.mxu0 0.0
  %5363 = vmatprep.subr.mxu0 0.0
  %5364 = vmatpush1.msra.mxu0 0.0
  %5365 = vmatprep.subr.mxu0 0.0
  %5366 = vmatpush1.msra.mxu0 0.0
  %5367 = vmatprep.subr.mxu0 0.0
  %5368 = vmatpush1.msra.mxu0 0.0
  %5369 = vmatprep.subr.mxu0 0.0
  %5370 = vmatpush1.msra.mxu0 0.0
  %5371 = vmatprep.subr.mxu0 0.0
  %5372 = vmatpush1.msra.mxu0 0.0
  %5373 = vmatprep.subr.mxu0 0.0
  %5374 = vmatpush1.msra.mxu0 0.0
  %5375 = vmatprep.subr.mxu0 0.0
  %5376 = vmatpush1.msra.mxu0 0.0
  %5377 = vmatprep.subr.mxu0 0.0
  %5378 = vmatpush1.msra.mxu0 0.0
  %5379 = vmatprep.subr.mxu0 0.0
  %5380 = vmatpush1.msra.mxu0 0.0
  %5381 = vmatprep.subr.mxu0 0.0
  %5382 = vmatpush1.msra.mxu0 0.0
  %5383 = vmatprep.subr.mxu0 0.0
  %5384 = vmatpush1.msra.mxu0 0.0
  %v5385 = vand.u32 %v3924, 4294901760
  %5386 = vmatprep.mubr.f32.mxu0 %v5385
  %v5387 = vand.u32 %v3641, 4294901760
  %5388 = vmatmul.mubr.f32.gmra.mrb[0].mxu0 %v5387
  %v5389 = vpop.f32.mrb[0].mxu0
  %v5390 = vadd.f32 %v5253, %v5389
  %v5391 = vpop.f32.mrb[0].mxu0
  %v5392 = vand.u32 %v3927, 4294901760
  %5393 = vmatprep.mubr.f32.mxu0 %v5392
  %v5394 = vand.u32 %v3643, 4294901760
  %5395 = vmatmul.mubr.f32.gmra.mrb[0].mxu0 %v5394
  %v5396 = vpop.f32.mrb[0].mxu0
  %v5397 = vadd.f32 %v5264, %v5396
  %v5398 = vpop.f32.mrb[0].mxu0
  %5399 = vdwg.mxu0
  %5400 = vmatprep.subr.mxu0 0.0
  %v5401 = vand.u32 %v4743, 4294901760
  %5402 = vmatpush1.msra.mxu0 %v5401
  %5403 = vmatprep.subr.mxu0 0.0
  %v5404 = vand.u32 %v4744, 4294901760
  %5405 = vmatpush1.msra.mxu0 %v5404
  %5406 = vmatprep.subr.mxu0 0.0
  %v5407 = vand.u32 %v4745, 4294901760
  %5408 = vmatpush1.msra.mxu0 %v5407
  %5409 = vmatprep.subr.mxu0 0.0
  %v5410 = vand.u32 %v4746, 4294901760
  %5411 = vmatpush1.msra.mxu0 %v5410
  %5412 = vmatprep.subr.mxu0 0.0
  %v5413 = vand.u32 %v4747, 4294901760
  %5414 = vmatpush1.msra.mxu0 %v5413
  %5415 = vmatprep.subr.mxu0 0.0
  %v5416 = vand.u32 %v4748, 4294901760
  %5417 = vmatpush1.msra.mxu0 %v5416
  %5418 = vmatprep.subr.mxu0 0.0
  %v5419 = vand.u32 %v4749, 4294901760
  %5420 = vmatpush1.msra.mxu0 %v5419
  %5421 = vmatprep.subr.mxu0 0.0
  %v5422 = vand.u32 %v4750, 4294901760
  %5423 = vmatpush1.msra.mxu0 %v5422
  %5424 = vmatprep.subr.mxu0 0.0
  %v5425 = vand.u32 %v4751, 4294901760
  %5426 = vmatpush1.msra.mxu0 %v5425
  %5427 = vmatprep.subr.mxu0 0.0
  %v5428 = vand.u32 %v4752, 4294901760
  %5429 = vmatpush1.msra.mxu0 %v5428
  %5430 = vmatprep.subr.mxu0 0.0
  %v5431 = vand.u32 %v4753, 4294901760
  %5432 = vmatpush1.msra.mxu0 %v5431
  %5433 = vmatprep.subr.mxu0 0.0
  %v5434 = vand.u32 %v4754, 4294901760
  %5435 = vmatpush1.msra.mxu0 %v5434
  %5436 = vmatprep.subr.mxu0 0.0
  %v5437 = vand.u32 %v4755, 4294901760
  %5438 = vmatpush1.msra.mxu0 %v5437
  %5439 = vmatprep.subr.mxu0 0.0
  %v5440 = vand.u32 %v4756, 4294901760
  %5441 = vmatpush1.msra.mxu0 %v5440
  %5442 = vmatprep.subr.mxu0 0.0
  %v5443 = vand.u32 %v4757, 4294901760
  %5444 = vmatpush1.msra.mxu0 %v5443
  %5445 = vmatprep.subr.mxu0 0.0
  %v5446 = vand.u32 %v4758, 4294901760
  %5447 = vmatpush1.msra.mxu0 %v5446
  %5448 = vmatprep.subr.mxu0 0.0
  %v5449 = vand.u32 %v4759, 4294901760
  %5450 = vmatpush1.msra.mxu0 %v5449
  %5451 = vmatprep.subr.mxu0 0.0
  %v5452 = vand.u32 %v4760, 4294901760
  %5453 = vmatpush1.msra.mxu0 %v5452
  %5454 = vmatprep.subr.mxu0 0.0
  %5455 = vmatpush1.msra.mxu0 0.0
  %5456 = vmatprep.subr.mxu0 0.0
  %5457 = vmatpush1.msra.mxu0 0.0
  %5458 = vmatprep.subr.mxu0 0.0
  %5459 = vmatpush1.msra.mxu0 0.0
  %5460 = vmatprep.subr.mxu0 0.0
  %5461 = vmatpush1.msra.mxu0 0.0
  %5462 = vmatprep.subr.mxu0 0.0
  %5463 = vmatpush1.msra.mxu0 0.0
  %5464 = vmatprep.subr.mxu0 0.0
  %5465 = vmatpush1.msra.mxu0 0.0
  %5466 = vmatprep.subr.mxu0 0.0
  %5467 = vmatpush1.msra.mxu0 0.0
  %5468 = vmatprep.subr.mxu0 0.0
  %5469 = vmatpush1.msra.mxu0 0.0
  %5470 = vmatprep.subr.mxu0 0.0
  %5471 = vmatpush1.msra.mxu0 0.0
  %5472 = vmatprep.subr.mxu0 0.0
  %5473 = vmatpush1.msra.mxu0 0.0
  %5474 = vmatprep.subr.mxu0 0.0
  %5475 = vmatpush1.msra.mxu0 0.0
  %5476 = vmatprep.subr.mxu0 0.0
  %5477 = vmatpush1.msra.mxu0 0.0
  %5478 = vmatprep.subr.mxu0 0.0
  %5479 = vmatpush1.msra.mxu0 0.0
  %5480 = vmatprep.subr.mxu0 0.0
  %5481 = vmatpush1.msra.mxu0 0.0
  %v5482 = vand.u32 %v3924, 4294901760
  %5483 = vmatprep.mubr.f32.mxu0 %v5482
  %v5484 = vand.u32 %v3641, 4294901760
  %5485 = vmatmul.mubr.f32.gmra.mrb[0].mxu0 %v5484
  %v5486 = vpop.f32.mrb[0].mxu0
  %v5487 = vadd.f32 %v5390, %v5486
  %v5488 = vpop.f32.mrb[0].mxu0
  %v5489 = vand.u32 %v3927, 4294901760
  %5490 = vmatprep.mubr.f32.mxu0 %v5489
  %v5491 = vand.u32 %v3643, 4294901760
  %5492 = vmatmul.mubr.f32.gmra.mrb[0].mxu0 %v5491
  %v5493 = vpop.f32.mrb[0].mxu0
  %v5494 = vadd.f32 %v5397, %v5493
  %v5495 = vpop.f32.mrb[0].mxu0
  %5496 = vdwg.mxu0
  %5498 = vset.pattern.permute.xlu0 0
  %5499 = vperm.xlu0 %5498, %v4668
  %v5500 = vpop.permute.xlu0 %5499
  %5503 = vset.pattern.permute.xlu0 0
  %5504 = vperm.xlu0 %5503, %v4670
  %v5505 = vpop.permute.xlu0 %5504
  %v5507 = vmul.f32 %v5487, %v5500
  %v5508 = vmul.f32 %v5494, %v5505
  %v5509 = vlaneseq
  %v5510 = vshrl.u32 %v5509, 7
  %v5511 = vsub.s32 2, %v5510
  %v5512 = vrot.slane %v22, %v5511
  %v5513 = vadd.f32 %v5507, %v5512
  %v5514 = vadd.f32 %v5508, %v5512
  %5515 = vst.msk [vmem:[%s5] sm:$0xff] %vm3645, %v5513
  %vm5516 = vcmask 11264
  %5517 = vst.msk [vmem:[%s5 + $0x8] sm:$0xf] %vm5516, %v5514
  %5536 = vrot.lane.b32.xlu0 %v3623, 126
  %v5537 = vpop.permute.xlu0 %5536
  %5538 = vrot.lane.b32.xlu0 %v3624, 126
  %v5539 = vpop.permute.xlu0 %5538
  %5540 = vrot.lane.b32.xlu0 %v3625, 126
  %v5541 = vpop.permute.xlu0 %5540
  %5542 = vrot.lane.b32.xlu0 %v3626, 126
  %v5543 = vpop.permute.xlu0 %5542
  %5544 = vrot.lane.b32.xlu0 %v3627, 126
  %v5545 = vpop.permute.xlu0 %5544
  %5546 = vrot.lane.b32.xlu0 %v3628, 126
  %v5547 = vpop.permute.xlu0 %5546
  %5548 = vrot.lane.b32.xlu0 %v3629, 126
  %v5549 = vpop.permute.xlu0 %5548
  %5550 = vrot.lane.b32.xlu0 %v3630, 126
  %v5551 = vpop.permute.xlu0 %5550
  %5552 = vrot.lane.b32.xlu0 %v3631, 126
  %v5553 = vpop.permute.xlu0 %5552
  %5554 = vrot.lane.b32.xlu0 %v3632, 126
  %v5555 = vpop.permute.xlu0 %5554
  %5556 = vrot.lane.b32.xlu0 %v3633, 126
  %v5557 = vpop.permute.xlu0 %5556
  %5558 = vrot.lane.b32.xlu0 %v3634, 126
  %v5559 = vpop.permute.xlu0 %5558
  %5560 = vrot.lane.b32.xlu0 %v3635, 126
  %v5561 = vpop.permute.xlu0 %5560
  %5562 = vrot.lane.b32.xlu0 %v3636, 126
  %v5563 = vpop.permute.xlu0 %5562
  %5564 = vrot.lane.b32.xlu0 %v3637, 126
  %v5565 = vpop.permute.xlu0 %5564
  %5566 = vrot.lane.b32.xlu0 %v3638, 126
  %v5567 = vpop.permute.xlu0 %5566
  %5568 = vrot.lane.b32.xlu0 %v3639, 126
  %v5569 = vpop.permute.xlu0 %5568
  %5570 = vrot.lane.b32.xlu0 %v3640, 126
  %v5571 = vpop.permute.xlu0 %5570
  %v5590 = vsel %vm3645, %v5537, 0.0
  %5591 = vadd.xlane.f32.xlu0 %v5590
  %v5592 = vpop.xlane.xlu0 %5591
  %v5593 = vsel %vm3645, %v5539, 0.0
  %5594 = vadd.xlane.f32.xlu0 %v5593
  %v5595 = vpop.xlane.xlu0 %5594
  %v5596 = vsel %vm3645, %v5541, 0.0
  %5597 = vadd.xlane.f32.xlu0 %v5596
  %v5598 = vpop.xlane.xlu0 %5597
  %v5599 = vsel %vm3645, %v5543, 0.0
  %5600 = vadd.xlane.f32.xlu0 %v5599
  %v5601 = vpop.xlane.xlu0 %5600
  %v5602 = vsel %vm3645, %v5545, 0.0
  %5603 = vadd.xlane.f32.xlu0 %v5602
  %v5604 = vpop.xlane.xlu0 %5603
  %v5605 = vsel %vm3645, %v5547, 0.0
  %5606 = vadd.xlane.f32.xlu0 %v5605
  %v5607 = vpop.xlane.xlu0 %5606
  %v5608 = vsel %vm3645, %v5549, 0.0
  %5609 = vadd.xlane.f32.xlu0 %v5608
  %v5610 = vpop.xlane.xlu0 %5609
  %v5611 = vsel %vm3645, %v5551, 0.0
  %5612 = vadd.xlane.f32.xlu0 %v5611
  %v5613 = vpop.xlane.xlu0 %5612
  %v5614 = vsel %vm3645, %v5553, 0.0
  %5615 = vadd.xlane.f32.xlu0 %v5614
  %v5616 = vpop.xlane.xlu0 %5615
  %v5617 = vsel %vm3645, %v5555, 0.0
  %5618 = vadd.xlane.f32.xlu0 %v5617
  %v5619 = vpop.xlane.xlu0 %5618
  %v5620 = vsel %vm3645, %v5557, 0.0
  %5621 = vadd.xlane.f32.xlu0 %v5620
  %v5622 = vpop.xlane.xlu0 %5621
  %v5623 = vsel %vm3645, %v5559, 0.0
  %5624 = vadd.xlane.f32.xlu0 %v5623
  %v5625 = vpop.xlane.xlu0 %5624
  %v5626 = vsel %vm3645, %v5561, 0.0
  %5627 = vadd.xlane.f32.xlu0 %v5626
  %v5628 = vpop.xlane.xlu0 %5627
  %v5629 = vsel %vm3645, %v5563, 0.0
  %5630 = vadd.xlane.f32.xlu0 %v5629
  %v5631 = vpop.xlane.xlu0 %5630
  %v5632 = vsel %vm3645, %v5565, 0.0
  %5633 = vadd.xlane.f32.xlu0 %v5632
  %v5634 = vpop.xlane.xlu0 %5633
  %v5635 = vsel %vm3645, %v5567, 0.0
  %5636 = vadd.xlane.f32.xlu0 %v5635
  %v5637 = vpop.xlane.xlu0 %5636
  %v5638 = vsel %vm3645, %v5569, 0.0
  %5639 = vadd.xlane.f32.xlu0 %v5638
  %v5640 = vpop.xlane.xlu0 %5639
  %v5641 = vsel %vm3645, %v5571, 0.0
  %5642 = vadd.xlane.f32.xlu0 %v5641
  %v5643 = vpop.xlane.xlu0 %5642
  %v5644 = vsel %vm3700, %v5592, -1e+30
  %v5645 = vsel %vm3701, %v5595, -1e+30
  %v5646 = vsel %vm3702, %v5598, -1e+30
  %v5647 = vsel %vm3703, %v5601, -1e+30
  %v5648 = vsel %vm3704, %v5604, -1e+30
  %v5649 = vsel %vm3705, %v5607, -1e+30
  %v5650 = vsel %vm3706, %v5610, -1e+30
  %v5651 = vsel %vm3707, %v5613, -1e+30
  %v5652 = vsel %vm3708, %v5616, -1e+30
  %v5653 = vsel %vm3709, %v5619, -1e+30
  %v5654 = vsel %vm3710, %v5622, -1e+30
  %v5655 = vsel %vm3711, %v5625, -1e+30
  %v5656 = vsel %vm3712, %v5628, -1e+30
  %v5657 = vsel %vm3713, %v5631, -1e+30
  %v5658 = vsel %vm3714, %v5634, -1e+30
  %v5659 = vsel %vm3715, %v5637, -1e+30
  %v5660 = vsel %vm3716, %v5640, -1e+30
  %v5661 = vsel %vm3717, %v5643, -1e+30
  %v5662 = vsel %vm3736, %v5644, -inf
  %v5663 = vsel %vm3736, %v5645, -inf
  %v5664 = vsel %vm3736, %v5646, -inf
  %v5665 = vsel %vm3736, %v5647, -inf
  %v5666 = vsel %vm3736, %v5648, -inf
  %v5667 = vmax.f32 %v5662, %v5666
  %v5668 = vsel %vm3736, %v5649, -inf
  %v5669 = vmax.f32 %v5663, %v5668
  %v5670 = vsel %vm3736, %v5650, -inf
  %v5671 = vmax.f32 %v5664, %v5670
  %v5672 = vsel %vm3736, %v5651, -inf
  %v5673 = vmax.f32 %v5665, %v5672
  %v5674 = vsel %vm3736, %v5652, -inf
  %v5675 = vmax.f32 %v5667, %v5674
  %v5676 = vsel %vm3736, %v5653, -inf
  %v5677 = vmax.f32 %v5669, %v5676
  %v5678 = vsel %vm3736, %v5654, -inf
  %v5679 = vmax.f32 %v5671, %v5678
  %v5680 = vsel %vm3736, %v5655, -inf
  %v5681 = vmax.f32 %v5673, %v5680
  %v5682 = vsel %vm3736, %v5656, -inf
  %v5683 = vmax.f32 %v5675, %v5682
  %v5684 = vsel %vm3736, %v5657, -inf
  %v5685 = vmax.f32 %v5677, %v5684
  %v5686 = vsel %vm3736, %v5658, -inf
  %v5687 = vmax.f32 %v5679, %v5686
  %v5688 = vsel %vm3736, %v5659, -inf
  %v5689 = vmax.f32 %v5681, %v5688
  %v5690 = vsel %vm3736, %v5660, -inf
  %v5691 = vmax.f32 %v5683, %v5690
  %v5692 = vsel %vm3736, %v5661, -inf
  %v5693 = vmax.f32 %v5685, %v5692
  %v5694 = vmax.f32 %v5691, %v5693
  %v5695 = vmax.f32 %v5687, %v5689
  %v5696 = vmax.f32 %v5694, %v5695
  %v5697 = vrot.slane %v5696, 4
  %v5698 = vmax.f32 %v5696, %v5697
  %v5699 = vrot.slane %v5698, 2
  %v5700 = vmax.f32 %v5698, %v5699
  %v5701 = vrot.slane %v5700, 1
  %v5702 = vmax.f32 %v5700, %v5701
  %v5703 = vsub.f32 %v5644, %v5702
  %v5704 = vsub.f32 %v5645, %v5702
  %v5705 = vsub.f32 %v5646, %v5702
  %v5706 = vsub.f32 %v5647, %v5702
  %v5707 = vsub.f32 %v5648, %v5702
  %v5708 = vsub.f32 %v5649, %v5702
  %v5709 = vsub.f32 %v5650, %v5702
  %v5710 = vsub.f32 %v5651, %v5702
  %v5711 = vsub.f32 %v5652, %v5702
  %v5712 = vsub.f32 %v5653, %v5702
  %v5713 = vsub.f32 %v5654, %v5702
  %v5714 = vsub.f32 %v5655, %v5702
  %v5715 = vsub.f32 %v5656, %v5702
  %v5716 = vsub.f32 %v5657, %v5702
  %v5717 = vsub.f32 %v5658, %v5702
  %v5718 = vsub.f32 %v5659, %v5702
  %v5719 = vsub.f32 %v5660, %v5702
  %v5720 = vsub.f32 %v5661, %v5702
  %v5721 = vmul.f32 %v5703, 1.442695
  %v5722 = vpow.pop %v5721
  %v5723 = vmul.f32 %v5704, 1.442695
  %v5724 = vpow.pop %v5723
  %v5725 = vmul.f32 %v5705, 1.442695
  %v5726 = vpow.pop %v5725
  %v5727 = vmul.f32 %v5706, 1.442695
  %v5728 = vpow.pop %v5727
  %v5729 = vmul.f32 %v5707, 1.442695
  %v5730 = vpow.pop %v5729
  %v5731 = vmul.f32 %v5708, 1.442695
  %v5732 = vpow.pop %v5731
  %v5733 = vmul.f32 %v5709, 1.442695
  %v5734 = vpow.pop %v5733
  %v5735 = vmul.f32 %v5710, 1.442695
  %v5736 = vpow.pop %v5735
  %v5737 = vmul.f32 %v5711, 1.442695
  %v5738 = vpow.pop %v5737
  %v5739 = vmul.f32 %v5712, 1.442695
  %v5740 = vpow.pop %v5739
  %v5741 = vmul.f32 %v5713, 1.442695
  %v5742 = vpow.pop %v5741
  %v5743 = vmul.f32 %v5714, 1.442695
  %v5744 = vpow.pop %v5743
  %v5745 = vmul.f32 %v5715, 1.442695
  %v5746 = vpow.pop %v5745
  %v5747 = vmul.f32 %v5716, 1.442695
  %v5748 = vpow.pop %v5747
  %v5749 = vmul.f32 %v5717, 1.442695
  %v5750 = vpow.pop %v5749
  %v5751 = vmul.f32 %v5718, 1.442695
  %v5752 = vpow.pop %v5751
  %v5753 = vmul.f32 %v5719, 1.442695
  %v5754 = vpow.pop %v5753
  %v5755 = vmul.f32 %v5720, 1.442695
  %v5756 = vpow.pop %v5755
  %v5757 = vmul.f32 %v5722, %v1033
  %v5758 = vmul.f32 %v5724, %v1034
  %v5759 = vmul.f32 %v5726, %v1035
  %v5760 = vmul.f32 %v5728, %v1036
  %v5761 = vmul.f32 %v5730, %v1037
  %v5762 = vmul.f32 %v5732, %v1038
  %v5763 = vmul.f32 %v5734, %v1039
  %v5764 = vmul.f32 %v5736, %v1040
  %v5765 = vmul.f32 %v5738, %v1041
  %v5766 = vmul.f32 %v5740, %v1042
  %v5767 = vmul.f32 %v5742, %v1043
  %v5768 = vmul.f32 %v5744, %v1044
  %v5769 = vmul.f32 %v5746, %v1045
  %v5770 = vmul.f32 %v5748, %v1046
  %v5771 = vmul.f32 %v5750, %v1047
  %v5772 = vmul.f32 %v5752, %v1048
  %v5773 = vmul.f32 %v5754, %v1049
  %v5774 = vmul.f32 %v5756, %v1050
  %5793 = vrot.lane.b32.xlu0 %v5757, 104
  %v5794 = vpop.permute.xlu0 %5793
  %5795 = vrot.lane.b32.xlu0 %v5758, 104
  %v5796 = vpop.permute.xlu0 %5795
  %5797 = vrot.lane.b32.xlu0 %v5759, 104
  %v5798 = vpop.permute.xlu0 %5797
  %5799 = vrot.lane.b32.xlu0 %v5760, 104
  %v5800 = vpop.permute.xlu0 %5799
  %5801 = vrot.lane.b32.xlu0 %v5761, 104
  %v5802 = vpop.permute.xlu0 %5801
  %5803 = vrot.lane.b32.xlu0 %v5762, 104
  %v5804 = vpop.permute.xlu0 %5803
  %5805 = vrot.lane.b32.xlu0 %v5763, 104
  %v5806 = vpop.permute.xlu0 %5805
  %5807 = vrot.lane.b32.xlu0 %v5764, 104
  %v5808 = vpop.permute.xlu0 %5807
  %5809 = vrot.lane.b32.xlu0 %v5765, 104
  %v5810 = vpop.permute.xlu0 %5809
  %5811 = vrot.lane.b32.xlu0 %v5766, 104
  %v5812 = vpop.permute.xlu0 %5811
  %5813 = vrot.lane.b32.xlu0 %v5767, 104
  %v5814 = vpop.permute.xlu0 %5813
  %5815 = vrot.lane.b32.xlu0 %v5768, 104
  %v5816 = vpop.permute.xlu0 %5815
  %5817 = vrot.lane.b32.xlu0 %v5769, 104
  %v5818 = vpop.permute.xlu0 %5817
  %5819 = vrot.lane.b32.xlu0 %v5770, 104
  %v5820 = vpop.permute.xlu0 %5819
  %5821 = vrot.lane.b32.xlu0 %v5771, 104
  %v5822 = vpop.permute.xlu0 %5821
  %5823 = vrot.lane.b32.xlu0 %v5772, 104
  %v5824 = vpop.permute.xlu0 %5823
  %5825 = vrot.lane.b32.xlu0 %v5773, 104
  %v5826 = vpop.permute.xlu0 %5825
  %5827 = vrot.lane.b32.xlu0 %v5774, 104
  %v5828 = vpop.permute.xlu0 %5827
  %5847 = vmatprep.subr.mxu0 0.0
  %v5848 = vand.u32 %v5794, 4294901760
  %5849 = vmatpush1.msra.mxu0 %v5848
  %5850 = vmatprep.subr.mxu0 0.0
  %v5851 = vand.u32 %v5796, 4294901760
  %5852 = vmatpush1.msra.mxu0 %v5851
  %5853 = vmatprep.subr.mxu0 0.0
  %v5854 = vand.u32 %v5798, 4294901760
  %5855 = vmatpush1.msra.mxu0 %v5854
  %5856 = vmatprep.subr.mxu0 0.0
  %v5857 = vand.u32 %v5800, 4294901760
  %5858 = vmatpush1.msra.mxu0 %v5857
  %5859 = vmatprep.subr.mxu0 0.0
  %v5860 = vand.u32 %v5802, 4294901760
  %5861 = vmatpush1.msra.mxu0 %v5860
  %5862 = vmatprep.subr.mxu0 0.0
  %v5863 = vand.u32 %v5804, 4294901760
  %5864 = vmatpush1.msra.mxu0 %v5863
  %5865 = vmatprep.subr.mxu0 0.0
  %v5866 = vand.u32 %v5806, 4294901760
  %5867 = vmatpush1.msra.mxu0 %v5866
  %5868 = vmatprep.subr.mxu0 0.0
  %v5869 = vand.u32 %v5808, 4294901760
  %5870 = vmatpush1.msra.mxu0 %v5869
  %5871 = vmatprep.subr.mxu0 0.0
  %v5872 = vand.u32 %v5810, 4294901760
  %5873 = vmatpush1.msra.mxu0 %v5872
  %5874 = vmatprep.subr.mxu0 0.0
  %v5875 = vand.u32 %v5812, 4294901760
  %5876 = vmatpush1.msra.mxu0 %v5875
  %5877 = vmatprep.subr.mxu0 0.0
  %v5878 = vand.u32 %v5814, 4294901760
  %5879 = vmatpush1.msra.mxu0 %v5878
  %5880 = vmatprep.subr.mxu0 0.0
  %v5881 = vand.u32 %v5816, 4294901760
  %5882 = vmatpush1.msra.mxu0 %v5881
  %5883 = vmatprep.subr.mxu0 0.0
  %v5884 = vand.u32 %v5818, 4294901760
  %5885 = vmatpush1.msra.mxu0 %v5884
  %5886 = vmatprep.subr.mxu0 0.0
  %v5887 = vand.u32 %v5820, 4294901760
  %5888 = vmatpush1.msra.mxu0 %v5887
  %5889 = vmatprep.subr.mxu0 0.0
  %v5890 = vand.u32 %v5822, 4294901760
  %5891 = vmatpush1.msra.mxu0 %v5890
  %5892 = vmatprep.subr.mxu0 0.0
  %v5893 = vand.u32 %v5824, 4294901760
  %5894 = vmatpush1.msra.mxu0 %v5893
  %5895 = vmatprep.subr.mxu0 0.0
  %v5896 = vand.u32 %v5826, 4294901760
  %5897 = vmatpush1.msra.mxu0 %v5896
  %5898 = vmatprep.subr.mxu0 0.0
  %v5899 = vand.u32 %v5828, 4294901760
  %5900 = vmatpush1.msra.mxu0 %v5899
  %5901 = vmatprep.subr.mxu0 0.0
  %5902 = vmatpush1.msra.mxu0 0.0
  %5903 = vmatprep.subr.mxu0 0.0
  %5904 = vmatpush1.msra.mxu0 0.0
  %5905 = vmatprep.subr.mxu0 0.0
  %5906 = vmatpush1.msra.mxu0 0.0
  %5907 = vmatprep.subr.mxu0 0.0
  %5908 = vmatpush1.msra.mxu0 0.0
  %5909 = vmatprep.subr.mxu0 0.0
  %5910 = vmatpush1.msra.mxu0 0.0
  %5911 = vmatprep.subr.mxu0 0.0
  %5912 = vmatpush1.msra.mxu0 0.0
  %5913 = vmatprep.subr.mxu0 0.0
  %5914 = vmatpush1.msra.mxu0 0.0
  %5915 = vmatprep.subr.mxu0 0.0
  %5916 = vmatpush1.msra.mxu0 0.0
  %5917 = vmatprep.subr.mxu0 0.0
  %5918 = vmatpush1.msra.mxu0 0.0
  %5919 = vmatprep.subr.mxu0 0.0
  %5920 = vmatpush1.msra.mxu0 0.0
  %5921 = vmatprep.subr.mxu0 0.0
  %5922 = vmatpush1.msra.mxu0 0.0
  %5923 = vmatprep.subr.mxu0 0.0
  %5924 = vmatpush1.msra.mxu0 0.0
  %5925 = vmatprep.subr.mxu0 0.0
  %5926 = vmatpush1.msra.mxu0 0.0
  %5927 = vmatprep.subr.mxu0 0.0
  %5928 = vmatpush1.msra.mxu0 0.0
  %v5929 = vand.u32 %v3924, 4294901760
  %v5930 = vsub.f32 %v3924, %v5929
  %v5931 = vand.u32 %v5930, 4294901760
  %v5932 = vsub.f32 %v5930, %v5931
  %v5933 = vand.u32 %v5932, 4294901760
  %5934 = vmatprep.mubr.f32.mxu0 %v5933
  %v5935 = vand.u32 %v3641, 4294901760
  %v5936 = vsub.f32 %v3641, %v5935
  %v5937 = vand.u32 %v5936, 4294901760
  %v5938 = vsub.f32 %v5936, %v5937
  %v5939 = vand.u32 %v5938, 4294901760
  %5940 = vmatmul.mubr.f32.gmra.mrb[0].mxu0 %v5939
  %v5941 = vpop.f32.mrb[0].mxu0
  %v5942 = vadd.f32 0.0, %v5941
  %v5943 = vpop.f32.mrb[0].mxu0
  %v5944 = vand.u32 %v3927, 4294901760
  %v5945 = vsub.f32 %v3927, %v5944
  %v5946 = vand.u32 %v5945, 4294901760
  %v5947 = vsub.f32 %v5945, %v5946
  %v5948 = vand.u32 %v5947, 4294901760
  %5949 = vmatprep.mubr.f32.mxu0 %v5948
  %v5950 = vand.u32 %v3643, 4294901760
  %v5951 = vsub.f32 %v3643, %v5950
  %v5952 = vand.u32 %v5951, 4294901760
  %v5953 = vsub.f32 %v5951, %v5952
  %v5954 = vand.u32 %v5953, 4294901760
  %5955 = vmatmul.mubr.f32.gmra.mrb[0].mxu0 %v5954
  %v5956 = vpop.f32.mrb[0].mxu0
  %v5957 = vadd.f32 0.0, %v5956
  %v5958 = vpop.f32.mrb[0].mxu0
  %5959 = vdwg.mxu0
  %5960 = vmatprep.subr.mxu0 0.0
  %v5961 = vand.u32 %v5794, 4294901760
  %v5962 = vsub.f32 %v5794, %v5961
  %v5963 = vand.u32 %v5962, 4294901760
  %v5964 = vsub.f32 %v5962, %v5963
  %v5965 = vand.u32 %v5964, 4294901760
  %5966 = vmatpush1.msra.mxu0 %v5965
  %5967 = vmatprep.subr.mxu0 0.0
  %v5968 = vand.u32 %v5796, 4294901760
  %v5969 = vsub.f32 %v5796, %v5968
  %v5970 = vand.u32 %v5969, 4294901760
  %v5971 = vsub.f32 %v5969, %v5970
  %v5972 = vand.u32 %v5971, 4294901760
  %5973 = vmatpush1.msra.mxu0 %v5972
  %5974 = vmatprep.subr.mxu0 0.0
  %v5975 = vand.u32 %v5798, 4294901760
  %v5976 = vsub.f32 %v5798, %v5975
  %v5977 = vand.u32 %v5976, 4294901760
  %v5978 = vsub.f32 %v5976, %v5977
  %v5979 = vand.u32 %v5978, 4294901760
  %5980 = vmatpush1.msra.mxu0 %v5979
  %5981 = vmatprep.subr.mxu0 0.0
  %v5982 = vand.u32 %v5800, 4294901760
  %v5983 = vsub.f32 %v5800, %v5982
  %v5984 = vand.u32 %v5983, 4294901760
  %v5985 = vsub.f32 %v5983, %v5984
  %v5986 = vand.u32 %v5985, 4294901760
  %5987 = vmatpush1.msra.mxu0 %v5986
  %5988 = vmatprep.subr.mxu0 0.0
  %v5989 = vand.u32 %v5802, 4294901760
  %v5990 = vsub.f32 %v5802, %v5989
  %v5991 = vand.u32 %v5990, 4294901760
  %v5992 = vsub.f32 %v5990, %v5991
  %v5993 = vand.u32 %v5992, 4294901760
  %5994 = vmatpush1.msra.mxu0 %v5993
  %5995 = vmatprep.subr.mxu0 0.0
  %v5996 = vand.u32 %v5804, 4294901760
  %v5997 = vsub.f32 %v5804, %v5996
  %v5998 = vand.u32 %v5997, 4294901760
  %v5999 = vsub.f32 %v5997, %v5998
  %v6000 = vand.u32 %v5999, 4294901760
  %6001 = vmatpush1.msra.mxu0 %v6000
  %6002 = vmatprep.subr.mxu0 0.0
  %v6003 = vand.u32 %v5806, 4294901760
  %v6004 = vsub.f32 %v5806, %v6003
  %v6005 = vand.u32 %v6004, 4294901760
  %v6006 = vsub.f32 %v6004, %v6005
  %v6007 = vand.u32 %v6006, 4294901760
  %6008 = vmatpush1.msra.mxu0 %v6007
  %6009 = vmatprep.subr.mxu0 0.0
  %v6010 = vand.u32 %v5808, 4294901760
  %v6011 = vsub.f32 %v5808, %v6010
  %v6012 = vand.u32 %v6011, 4294901760
  %v6013 = vsub.f32 %v6011, %v6012
  %v6014 = vand.u32 %v6013, 4294901760
  %6015 = vmatpush1.msra.mxu0 %v6014
  %6016 = vmatprep.subr.mxu0 0.0
  %v6017 = vand.u32 %v5810, 4294901760
  %v6018 = vsub.f32 %v5810, %v6017
  %v6019 = vand.u32 %v6018, 4294901760
  %v6020 = vsub.f32 %v6018, %v6019
  %v6021 = vand.u32 %v6020, 4294901760
  %6022 = vmatpush1.msra.mxu0 %v6021
  %6023 = vmatprep.subr.mxu0 0.0
  %v6024 = vand.u32 %v5812, 4294901760
  %v6025 = vsub.f32 %v5812, %v6024
  %v6026 = vand.u32 %v6025, 4294901760
  %v6027 = vsub.f32 %v6025, %v6026
  %v6028 = vand.u32 %v6027, 4294901760
  %6029 = vmatpush1.msra.mxu0 %v6028
  %6030 = vmatprep.subr.mxu0 0.0
  %v6031 = vand.u32 %v5814, 4294901760
  %v6032 = vsub.f32 %v5814, %v6031
  %v6033 = vand.u32 %v6032, 4294901760
  %v6034 = vsub.f32 %v6032, %v6033
  %v6035 = vand.u32 %v6034, 4294901760
  %6036 = vmatpush1.msra.mxu0 %v6035
  %6037 = vmatprep.subr.mxu0 0.0
  %v6038 = vand.u32 %v5816, 4294901760
  %v6039 = vsub.f32 %v5816, %v6038
  %v6040 = vand.u32 %v6039, 4294901760
  %v6041 = vsub.f32 %v6039, %v6040
  %v6042 = vand.u32 %v6041, 4294901760
  %6043 = vmatpush1.msra.mxu0 %v6042
  %6044 = vmatprep.subr.mxu0 0.0
  %v6045 = vand.u32 %v5818, 4294901760
  %v6046 = vsub.f32 %v5818, %v6045
  %v6047 = vand.u32 %v6046, 4294901760
  %v6048 = vsub.f32 %v6046, %v6047
  %v6049 = vand.u32 %v6048, 4294901760
  %6050 = vmatpush1.msra.mxu0 %v6049
  %6051 = vmatprep.subr.mxu0 0.0
  %v6052 = vand.u32 %v5820, 4294901760
  %v6053 = vsub.f32 %v5820, %v6052
  %v6054 = vand.u32 %v6053, 4294901760
  %v6055 = vsub.f32 %v6053, %v6054
  %v6056 = vand.u32 %v6055, 4294901760
  %6057 = vmatpush1.msra.mxu0 %v6056
  %6058 = vmatprep.subr.mxu0 0.0
  %v6059 = vand.u32 %v5822, 4294901760
  %v6060 = vsub.f32 %v5822, %v6059
  %v6061 = vand.u32 %v6060, 4294901760
  %v6062 = vsub.f32 %v6060, %v6061
  %v6063 = vand.u32 %v6062, 4294901760
  %6064 = vmatpush1.msra.mxu0 %v6063
  %6065 = vmatprep.subr.mxu0 0.0
  %v6066 = vand.u32 %v5824, 4294901760
  %v6067 = vsub.f32 %v5824, %v6066
  %v6068 = vand.u32 %v6067, 4294901760
  %v6069 = vsub.f32 %v6067, %v6068
  %v6070 = vand.u32 %v6069, 4294901760
  %6071 = vmatpush1.msra.mxu0 %v6070
  %6072 = vmatprep.subr.mxu0 0.0
  %v6073 = vand.u32 %v5826, 4294901760
  %v6074 = vsub.f32 %v5826, %v6073
  %v6075 = vand.u32 %v6074, 4294901760
  %v6076 = vsub.f32 %v6074, %v6075
  %v6077 = vand.u32 %v6076, 4294901760
  %6078 = vmatpush1.msra.mxu0 %v6077
  %6079 = vmatprep.subr.mxu0 0.0
  %v6080 = vand.u32 %v5828, 4294901760
  %v6081 = vsub.f32 %v5828, %v6080
  %v6082 = vand.u32 %v6081, 4294901760
  %v6083 = vsub.f32 %v6081, %v6082
  %v6084 = vand.u32 %v6083, 4294901760
  %6085 = vmatpush1.msra.mxu0 %v6084
  %6086 = vmatprep.subr.mxu0 0.0
  %6087 = vmatpush1.msra.mxu0 0.0
  %6088 = vmatprep.subr.mxu0 0.0
  %6089 = vmatpush1.msra.mxu0 0.0
  %6090 = vmatprep.subr.mxu0 0.0
  %6091 = vmatpush1.msra.mxu0 0.0
  %6092 = vmatprep.subr.mxu0 0.0
  %6093 = vmatpush1.msra.mxu0 0.0
  %6094 = vmatprep.subr.mxu0 0.0
  %6095 = vmatpush1.msra.mxu0 0.0
  %6096 = vmatprep.subr.mxu0 0.0
  %6097 = vmatpush1.msra.mxu0 0.0
  %6098 = vmatprep.subr.mxu0 0.0
  %6099 = vmatpush1.msra.mxu0 0.0
  %6100 = vmatprep.subr.mxu0 0.0
  %6101 = vmatpush1.msra.mxu0 0.0
  %6102 = vmatprep.subr.mxu0 0.0
  %6103 = vmatpush1.msra.mxu0 0.0
  %6104 = vmatprep.subr.mxu0 0.0
  %6105 = vmatpush1.msra.mxu0 0.0
  %6106 = vmatprep.subr.mxu0 0.0
  %6107 = vmatpush1.msra.mxu0 0.0
  %6108 = vmatprep.subr.mxu0 0.0
  %6109 = vmatpush1.msra.mxu0 0.0
  %6110 = vmatprep.subr.mxu0 0.0
  %6111 = vmatpush1.msra.mxu0 0.0
  %6112 = vmatprep.subr.mxu0 0.0
  %6113 = vmatpush1.msra.mxu0 0.0
  %v6114 = vand.u32 %v3924, 4294901760
  %6115 = vmatprep.mubr.f32.mxu0 %v6114
  %v6116 = vand.u32 %v3641, 4294901760
  %6117 = vmatmul.mubr.f32.gmra.mrb[0].mxu0 %v6116
  %v6118 = vpop.f32.mrb[0].mxu0
  %v6119 = vadd.f32 %v5942, %v6118
  %v6120 = vpop.f32.mrb[0].mxu0
  %v6121 = vand.u32 %v3927, 4294901760
  %6122 = vmatprep.mubr.f32.mxu0 %v6121
  %v6123 = vand.u32 %v3643, 4294901760
  %6124 = vmatmul.mubr.f32.gmra.mrb[0].mxu0 %v6123
  %v6125 = vpop.f32.mrb[0].mxu0
  %v6126 = vadd.f32 %v5957, %v6125
  %v6127 = vpop.f32.mrb[0].mxu0
  %6128 = vdwg.mxu0
  %6129 = vmatprep.subr.mxu0 0.0
  %v6130 = vand.u32 %v5794, 4294901760
  %v6131 = vsub.f32 %v5794, %v6130
  %6132 = vmatpush1.msra.mxu0 %v6131
  %6133 = vmatprep.subr.mxu0 0.0
  %v6134 = vand.u32 %v5796, 4294901760
  %v6135 = vsub.f32 %v5796, %v6134
  %6136 = vmatpush1.msra.mxu0 %v6135
  %6137 = vmatprep.subr.mxu0 0.0
  %v6138 = vand.u32 %v5798, 4294901760
  %v6139 = vsub.f32 %v5798, %v6138
  %6140 = vmatpush1.msra.mxu0 %v6139
  %6141 = vmatprep.subr.mxu0 0.0
  %v6142 = vand.u32 %v5800, 4294901760
  %v6143 = vsub.f32 %v5800, %v6142
  %6144 = vmatpush1.msra.mxu0 %v6143
  %6145 = vmatprep.subr.mxu0 0.0
  %v6146 = vand.u32 %v5802, 4294901760
  %v6147 = vsub.f32 %v5802, %v6146
  %6148 = vmatpush1.msra.mxu0 %v6147
  %6149 = vmatprep.subr.mxu0 0.0
  %v6150 = vand.u32 %v5804, 4294901760
  %v6151 = vsub.f32 %v5804, %v6150
  %6152 = vmatpush1.msra.mxu0 %v6151
  %6153 = vmatprep.subr.mxu0 0.0
  %v6154 = vand.u32 %v5806, 4294901760
  %v6155 = vsub.f32 %v5806, %v6154
  %6156 = vmatpush1.msra.mxu0 %v6155
  %6157 = vmatprep.subr.mxu0 0.0
  %v6158 = vand.u32 %v5808, 4294901760
  %v6159 = vsub.f32 %v5808, %v6158
  %6160 = vmatpush1.msra.mxu0 %v6159
  %6161 = vmatprep.subr.mxu0 0.0
  %v6162 = vand.u32 %v5810, 4294901760
  %v6163 = vsub.f32 %v5810, %v6162
  %6164 = vmatpush1.msra.mxu0 %v6163
  %6165 = vmatprep.subr.mxu0 0.0
  %v6166 = vand.u32 %v5812, 4294901760
  %v6167 = vsub.f32 %v5812, %v6166
  %6168 = vmatpush1.msra.mxu0 %v6167
  %6169 = vmatprep.subr.mxu0 0.0
  %v6170 = vand.u32 %v5814, 4294901760
  %v6171 = vsub.f32 %v5814, %v6170
  %6172 = vmatpush1.msra.mxu0 %v6171
  %6173 = vmatprep.subr.mxu0 0.0
  %v6174 = vand.u32 %v5816, 4294901760
  %v6175 = vsub.f32 %v5816, %v6174
  %6176 = vmatpush1.msra.mxu0 %v6175
  %6177 = vmatprep.subr.mxu0 0.0
  %v6178 = vand.u32 %v5818, 4294901760
  %v6179 = vsub.f32 %v5818, %v6178
  %6180 = vmatpush1.msra.mxu0 %v6179
  %6181 = vmatprep.subr.mxu0 0.0
  %v6182 = vand.u32 %v5820, 4294901760
  %v6183 = vsub.f32 %v5820, %v6182
  %6184 = vmatpush1.msra.mxu0 %v6183
  %6185 = vmatprep.subr.mxu0 0.0
  %v6186 = vand.u32 %v5822, 4294901760
  %v6187 = vsub.f32 %v5822, %v6186
  %6188 = vmatpush1.msra.mxu0 %v6187
  %6189 = vmatprep.subr.mxu0 0.0
  %v6190 = vand.u32 %v5824, 4294901760
  %v6191 = vsub.f32 %v5824, %v6190
  %6192 = vmatpush1.msra.mxu0 %v6191
  %6193 = vmatprep.subr.mxu0 0.0
  %v6194 = vand.u32 %v5826, 4294901760
  %v6195 = vsub.f32 %v5826, %v6194
  %6196 = vmatpush1.msra.mxu0 %v6195
  %6197 = vmatprep.subr.mxu0 0.0
  %v6198 = vand.u32 %v5828, 4294901760
  %v6199 = vsub.f32 %v5828, %v6198
  %6200 = vmatpush1.msra.mxu0 %v6199
  %6201 = vmatprep.subr.mxu0 0.0
  %6202 = vmatpush1.msra.mxu0 0.0
  %6203 = vmatprep.subr.mxu0 0.0
  %6204 = vmatpush1.msra.mxu0 0.0
  %6205 = vmatprep.subr.mxu0 0.0
  %6206 = vmatpush1.msra.mxu0 0.0
  %6207 = vmatprep.subr.mxu0 0.0
  %6208 = vmatpush1.msra.mxu0 0.0
  %6209 = vmatprep.subr.mxu0 0.0
  %6210 = vmatpush1.msra.mxu0 0.0
  %6211 = vmatprep.subr.mxu0 0.0
  %6212 = vmatpush1.msra.mxu0 0.0
  %6213 = vmatprep.subr.mxu0 0.0
  %6214 = vmatpush1.msra.mxu0 0.0
  %6215 = vmatprep.subr.mxu0 0.0
  %6216 = vmatpush1.msra.mxu0 0.0
  %6217 = vmatprep.subr.mxu0 0.0
  %6218 = vmatpush1.msra.mxu0 0.0
  %6219 = vmatprep.subr.mxu0 0.0
  %6220 = vmatpush1.msra.mxu0 0.0
  %6221 = vmatprep.subr.mxu0 0.0
  %6222 = vmatpush1.msra.mxu0 0.0
  %6223 = vmatprep.subr.mxu0 0.0
  %6224 = vmatpush1.msra.mxu0 0.0
  %6225 = vmatprep.subr.mxu0 0.0
  %6226 = vmatpush1.msra.mxu0 0.0
  %6227 = vmatprep.subr.mxu0 0.0
  %6228 = vmatpush1.msra.mxu0 0.0
  %v6229 = vand.u32 %v3924, 4294901760
  %v6230 = vsub.f32 %v3924, %v6229
  %6231 = vmatprep.mubr.f32.mxu0 %v6230
  %v6232 = vand.u32 %v3641, 4294901760
  %v6233 = vsub.f32 %v3641, %v6232
  %6234 = vmatmul.mubr.f32.gmra.mrb[0].mxu0 %v6233
  %v6235 = vpop.f32.mrb[0].mxu0
  %v6236 = vadd.f32 %v6119, %v6235
  %v6237 = vpop.f32.mrb[0].mxu0
  %v6238 = vand.u32 %v3927, 4294901760
  %v6239 = vsub.f32 %v3927, %v6238
  %6240 = vmatprep.mubr.f32.mxu0 %v6239
  %v6241 = vand.u32 %v3643, 4294901760
  %v6242 = vsub.f32 %v3643, %v6241
  %6243 = vmatmul.mubr.f32.gmra.mrb[0].mxu0 %v6242
  %v6244 = vpop.f32.mrb[0].mxu0
  %v6245 = vadd.f32 %v6126, %v6244
  %v6246 = vpop.f32.mrb[0].mxu0
  %6247 = vdwg.mxu0
  %6248 = vmatprep.subr.mxu0 0.0
  %v6249 = vand.u32 %v5794, 4294901760
  %6250 = vmatpush1.msra.mxu0 %v6249
  %6251 = vmatprep.subr.mxu0 0.0
  %v6252 = vand.u32 %v5796, 4294901760
  %6253 = vmatpush1.msra.mxu0 %v6252
  %6254 = vmatprep.subr.mxu0 0.0
  %v6255 = vand.u32 %v5798, 4294901760
  %6256 = vmatpush1.msra.mxu0 %v6255
  %6257 = vmatprep.subr.mxu0 0.0
  %v6258 = vand.u32 %v5800, 4294901760
  %6259 = vmatpush1.msra.mxu0 %v6258
  %6260 = vmatprep.subr.mxu0 0.0
  %v6261 = vand.u32 %v5802, 4294901760
  %6262 = vmatpush1.msra.mxu0 %v6261
  %6263 = vmatprep.subr.mxu0 0.0
  %v6264 = vand.u32 %v5804, 4294901760
  %6265 = vmatpush1.msra.mxu0 %v6264
  %6266 = vmatprep.subr.mxu0 0.0
  %v6267 = vand.u32 %v5806, 4294901760
  %6268 = vmatpush1.msra.mxu0 %v6267
  %6269 = vmatprep.subr.mxu0 0.0
  %v6270 = vand.u32 %v5808, 4294901760
  %6271 = vmatpush1.msra.mxu0 %v6270
  %6272 = vmatprep.subr.mxu0 0.0
  %v6273 = vand.u32 %v5810, 4294901760
  %6274 = vmatpush1.msra.mxu0 %v6273
  %6275 = vmatprep.subr.mxu0 0.0
  %v6276 = vand.u32 %v5812, 4294901760
  %6277 = vmatpush1.msra.mxu0 %v6276
  %6278 = vmatprep.subr.mxu0 0.0
  %v6279 = vand.u32 %v5814, 4294901760
  %6280 = vmatpush1.msra.mxu0 %v6279
  %6281 = vmatprep.subr.mxu0 0.0
  %v6282 = vand.u32 %v5816, 4294901760
  %6283 = vmatpush1.msra.mxu0 %v6282
  %6284 = vmatprep.subr.mxu0 0.0
  %v6285 = vand.u32 %v5818, 4294901760
  %6286 = vmatpush1.msra.mxu0 %v6285
  %6287 = vmatprep.subr.mxu0 0.0
  %v6288 = vand.u32 %v5820, 4294901760
  %6289 = vmatpush1.msra.mxu0 %v6288
  %6290 = vmatprep.subr.mxu0 0.0
  %v6291 = vand.u32 %v5822, 4294901760
  %6292 = vmatpush1.msra.mxu0 %v6291
  %6293 = vmatprep.subr.mxu0 0.0
  %v6294 = vand.u32 %v5824, 4294901760
  %6295 = vmatpush1.msra.mxu0 %v6294
  %6296 = vmatprep.subr.mxu0 0.0
  %v6297 = vand.u32 %v5826, 4294901760
  %6298 = vmatpush1.msra.mxu0 %v6297
  %6299 = vmatprep.subr.mxu0 0.0
  %v6300 = vand.u32 %v5828, 4294901760
  %6301 = vmatpush1.msra.mxu0 %v6300
  %6302 = vmatprep.subr.mxu0 0.0
  %6303 = vmatpush1.msra.mxu0 0.0
  %6304 = vmatprep.subr.mxu0 0.0
  %6305 = vmatpush1.msra.mxu0 0.0
  %6306 = vmatprep.subr.mxu0 0.0
  %6307 = vmatpush1.msra.mxu0 0.0
  %6308 = vmatprep.subr.mxu0 0.0
  %6309 = vmatpush1.msra.mxu0 0.0
  %6310 = vmatprep.subr.mxu0 0.0
  %6311 = vmatpush1.msra.mxu0 0.0
  %6312 = vmatprep.subr.mxu0 0.0
  %6313 = vmatpush1.msra.mxu0 0.0
  %6314 = vmatprep.subr.mxu0 0.0
  %6315 = vmatpush1.msra.mxu0 0.0
  %6316 = vmatprep.subr.mxu0 0.0
  %6317 = vmatpush1.msra.mxu0 0.0
  %6318 = vmatprep.subr.mxu0 0.0
  %6319 = vmatpush1.msra.mxu0 0.0
  %6320 = vmatprep.subr.mxu0 0.0
  %6321 = vmatpush1.msra.mxu0 0.0
  %6322 = vmatprep.subr.mxu0 0.0
  %6323 = vmatpush1.msra.mxu0 0.0
  %6324 = vmatprep.subr.mxu0 0.0
  %6325 = vmatpush1.msra.mxu0 0.0
  %6326 = vmatprep.subr.mxu0 0.0
  %6327 = vmatpush1.msra.mxu0 0.0
  %6328 = vmatprep.subr.mxu0 0.0
  %6329 = vmatpush1.msra.mxu0 0.0
  %v6330 = vand.u32 %v3924, 4294901760
  %v6331 = vsub.f32 %v3924, %v6330
  %v6332 = vand.u32 %v6331, 4294901760
  %6333 = vmatprep.mubr.f32.mxu0 %v6332
  %v6334 = vand.u32 %v3641, 4294901760
  %v6335 = vsub.f32 %v3641, %v6334
  %v6336 = vand.u32 %v6335, 4294901760
  %6337 = vmatmul.mubr.f32.gmra.mrb[0].mxu0 %v6336
  %v6338 = vpop.f32.mrb[0].mxu0
  %v6339 = vadd.f32 %v6236, %v6338
  %v6340 = vpop.f32.mrb[0].mxu0
  %v6341 = vand.u32 %v3927, 4294901760
  %v6342 = vsub.f32 %v3927, %v6341
  %v6343 = vand.u32 %v6342, 4294901760
  %6344 = vmatprep.mubr.f32.mxu0 %v6343
  %v6345 = vand.u32 %v3643, 4294901760
  %v6346 = vsub.f32 %v3643, %v6345
  %v6347 = vand.u32 %v6346, 4294901760
  %6348 = vmatmul.mubr.f32.gmra.mrb[0].mxu0 %v6347
  %v6349 = vpop.f32.mrb[0].mxu0
  %v6350 = vadd.f32 %v6245, %v6349
  %v6351 = vpop.f32.mrb[0].mxu0
  %6352 = vdwg.mxu0
  %6353 = vmatprep.subr.mxu0 0.0
  %v6354 = vand.u32 %v5794, 4294901760
  %v6355 = vsub.f32 %v5794, %v6354
  %v6356 = vand.u32 %v6355, 4294901760
  %6357 = vmatpush1.msra.mxu0 %v6356
  %6358 = vmatprep.subr.mxu0 0.0
  %v6359 = vand.u32 %v5796, 4294901760
  %v6360 = vsub.f32 %v5796, %v6359
  %v6361 = vand.u32 %v6360, 4294901760
  %6362 = vmatpush1.msra.mxu0 %v6361
  %6363 = vmatprep.subr.mxu0 0.0
  %v6364 = vand.u32 %v5798, 4294901760
  %v6365 = vsub.f32 %v5798, %v6364
  %v6366 = vand.u32 %v6365, 4294901760
  %6367 = vmatpush1.msra.mxu0 %v6366
  %6368 = vmatprep.subr.mxu0 0.0
  %v6369 = vand.u32 %v5800, 4294901760
  %v6370 = vsub.f32 %v5800, %v6369
  %v6371 = vand.u32 %v6370, 4294901760
  %6372 = vmatpush1.msra.mxu0 %v6371
  %6373 = vmatprep.subr.mxu0 0.0
  %v6374 = vand.u32 %v5802, 4294901760
  %v6375 = vsub.f32 %v5802, %v6374
  %v6376 = vand.u32 %v6375, 4294901760
  %6377 = vmatpush1.msra.mxu0 %v6376
  %6378 = vmatprep.subr.mxu0 0.0
  %v6379 = vand.u32 %v5804, 4294901760
  %v6380 = vsub.f32 %v5804, %v6379
  %v6381 = vand.u32 %v6380, 4294901760
  %6382 = vmatpush1.msra.mxu0 %v6381
  %6383 = vmatprep.subr.mxu0 0.0
  %v6384 = vand.u32 %v5806, 4294901760
  %v6385 = vsub.f32 %v5806, %v6384
  %v6386 = vand.u32 %v6385, 4294901760
  %6387 = vmatpush1.msra.mxu0 %v6386
  %6388 = vmatprep.subr.mxu0 0.0
  %v6389 = vand.u32 %v5808, 4294901760
  %v6390 = vsub.f32 %v5808, %v6389
  %v6391 = vand.u32 %v6390, 4294901760
  %6392 = vmatpush1.msra.mxu0 %v6391
  %6393 = vmatprep.subr.mxu0 0.0
  %v6394 = vand.u32 %v5810, 4294901760
  %v6395 = vsub.f32 %v5810, %v6394
  %v6396 = vand.u32 %v6395, 4294901760
  %6397 = vmatpush1.msra.mxu0 %v6396
  %6398 = vmatprep.subr.mxu0 0.0
  %v6399 = vand.u32 %v5812, 4294901760
  %v6400 = vsub.f32 %v5812, %v6399
  %v6401 = vand.u32 %v6400, 4294901760
  %6402 = vmatpush1.msra.mxu0 %v6401
  %6403 = vmatprep.subr.mxu0 0.0
  %v6404 = vand.u32 %v5814, 4294901760
  %v6405 = vsub.f32 %v5814, %v6404
  %v6406 = vand.u32 %v6405, 4294901760
  %6407 = vmatpush1.msra.mxu0 %v6406
  %6408 = vmatprep.subr.mxu0 0.0
  %v6409 = vand.u32 %v5816, 4294901760
  %v6410 = vsub.f32 %v5816, %v6409
  %v6411 = vand.u32 %v6410, 4294901760
  %6412 = vmatpush1.msra.mxu0 %v6411
  %6413 = vmatprep.subr.mxu0 0.0
  %v6414 = vand.u32 %v5818, 4294901760
  %v6415 = vsub.f32 %v5818, %v6414
  %v6416 = vand.u32 %v6415, 4294901760
  %6417 = vmatpush1.msra.mxu0 %v6416
  %6418 = vmatprep.subr.mxu0 0.0
  %v6419 = vand.u32 %v5820, 4294901760
  %v6420 = vsub.f32 %v5820, %v6419
  %v6421 = vand.u32 %v6420, 4294901760
  %6422 = vmatpush1.msra.mxu0 %v6421
  %6423 = vmatprep.subr.mxu0 0.0
  %v6424 = vand.u32 %v5822, 4294901760
  %v6425 = vsub.f32 %v5822, %v6424
  %v6426 = vand.u32 %v6425, 4294901760
  %6427 = vmatpush1.msra.mxu0 %v6426
  %6428 = vmatprep.subr.mxu0 0.0
  %v6429 = vand.u32 %v5824, 4294901760
  %v6430 = vsub.f32 %v5824, %v6429
  %v6431 = vand.u32 %v6430, 4294901760
  %6432 = vmatpush1.msra.mxu0 %v6431
  %6433 = vmatprep.subr.mxu0 0.0
  %v6434 = vand.u32 %v5826, 4294901760
  %v6435 = vsub.f32 %v5826, %v6434
  %v6436 = vand.u32 %v6435, 4294901760
  %6437 = vmatpush1.msra.mxu0 %v6436
  %6438 = vmatprep.subr.mxu0 0.0
  %v6439 = vand.u32 %v5828, 4294901760
  %v6440 = vsub.f32 %v5828, %v6439
  %v6441 = vand.u32 %v6440, 4294901760
  %6442 = vmatpush1.msra.mxu0 %v6441
  %6443 = vmatprep.subr.mxu0 0.0
  %6444 = vmatpush1.msra.mxu0 0.0
  %6445 = vmatprep.subr.mxu0 0.0
  %6446 = vmatpush1.msra.mxu0 0.0
  %6447 = vmatprep.subr.mxu0 0.0
  %6448 = vmatpush1.msra.mxu0 0.0
  %6449 = vmatprep.subr.mxu0 0.0
  %6450 = vmatpush1.msra.mxu0 0.0
  %6451 = vmatprep.subr.mxu0 0.0
  %6452 = vmatpush1.msra.mxu0 0.0
  %6453 = vmatprep.subr.mxu0 0.0
  %6454 = vmatpush1.msra.mxu0 0.0
  %6455 = vmatprep.subr.mxu0 0.0
  %6456 = vmatpush1.msra.mxu0 0.0
  %6457 = vmatprep.subr.mxu0 0.0
  %6458 = vmatpush1.msra.mxu0 0.0
  %6459 = vmatprep.subr.mxu0 0.0
  %6460 = vmatpush1.msra.mxu0 0.0
  %6461 = vmatprep.subr.mxu0 0.0
  %6462 = vmatpush1.msra.mxu0 0.0
  %6463 = vmatprep.subr.mxu0 0.0
  %6464 = vmatpush1.msra.mxu0 0.0
  %6465 = vmatprep.subr.mxu0 0.0
  %6466 = vmatpush1.msra.mxu0 0.0
  %6467 = vmatprep.subr.mxu0 0.0
  %6468 = vmatpush1.msra.mxu0 0.0
  %6469 = vmatprep.subr.mxu0 0.0
  %6470 = vmatpush1.msra.mxu0 0.0
  %v6471 = vand.u32 %v3924, 4294901760
  %6472 = vmatprep.mubr.f32.mxu0 %v6471
  %v6473 = vand.u32 %v3641, 4294901760
  %6474 = vmatmul.mubr.f32.gmra.mrb[0].mxu0 %v6473
  %v6475 = vpop.f32.mrb[0].mxu0
  %v6476 = vadd.f32 %v6339, %v6475
  %v6477 = vpop.f32.mrb[0].mxu0
  %v6478 = vand.u32 %v3927, 4294901760
  %6479 = vmatprep.mubr.f32.mxu0 %v6478
  %v6480 = vand.u32 %v3643, 4294901760
  %6481 = vmatmul.mubr.f32.gmra.mrb[0].mxu0 %v6480
  %v6482 = vpop.f32.mrb[0].mxu0
  %v6483 = vadd.f32 %v6350, %v6482
  %v6484 = vpop.f32.mrb[0].mxu0
  %6485 = vdwg.mxu0
  %6486 = vmatprep.subr.mxu0 0.0
  %v6487 = vand.u32 %v5794, 4294901760
  %6488 = vmatpush1.msra.mxu0 %v6487
  %6489 = vmatprep.subr.mxu0 0.0
  %v6490 = vand.u32 %v5796, 4294901760
  %6491 = vmatpush1.msra.mxu0 %v6490
  %6492 = vmatprep.subr.mxu0 0.0
  %v6493 = vand.u32 %v5798, 4294901760
  %6494 = vmatpush1.msra.mxu0 %v6493
  %6495 = vmatprep.subr.mxu0 0.0
  %v6496 = vand.u32 %v5800, 4294901760
  %6497 = vmatpush1.msra.mxu0 %v6496
  %6498 = vmatprep.subr.mxu0 0.0
  %v6499 = vand.u32 %v5802, 4294901760
  %6500 = vmatpush1.msra.mxu0 %v6499
  %6501 = vmatprep.subr.mxu0 0.0
  %v6502 = vand.u32 %v5804, 4294901760
  %6503 = vmatpush1.msra.mxu0 %v6502
  %6504 = vmatprep.subr.mxu0 0.0
  %v6505 = vand.u32 %v5806, 4294901760
  %6506 = vmatpush1.msra.mxu0 %v6505
  %6507 = vmatprep.subr.mxu0 0.0
  %v6508 = vand.u32 %v5808, 4294901760
  %6509 = vmatpush1.msra.mxu0 %v6508
  %6510 = vmatprep.subr.mxu0 0.0
  %v6511 = vand.u32 %v5810, 4294901760
  %6512 = vmatpush1.msra.mxu0 %v6511
  %6513 = vmatprep.subr.mxu0 0.0
  %v6514 = vand.u32 %v5812, 4294901760
  %6515 = vmatpush1.msra.mxu0 %v6514
  %6516 = vmatprep.subr.mxu0 0.0
  %v6517 = vand.u32 %v5814, 4294901760
  %6518 = vmatpush1.msra.mxu0 %v6517
  %6519 = vmatprep.subr.mxu0 0.0
  %v6520 = vand.u32 %v5816, 4294901760
  %6521 = vmatpush1.msra.mxu0 %v6520
  %6522 = vmatprep.subr.mxu0 0.0
  %v6523 = vand.u32 %v5818, 4294901760
  %6524 = vmatpush1.msra.mxu0 %v6523
  %6525 = vmatprep.subr.mxu0 0.0
  %v6526 = vand.u32 %v5820, 4294901760
  %6527 = vmatpush1.msra.mxu0 %v6526
  %6528 = vmatprep.subr.mxu0 0.0
  %v6529 = vand.u32 %v5822, 4294901760
  %6530 = vmatpush1.msra.mxu0 %v6529
  %6531 = vmatprep.subr.mxu0 0.0
  %v6532 = vand.u32 %v5824, 4294901760
  %6533 = vmatpush1.msra.mxu0 %v6532
  %6534 = vmatprep.subr.mxu0 0.0
  %v6535 = vand.u32 %v5826, 4294901760
  %6536 = vmatpush1.msra.mxu0 %v6535
  %6537 = vmatprep.subr.mxu0 0.0
  %v6538 = vand.u32 %v5828, 4294901760
  %6539 = vmatpush1.msra.mxu0 %v6538
  %6540 = vmatprep.subr.mxu0 0.0
  %6541 = vmatpush1.msra.mxu0 0.0
  %6542 = vmatprep.subr.mxu0 0.0
  %6543 = vmatpush1.msra.mxu0 0.0
  %6544 = vmatprep.subr.mxu0 0.0
  %6545 = vmatpush1.msra.mxu0 0.0
  %6546 = vmatprep.subr.mxu0 0.0
  %6547 = vmatpush1.msra.mxu0 0.0
  %6548 = vmatprep.subr.mxu0 0.0
  %6549 = vmatpush1.msra.mxu0 0.0
  %6550 = vmatprep.subr.mxu0 0.0
  %6551 = vmatpush1.msra.mxu0 0.0
  %6552 = vmatprep.subr.mxu0 0.0
  %6553 = vmatpush1.msra.mxu0 0.0
  %6554 = vmatprep.subr.mxu0 0.0
  %6555 = vmatpush1.msra.mxu0 0.0
  %6556 = vmatprep.subr.mxu0 0.0
  %6557 = vmatpush1.msra.mxu0 0.0
  %6558 = vmatprep.subr.mxu0 0.0
  %6559 = vmatpush1.msra.mxu0 0.0
  %6560 = vmatprep.subr.mxu0 0.0
  %6561 = vmatpush1.msra.mxu0 0.0
  %6562 = vmatprep.subr.mxu0 0.0
  %6563 = vmatpush1.msra.mxu0 0.0
  %6564 = vmatprep.subr.mxu0 0.0
  %6565 = vmatpush1.msra.mxu0 0.0
  %6566 = vmatprep.subr.mxu0 0.0
  %6567 = vmatpush1.msra.mxu0 0.0
  %v6568 = vand.u32 %v3924, 4294901760
  %6569 = vmatprep.mubr.f32.mxu0 %v6568
  %v6570 = vand.u32 %v3641, 4294901760
  %6571 = vmatmul.mubr.f32.gmra.mrb[0].mxu0 %v6570
  %v6572 = vpop.f32.mrb[0].mxu0
  %v6573 = vadd.f32 %v6476, %v6572
  %v6574 = vpop.f32.mrb[0].mxu0
  %v6575 = vand.u32 %v3927, 4294901760
  %6576 = vmatprep.mubr.f32.mxu0 %v6575
  %v6577 = vand.u32 %v3643, 4294901760
  %6578 = vmatmul.mubr.f32.gmra.mrb[0].mxu0 %v6577
  %v6579 = vpop.f32.mrb[0].mxu0
  %v6580 = vadd.f32 %v6483, %v6579
  %v6581 = vpop.f32.mrb[0].mxu0
  %6582 = vdwg.mxu0
  %v6583 = vmax.f32 %v6573, 1e-30
  %v6584 = vmax.f32 %v6580, 1e-30
  %v6585 = vrcp.pop %v6583
  %v6586 = vmul.f32 1.0, %v6585
  %v6587 = vrcp.pop %v6584
  %v6588 = vmul.f32 1.0, %v6587
  %6589 = vset.pattern.permute.xlu0 24
  %6590 = vperm.xlu0 %6589, %v5757
  %v6591 = vpop.permute.xlu0 %6590
  %6593 = vset.pattern.permute.xlu0 24
  %6594 = vperm.xlu0 %6593, %v5758
  %v6595 = vpop.permute.xlu0 %6594
  %6597 = vset.pattern.permute.xlu0 24
  %6598 = vperm.xlu0 %6597, %v5759
  %v6599 = vpop.permute.xlu0 %6598
  %6601 = vset.pattern.permute.xlu0 24
  %6602 = vperm.xlu0 %6601, %v5760
  %v6603 = vpop.permute.xlu0 %6602
  %6605 = vset.pattern.permute.xlu0 24
  %6606 = vperm.xlu0 %6605, %v5761
  %v6607 = vpop.permute.xlu0 %6606
  %6609 = vset.pattern.permute.xlu0 24
  %6610 = vperm.xlu0 %6609, %v5762
  %v6611 = vpop.permute.xlu0 %6610
  %6613 = vset.pattern.permute.xlu0 24
  %6614 = vperm.xlu0 %6613, %v5763
  %v6615 = vpop.permute.xlu0 %6614
  %6617 = vset.pattern.permute.xlu0 24
  %6618 = vperm.xlu0 %6617, %v5764
  %v6619 = vpop.permute.xlu0 %6618
  %6621 = vset.pattern.permute.xlu0 24
  %6622 = vperm.xlu0 %6621, %v5765
  %v6623 = vpop.permute.xlu0 %6622
  %6625 = vset.pattern.permute.xlu0 24
  %6626 = vperm.xlu0 %6625, %v5766
  %v6627 = vpop.permute.xlu0 %6626
  %6629 = vset.pattern.permute.xlu0 24
  %6630 = vperm.xlu0 %6629, %v5767
  %v6631 = vpop.permute.xlu0 %6630
  %6633 = vset.pattern.permute.xlu0 24
  %6634 = vperm.xlu0 %6633, %v5768
  %v6635 = vpop.permute.xlu0 %6634
  %6637 = vset.pattern.permute.xlu0 24
  %6638 = vperm.xlu0 %6637, %v5769
  %v6639 = vpop.permute.xlu0 %6638
  %6641 = vset.pattern.permute.xlu0 24
  %6642 = vperm.xlu0 %6641, %v5770
  %v6643 = vpop.permute.xlu0 %6642
  %6645 = vset.pattern.permute.xlu0 24
  %6646 = vperm.xlu0 %6645, %v5771
  %v6647 = vpop.permute.xlu0 %6646
  %6649 = vset.pattern.permute.xlu0 24
  %6650 = vperm.xlu0 %6649, %v5772
  %v6651 = vpop.permute.xlu0 %6650
  %6653 = vset.pattern.permute.xlu0 24
  %6654 = vperm.xlu0 %6653, %v5773
  %v6655 = vpop.permute.xlu0 %6654
  %6657 = vset.pattern.permute.xlu0 24
  %6658 = vperm.xlu0 %6657, %v5774
  %v6659 = vpop.permute.xlu0 %6658
  %v6661 = vmul.f32 %v6591, %v2195
  %v6662 = vmul.f32 %v6595, %v2201
  %v6663 = vmul.f32 %v6599, %v2207
  %v6664 = vmul.f32 %v6603, %v2213
  %v6665 = vmul.f32 %v6607, %v2219
  %v6666 = vmul.f32 %v6611, %v2225
  %v6667 = vmul.f32 %v6615, %v2231
  %v6668 = vmul.f32 %v6619, %v2237
  %v6669 = vmul.f32 %v6623, %v2243
  %v6670 = vmul.f32 %v6627, %v2249
  %v6671 = vmul.f32 %v6631, %v2255
  %v6672 = vmul.f32 %v6635, %v2261
  %v6673 = vmul.f32 %v6639, %v2267
  %v6674 = vmul.f32 %v6643, %v2273
  %v6675 = vmul.f32 %v6647, %v2279
  %v6676 = vmul.f32 %v6651, %v2285
  %v6677 = vmul.f32 %v6655, %v2291
  %v6678 = vmul.f32 %v6659, %v2297
  %6697 = vrot.lane.b32.xlu0 %v6661, 126
  %v6698 = vpop.permute.xlu0 %6697
  %6699 = vrot.lane.b32.xlu0 %v6662, 126
  %v6700 = vpop.permute.xlu0 %6699
  %6701 = vrot.lane.b32.xlu0 %v6663, 126
  %v6702 = vpop.permute.xlu0 %6701
  %6703 = vrot.lane.b32.xlu0 %v6664, 126
  %v6704 = vpop.permute.xlu0 %6703
  %6705 = vrot.lane.b32.xlu0 %v6665, 126
  %v6706 = vpop.permute.xlu0 %6705
  %6707 = vrot.lane.b32.xlu0 %v6666, 126
  %v6708 = vpop.permute.xlu0 %6707
  %6709 = vrot.lane.b32.xlu0 %v6667, 126
  %v6710 = vpop.permute.xlu0 %6709
  %6711 = vrot.lane.b32.xlu0 %v6668, 126
  %v6712 = vpop.permute.xlu0 %6711
  %6713 = vrot.lane.b32.xlu0 %v6669, 126
  %v6714 = vpop.permute.xlu0 %6713
  %6715 = vrot.lane.b32.xlu0 %v6670, 126
  %v6716 = vpop.permute.xlu0 %6715
  %6717 = vrot.lane.b32.xlu0 %v6671, 126
  %v6718 = vpop.permute.xlu0 %6717
  %6719 = vrot.lane.b32.xlu0 %v6672, 126
  %v6720 = vpop.permute.xlu0 %6719
  %6721 = vrot.lane.b32.xlu0 %v6673, 126
  %v6722 = vpop.permute.xlu0 %6721
  %6723 = vrot.lane.b32.xlu0 %v6674, 126
  %v6724 = vpop.permute.xlu0 %6723
  %6725 = vrot.lane.b32.xlu0 %v6675, 126
  %v6726 = vpop.permute.xlu0 %6725
  %6727 = vrot.lane.b32.xlu0 %v6676, 126
  %v6728 = vpop.permute.xlu0 %6727
  %6729 = vrot.lane.b32.xlu0 %v6677, 126
  %v6730 = vpop.permute.xlu0 %6729
  %6731 = vrot.lane.b32.xlu0 %v6678, 126
  %v6732 = vpop.permute.xlu0 %6731
  %6751 = vmatprep.subr.mxu0 0.0
  %v6752 = vand.u32 %v6698, 4294901760
  %6753 = vmatpush1.msra.mxu0 %v6752
  %6754 = vmatprep.subr.mxu0 0.0
  %v6755 = vand.u32 %v6700, 4294901760
  %6756 = vmatpush1.msra.mxu0 %v6755
  %6757 = vmatprep.subr.mxu0 0.0
  %v6758 = vand.u32 %v6702, 4294901760
  %6759 = vmatpush1.msra.mxu0 %v6758
  %6760 = vmatprep.subr.mxu0 0.0
  %v6761 = vand.u32 %v6704, 4294901760
  %6762 = vmatpush1.msra.mxu0 %v6761
  %6763 = vmatprep.subr.mxu0 0.0
  %v6764 = vand.u32 %v6706, 4294901760
  %6765 = vmatpush1.msra.mxu0 %v6764
  %6766 = vmatprep.subr.mxu0 0.0
  %v6767 = vand.u32 %v6708, 4294901760
  %6768 = vmatpush1.msra.mxu0 %v6767
  %6769 = vmatprep.subr.mxu0 0.0
  %v6770 = vand.u32 %v6710, 4294901760
  %6771 = vmatpush1.msra.mxu0 %v6770
  %6772 = vmatprep.subr.mxu0 0.0
  %v6773 = vand.u32 %v6712, 4294901760
  %6774 = vmatpush1.msra.mxu0 %v6773
  %6775 = vmatprep.subr.mxu0 0.0
  %v6776 = vand.u32 %v6714, 4294901760
  %6777 = vmatpush1.msra.mxu0 %v6776
  %6778 = vmatprep.subr.mxu0 0.0
  %v6779 = vand.u32 %v6716, 4294901760
  %6780 = vmatpush1.msra.mxu0 %v6779
  %6781 = vmatprep.subr.mxu0 0.0
  %v6782 = vand.u32 %v6718, 4294901760
  %6783 = vmatpush1.msra.mxu0 %v6782
  %6784 = vmatprep.subr.mxu0 0.0
  %v6785 = vand.u32 %v6720, 4294901760
  %6786 = vmatpush1.msra.mxu0 %v6785
  %6787 = vmatprep.subr.mxu0 0.0
  %v6788 = vand.u32 %v6722, 4294901760
  %6789 = vmatpush1.msra.mxu0 %v6788
  %6790 = vmatprep.subr.mxu0 0.0
  %v6791 = vand.u32 %v6724, 4294901760
  %6792 = vmatpush1.msra.mxu0 %v6791
  %6793 = vmatprep.subr.mxu0 0.0
  %v6794 = vand.u32 %v6726, 4294901760
  %6795 = vmatpush1.msra.mxu0 %v6794
  %6796 = vmatprep.subr.mxu0 0.0
  %v6797 = vand.u32 %v6728, 4294901760
  %6798 = vmatpush1.msra.mxu0 %v6797
  %6799 = vmatprep.subr.mxu0 0.0
  %v6800 = vand.u32 %v6730, 4294901760
  %6801 = vmatpush1.msra.mxu0 %v6800
  %6802 = vmatprep.subr.mxu0 0.0
  %v6803 = vand.u32 %v6732, 4294901760
  %6804 = vmatpush1.msra.mxu0 %v6803
  %6805 = vmatprep.subr.mxu0 0.0
  %6806 = vmatpush1.msra.mxu0 0.0
  %6807 = vmatprep.subr.mxu0 0.0
  %6808 = vmatpush1.msra.mxu0 0.0
  %6809 = vmatprep.subr.mxu0 0.0
  %6810 = vmatpush1.msra.mxu0 0.0
  %6811 = vmatprep.subr.mxu0 0.0
  %6812 = vmatpush1.msra.mxu0 0.0
  %6813 = vmatprep.subr.mxu0 0.0
  %6814 = vmatpush1.msra.mxu0 0.0
  %6815 = vmatprep.subr.mxu0 0.0
  %6816 = vmatpush1.msra.mxu0 0.0
  %6817 = vmatprep.subr.mxu0 0.0
  %6818 = vmatpush1.msra.mxu0 0.0
  %6819 = vmatprep.subr.mxu0 0.0
  %6820 = vmatpush1.msra.mxu0 0.0
  %6821 = vmatprep.subr.mxu0 0.0
  %6822 = vmatpush1.msra.mxu0 0.0
  %6823 = vmatprep.subr.mxu0 0.0
  %6824 = vmatpush1.msra.mxu0 0.0
  %6825 = vmatprep.subr.mxu0 0.0
  %6826 = vmatpush1.msra.mxu0 0.0
  %6827 = vmatprep.subr.mxu0 0.0
  %6828 = vmatpush1.msra.mxu0 0.0
  %6829 = vmatprep.subr.mxu0 0.0
  %6830 = vmatpush1.msra.mxu0 0.0
  %6831 = vmatprep.subr.mxu0 0.0
  %6832 = vmatpush1.msra.mxu0 0.0
  %v6833 = vand.u32 %v3924, 4294901760
  %v6834 = vsub.f32 %v3924, %v6833
  %v6835 = vand.u32 %v6834, 4294901760
  %v6836 = vsub.f32 %v6834, %v6835
  %v6837 = vand.u32 %v6836, 4294901760
  %6838 = vmatprep.mubr.f32.mxu0 %v6837
  %v6839 = vand.u32 %v3641, 4294901760
  %v6840 = vsub.f32 %v3641, %v6839
  %v6841 = vand.u32 %v6840, 4294901760
  %v6842 = vsub.f32 %v6840, %v6841
  %v6843 = vand.u32 %v6842, 4294901760
  %6844 = vmatmul.mubr.f32.gmra.mrb[0].mxu0 %v6843
  %v6845 = vpop.f32.mrb[0].mxu0
  %v6846 = vadd.f32 0.0, %v6845
  %v6847 = vpop.f32.mrb[0].mxu0
  %v6848 = vand.u32 %v3927, 4294901760
  %v6849 = vsub.f32 %v3927, %v6848
  %v6850 = vand.u32 %v6849, 4294901760
  %v6851 = vsub.f32 %v6849, %v6850
  %v6852 = vand.u32 %v6851, 4294901760
  %6853 = vmatprep.mubr.f32.mxu0 %v6852
  %v6854 = vand.u32 %v3643, 4294901760
  %v6855 = vsub.f32 %v3643, %v6854
  %v6856 = vand.u32 %v6855, 4294901760
  %v6857 = vsub.f32 %v6855, %v6856
  %v6858 = vand.u32 %v6857, 4294901760
  %6859 = vmatmul.mubr.f32.gmra.mrb[0].mxu0 %v6858
  %v6860 = vpop.f32.mrb[0].mxu0
  %v6861 = vadd.f32 0.0, %v6860
  %v6862 = vpop.f32.mrb[0].mxu0
  %6863 = vdwg.mxu0
  %6864 = vmatprep.subr.mxu0 0.0
  %v6865 = vand.u32 %v6698, 4294901760
  %v6866 = vsub.f32 %v6698, %v6865
  %v6867 = vand.u32 %v6866, 4294901760
  %v6868 = vsub.f32 %v6866, %v6867
  %v6869 = vand.u32 %v6868, 4294901760
  %6870 = vmatpush1.msra.mxu0 %v6869
  %6871 = vmatprep.subr.mxu0 0.0
  %v6872 = vand.u32 %v6700, 4294901760
  %v6873 = vsub.f32 %v6700, %v6872
  %v6874 = vand.u32 %v6873, 4294901760
  %v6875 = vsub.f32 %v6873, %v6874
  %v6876 = vand.u32 %v6875, 4294901760
  %6877 = vmatpush1.msra.mxu0 %v6876
  %6878 = vmatprep.subr.mxu0 0.0
  %v6879 = vand.u32 %v6702, 4294901760
  %v6880 = vsub.f32 %v6702, %v6879
  %v6881 = vand.u32 %v6880, 4294901760
  %v6882 = vsub.f32 %v6880, %v6881
  %v6883 = vand.u32 %v6882, 4294901760
  %6884 = vmatpush1.msra.mxu0 %v6883
  %6885 = vmatprep.subr.mxu0 0.0
  %v6886 = vand.u32 %v6704, 4294901760
  %v6887 = vsub.f32 %v6704, %v6886
  %v6888 = vand.u32 %v6887, 4294901760
  %v6889 = vsub.f32 %v6887, %v6888
  %v6890 = vand.u32 %v6889, 4294901760
  %6891 = vmatpush1.msra.mxu0 %v6890
  %6892 = vmatprep.subr.mxu0 0.0
  %v6893 = vand.u32 %v6706, 4294901760
  %v6894 = vsub.f32 %v6706, %v6893
  %v6895 = vand.u32 %v6894, 4294901760
  %v6896 = vsub.f32 %v6894, %v6895
  %v6897 = vand.u32 %v6896, 4294901760
  %6898 = vmatpush1.msra.mxu0 %v6897
  %6899 = vmatprep.subr.mxu0 0.0
  %v6900 = vand.u32 %v6708, 4294901760
  %v6901 = vsub.f32 %v6708, %v6900
  %v6902 = vand.u32 %v6901, 4294901760
  %v6903 = vsub.f32 %v6901, %v6902
  %v6904 = vand.u32 %v6903, 4294901760
  %6905 = vmatpush1.msra.mxu0 %v6904
  %6906 = vmatprep.subr.mxu0 0.0
  %v6907 = vand.u32 %v6710, 4294901760
  %v6908 = vsub.f32 %v6710, %v6907
  %v6909 = vand.u32 %v6908, 4294901760
  %v6910 = vsub.f32 %v6908, %v6909
  %v6911 = vand.u32 %v6910, 4294901760
  %6912 = vmatpush1.msra.mxu0 %v6911
  %6913 = vmatprep.subr.mxu0 0.0
  %v6914 = vand.u32 %v6712, 4294901760
  %v6915 = vsub.f32 %v6712, %v6914
  %v6916 = vand.u32 %v6915, 4294901760
  %v6917 = vsub.f32 %v6915, %v6916
  %v6918 = vand.u32 %v6917, 4294901760
  %6919 = vmatpush1.msra.mxu0 %v6918
  %6920 = vmatprep.subr.mxu0 0.0
  %v6921 = vand.u32 %v6714, 4294901760
  %v6922 = vsub.f32 %v6714, %v6921
  %v6923 = vand.u32 %v6922, 4294901760
  %v6924 = vsub.f32 %v6922, %v6923
  %v6925 = vand.u32 %v6924, 4294901760
  %6926 = vmatpush1.msra.mxu0 %v6925
  %6927 = vmatprep.subr.mxu0 0.0
  %v6928 = vand.u32 %v6716, 4294901760
  %v6929 = vsub.f32 %v6716, %v6928
  %v6930 = vand.u32 %v6929, 4294901760
  %v6931 = vsub.f32 %v6929, %v6930
  %v6932 = vand.u32 %v6931, 4294901760
  %6933 = vmatpush1.msra.mxu0 %v6932
  %6934 = vmatprep.subr.mxu0 0.0
  %v6935 = vand.u32 %v6718, 4294901760
  %v6936 = vsub.f32 %v6718, %v6935
  %v6937 = vand.u32 %v6936, 4294901760
  %v6938 = vsub.f32 %v6936, %v6937
  %v6939 = vand.u32 %v6938, 4294901760
  %6940 = vmatpush1.msra.mxu0 %v6939
  %6941 = vmatprep.subr.mxu0 0.0
  %v6942 = vand.u32 %v6720, 4294901760
  %v6943 = vsub.f32 %v6720, %v6942
  %v6944 = vand.u32 %v6943, 4294901760
  %v6945 = vsub.f32 %v6943, %v6944
  %v6946 = vand.u32 %v6945, 4294901760
  %6947 = vmatpush1.msra.mxu0 %v6946
  %6948 = vmatprep.subr.mxu0 0.0
  %v6949 = vand.u32 %v6722, 4294901760
  %v6950 = vsub.f32 %v6722, %v6949
  %v6951 = vand.u32 %v6950, 4294901760
  %v6952 = vsub.f32 %v6950, %v6951
  %v6953 = vand.u32 %v6952, 4294901760
  %6954 = vmatpush1.msra.mxu0 %v6953
  %6955 = vmatprep.subr.mxu0 0.0
  %v6956 = vand.u32 %v6724, 4294901760
  %v6957 = vsub.f32 %v6724, %v6956
  %v6958 = vand.u32 %v6957, 4294901760
  %v6959 = vsub.f32 %v6957, %v6958
  %v6960 = vand.u32 %v6959, 4294901760
  %6961 = vmatpush1.msra.mxu0 %v6960
  %6962 = vmatprep.subr.mxu0 0.0
  %v6963 = vand.u32 %v6726, 4294901760
  %v6964 = vsub.f32 %v6726, %v6963
  %v6965 = vand.u32 %v6964, 4294901760
  %v6966 = vsub.f32 %v6964, %v6965
  %v6967 = vand.u32 %v6966, 4294901760
  %6968 = vmatpush1.msra.mxu0 %v6967
  %6969 = vmatprep.subr.mxu0 0.0
  %v6970 = vand.u32 %v6728, 4294901760
  %v6971 = vsub.f32 %v6728, %v6970
  %v6972 = vand.u32 %v6971, 4294901760
  %v6973 = vsub.f32 %v6971, %v6972
  %v6974 = vand.u32 %v6973, 4294901760
  %6975 = vmatpush1.msra.mxu0 %v6974
  %6976 = vmatprep.subr.mxu0 0.0
  %v6977 = vand.u32 %v6730, 4294901760
  %v6978 = vsub.f32 %v6730, %v6977
  %v6979 = vand.u32 %v6978, 4294901760
  %v6980 = vsub.f32 %v6978, %v6979
  %v6981 = vand.u32 %v6980, 4294901760
  %6982 = vmatpush1.msra.mxu0 %v6981
  %6983 = vmatprep.subr.mxu0 0.0
  %v6984 = vand.u32 %v6732, 4294901760
  %v6985 = vsub.f32 %v6732, %v6984
  %v6986 = vand.u32 %v6985, 4294901760
  %v6987 = vsub.f32 %v6985, %v6986
  %v6988 = vand.u32 %v6987, 4294901760
  %6989 = vmatpush1.msra.mxu0 %v6988
  %6990 = vmatprep.subr.mxu0 0.0
  %6991 = vmatpush1.msra.mxu0 0.0
  %6992 = vmatprep.subr.mxu0 0.0
  %6993 = vmatpush1.msra.mxu0 0.0
  %6994 = vmatprep.subr.mxu0 0.0
  %6995 = vmatpush1.msra.mxu0 0.0
  %6996 = vmatprep.subr.mxu0 0.0
  %6997 = vmatpush1.msra.mxu0 0.0
  %6998 = vmatprep.subr.mxu0 0.0
  %6999 = vmatpush1.msra.mxu0 0.0
  %7000 = vmatprep.subr.mxu0 0.0
  %7001 = vmatpush1.msra.mxu0 0.0
  %7002 = vmatprep.subr.mxu0 0.0
  %7003 = vmatpush1.msra.mxu0 0.0
  %7004 = vmatprep.subr.mxu0 0.0
  %7005 = vmatpush1.msra.mxu0 0.0
  %7006 = vmatprep.subr.mxu0 0.0
  %7007 = vmatpush1.msra.mxu0 0.0
  %7008 = vmatprep.subr.mxu0 0.0
  %7009 = vmatpush1.msra.mxu0 0.0
  %7010 = vmatprep.subr.mxu0 0.0
  %7011 = vmatpush1.msra.mxu0 0.0
  %7012 = vmatprep.subr.mxu0 0.0
  %7013 = vmatpush1.msra.mxu0 0.0
  %7014 = vmatprep.subr.mxu0 0.0
  %7015 = vmatpush1.msra.mxu0 0.0
  %7016 = vmatprep.subr.mxu0 0.0
  %7017 = vmatpush1.msra.mxu0 0.0
  %v7018 = vand.u32 %v3924, 4294901760
  %7019 = vmatprep.mubr.f32.mxu0 %v7018
  %v7020 = vand.u32 %v3641, 4294901760
  %7021 = vmatmul.mubr.f32.gmra.mrb[0].mxu0 %v7020
  %v7022 = vpop.f32.mrb[0].mxu0
  %v7023 = vadd.f32 %v6846, %v7022
  %v7024 = vpop.f32.mrb[0].mxu0
  %v7025 = vand.u32 %v3927, 4294901760
  %7026 = vmatprep.mubr.f32.mxu0 %v7025
  %v7027 = vand.u32 %v3643, 4294901760
  %7028 = vmatmul.mubr.f32.gmra.mrb[0].mxu0 %v7027
  %v7029 = vpop.f32.mrb[0].mxu0
  %v7030 = vadd.f32 %v6861, %v7029
  %v7031 = vpop.f32.mrb[0].mxu0
  %7032 = vdwg.mxu0
  %7033 = vmatprep.subr.mxu0 0.0
  %v7034 = vand.u32 %v6698, 4294901760
  %v7035 = vsub.f32 %v6698, %v7034
  %7036 = vmatpush1.msra.mxu0 %v7035
  %7037 = vmatprep.subr.mxu0 0.0
  %v7038 = vand.u32 %v6700, 4294901760
  %v7039 = vsub.f32 %v6700, %v7038
  %7040 = vmatpush1.msra.mxu0 %v7039
  %7041 = vmatprep.subr.mxu0 0.0
  %v7042 = vand.u32 %v6702, 4294901760
  %v7043 = vsub.f32 %v6702, %v7042
  %7044 = vmatpush1.msra.mxu0 %v7043
  %7045 = vmatprep.subr.mxu0 0.0
  %v7046 = vand.u32 %v6704, 4294901760
  %v7047 = vsub.f32 %v6704, %v7046
  %7048 = vmatpush1.msra.mxu0 %v7047
  %7049 = vmatprep.subr.mxu0 0.0
  %v7050 = vand.u32 %v6706, 4294901760
  %v7051 = vsub.f32 %v6706, %v7050
  %7052 = vmatpush1.msra.mxu0 %v7051
  %7053 = vmatprep.subr.mxu0 0.0
  %v7054 = vand.u32 %v6708, 4294901760
  %v7055 = vsub.f32 %v6708, %v7054
  %7056 = vmatpush1.msra.mxu0 %v7055
  %7057 = vmatprep.subr.mxu0 0.0
  %v7058 = vand.u32 %v6710, 4294901760
  %v7059 = vsub.f32 %v6710, %v7058
  %7060 = vmatpush1.msra.mxu0 %v7059
  %7061 = vmatprep.subr.mxu0 0.0
  %v7062 = vand.u32 %v6712, 4294901760
  %v7063 = vsub.f32 %v6712, %v7062
  %7064 = vmatpush1.msra.mxu0 %v7063
  %7065 = vmatprep.subr.mxu0 0.0
  %v7066 = vand.u32 %v6714, 4294901760
  %v7067 = vsub.f32 %v6714, %v7066
  %7068 = vmatpush1.msra.mxu0 %v7067
  %7069 = vmatprep.subr.mxu0 0.0
  %v7070 = vand.u32 %v6716, 4294901760
  %v7071 = vsub.f32 %v6716, %v7070
  %7072 = vmatpush1.msra.mxu0 %v7071
  %7073 = vmatprep.subr.mxu0 0.0
  %v7074 = vand.u32 %v6718, 4294901760
  %v7075 = vsub.f32 %v6718, %v7074
  %7076 = vmatpush1.msra.mxu0 %v7075
  %7077 = vmatprep.subr.mxu0 0.0
  %v7078 = vand.u32 %v6720, 4294901760
  %v7079 = vsub.f32 %v6720, %v7078
  %7080 = vmatpush1.msra.mxu0 %v7079
  %7081 = vmatprep.subr.mxu0 0.0
  %v7082 = vand.u32 %v6722, 4294901760
  %v7083 = vsub.f32 %v6722, %v7082
  %7084 = vmatpush1.msra.mxu0 %v7083
  %7085 = vmatprep.subr.mxu0 0.0
  %v7086 = vand.u32 %v6724, 4294901760
  %v7087 = vsub.f32 %v6724, %v7086
  %7088 = vmatpush1.msra.mxu0 %v7087
  %7089 = vmatprep.subr.mxu0 0.0
  %v7090 = vand.u32 %v6726, 4294901760
  %v7091 = vsub.f32 %v6726, %v7090
  %7092 = vmatpush1.msra.mxu0 %v7091
  %7093 = vmatprep.subr.mxu0 0.0
  %v7094 = vand.u32 %v6728, 4294901760
  %v7095 = vsub.f32 %v6728, %v7094
  %7096 = vmatpush1.msra.mxu0 %v7095
  %7097 = vmatprep.subr.mxu0 0.0
  %v7098 = vand.u32 %v6730, 4294901760
  %v7099 = vsub.f32 %v6730, %v7098
  %7100 = vmatpush1.msra.mxu0 %v7099
  %7101 = vmatprep.subr.mxu0 0.0
  %v7102 = vand.u32 %v6732, 4294901760
  %v7103 = vsub.f32 %v6732, %v7102
  %7104 = vmatpush1.msra.mxu0 %v7103
  %7105 = vmatprep.subr.mxu0 0.0
  %7106 = vmatpush1.msra.mxu0 0.0
  %7107 = vmatprep.subr.mxu0 0.0
  %7108 = vmatpush1.msra.mxu0 0.0
  %7109 = vmatprep.subr.mxu0 0.0
  %7110 = vmatpush1.msra.mxu0 0.0
  %7111 = vmatprep.subr.mxu0 0.0
  %7112 = vmatpush1.msra.mxu0 0.0
  %7113 = vmatprep.subr.mxu0 0.0
  %7114 = vmatpush1.msra.mxu0 0.0
  %7115 = vmatprep.subr.mxu0 0.0
  %7116 = vmatpush1.msra.mxu0 0.0
  %7117 = vmatprep.subr.mxu0 0.0
  %7118 = vmatpush1.msra.mxu0 0.0
  %7119 = vmatprep.subr.mxu0 0.0
  %7120 = vmatpush1.msra.mxu0 0.0
  %7121 = vmatprep.subr.mxu0 0.0
  %7122 = vmatpush1.msra.mxu0 0.0
  %7123 = vmatprep.subr.mxu0 0.0
  %7124 = vmatpush1.msra.mxu0 0.0
  %7125 = vmatprep.subr.mxu0 0.0
  %7126 = vmatpush1.msra.mxu0 0.0
  %7127 = vmatprep.subr.mxu0 0.0
  %7128 = vmatpush1.msra.mxu0 0.0
  %7129 = vmatprep.subr.mxu0 0.0
  %7130 = vmatpush1.msra.mxu0 0.0
  %7131 = vmatprep.subr.mxu0 0.0
  %7132 = vmatpush1.msra.mxu0 0.0
  %v7133 = vand.u32 %v3924, 4294901760
  %v7134 = vsub.f32 %v3924, %v7133
  %7135 = vmatprep.mubr.f32.mxu0 %v7134
  %v7136 = vand.u32 %v3641, 4294901760
  %v7137 = vsub.f32 %v3641, %v7136
  %7138 = vmatmul.mubr.f32.gmra.mrb[0].mxu0 %v7137
  %v7139 = vpop.f32.mrb[0].mxu0
  %v7140 = vadd.f32 %v7023, %v7139
  %v7141 = vpop.f32.mrb[0].mxu0
  %v7142 = vand.u32 %v3927, 4294901760
  %v7143 = vsub.f32 %v3927, %v7142
  %7144 = vmatprep.mubr.f32.mxu0 %v7143
  %v7145 = vand.u32 %v3643, 4294901760
  %v7146 = vsub.f32 %v3643, %v7145
  %7147 = vmatmul.mubr.f32.gmra.mrb[0].mxu0 %v7146
  %v7148 = vpop.f32.mrb[0].mxu0
  %v7149 = vadd.f32 %v7030, %v7148
  %v7150 = vpop.f32.mrb[0].mxu0
  %7151 = vdwg.mxu0
  %7152 = vmatprep.subr.mxu0 0.0
  %v7153 = vand.u32 %v6698, 4294901760
  %7154 = vmatpush1.msra.mxu0 %v7153
  %7155 = vmatprep.subr.mxu0 0.0
  %v7156 = vand.u32 %v6700, 4294901760
  %7157 = vmatpush1.msra.mxu0 %v7156
  %7158 = vmatprep.subr.mxu0 0.0
  %v7159 = vand.u32 %v6702, 4294901760
  %7160 = vmatpush1.msra.mxu0 %v7159
  %7161 = vmatprep.subr.mxu0 0.0
  %v7162 = vand.u32 %v6704, 4294901760
  %7163 = vmatpush1.msra.mxu0 %v7162
  %7164 = vmatprep.subr.mxu0 0.0
  %v7165 = vand.u32 %v6706, 4294901760
  %7166 = vmatpush1.msra.mxu0 %v7165
  %7167 = vmatprep.subr.mxu0 0.0
  %v7168 = vand.u32 %v6708, 4294901760
  %7169 = vmatpush1.msra.mxu0 %v7168
  %7170 = vmatprep.subr.mxu0 0.0
  %v7171 = vand.u32 %v6710, 4294901760
  %7172 = vmatpush1.msra.mxu0 %v7171
  %7173 = vmatprep.subr.mxu0 0.0
  %v7174 = vand.u32 %v6712, 4294901760
  %7175 = vmatpush1.msra.mxu0 %v7174
  %7176 = vmatprep.subr.mxu0 0.0
  %v7177 = vand.u32 %v6714, 4294901760
  %7178 = vmatpush1.msra.mxu0 %v7177
  %7179 = vmatprep.subr.mxu0 0.0
  %v7180 = vand.u32 %v6716, 4294901760
  %7181 = vmatpush1.msra.mxu0 %v7180
  %7182 = vmatprep.subr.mxu0 0.0
  %v7183 = vand.u32 %v6718, 4294901760
  %7184 = vmatpush1.msra.mxu0 %v7183
  %7185 = vmatprep.subr.mxu0 0.0
  %v7186 = vand.u32 %v6720, 4294901760
  %7187 = vmatpush1.msra.mxu0 %v7186
  %7188 = vmatprep.subr.mxu0 0.0
  %v7189 = vand.u32 %v6722, 4294901760
  %7190 = vmatpush1.msra.mxu0 %v7189
  %7191 = vmatprep.subr.mxu0 0.0
  %v7192 = vand.u32 %v6724, 4294901760
  %7193 = vmatpush1.msra.mxu0 %v7192
  %7194 = vmatprep.subr.mxu0 0.0
  %v7195 = vand.u32 %v6726, 4294901760
  %7196 = vmatpush1.msra.mxu0 %v7195
  %7197 = vmatprep.subr.mxu0 0.0
  %v7198 = vand.u32 %v6728, 4294901760
  %7199 = vmatpush1.msra.mxu0 %v7198
  %7200 = vmatprep.subr.mxu0 0.0
  %v7201 = vand.u32 %v6730, 4294901760
  %7202 = vmatpush1.msra.mxu0 %v7201
  %7203 = vmatprep.subr.mxu0 0.0
  %v7204 = vand.u32 %v6732, 4294901760
  %7205 = vmatpush1.msra.mxu0 %v7204
  %7206 = vmatprep.subr.mxu0 0.0
  %7207 = vmatpush1.msra.mxu0 0.0
  %7208 = vmatprep.subr.mxu0 0.0
  %7209 = vmatpush1.msra.mxu0 0.0
  %7210 = vmatprep.subr.mxu0 0.0
  %7211 = vmatpush1.msra.mxu0 0.0
  %7212 = vmatprep.subr.mxu0 0.0
  %7213 = vmatpush1.msra.mxu0 0.0
  %7214 = vmatprep.subr.mxu0 0.0
  %7215 = vmatpush1.msra.mxu0 0.0
  %7216 = vmatprep.subr.mxu0 0.0
  %7217 = vmatpush1.msra.mxu0 0.0
  %7218 = vmatprep.subr.mxu0 0.0
  %7219 = vmatpush1.msra.mxu0 0.0
  %7220 = vmatprep.subr.mxu0 0.0
  %7221 = vmatpush1.msra.mxu0 0.0
  %7222 = vmatprep.subr.mxu0 0.0
  %7223 = vmatpush1.msra.mxu0 0.0
  %7224 = vmatprep.subr.mxu0 0.0
  %7225 = vmatpush1.msra.mxu0 0.0
  %7226 = vmatprep.subr.mxu0 0.0
  %7227 = vmatpush1.msra.mxu0 0.0
  %7228 = vmatprep.subr.mxu0 0.0
  %7229 = vmatpush1.msra.mxu0 0.0
  %7230 = vmatprep.subr.mxu0 0.0
  %7231 = vmatpush1.msra.mxu0 0.0
  %7232 = vmatprep.subr.mxu0 0.0
  %7233 = vmatpush1.msra.mxu0 0.0
  %v7234 = vand.u32 %v3924, 4294901760
  %v7235 = vsub.f32 %v3924, %v7234
  %v7236 = vand.u32 %v7235, 4294901760
  %7237 = vmatprep.mubr.f32.mxu0 %v7236
  %v7238 = vand.u32 %v3641, 4294901760
  %v7239 = vsub.f32 %v3641, %v7238
  %v7240 = vand.u32 %v7239, 4294901760
  %7241 = vmatmul.mubr.f32.gmra.mrb[0].mxu0 %v7240
  %v7242 = vpop.f32.mrb[0].mxu0
  %v7243 = vadd.f32 %v7140, %v7242
  %v7244 = vpop.f32.mrb[0].mxu0
  %v7245 = vand.u32 %v3927, 4294901760
  %v7246 = vsub.f32 %v3927, %v7245
  %v7247 = vand.u32 %v7246, 4294901760
  %7248 = vmatprep.mubr.f32.mxu0 %v7247
  %v7249 = vand.u32 %v3643, 4294901760
  %v7250 = vsub.f32 %v3643, %v7249
  %v7251 = vand.u32 %v7250, 4294901760
  %7252 = vmatmul.mubr.f32.gmra.mrb[0].mxu0 %v7251
  %v7253 = vpop.f32.mrb[0].mxu0
  %v7254 = vadd.f32 %v7149, %v7253
  %v7255 = vpop.f32.mrb[0].mxu0
  %7256 = vdwg.mxu0
  %7257 = vmatprep.subr.mxu0 0.0
  %v7258 = vand.u32 %v6698, 4294901760
  %v7259 = vsub.f32 %v6698, %v7258
  %v7260 = vand.u32 %v7259, 4294901760
  %7261 = vmatpush1.msra.mxu0 %v7260
  %7262 = vmatprep.subr.mxu0 0.0
  %v7263 = vand.u32 %v6700, 4294901760
  %v7264 = vsub.f32 %v6700, %v7263
  %v7265 = vand.u32 %v7264, 4294901760
  %7266 = vmatpush1.msra.mxu0 %v7265
  %7267 = vmatprep.subr.mxu0 0.0
  %v7268 = vand.u32 %v6702, 4294901760
  %v7269 = vsub.f32 %v6702, %v7268
  %v7270 = vand.u32 %v7269, 4294901760
  %7271 = vmatpush1.msra.mxu0 %v7270
  %7272 = vmatprep.subr.mxu0 0.0
  %v7273 = vand.u32 %v6704, 4294901760
  %v7274 = vsub.f32 %v6704, %v7273
  %v7275 = vand.u32 %v7274, 4294901760
  %7276 = vmatpush1.msra.mxu0 %v7275
  %7277 = vmatprep.subr.mxu0 0.0
  %v7278 = vand.u32 %v6706, 4294901760
  %v7279 = vsub.f32 %v6706, %v7278
  %v7280 = vand.u32 %v7279, 4294901760
  %7281 = vmatpush1.msra.mxu0 %v7280
  %7282 = vmatprep.subr.mxu0 0.0
  %v7283 = vand.u32 %v6708, 4294901760
  %v7284 = vsub.f32 %v6708, %v7283
  %v7285 = vand.u32 %v7284, 4294901760
  %7286 = vmatpush1.msra.mxu0 %v7285
  %7287 = vmatprep.subr.mxu0 0.0
  %v7288 = vand.u32 %v6710, 4294901760
  %v7289 = vsub.f32 %v6710, %v7288
  %v7290 = vand.u32 %v7289, 4294901760
  %7291 = vmatpush1.msra.mxu0 %v7290
  %7292 = vmatprep.subr.mxu0 0.0
  %v7293 = vand.u32 %v6712, 4294901760
  %v7294 = vsub.f32 %v6712, %v7293
  %v7295 = vand.u32 %v7294, 4294901760
  %7296 = vmatpush1.msra.mxu0 %v7295
  %7297 = vmatprep.subr.mxu0 0.0
  %v7298 = vand.u32 %v6714, 4294901760
  %v7299 = vsub.f32 %v6714, %v7298
  %v7300 = vand.u32 %v7299, 4294901760
  %7301 = vmatpush1.msra.mxu0 %v7300
  %7302 = vmatprep.subr.mxu0 0.0
  %v7303 = vand.u32 %v6716, 4294901760
  %v7304 = vsub.f32 %v6716, %v7303
  %v7305 = vand.u32 %v7304, 4294901760
  %7306 = vmatpush1.msra.mxu0 %v7305
  %7307 = vmatprep.subr.mxu0 0.0
  %v7308 = vand.u32 %v6718, 4294901760
  %v7309 = vsub.f32 %v6718, %v7308
  %v7310 = vand.u32 %v7309, 4294901760
  %7311 = vmatpush1.msra.mxu0 %v7310
  %7312 = vmatprep.subr.mxu0 0.0
  %v7313 = vand.u32 %v6720, 4294901760
  %v7314 = vsub.f32 %v6720, %v7313
  %v7315 = vand.u32 %v7314, 4294901760
  %7316 = vmatpush1.msra.mxu0 %v7315
  %7317 = vmatprep.subr.mxu0 0.0
  %v7318 = vand.u32 %v6722, 4294901760
  %v7319 = vsub.f32 %v6722, %v7318
  %v7320 = vand.u32 %v7319, 4294901760
  %7321 = vmatpush1.msra.mxu0 %v7320
  %7322 = vmatprep.subr.mxu0 0.0
  %v7323 = vand.u32 %v6724, 4294901760
  %v7324 = vsub.f32 %v6724, %v7323
  %v7325 = vand.u32 %v7324, 4294901760
  %7326 = vmatpush1.msra.mxu0 %v7325
  %7327 = vmatprep.subr.mxu0 0.0
  %v7328 = vand.u32 %v6726, 4294901760
  %v7329 = vsub.f32 %v6726, %v7328
  %v7330 = vand.u32 %v7329, 4294901760
  %7331 = vmatpush1.msra.mxu0 %v7330
  %7332 = vmatprep.subr.mxu0 0.0
  %v7333 = vand.u32 %v6728, 4294901760
  %v7334 = vsub.f32 %v6728, %v7333
  %v7335 = vand.u32 %v7334, 4294901760
  %7336 = vmatpush1.msra.mxu0 %v7335
  %7337 = vmatprep.subr.mxu0 0.0
  %v7338 = vand.u32 %v6730, 4294901760
  %v7339 = vsub.f32 %v6730, %v7338
  %v7340 = vand.u32 %v7339, 4294901760
  %7341 = vmatpush1.msra.mxu0 %v7340
  %7342 = vmatprep.subr.mxu0 0.0
  %v7343 = vand.u32 %v6732, 4294901760
  %v7344 = vsub.f32 %v6732, %v7343
  %v7345 = vand.u32 %v7344, 4294901760
  %7346 = vmatpush1.msra.mxu0 %v7345
  %7347 = vmatprep.subr.mxu0 0.0
  %7348 = vmatpush1.msra.mxu0 0.0
  %7349 = vmatprep.subr.mxu0 0.0
  %7350 = vmatpush1.msra.mxu0 0.0
  %7351 = vmatprep.subr.mxu0 0.0
  %7352 = vmatpush1.msra.mxu0 0.0
  %7353 = vmatprep.subr.mxu0 0.0
  %7354 = vmatpush1.msra.mxu0 0.0
  %7355 = vmatprep.subr.mxu0 0.0
  %7356 = vmatpush1.msra.mxu0 0.0
  %7357 = vmatprep.subr.mxu0 0.0
  %7358 = vmatpush1.msra.mxu0 0.0
  %7359 = vmatprep.subr.mxu0 0.0
  %7360 = vmatpush1.msra.mxu0 0.0
  %7361 = vmatprep.subr.mxu0 0.0
  %7362 = vmatpush1.msra.mxu0 0.0
  %7363 = vmatprep.subr.mxu0 0.0
  %7364 = vmatpush1.msra.mxu0 0.0
  %7365 = vmatprep.subr.mxu0 0.0
  %7366 = vmatpush1.msra.mxu0 0.0
  %7367 = vmatprep.subr.mxu0 0.0
  %7368 = vmatpush1.msra.mxu0 0.0
  %7369 = vmatprep.subr.mxu0 0.0
  %7370 = vmatpush1.msra.mxu0 0.0
  %7371 = vmatprep.subr.mxu0 0.0
  %7372 = vmatpush1.msra.mxu0 0.0
  %7373 = vmatprep.subr.mxu0 0.0
  %7374 = vmatpush1.msra.mxu0 0.0
  %v7375 = vand.u32 %v3924, 4294901760
  %7376 = vmatprep.mubr.f32.mxu0 %v7375
  %v7377 = vand.u32 %v3641, 4294901760
  %7378 = vmatmul.mubr.f32.gmra.mrb[0].mxu0 %v7377
  %v7379 = vpop.f32.mrb[0].mxu0
  %v7380 = vadd.f32 %v7243, %v7379
  %v7381 = vpop.f32.mrb[0].mxu0
  %v7382 = vand.u32 %v3927, 4294901760
  %7383 = vmatprep.mubr.f32.mxu0 %v7382
  %v7384 = vand.u32 %v3643, 4294901760
  %7385 = vmatmul.mubr.f32.gmra.mrb[0].mxu0 %v7384
  %v7386 = vpop.f32.mrb[0].mxu0
  %v7387 = vadd.f32 %v7254, %v7386
  %v7388 = vpop.f32.mrb[0].mxu0
  %7389 = vdwg.mxu0
  %7390 = vmatprep.subr.mxu0 0.0
  %v7391 = vand.u32 %v6698, 4294901760
  %7392 = vmatpush1.msra.mxu0 %v7391
  %7393 = vmatprep.subr.mxu0 0.0
  %v7394 = vand.u32 %v6700, 4294901760
  %7395 = vmatpush1.msra.mxu0 %v7394
  %7396 = vmatprep.subr.mxu0 0.0
  %v7397 = vand.u32 %v6702, 4294901760
  %7398 = vmatpush1.msra.mxu0 %v7397
  %7399 = vmatprep.subr.mxu0 0.0
  %v7400 = vand.u32 %v6704, 4294901760
  %7401 = vmatpush1.msra.mxu0 %v7400
  %7402 = vmatprep.subr.mxu0 0.0
  %v7403 = vand.u32 %v6706, 4294901760
  %7404 = vmatpush1.msra.mxu0 %v7403
  %7405 = vmatprep.subr.mxu0 0.0
  %v7406 = vand.u32 %v6708, 4294901760
  %7407 = vmatpush1.msra.mxu0 %v7406
  %7408 = vmatprep.subr.mxu0 0.0
  %v7409 = vand.u32 %v6710, 4294901760
  %7410 = vmatpush1.msra.mxu0 %v7409
  %7411 = vmatprep.subr.mxu0 0.0
  %v7412 = vand.u32 %v6712, 4294901760
  %7413 = vmatpush1.msra.mxu0 %v7412
  %7414 = vmatprep.subr.mxu0 0.0
  %v7415 = vand.u32 %v6714, 4294901760
  %7416 = vmatpush1.msra.mxu0 %v7415
  %7417 = vmatprep.subr.mxu0 0.0
  %v7418 = vand.u32 %v6716, 4294901760
  %7419 = vmatpush1.msra.mxu0 %v7418
  %7420 = vmatprep.subr.mxu0 0.0
  %v7421 = vand.u32 %v6718, 4294901760
  %7422 = vmatpush1.msra.mxu0 %v7421
  %7423 = vmatprep.subr.mxu0 0.0
  %v7424 = vand.u32 %v6720, 4294901760
  %7425 = vmatpush1.msra.mxu0 %v7424
  %7426 = vmatprep.subr.mxu0 0.0
  %v7427 = vand.u32 %v6722, 4294901760
  %7428 = vmatpush1.msra.mxu0 %v7427
  %7429 = vmatprep.subr.mxu0 0.0
  %v7430 = vand.u32 %v6724, 4294901760
  %7431 = vmatpush1.msra.mxu0 %v7430
  %7432 = vmatprep.subr.mxu0 0.0
  %v7433 = vand.u32 %v6726, 4294901760
  %7434 = vmatpush1.msra.mxu0 %v7433
  %7435 = vmatprep.subr.mxu0 0.0
  %v7436 = vand.u32 %v6728, 4294901760
  %7437 = vmatpush1.msra.mxu0 %v7436
  %7438 = vmatprep.subr.mxu0 0.0
  %v7439 = vand.u32 %v6730, 4294901760
  %7440 = vmatpush1.msra.mxu0 %v7439
  %7441 = vmatprep.subr.mxu0 0.0
  %v7442 = vand.u32 %v6732, 4294901760
  %7443 = vmatpush1.msra.mxu0 %v7442
  %7444 = vmatprep.subr.mxu0 0.0
  %7445 = vmatpush1.msra.mxu0 0.0
  %7446 = vmatprep.subr.mxu0 0.0
  %7447 = vmatpush1.msra.mxu0 0.0
  %7448 = vmatprep.subr.mxu0 0.0
  %7449 = vmatpush1.msra.mxu0 0.0
  %7450 = vmatprep.subr.mxu0 0.0
  %7451 = vmatpush1.msra.mxu0 0.0
  %7452 = vmatprep.subr.mxu0 0.0
  %7453 = vmatpush1.msra.mxu0 0.0
  %7454 = vmatprep.subr.mxu0 0.0
  %7455 = vmatpush1.msra.mxu0 0.0
  %7456 = vmatprep.subr.mxu0 0.0
  %7457 = vmatpush1.msra.mxu0 0.0
  %7458 = vmatprep.subr.mxu0 0.0
  %7459 = vmatpush1.msra.mxu0 0.0
  %7460 = vmatprep.subr.mxu0 0.0
  %7461 = vmatpush1.msra.mxu0 0.0
  %7462 = vmatprep.subr.mxu0 0.0
  %7463 = vmatpush1.msra.mxu0 0.0
  %7464 = vmatprep.subr.mxu0 0.0
  %7465 = vmatpush1.msra.mxu0 0.0
  %7466 = vmatprep.subr.mxu0 0.0
  %7467 = vmatpush1.msra.mxu0 0.0
  %7468 = vmatprep.subr.mxu0 0.0
  %7469 = vmatpush1.msra.mxu0 0.0
  %7470 = vmatprep.subr.mxu0 0.0
  %7471 = vmatpush1.msra.mxu0 0.0
  %v7472 = vand.u32 %v3924, 4294901760
  %7473 = vmatprep.mubr.f32.mxu0 %v7472
  %v7474 = vand.u32 %v3641, 4294901760
  %7475 = vmatmul.mubr.f32.gmra.mrb[0].mxu0 %v7474
  %v7476 = vpop.f32.mrb[0].mxu0
  %v7477 = vadd.f32 %v7380, %v7476
  %v7478 = vpop.f32.mrb[0].mxu0
  %v7479 = vand.u32 %v3927, 4294901760
  %7480 = vmatprep.mubr.f32.mxu0 %v7479
  %v7481 = vand.u32 %v3643, 4294901760
  %7482 = vmatmul.mubr.f32.gmra.mrb[0].mxu0 %v7481
  %v7483 = vpop.f32.mrb[0].mxu0
  %v7484 = vadd.f32 %v7387, %v7483
  %v7485 = vpop.f32.mrb[0].mxu0
  %7486 = vdwg.mxu0
  %7488 = vset.pattern.permute.xlu0 0
  %7489 = vperm.xlu0 %7488, %v6586
  %v7490 = vpop.permute.xlu0 %7489
  %7493 = vset.pattern.permute.xlu0 0
  %7494 = vperm.xlu0 %7493, %v6588
  %v7495 = vpop.permute.xlu0 %7494
  %v7497 = vmul.f32 %v7477, %v7490
  %v7498 = vmul.f32 %v7484, %v7495
  %7500 = vrot.lane.b32.xlu0 %v5512, 126
  %v7501 = vpop.permute.xlu0 %7500
  %v7503 = vadd.f32 %v7497, %v7501
  %v7504 = vadd.f32 %v7498, %v7501
  %7507 = vrot.lane.b32.xlu0 %v7503, 2
  %v7508 = vpop.permute.xlu0 %7507
  %7509 = vrot.lane.b32.xlu0 %v7504, 2
  %v7510 = vpop.permute.xlu0 %7509
  %vm7513 = vcmask 31760
  %7514 = vst.msk [vmem:[%s5] sm:$0xff] %vm7513, %v7508
  %vm7515 = vcmask 27664
  %7516 = vst.msk [vmem:[%s5 + $0x8] sm:$0xf] %vm7515, %v7510
  %7517 = vrot.lane.b32.xlu0 %v3623, 124
  %v7518 = vpop.permute.xlu0 %7517
  %7519 = vrot.lane.b32.xlu0 %v3624, 124
  %v7520 = vpop.permute.xlu0 %7519
  %7521 = vrot.lane.b32.xlu0 %v3625, 124
  %v7522 = vpop.permute.xlu0 %7521
  %7523 = vrot.lane.b32.xlu0 %v3626, 124
  %v7524 = vpop.permute.xlu0 %7523
  %7525 = vrot.lane.b32.xlu0 %v3627, 124
  %v7526 = vpop.permute.xlu0 %7525
  %7527 = vrot.lane.b32.xlu0 %v3628, 124
  %v7528 = vpop.permute.xlu0 %7527
  %7529 = vrot.lane.b32.xlu0 %v3629, 124
  %v7530 = vpop.permute.xlu0 %7529
  %7531 = vrot.lane.b32.xlu0 %v3630, 124
  %v7532 = vpop.permute.xlu0 %7531
  %7533 = vrot.lane.b32.xlu0 %v3631, 124
  %v7534 = vpop.permute.xlu0 %7533
  %7535 = vrot.lane.b32.xlu0 %v3632, 124
  %v7536 = vpop.permute.xlu0 %7535
  %7537 = vrot.lane.b32.xlu0 %v3633, 124
  %v7538 = vpop.permute.xlu0 %7537
  %7539 = vrot.lane.b32.xlu0 %v3634, 124
  %v7540 = vpop.permute.xlu0 %7539
  %7541 = vrot.lane.b32.xlu0 %v3635, 124
  %v7542 = vpop.permute.xlu0 %7541
  %7543 = vrot.lane.b32.xlu0 %v3636, 124
  %v7544 = vpop.permute.xlu0 %7543
  %7545 = vrot.lane.b32.xlu0 %v3637, 124
  %v7546 = vpop.permute.xlu0 %7545
  %7547 = vrot.lane.b32.xlu0 %v3638, 124
  %v7548 = vpop.permute.xlu0 %7547
  %7549 = vrot.lane.b32.xlu0 %v3639, 124
  %v7550 = vpop.permute.xlu0 %7549
  %7551 = vrot.lane.b32.xlu0 %v3640, 124
  %v7552 = vpop.permute.xlu0 %7551
  %v7571 = vsel %vm3645, %v7518, 0.0
  %7572 = vadd.xlane.f32.xlu0 %v7571
  %v7573 = vpop.xlane.xlu0 %7572
  %v7574 = vsel %vm3645, %v7520, 0.0
  %7575 = vadd.xlane.f32.xlu0 %v7574
  %v7576 = vpop.xlane.xlu0 %7575
  %v7577 = vsel %vm3645, %v7522, 0.0
  %7578 = vadd.xlane.f32.xlu0 %v7577
  %v7579 = vpop.xlane.xlu0 %7578
  %v7580 = vsel %vm3645, %v7524, 0.0
  %7581 = vadd.xlane.f32.xlu0 %v7580
  %v7582 = vpop.xlane.xlu0 %7581
  %v7583 = vsel %vm3645, %v7526, 0.0
  %7584 = vadd.xlane.f32.xlu0 %v7583
  %v7585 = vpop.xlane.xlu0 %7584
  %v7586 = vsel %vm3645, %v7528, 0.0
  %7587 = vadd.xlane.f32.xlu0 %v7586
  %v7588 = vpop.xlane.xlu0 %7587
  %v7589 = vsel %vm3645, %v7530, 0.0
  %7590 = vadd.xlane.f32.xlu0 %v7589
  %v7591 = vpop.xlane.xlu0 %7590
  %v7592 = vsel %vm3645, %v7532, 0.0
  %7593 = vadd.xlane.f32.xlu0 %v7592
  %v7594 = vpop.xlane.xlu0 %7593
  %v7595 = vsel %vm3645, %v7534, 0.0
  %7596 = vadd.xlane.f32.xlu0 %v7595
  %v7597 = vpop.xlane.xlu0 %7596
  %v7598 = vsel %vm3645, %v7536, 0.0
  %7599 = vadd.xlane.f32.xlu0 %v7598
  %v7600 = vpop.xlane.xlu0 %7599
  %v7601 = vsel %vm3645, %v7538, 0.0
  %7602 = vadd.xlane.f32.xlu0 %v7601
  %v7603 = vpop.xlane.xlu0 %7602
  %v7604 = vsel %vm3645, %v7540, 0.0
  %7605 = vadd.xlane.f32.xlu0 %v7604
  %v7606 = vpop.xlane.xlu0 %7605
  %v7607 = vsel %vm3645, %v7542, 0.0
  %7608 = vadd.xlane.f32.xlu0 %v7607
  %v7609 = vpop.xlane.xlu0 %7608
  %v7610 = vsel %vm3645, %v7544, 0.0
  %7611 = vadd.xlane.f32.xlu0 %v7610
  %v7612 = vpop.xlane.xlu0 %7611
  %v7613 = vsel %vm3645, %v7546, 0.0
  %7614 = vadd.xlane.f32.xlu0 %v7613
  %v7615 = vpop.xlane.xlu0 %7614
  %v7616 = vsel %vm3645, %v7548, 0.0
  %7617 = vadd.xlane.f32.xlu0 %v7616
  %v7618 = vpop.xlane.xlu0 %7617
  %v7619 = vsel %vm3645, %v7550, 0.0
  %7620 = vadd.xlane.f32.xlu0 %v7619
  %v7621 = vpop.xlane.xlu0 %7620
  %v7622 = vsel %vm3645, %v7552, 0.0
  %7623 = vadd.xlane.f32.xlu0 %v7622
  %v7624 = vpop.xlane.xlu0 %7623
  %v7625 = vsel %vm3700, %v7573, -1e+30
  %v7626 = vsel %vm3701, %v7576, -1e+30
  %v7627 = vsel %vm3702, %v7579, -1e+30
  %v7628 = vsel %vm3703, %v7582, -1e+30
  %v7629 = vsel %vm3704, %v7585, -1e+30
  %v7630 = vsel %vm3705, %v7588, -1e+30
  %v7631 = vsel %vm3706, %v7591, -1e+30
  %v7632 = vsel %vm3707, %v7594, -1e+30
  %v7633 = vsel %vm3708, %v7597, -1e+30
  %v7634 = vsel %vm3709, %v7600, -1e+30
  %v7635 = vsel %vm3710, %v7603, -1e+30
  %v7636 = vsel %vm3711, %v7606, -1e+30
  %v7637 = vsel %vm3712, %v7609, -1e+30
  %v7638 = vsel %vm3713, %v7612, -1e+30
  %v7639 = vsel %vm3714, %v7615, -1e+30
  %v7640 = vsel %vm3715, %v7618, -1e+30
  %v7641 = vsel %vm3716, %v7621, -1e+30
  %v7642 = vsel %vm3717, %v7624, -1e+30
  %v7643 = vsel %vm3736, %v7625, -inf
  %v7644 = vsel %vm3736, %v7626, -inf
  %v7645 = vsel %vm3736, %v7627, -inf
  %v7646 = vsel %vm3736, %v7628, -inf
  %v7647 = vsel %vm3736, %v7629, -inf
  %v7648 = vmax.f32 %v7643, %v7647
  %v7649 = vsel %vm3736, %v7630, -inf
  %v7650 = vmax.f32 %v7644, %v7649
  %v7651 = vsel %vm3736, %v7631, -inf
  %v7652 = vmax.f32 %v7645, %v7651
  %v7653 = vsel %vm3736, %v7632, -inf
  %v7654 = vmax.f32 %v7646, %v7653
  %v7655 = vsel %vm3736, %v7633, -inf
  %v7656 = vmax.f32 %v7648, %v7655
  %v7657 = vsel %vm3736, %v7634, -inf
  %v7658 = vmax.f32 %v7650, %v7657
  %v7659 = vsel %vm3736, %v7635, -inf
  %v7660 = vmax.f32 %v7652, %v7659
  %v7661 = vsel %vm3736, %v7636, -inf
  %v7662 = vmax.f32 %v7654, %v7661
  %v7663 = vsel %vm3736, %v7637, -inf
  %v7664 = vmax.f32 %v7656, %v7663
  %v7665 = vsel %vm3736, %v7638, -inf
  %v7666 = vmax.f32 %v7658, %v7665
  %v7667 = vsel %vm3736, %v7639, -inf
  %v7668 = vmax.f32 %v7660, %v7667
  %v7669 = vsel %vm3736, %v7640, -inf
  %v7670 = vmax.f32 %v7662, %v7669
  %v7671 = vsel %vm3736, %v7641, -inf
  %v7672 = vmax.f32 %v7664, %v7671
  %v7673 = vsel %vm3736, %v7642, -inf
  %v7674 = vmax.f32 %v7666, %v7673
  %v7675 = vmax.f32 %v7672, %v7674
  %v7676 = vmax.f32 %v7668, %v7670
  %v7677 = vmax.f32 %v7675, %v7676
  %v7678 = vrot.slane %v7677, 4
  %v7679 = vmax.f32 %v7677, %v7678
  %v7680 = vrot.slane %v7679, 2
  %v7681 = vmax.f32 %v7679, %v7680
  %v7682 = vrot.slane %v7681, 1
  %v7683 = vmax.f32 %v7681, %v7682
  %v7684 = vsub.f32 %v7625, %v7683
  %v7685 = vsub.f32 %v7626, %v7683
  %v7686 = vsub.f32 %v7627, %v7683
  %v7687 = vsub.f32 %v7628, %v7683
  %v7688 = vsub.f32 %v7629, %v7683
  %v7689 = vsub.f32 %v7630, %v7683
  %v7690 = vsub.f32 %v7631, %v7683
  %v7691 = vsub.f32 %v7632, %v7683
  %v7692 = vsub.f32 %v7633, %v7683
  %v7693 = vsub.f32 %v7634, %v7683
  %v7694 = vsub.f32 %v7635, %v7683
  %v7695 = vsub.f32 %v7636, %v7683
  %v7696 = vsub.f32 %v7637, %v7683
  %v7697 = vsub.f32 %v7638, %v7683
  %v7698 = vsub.f32 %v7639, %v7683
  %v7699 = vsub.f32 %v7640, %v7683
  %v7700 = vsub.f32 %v7641, %v7683
  %v7701 = vsub.f32 %v7642, %v7683
  %v7702 = vmul.f32 %v7684, 1.442695
  %v7703 = vpow.pop %v7702
  %v7704 = vmul.f32 %v7685, 1.442695
  %v7705 = vpow.pop %v7704
  %v7706 = vmul.f32 %v7686, 1.442695
  %v7707 = vpow.pop %v7706
  %v7708 = vmul.f32 %v7687, 1.442695
  %v7709 = vpow.pop %v7708
  %v7710 = vmul.f32 %v7688, 1.442695
  %v7711 = vpow.pop %v7710
  %v7712 = vmul.f32 %v7689, 1.442695
  %v7713 = vpow.pop %v7712
  %v7714 = vmul.f32 %v7690, 1.442695
  %v7715 = vpow.pop %v7714
  %v7716 = vmul.f32 %v7691, 1.442695
  %v7717 = vpow.pop %v7716
  %v7718 = vmul.f32 %v7692, 1.442695
  %v7719 = vpow.pop %v7718
  %v7720 = vmul.f32 %v7693, 1.442695
  %v7721 = vpow.pop %v7720
  %v7722 = vmul.f32 %v7694, 1.442695
  %v7723 = vpow.pop %v7722
  %v7724 = vmul.f32 %v7695, 1.442695
  %v7725 = vpow.pop %v7724
  %v7726 = vmul.f32 %v7696, 1.442695
  %v7727 = vpow.pop %v7726
  %v7728 = vmul.f32 %v7697, 1.442695
  %v7729 = vpow.pop %v7728
  %v7730 = vmul.f32 %v7698, 1.442695
  %v7731 = vpow.pop %v7730
  %v7732 = vmul.f32 %v7699, 1.442695
  %v7733 = vpow.pop %v7732
  %v7734 = vmul.f32 %v7700, 1.442695
  %v7735 = vpow.pop %v7734
  %v7736 = vmul.f32 %v7701, 1.442695
  %v7737 = vpow.pop %v7736
  %v7738 = vmul.f32 %v7703, %v1033
  %v7739 = vmul.f32 %v7705, %v1034
  %v7740 = vmul.f32 %v7707, %v1035
  %v7741 = vmul.f32 %v7709, %v1036
  %v7742 = vmul.f32 %v7711, %v1037
  %v7743 = vmul.f32 %v7713, %v1038
  %v7744 = vmul.f32 %v7715, %v1039
  %v7745 = vmul.f32 %v7717, %v1040
  %v7746 = vmul.f32 %v7719, %v1041
  %v7747 = vmul.f32 %v7721, %v1042
  %v7748 = vmul.f32 %v7723, %v1043
  %v7749 = vmul.f32 %v7725, %v1044
  %v7750 = vmul.f32 %v7727, %v1045
  %v7751 = vmul.f32 %v7729, %v1046
  %v7752 = vmul.f32 %v7731, %v1047
  %v7753 = vmul.f32 %v7733, %v1048
  %v7754 = vmul.f32 %v7735, %v1049
  %v7755 = vmul.f32 %v7737, %v1050
  %7774 = vrot.lane.b32.xlu0 %v7738, 104
  %v7775 = vpop.permute.xlu0 %7774
  %7776 = vrot.lane.b32.xlu0 %v7739, 104
  %v7777 = vpop.permute.xlu0 %7776
  %7778 = vrot.lane.b32.xlu0 %v7740, 104
  %v7779 = vpop.permute.xlu0 %7778
  %7780 = vrot.lane.b32.xlu0 %v7741, 104
  %v7781 = vpop.permute.xlu0 %7780
  %7782 = vrot.lane.b32.xlu0 %v7742, 104
  %v7783 = vpop.permute.xlu0 %7782
  %7784 = vrot.lane.b32.xlu0 %v7743, 104
  %v7785 = vpop.permute.xlu0 %7784
  %7786 = vrot.lane.b32.xlu0 %v7744, 104
  %v7787 = vpop.permute.xlu0 %7786
  %7788 = vrot.lane.b32.xlu0 %v7745, 104
  %v7789 = vpop.permute.xlu0 %7788
  %7790 = vrot.lane.b32.xlu0 %v7746, 104
  %v7791 = vpop.permute.xlu0 %7790
  %7792 = vrot.lane.b32.xlu0 %v7747, 104
  %v7793 = vpop.permute.xlu0 %7792
  %7794 = vrot.lane.b32.xlu0 %v7748, 104
  %v7795 = vpop.permute.xlu0 %7794
  %7796 = vrot.lane.b32.xlu0 %v7749, 104
  %v7797 = vpop.permute.xlu0 %7796
  %7798 = vrot.lane.b32.xlu0 %v7750, 104
  %v7799 = vpop.permute.xlu0 %7798
  %7800 = vrot.lane.b32.xlu0 %v7751, 104
  %v7801 = vpop.permute.xlu0 %7800
  %7802 = vrot.lane.b32.xlu0 %v7752, 104
  %v7803 = vpop.permute.xlu0 %7802
  %7804 = vrot.lane.b32.xlu0 %v7753, 104
  %v7805 = vpop.permute.xlu0 %7804
  %7806 = vrot.lane.b32.xlu0 %v7754, 104
  %v7807 = vpop.permute.xlu0 %7806
  %7808 = vrot.lane.b32.xlu0 %v7755, 104
  %v7809 = vpop.permute.xlu0 %7808
  %7828 = vmatprep.subr.mxu0 0.0
  %v7829 = vand.u32 %v7775, 4294901760
  %7830 = vmatpush1.msra.mxu0 %v7829
  %7831 = vmatprep.subr.mxu0 0.0
  %v7832 = vand.u32 %v7777, 4294901760
  %7833 = vmatpush1.msra.mxu0 %v7832
  %7834 = vmatprep.subr.mxu0 0.0
  %v7835 = vand.u32 %v7779, 4294901760
  %7836 = vmatpush1.msra.mxu0 %v7835
  %7837 = vmatprep.subr.mxu0 0.0
  %v7838 = vand.u32 %v7781, 4294901760
  %7839 = vmatpush1.msra.mxu0 %v7838
  %7840 = vmatprep.subr.mxu0 0.0
  %v7841 = vand.u32 %v7783, 4294901760
  %7842 = vmatpush1.msra.mxu0 %v7841
  %7843 = vmatprep.subr.mxu0 0.0
  %v7844 = vand.u32 %v7785, 4294901760
  %7845 = vmatpush1.msra.mxu0 %v7844
  %7846 = vmatprep.subr.mxu0 0.0
  %v7847 = vand.u32 %v7787, 4294901760
  %7848 = vmatpush1.msra.mxu0 %v7847
  %7849 = vmatprep.subr.mxu0 0.0
  %v7850 = vand.u32 %v7789, 4294901760
  %7851 = vmatpush1.msra.mxu0 %v7850
  %7852 = vmatprep.subr.mxu0 0.0
  %v7853 = vand.u32 %v7791, 4294901760
  %7854 = vmatpush1.msra.mxu0 %v7853
  %7855 = vmatprep.subr.mxu0 0.0
  %v7856 = vand.u32 %v7793, 4294901760
  %7857 = vmatpush1.msra.mxu0 %v7856
  %7858 = vmatprep.subr.mxu0 0.0
  %v7859 = vand.u32 %v7795, 4294901760
  %7860 = vmatpush1.msra.mxu0 %v7859
  %7861 = vmatprep.subr.mxu0 0.0
  %v7862 = vand.u32 %v7797, 4294901760
  %7863 = vmatpush1.msra.mxu0 %v7862
  %7864 = vmatprep.subr.mxu0 0.0
  %v7865 = vand.u32 %v7799, 4294901760
  %7866 = vmatpush1.msra.mxu0 %v7865
  %7867 = vmatprep.subr.mxu0 0.0
  %v7868 = vand.u32 %v7801, 4294901760
  %7869 = vmatpush1.msra.mxu0 %v7868
  %7870 = vmatprep.subr.mxu0 0.0
  %v7871 = vand.u32 %v7803, 4294901760
  %7872 = vmatpush1.msra.mxu0 %v7871
  %7873 = vmatprep.subr.mxu0 0.0
  %v7874 = vand.u32 %v7805, 4294901760
  %7875 = vmatpush1.msra.mxu0 %v7874
  %7876 = vmatprep.subr.mxu0 0.0
  %v7877 = vand.u32 %v7807, 4294901760
  %7878 = vmatpush1.msra.mxu0 %v7877
  %7879 = vmatprep.subr.mxu0 0.0
  %v7880 = vand.u32 %v7809, 4294901760
  %7881 = vmatpush1.msra.mxu0 %v7880
  %7882 = vmatprep.subr.mxu0 0.0
  %7883 = vmatpush1.msra.mxu0 0.0
  %7884 = vmatprep.subr.mxu0 0.0
  %7885 = vmatpush1.msra.mxu0 0.0
  %7886 = vmatprep.subr.mxu0 0.0
  %7887 = vmatpush1.msra.mxu0 0.0
  %7888 = vmatprep.subr.mxu0 0.0
  %7889 = vmatpush1.msra.mxu0 0.0
  %7890 = vmatprep.subr.mxu0 0.0
  %7891 = vmatpush1.msra.mxu0 0.0
  %7892 = vmatprep.subr.mxu0 0.0
  %7893 = vmatpush1.msra.mxu0 0.0
  %7894 = vmatprep.subr.mxu0 0.0
  %7895 = vmatpush1.msra.mxu0 0.0
  %7896 = vmatprep.subr.mxu0 0.0
  %7897 = vmatpush1.msra.mxu0 0.0
  %7898 = vmatprep.subr.mxu0 0.0
  %7899 = vmatpush1.msra.mxu0 0.0
  %7900 = vmatprep.subr.mxu0 0.0
  %7901 = vmatpush1.msra.mxu0 0.0
  %7902 = vmatprep.subr.mxu0 0.0
  %7903 = vmatpush1.msra.mxu0 0.0
  %7904 = vmatprep.subr.mxu0 0.0
  %7905 = vmatpush1.msra.mxu0 0.0
  %7906 = vmatprep.subr.mxu0 0.0
  %7907 = vmatpush1.msra.mxu0 0.0
  %7908 = vmatprep.subr.mxu0 0.0
  %7909 = vmatpush1.msra.mxu0 0.0
  %v7910 = vand.u32 %v3924, 4294901760
  %v7911 = vsub.f32 %v3924, %v7910
  %v7912 = vand.u32 %v7911, 4294901760
  %v7913 = vsub.f32 %v7911, %v7912
  %v7914 = vand.u32 %v7913, 4294901760
  %7915 = vmatprep.mubr.f32.mxu0 %v7914
  %v7916 = vand.u32 %v3641, 4294901760
  %v7917 = vsub.f32 %v3641, %v7916
  %v7918 = vand.u32 %v7917, 4294901760
  %v7919 = vsub.f32 %v7917, %v7918
  %v7920 = vand.u32 %v7919, 4294901760
  %7921 = vmatmul.mubr.f32.gmra.mrb[0].mxu0 %v7920
  %v7922 = vpop.f32.mrb[0].mxu0
  %v7923 = vadd.f32 0.0, %v7922
  %v7924 = vpop.f32.mrb[0].mxu0
  %v7925 = vand.u32 %v3927, 4294901760
  %v7926 = vsub.f32 %v3927, %v7925
  %v7927 = vand.u32 %v7926, 4294901760
  %v7928 = vsub.f32 %v7926, %v7927
  %v7929 = vand.u32 %v7928, 4294901760
  %7930 = vmatprep.mubr.f32.mxu0 %v7929
  %v7931 = vand.u32 %v3643, 4294901760
  %v7932 = vsub.f32 %v3643, %v7931
  %v7933 = vand.u32 %v7932, 4294901760
  %v7934 = vsub.f32 %v7932, %v7933
  %v7935 = vand.u32 %v7934, 4294901760
  %7936 = vmatmul.mubr.f32.gmra.mrb[0].mxu0 %v7935
  %v7937 = vpop.f32.mrb[0].mxu0
  %v7938 = vadd.f32 0.0, %v7937
  %v7939 = vpop.f32.mrb[0].mxu0
  %7940 = vdwg.mxu0
  %7941 = vmatprep.subr.mxu0 0.0
  %v7942 = vand.u32 %v7775, 4294901760
  %v7943 = vsub.f32 %v7775, %v7942
  %v7944 = vand.u32 %v7943, 4294901760
  %v7945 = vsub.f32 %v7943, %v7944
  %v7946 = vand.u32 %v7945, 4294901760
  %7947 = vmatpush1.msra.mxu0 %v7946
  %7948 = vmatprep.subr.mxu0 0.0
  %v7949 = vand.u32 %v7777, 4294901760
  %v7950 = vsub.f32 %v7777, %v7949
  %v7951 = vand.u32 %v7950, 4294901760
  %v7952 = vsub.f32 %v7950, %v7951
  %v7953 = vand.u32 %v7952, 4294901760
  %7954 = vmatpush1.msra.mxu0 %v7953
  %7955 = vmatprep.subr.mxu0 0.0
  %v7956 = vand.u32 %v7779, 4294901760
  %v7957 = vsub.f32 %v7779, %v7956
  %v7958 = vand.u32 %v7957, 4294901760
  %v7959 = vsub.f32 %v7957, %v7958
  %v7960 = vand.u32 %v7959, 4294901760
  %7961 = vmatpush1.msra.mxu0 %v7960
  %7962 = vmatprep.subr.mxu0 0.0
  %v7963 = vand.u32 %v7781, 4294901760
  %v7964 = vsub.f32 %v7781, %v7963
  %v7965 = vand.u32 %v7964, 4294901760
  %v7966 = vsub.f32 %v7964, %v7965
  %v7967 = vand.u32 %v7966, 4294901760
  %7968 = vmatpush1.msra.mxu0 %v7967
  %7969 = vmatprep.subr.mxu0 0.0
  %v7970 = vand.u32 %v7783, 4294901760
  %v7971 = vsub.f32 %v7783, %v7970
  %v7972 = vand.u32 %v7971, 4294901760
  %v7973 = vsub.f32 %v7971, %v7972
  %v7974 = vand.u32 %v7973, 4294901760
  %7975 = vmatpush1.msra.mxu0 %v7974
  %7976 = vmatprep.subr.mxu0 0.0
  %v7977 = vand.u32 %v7785, 4294901760
  %v7978 = vsub.f32 %v7785, %v7977
  %v7979 = vand.u32 %v7978, 4294901760
  %v7980 = vsub.f32 %v7978, %v7979
  %v7981 = vand.u32 %v7980, 4294901760
  %7982 = vmatpush1.msra.mxu0 %v7981
  %7983 = vmatprep.subr.mxu0 0.0
  %v7984 = vand.u32 %v7787, 4294901760
  %v7985 = vsub.f32 %v7787, %v7984
  %v7986 = vand.u32 %v7985, 4294901760
  %v7987 = vsub.f32 %v7985, %v7986
  %v7988 = vand.u32 %v7987, 4294901760
  %7989 = vmatpush1.msra.mxu0 %v7988
  %7990 = vmatprep.subr.mxu0 0.0
  %v7991 = vand.u32 %v7789, 4294901760
  %v7992 = vsub.f32 %v7789, %v7991
  %v7993 = vand.u32 %v7992, 4294901760
  %v7994 = vsub.f32 %v7992, %v7993
  %v7995 = vand.u32 %v7994, 4294901760
  %7996 = vmatpush1.msra.mxu0 %v7995
  %7997 = vmatprep.subr.mxu0 0.0
  %v7998 = vand.u32 %v7791, 4294901760
  %v7999 = vsub.f32 %v7791, %v7998
  %v8000 = vand.u32 %v7999, 4294901760
  %v8001 = vsub.f32 %v7999, %v8000
  %v8002 = vand.u32 %v8001, 4294901760
  %8003 = vmatpush1.msra.mxu0 %v8002
  %8004 = vmatprep.subr.mxu0 0.0
  %v8005 = vand.u32 %v7793, 4294901760
  %v8006 = vsub.f32 %v7793, %v8005
  %v8007 = vand.u32 %v8006, 4294901760
  %v8008 = vsub.f32 %v8006, %v8007
  %v8009 = vand.u32 %v8008, 4294901760
  %8010 = vmatpush1.msra.mxu0 %v8009
  %8011 = vmatprep.subr.mxu0 0.0
  %v8012 = vand.u32 %v7795, 4294901760
  %v8013 = vsub.f32 %v7795, %v8012
  %v8014 = vand.u32 %v8013, 4294901760
  %v8015 = vsub.f32 %v8013, %v8014
  %v8016 = vand.u32 %v8015, 4294901760
  %8017 = vmatpush1.msra.mxu0 %v8016
  %8018 = vmatprep.subr.mxu0 0.0
  %v8019 = vand.u32 %v7797, 4294901760
  %v8020 = vsub.f32 %v7797, %v8019
  %v8021 = vand.u32 %v8020, 4294901760
  %v8022 = vsub.f32 %v8020, %v8021
  %v8023 = vand.u32 %v8022, 4294901760
  %8024 = vmatpush1.msra.mxu0 %v8023
  %8025 = vmatprep.subr.mxu0 0.0
  %v8026 = vand.u32 %v7799, 4294901760
  %v8027 = vsub.f32 %v7799, %v8026
  %v8028 = vand.u32 %v8027, 4294901760
  %v8029 = vsub.f32 %v8027, %v8028
  %v8030 = vand.u32 %v8029, 4294901760
  %8031 = vmatpush1.msra.mxu0 %v8030
  %8032 = vmatprep.subr.mxu0 0.0
  %v8033 = vand.u32 %v7801, 4294901760
  %v8034 = vsub.f32 %v7801, %v8033
  %v8035 = vand.u32 %v8034, 4294901760
  %v8036 = vsub.f32 %v8034, %v8035
  %v8037 = vand.u32 %v8036, 4294901760
  %8038 = vmatpush1.msra.mxu0 %v8037
  %8039 = vmatprep.subr.mxu0 0.0
  %v8040 = vand.u32 %v7803, 4294901760
  %v8041 = vsub.f32 %v7803, %v8040
  %v8042 = vand.u32 %v8041, 4294901760
  %v8043 = vsub.f32 %v8041, %v8042
  %v8044 = vand.u32 %v8043, 4294901760
  %8045 = vmatpush1.msra.mxu0 %v8044
  %8046 = vmatprep.subr.mxu0 0.0
  %v8047 = vand.u32 %v7805, 4294901760
  %v8048 = vsub.f32 %v7805, %v8047
  %v8049 = vand.u32 %v8048, 4294901760
  %v8050 = vsub.f32 %v8048, %v8049
  %v8051 = vand.u32 %v8050, 4294901760
  %8052 = vmatpush1.msra.mxu0 %v8051
  %8053 = vmatprep.subr.mxu0 0.0
  %v8054 = vand.u32 %v7807, 4294901760
  %v8055 = vsub.f32 %v7807, %v8054
  %v8056 = vand.u32 %v8055, 4294901760
  %v8057 = vsub.f32 %v8055, %v8056
  %v8058 = vand.u32 %v8057, 4294901760
  %8059 = vmatpush1.msra.mxu0 %v8058
  %8060 = vmatprep.subr.mxu0 0.0
  %v8061 = vand.u32 %v7809, 4294901760
  %v8062 = vsub.f32 %v7809, %v8061
  %v8063 = vand.u32 %v8062, 4294901760
  %v8064 = vsub.f32 %v8062, %v8063
  %v8065 = vand.u32 %v8064, 4294901760
  %8066 = vmatpush1.msra.mxu0 %v8065
  %8067 = vmatprep.subr.mxu0 0.0
  %8068 = vmatpush1.msra.mxu0 0.0
  %8069 = vmatprep.subr.mxu0 0.0
  %8070 = vmatpush1.msra.mxu0 0.0
  %8071 = vmatprep.subr.mxu0 0.0
  %8072 = vmatpush1.msra.mxu0 0.0
  %8073 = vmatprep.subr.mxu0 0.0
  %8074 = vmatpush1.msra.mxu0 0.0
  %8075 = vmatprep.subr.mxu0 0.0
  %8076 = vmatpush1.msra.mxu0 0.0
  %8077 = vmatprep.subr.mxu0 0.0
  %8078 = vmatpush1.msra.mxu0 0.0
  %8079 = vmatprep.subr.mxu0 0.0
  %8080 = vmatpush1.msra.mxu0 0.0
  %8081 = vmatprep.subr.mxu0 0.0
  %8082 = vmatpush1.msra.mxu0 0.0
  %8083 = vmatprep.subr.mxu0 0.0
  %8084 = vmatpush1.msra.mxu0 0.0
  %8085 = vmatprep.subr.mxu0 0.0
  %8086 = vmatpush1.msra.mxu0 0.0
  %8087 = vmatprep.subr.mxu0 0.0
  %8088 = vmatpush1.msra.mxu0 0.0
  %8089 = vmatprep.subr.mxu0 0.0
  %8090 = vmatpush1.msra.mxu0 0.0
  %8091 = vmatprep.subr.mxu0 0.0
  %8092 = vmatpush1.msra.mxu0 0.0
  %8093 = vmatprep.subr.mxu0 0.0
  %8094 = vmatpush1.msra.mxu0 0.0
  %v8095 = vand.u32 %v3924, 4294901760
  %8096 = vmatprep.mubr.f32.mxu0 %v8095
  %v8097 = vand.u32 %v3641, 4294901760
  %8098 = vmatmul.mubr.f32.gmra.mrb[0].mxu0 %v8097
  %v8099 = vpop.f32.mrb[0].mxu0
  %v8100 = vadd.f32 %v7923, %v8099
  %v8101 = vpop.f32.mrb[0].mxu0
  %v8102 = vand.u32 %v3927, 4294901760
  %8103 = vmatprep.mubr.f32.mxu0 %v8102
  %v8104 = vand.u32 %v3643, 4294901760
  %8105 = vmatmul.mubr.f32.gmra.mrb[0].mxu0 %v8104
  %v8106 = vpop.f32.mrb[0].mxu0
  %v8107 = vadd.f32 %v7938, %v8106
  %v8108 = vpop.f32.mrb[0].mxu0
  %8109 = vdwg.mxu0
  %8110 = vmatprep.subr.mxu0 0.0
  %v8111 = vand.u32 %v7775, 4294901760
  %v8112 = vsub.f32 %v7775, %v8111
  %8113 = vmatpush1.msra.mxu0 %v8112
  %8114 = vmatprep.subr.mxu0 0.0
  %v8115 = vand.u32 %v7777, 4294901760
  %v8116 = vsub.f32 %v7777, %v8115
  %8117 = vmatpush1.msra.mxu0 %v8116
  %8118 = vmatprep.subr.mxu0 0.0
  %v8119 = vand.u32 %v7779, 4294901760
  %v8120 = vsub.f32 %v7779, %v8119
  %8121 = vmatpush1.msra.mxu0 %v8120
  %8122 = vmatprep.subr.mxu0 0.0
  %v8123 = vand.u32 %v7781, 4294901760
  %v8124 = vsub.f32 %v7781, %v8123
  %8125 = vmatpush1.msra.mxu0 %v8124
  %8126 = vmatprep.subr.mxu0 0.0
  %v8127 = vand.u32 %v7783, 4294901760
  %v8128 = vsub.f32 %v7783, %v8127
  %8129 = vmatpush1.msra.mxu0 %v8128
  %8130 = vmatprep.subr.mxu0 0.0
  %v8131 = vand.u32 %v7785, 4294901760
  %v8132 = vsub.f32 %v7785, %v8131
  %8133 = vmatpush1.msra.mxu0 %v8132
  %8134 = vmatprep.subr.mxu0 0.0
  %v8135 = vand.u32 %v7787, 4294901760
  %v8136 = vsub.f32 %v7787, %v8135
  %8137 = vmatpush1.msra.mxu0 %v8136
  %8138 = vmatprep.subr.mxu0 0.0
  %v8139 = vand.u32 %v7789, 4294901760
  %v8140 = vsub.f32 %v7789, %v8139
  %8141 = vmatpush1.msra.mxu0 %v8140
  %8142 = vmatprep.subr.mxu0 0.0
  %v8143 = vand.u32 %v7791, 4294901760
  %v8144 = vsub.f32 %v7791, %v8143
  %8145 = vmatpush1.msra.mxu0 %v8144
  %8146 = vmatprep.subr.mxu0 0.0
  %v8147 = vand.u32 %v7793, 4294901760
  %v8148 = vsub.f32 %v7793, %v8147
  %8149 = vmatpush1.msra.mxu0 %v8148
  %8150 = vmatprep.subr.mxu0 0.0
  %v8151 = vand.u32 %v7795, 4294901760
  %v8152 = vsub.f32 %v7795, %v8151
  %8153 = vmatpush1.msra.mxu0 %v8152
  %8154 = vmatprep.subr.mxu0 0.0
  %v8155 = vand.u32 %v7797, 4294901760
  %v8156 = vsub.f32 %v7797, %v8155
  %8157 = vmatpush1.msra.mxu0 %v8156
  %8158 = vmatprep.subr.mxu0 0.0
  %v8159 = vand.u32 %v7799, 4294901760
  %v8160 = vsub.f32 %v7799, %v8159
  %8161 = vmatpush1.msra.mxu0 %v8160
  %8162 = vmatprep.subr.mxu0 0.0
  %v8163 = vand.u32 %v7801, 4294901760
  %v8164 = vsub.f32 %v7801, %v8163
  %8165 = vmatpush1.msra.mxu0 %v8164
  %8166 = vmatprep.subr.mxu0 0.0
  %v8167 = vand.u32 %v7803, 4294901760
  %v8168 = vsub.f32 %v7803, %v8167
  %8169 = vmatpush1.msra.mxu0 %v8168
  %8170 = vmatprep.subr.mxu0 0.0
  %v8171 = vand.u32 %v7805, 4294901760
  %v8172 = vsub.f32 %v7805, %v8171
  %8173 = vmatpush1.msra.mxu0 %v8172
  %8174 = vmatprep.subr.mxu0 0.0
  %v8175 = vand.u32 %v7807, 4294901760
  %v8176 = vsub.f32 %v7807, %v8175
  %8177 = vmatpush1.msra.mxu0 %v8176
  %8178 = vmatprep.subr.mxu0 0.0
  %v8179 = vand.u32 %v7809, 4294901760
  %v8180 = vsub.f32 %v7809, %v8179
  %8181 = vmatpush1.msra.mxu0 %v8180
  %8182 = vmatprep.subr.mxu0 0.0
  %8183 = vmatpush1.msra.mxu0 0.0
  %8184 = vmatprep.subr.mxu0 0.0
  %8185 = vmatpush1.msra.mxu0 0.0
  %8186 = vmatprep.subr.mxu0 0.0
  %8187 = vmatpush1.msra.mxu0 0.0
  %8188 = vmatprep.subr.mxu0 0.0
  %8189 = vmatpush1.msra.mxu0 0.0
  %8190 = vmatprep.subr.mxu0 0.0
  %8191 = vmatpush1.msra.mxu0 0.0
  %8192 = vmatprep.subr.mxu0 0.0
  %8193 = vmatpush1.msra.mxu0 0.0
  %8194 = vmatprep.subr.mxu0 0.0
  %8195 = vmatpush1.msra.mxu0 0.0
  %8196 = vmatprep.subr.mxu0 0.0
  %8197 = vmatpush1.msra.mxu0 0.0
  %8198 = vmatprep.subr.mxu0 0.0
  %8199 = vmatpush1.msra.mxu0 0.0
  %8200 = vmatprep.subr.mxu0 0.0
  %8201 = vmatpush1.msra.mxu0 0.0
  %8202 = vmatprep.subr.mxu0 0.0
  %8203 = vmatpush1.msra.mxu0 0.0
  %8204 = vmatprep.subr.mxu0 0.0
  %8205 = vmatpush1.msra.mxu0 0.0
  %8206 = vmatprep.subr.mxu0 0.0
  %8207 = vmatpush1.msra.mxu0 0.0
  %8208 = vmatprep.subr.mxu0 0.0
  %8209 = vmatpush1.msra.mxu0 0.0
  %v8210 = vand.u32 %v3924, 4294901760
  %v8211 = vsub.f32 %v3924, %v8210
  %8212 = vmatprep.mubr.f32.mxu0 %v8211
  %v8213 = vand.u32 %v3641, 4294901760
  %v8214 = vsub.f32 %v3641, %v8213
  %8215 = vmatmul.mubr.f32.gmra.mrb[0].mxu0 %v8214
  %v8216 = vpop.f32.mrb[0].mxu0
  %v8217 = vadd.f32 %v8100, %v8216
  %v8218 = vpop.f32.mrb[0].mxu0
  %v8219 = vand.u32 %v3927, 4294901760
  %v8220 = vsub.f32 %v3927, %v8219
  %8221 = vmatprep.mubr.f32.mxu0 %v8220
  %v8222 = vand.u32 %v3643, 4294901760
  %v8223 = vsub.f32 %v3643, %v8222
  %8224 = vmatmul.mubr.f32.gmra.mrb[0].mxu0 %v8223
  %v8225 = vpop.f32.mrb[0].mxu0
  %v8226 = vadd.f32 %v8107, %v8225
  %v8227 = vpop.f32.mrb[0].mxu0
  %8228 = vdwg.mxu0
  %8229 = vmatprep.subr.mxu0 0.0
  %v8230 = vand.u32 %v7775, 4294901760
  %8231 = vmatpush1.msra.mxu0 %v8230
  %8232 = vmatprep.subr.mxu0 0.0
  %v8233 = vand.u32 %v7777, 4294901760
  %8234 = vmatpush1.msra.mxu0 %v8233
  %8235 = vmatprep.subr.mxu0 0.0
  %v8236 = vand.u32 %v7779, 4294901760
  %8237 = vmatpush1.msra.mxu0 %v8236
  %8238 = vmatprep.subr.mxu0 0.0
  %v8239 = vand.u32 %v7781, 4294901760
  %8240 = vmatpush1.msra.mxu0 %v8239
  %8241 = vmatprep.subr.mxu0 0.0
  %v8242 = vand.u32 %v7783, 4294901760
  %8243 = vmatpush1.msra.mxu0 %v8242
  %8244 = vmatprep.subr.mxu0 0.0
  %v8245 = vand.u32 %v7785, 4294901760
  %8246 = vmatpush1.msra.mxu0 %v8245
  %8247 = vmatprep.subr.mxu0 0.0
  %v8248 = vand.u32 %v7787, 4294901760
  %8249 = vmatpush1.msra.mxu0 %v8248
  %8250 = vmatprep.subr.mxu0 0.0
  %v8251 = vand.u32 %v7789, 4294901760
  %8252 = vmatpush1.msra.mxu0 %v8251
  %8253 = vmatprep.subr.mxu0 0.0
  %v8254 = vand.u32 %v7791, 4294901760
  %8255 = vmatpush1.msra.mxu0 %v8254
  %8256 = vmatprep.subr.mxu0 0.0
  %v8257 = vand.u32 %v7793, 4294901760
  %8258 = vmatpush1.msra.mxu0 %v8257
  %8259 = vmatprep.subr.mxu0 0.0
  %v8260 = vand.u32 %v7795, 4294901760
  %8261 = vmatpush1.msra.mxu0 %v8260
  %8262 = vmatprep.subr.mxu0 0.0
  %v8263 = vand.u32 %v7797, 4294901760
  %8264 = vmatpush1.msra.mxu0 %v8263
  %8265 = vmatprep.subr.mxu0 0.0
  %v8266 = vand.u32 %v7799, 4294901760
  %8267 = vmatpush1.msra.mxu0 %v8266
  %8268 = vmatprep.subr.mxu0 0.0
  %v8269 = vand.u32 %v7801, 4294901760
  %8270 = vmatpush1.msra.mxu0 %v8269
  %8271 = vmatprep.subr.mxu0 0.0
  %v8272 = vand.u32 %v7803, 4294901760
  %8273 = vmatpush1.msra.mxu0 %v8272
  %8274 = vmatprep.subr.mxu0 0.0
  %v8275 = vand.u32 %v7805, 4294901760
  %8276 = vmatpush1.msra.mxu0 %v8275
  %8277 = vmatprep.subr.mxu0 0.0
  %v8278 = vand.u32 %v7807, 4294901760
  %8279 = vmatpush1.msra.mxu0 %v8278
  %8280 = vmatprep.subr.mxu0 0.0
  %v8281 = vand.u32 %v7809, 4294901760
  %8282 = vmatpush1.msra.mxu0 %v8281
  %8283 = vmatprep.subr.mxu0 0.0
  %8284 = vmatpush1.msra.mxu0 0.0
  %8285 = vmatprep.subr.mxu0 0.0
  %8286 = vmatpush1.msra.mxu0 0.0
  %8287 = vmatprep.subr.mxu0 0.0
  %8288 = vmatpush1.msra.mxu0 0.0
  %8289 = vmatprep.subr.mxu0 0.0
  %8290 = vmatpush1.msra.mxu0 0.0
  %8291 = vmatprep.subr.mxu0 0.0
  %8292 = vmatpush1.msra.mxu0 0.0
  %8293 = vmatprep.subr.mxu0 0.0
  %8294 = vmatpush1.msra.mxu0 0.0
  %8295 = vmatprep.subr.mxu0 0.0
  %8296 = vmatpush1.msra.mxu0 0.0
  %8297 = vmatprep.subr.mxu0 0.0
  %8298 = vmatpush1.msra.mxu0 0.0
  %8299 = vmatprep.subr.mxu0 0.0
  %8300 = vmatpush1.msra.mxu0 0.0
  %8301 = vmatprep.subr.mxu0 0.0
  %8302 = vmatpush1.msra.mxu0 0.0
  %8303 = vmatprep.subr.mxu0 0.0
  %8304 = vmatpush1.msra.mxu0 0.0
  %8305 = vmatprep.subr.mxu0 0.0
  %8306 = vmatpush1.msra.mxu0 0.0
  %8307 = vmatprep.subr.mxu0 0.0
  %8308 = vmatpush1.msra.mxu0 0.0
  %8309 = vmatprep.subr.mxu0 0.0
  %8310 = vmatpush1.msra.mxu0 0.0
  %v8311 = vand.u32 %v3924, 4294901760
  %v8312 = vsub.f32 %v3924, %v8311
  %v8313 = vand.u32 %v8312, 4294901760
  %8314 = vmatprep.mubr.f32.mxu0 %v8313
  %v8315 = vand.u32 %v3641, 4294901760
  %v8316 = vsub.f32 %v3641, %v8315
  %v8317 = vand.u32 %v8316, 4294901760
  %8318 = vmatmul.mubr.f32.gmra.mrb[0].mxu0 %v8317
  %v8319 = vpop.f32.mrb[0].mxu0
  %v8320 = vadd.f32 %v8217, %v8319
  %v8321 = vpop.f32.mrb[0].mxu0
  %v8322 = vand.u32 %v3927, 4294901760
  %v8323 = vsub.f32 %v3927, %v8322
  %v8324 = vand.u32 %v8323, 4294901760
  %8325 = vmatprep.mubr.f32.mxu0 %v8324
  %v8326 = vand.u32 %v3643, 4294901760
  %v8327 = vsub.f32 %v3643, %v8326
  %v8328 = vand.u32 %v8327, 4294901760
  %8329 = vmatmul.mubr.f32.gmra.mrb[0].mxu0 %v8328
  %v8330 = vpop.f32.mrb[0].mxu0
  %v8331 = vadd.f32 %v8226, %v8330
  %v8332 = vpop.f32.mrb[0].mxu0
  %8333 = vdwg.mxu0
  %8334 = vmatprep.subr.mxu0 0.0
  %v8335 = vand.u32 %v7775, 4294901760
  %v8336 = vsub.f32 %v7775, %v8335
  %v8337 = vand.u32 %v8336, 4294901760
  %8338 = vmatpush1.msra.mxu0 %v8337
  %8339 = vmatprep.subr.mxu0 0.0
  %v8340 = vand.u32 %v7777, 4294901760
  %v8341 = vsub.f32 %v7777, %v8340
  %v8342 = vand.u32 %v8341, 4294901760
  %8343 = vmatpush1.msra.mxu0 %v8342
  %8344 = vmatprep.subr.mxu0 0.0
  %v8345 = vand.u32 %v7779, 4294901760
  %v8346 = vsub.f32 %v7779, %v8345
  %v8347 = vand.u32 %v8346, 4294901760
  %8348 = vmatpush1.msra.mxu0 %v8347
  %8349 = vmatprep.subr.mxu0 0.0
  %v8350 = vand.u32 %v7781, 4294901760
  %v8351 = vsub.f32 %v7781, %v8350
  %v8352 = vand.u32 %v8351, 4294901760
  %8353 = vmatpush1.msra.mxu0 %v8352
  %8354 = vmatprep.subr.mxu0 0.0
  %v8355 = vand.u32 %v7783, 4294901760
  %v8356 = vsub.f32 %v7783, %v8355
  %v8357 = vand.u32 %v8356, 4294901760
  %8358 = vmatpush1.msra.mxu0 %v8357
  %8359 = vmatprep.subr.mxu0 0.0
  %v8360 = vand.u32 %v7785, 4294901760
  %v8361 = vsub.f32 %v7785, %v8360
  %v8362 = vand.u32 %v8361, 4294901760
  %8363 = vmatpush1.msra.mxu0 %v8362
  %8364 = vmatprep.subr.mxu0 0.0
  %v8365 = vand.u32 %v7787, 4294901760
  %v8366 = vsub.f32 %v7787, %v8365
  %v8367 = vand.u32 %v8366, 4294901760
  %8368 = vmatpush1.msra.mxu0 %v8367
  %8369 = vmatprep.subr.mxu0 0.0
  %v8370 = vand.u32 %v7789, 4294901760
  %v8371 = vsub.f32 %v7789, %v8370
  %v8372 = vand.u32 %v8371, 4294901760
  %8373 = vmatpush1.msra.mxu0 %v8372
  %8374 = vmatprep.subr.mxu0 0.0
  %v8375 = vand.u32 %v7791, 4294901760
  %v8376 = vsub.f32 %v7791, %v8375
  %v8377 = vand.u32 %v8376, 4294901760
  %8378 = vmatpush1.msra.mxu0 %v8377
  %8379 = vmatprep.subr.mxu0 0.0
  %v8380 = vand.u32 %v7793, 4294901760
  %v8381 = vsub.f32 %v7793, %v8380
  %v8382 = vand.u32 %v8381, 4294901760
  %8383 = vmatpush1.msra.mxu0 %v8382
  %8384 = vmatprep.subr.mxu0 0.0
  %v8385 = vand.u32 %v7795, 4294901760
  %v8386 = vsub.f32 %v7795, %v8385
  %v8387 = vand.u32 %v8386, 4294901760
  %8388 = vmatpush1.msra.mxu0 %v8387
  %8389 = vmatprep.subr.mxu0 0.0
  %v8390 = vand.u32 %v7797, 4294901760
  %v8391 = vsub.f32 %v7797, %v8390
  %v8392 = vand.u32 %v8391, 4294901760
  %8393 = vmatpush1.msra.mxu0 %v8392
  %8394 = vmatprep.subr.mxu0 0.0
  %v8395 = vand.u32 %v7799, 4294901760
  %v8396 = vsub.f32 %v7799, %v8395
  %v8397 = vand.u32 %v8396, 4294901760
  %8398 = vmatpush1.msra.mxu0 %v8397
  %8399 = vmatprep.subr.mxu0 0.0
  %v8400 = vand.u32 %v7801, 4294901760
  %v8401 = vsub.f32 %v7801, %v8400
  %v8402 = vand.u32 %v8401, 4294901760
  %8403 = vmatpush1.msra.mxu0 %v8402
  %8404 = vmatprep.subr.mxu0 0.0
  %v8405 = vand.u32 %v7803, 4294901760
  %v8406 = vsub.f32 %v7803, %v8405
  %v8407 = vand.u32 %v8406, 4294901760
  %8408 = vmatpush1.msra.mxu0 %v8407
  %8409 = vmatprep.subr.mxu0 0.0
  %v8410 = vand.u32 %v7805, 4294901760
  %v8411 = vsub.f32 %v7805, %v8410
  %v8412 = vand.u32 %v8411, 4294901760
  %8413 = vmatpush1.msra.mxu0 %v8412
  %8414 = vmatprep.subr.mxu0 0.0
  %v8415 = vand.u32 %v7807, 4294901760
  %v8416 = vsub.f32 %v7807, %v8415
  %v8417 = vand.u32 %v8416, 4294901760
  %8418 = vmatpush1.msra.mxu0 %v8417
  %8419 = vmatprep.subr.mxu0 0.0
  %v8420 = vand.u32 %v7809, 4294901760
  %v8421 = vsub.f32 %v7809, %v8420
  %v8422 = vand.u32 %v8421, 4294901760
  %8423 = vmatpush1.msra.mxu0 %v8422
  %8424 = vmatprep.subr.mxu0 0.0
  %8425 = vmatpush1.msra.mxu0 0.0
  %8426 = vmatprep.subr.mxu0 0.0
  %8427 = vmatpush1.msra.mxu0 0.0
  %8428 = vmatprep.subr.mxu0 0.0
  %8429 = vmatpush1.msra.mxu0 0.0
  %8430 = vmatprep.subr.mxu0 0.0
  %8431 = vmatpush1.msra.mxu0 0.0
  %8432 = vmatprep.subr.mxu0 0.0
  %8433 = vmatpush1.msra.mxu0 0.0
  %8434 = vmatprep.subr.mxu0 0.0
  %8435 = vmatpush1.msra.mxu0 0.0
  %8436 = vmatprep.subr.mxu0 0.0
  %8437 = vmatpush1.msra.mxu0 0.0
  %8438 = vmatprep.subr.mxu0 0.0
  %8439 = vmatpush1.msra.mxu0 0.0
  %8440 = vmatprep.subr.mxu0 0.0
  %8441 = vmatpush1.msra.mxu0 0.0
  %8442 = vmatprep.subr.mxu0 0.0
  %8443 = vmatpush1.msra.mxu0 0.0
  %8444 = vmatprep.subr.mxu0 0.0
  %8445 = vmatpush1.msra.mxu0 0.0
  %8446 = vmatprep.subr.mxu0 0.0
  %8447 = vmatpush1.msra.mxu0 0.0
  %8448 = vmatprep.subr.mxu0 0.0
  %8449 = vmatpush1.msra.mxu0 0.0
  %8450 = vmatprep.subr.mxu0 0.0
  %8451 = vmatpush1.msra.mxu0 0.0
  %v8452 = vand.u32 %v3924, 4294901760
  %8453 = vmatprep.mubr.f32.mxu0 %v8452
  %v8454 = vand.u32 %v3641, 4294901760
  %8455 = vmatmul.mubr.f32.gmra.mrb[0].mxu0 %v8454
  %v8456 = vpop.f32.mrb[0].mxu0
  %v8457 = vadd.f32 %v8320, %v8456
  %v8458 = vpop.f32.mrb[0].mxu0
  %v8459 = vand.u32 %v3927, 4294901760
  %8460 = vmatprep.mubr.f32.mxu0 %v8459
  %v8461 = vand.u32 %v3643, 4294901760
  %8462 = vmatmul.mubr.f32.gmra.mrb[0].mxu0 %v8461
  %v8463 = vpop.f32.mrb[0].mxu0
  %v8464 = vadd.f32 %v8331, %v8463
  %v8465 = vpop.f32.mrb[0].mxu0
  %8466 = vdwg.mxu0
  %8467 = vmatprep.subr.mxu0 0.0
  %v8468 = vand.u32 %v7775, 4294901760
  %8469 = vmatpush1.msra.mxu0 %v8468
  %8470 = vmatprep.subr.mxu0 0.0
  %v8471 = vand.u32 %v7777, 4294901760
  %8472 = vmatpush1.msra.mxu0 %v8471
  %8473 = vmatprep.subr.mxu0 0.0
  %v8474 = vand.u32 %v7779, 4294901760
  %8475 = vmatpush1.msra.mxu0 %v8474
  %8476 = vmatprep.subr.mxu0 0.0
  %v8477 = vand.u32 %v7781, 4294901760
  %8478 = vmatpush1.msra.mxu0 %v8477
  %8479 = vmatprep.subr.mxu0 0.0
  %v8480 = vand.u32 %v7783, 4294901760
  %8481 = vmatpush1.msra.mxu0 %v8480
  %8482 = vmatprep.subr.mxu0 0.0
  %v8483 = vand.u32 %v7785, 4294901760
  %8484 = vmatpush1.msra.mxu0 %v8483
  %8485 = vmatprep.subr.mxu0 0.0
  %v8486 = vand.u32 %v7787, 4294901760
  %8487 = vmatpush1.msra.mxu0 %v8486
  %8488 = vmatprep.subr.mxu0 0.0
  %v8489 = vand.u32 %v7789, 4294901760
  %8490 = vmatpush1.msra.mxu0 %v8489
  %8491 = vmatprep.subr.mxu0 0.0
  %v8492 = vand.u32 %v7791, 4294901760
  %8493 = vmatpush1.msra.mxu0 %v8492
  %8494 = vmatprep.subr.mxu0 0.0
  %v8495 = vand.u32 %v7793, 4294901760
  %8496 = vmatpush1.msra.mxu0 %v8495
  %8497 = vmatprep.subr.mxu0 0.0
  %v8498 = vand.u32 %v7795, 4294901760
  %8499 = vmatpush1.msra.mxu0 %v8498
  %8500 = vmatprep.subr.mxu0 0.0
  %v8501 = vand.u32 %v7797, 4294901760
  %8502 = vmatpush1.msra.mxu0 %v8501
  %8503 = vmatprep.subr.mxu0 0.0
  %v8504 = vand.u32 %v7799, 4294901760
  %8505 = vmatpush1.msra.mxu0 %v8504
  %8506 = vmatprep.subr.mxu0 0.0
  %v8507 = vand.u32 %v7801, 4294901760
  %8508 = vmatpush1.msra.mxu0 %v8507
  %8509 = vmatprep.subr.mxu0 0.0
  %v8510 = vand.u32 %v7803, 4294901760
  %8511 = vmatpush1.msra.mxu0 %v8510
  %8512 = vmatprep.subr.mxu0 0.0
  %v8513 = vand.u32 %v7805, 4294901760
  %8514 = vmatpush1.msra.mxu0 %v8513
  %8515 = vmatprep.subr.mxu0 0.0
  %v8516 = vand.u32 %v7807, 4294901760
  %8517 = vmatpush1.msra.mxu0 %v8516
  %8518 = vmatprep.subr.mxu0 0.0
  %v8519 = vand.u32 %v7809, 4294901760
  %8520 = vmatpush1.msra.mxu0 %v8519
  %8521 = vmatprep.subr.mxu0 0.0
  %8522 = vmatpush1.msra.mxu0 0.0
  %8523 = vmatprep.subr.mxu0 0.0
  %8524 = vmatpush1.msra.mxu0 0.0
  %8525 = vmatprep.subr.mxu0 0.0
  %8526 = vmatpush1.msra.mxu0 0.0
  %8527 = vmatprep.subr.mxu0 0.0
  %8528 = vmatpush1.msra.mxu0 0.0
  %8529 = vmatprep.subr.mxu0 0.0
  %8530 = vmatpush1.msra.mxu0 0.0
  %8531 = vmatprep.subr.mxu0 0.0
  %8532 = vmatpush1.msra.mxu0 0.0
  %8533 = vmatprep.subr.mxu0 0.0
  %8534 = vmatpush1.msra.mxu0 0.0
  %8535 = vmatprep.subr.mxu0 0.0
  %8536 = vmatpush1.msra.mxu0 0.0
  %8537 = vmatprep.subr.mxu0 0.0
  %8538 = vmatpush1.msra.mxu0 0.0
  %8539 = vmatprep.subr.mxu0 0.0
  %8540 = vmatpush1.msra.mxu0 0.0
  %8541 = vmatprep.subr.mxu0 0.0
  %8542 = vmatpush1.msra.mxu0 0.0
  %8543 = vmatprep.subr.mxu0 0.0
  %8544 = vmatpush1.msra.mxu0 0.0
  %8545 = vmatprep.subr.mxu0 0.0
  %8546 = vmatpush1.msra.mxu0 0.0
  %8547 = vmatprep.subr.mxu0 0.0
  %8548 = vmatpush1.msra.mxu0 0.0
  %v8549 = vand.u32 %v3924, 4294901760
  %8550 = vmatprep.mubr.f32.mxu0 %v8549
  %v8551 = vand.u32 %v3641, 4294901760
  %8552 = vmatmul.mubr.f32.gmra.mrb[0].mxu0 %v8551
  %v8553 = vpop.f32.mrb[0].mxu0
  %v8554 = vadd.f32 %v8457, %v8553
  %v8555 = vpop.f32.mrb[0].mxu0
  %v8556 = vand.u32 %v3927, 4294901760
  %8557 = vmatprep.mubr.f32.mxu0 %v8556
  %v8558 = vand.u32 %v3643, 4294901760
  %8559 = vmatmul.mubr.f32.gmra.mrb[0].mxu0 %v8558
  %v8560 = vpop.f32.mrb[0].mxu0
  %v8561 = vadd.f32 %v8464, %v8560
  %v8562 = vpop.f32.mrb[0].mxu0
  %8563 = vdwg.mxu0
  %v8564 = vmax.f32 %v8554, 1e-30
  %v8565 = vmax.f32 %v8561, 1e-30
  %v8566 = vrcp.pop %v8564
  %v8567 = vmul.f32 1.0, %v8566
  %v8568 = vrcp.pop %v8565
  %v8569 = vmul.f32 1.0, %v8568
  %8570 = vset.pattern.permute.xlu0 24
  %8571 = vperm.xlu0 %8570, %v7738
  %v8572 = vpop.permute.xlu0 %8571
  %8574 = vset.pattern.permute.xlu0 24
  %8575 = vperm.xlu0 %8574, %v7739
  %v8576 = vpop.permute.xlu0 %8575
  %8578 = vset.pattern.permute.xlu0 24
  %8579 = vperm.xlu0 %8578, %v7740
  %v8580 = vpop.permute.xlu0 %8579
  %8582 = vset.pattern.permute.xlu0 24
  %8583 = vperm.xlu0 %8582, %v7741
  %v8584 = vpop.permute.xlu0 %8583
  %8586 = vset.pattern.permute.xlu0 24
  %8587 = vperm.xlu0 %8586, %v7742
  %v8588 = vpop.permute.xlu0 %8587
  %8590 = vset.pattern.permute.xlu0 24
  %8591 = vperm.xlu0 %8590, %v7743
  %v8592 = vpop.permute.xlu0 %8591
  %8594 = vset.pattern.permute.xlu0 24
  %8595 = vperm.xlu0 %8594, %v7744
  %v8596 = vpop.permute.xlu0 %8595
  %8598 = vset.pattern.permute.xlu0 24
  %8599 = vperm.xlu0 %8598, %v7745
  %v8600 = vpop.permute.xlu0 %8599
  %8602 = vset.pattern.permute.xlu0 24
  %8603 = vperm.xlu0 %8602, %v7746
  %v8604 = vpop.permute.xlu0 %8603
  %8606 = vset.pattern.permute.xlu0 24
  %8607 = vperm.xlu0 %8606, %v7747
  %v8608 = vpop.permute.xlu0 %8607
  %8610 = vset.pattern.permute.xlu0 24
  %8611 = vperm.xlu0 %8610, %v7748
  %v8612 = vpop.permute.xlu0 %8611
  %8614 = vset.pattern.permute.xlu0 24
  %8615 = vperm.xlu0 %8614, %v7749
  %v8616 = vpop.permute.xlu0 %8615
  %8618 = vset.pattern.permute.xlu0 24
  %8619 = vperm.xlu0 %8618, %v7750
  %v8620 = vpop.permute.xlu0 %8619
  %8622 = vset.pattern.permute.xlu0 24
  %8623 = vperm.xlu0 %8622, %v7751
  %v8624 = vpop.permute.xlu0 %8623
  %8626 = vset.pattern.permute.xlu0 24
  %8627 = vperm.xlu0 %8626, %v7752
  %v8628 = vpop.permute.xlu0 %8627
  %8630 = vset.pattern.permute.xlu0 24
  %8631 = vperm.xlu0 %8630, %v7753
  %v8632 = vpop.permute.xlu0 %8631
  %8634 = vset.pattern.permute.xlu0 24
  %8635 = vperm.xlu0 %8634, %v7754
  %v8636 = vpop.permute.xlu0 %8635
  %8638 = vset.pattern.permute.xlu0 24
  %8639 = vperm.xlu0 %8638, %v7755
  %v8640 = vpop.permute.xlu0 %8639
  %v8642 = vmul.f32 %v8572, %v2195
  %v8643 = vmul.f32 %v8576, %v2201
  %v8644 = vmul.f32 %v8580, %v2207
  %v8645 = vmul.f32 %v8584, %v2213
  %v8646 = vmul.f32 %v8588, %v2219
  %v8647 = vmul.f32 %v8592, %v2225
  %v8648 = vmul.f32 %v8596, %v2231
  %v8649 = vmul.f32 %v8600, %v2237
  %v8650 = vmul.f32 %v8604, %v2243
  %v8651 = vmul.f32 %v8608, %v2249
  %v8652 = vmul.f32 %v8612, %v2255
  %v8653 = vmul.f32 %v8616, %v2261
  %v8654 = vmul.f32 %v8620, %v2267
  %v8655 = vmul.f32 %v8624, %v2273
  %v8656 = vmul.f32 %v8628, %v2279
  %v8657 = vmul.f32 %v8632, %v2285
  %v8658 = vmul.f32 %v8636, %v2291
  %v8659 = vmul.f32 %v8640, %v2297
  %8678 = vrot.lane.b32.xlu0 %v8642, 124
  %v8679 = vpop.permute.xlu0 %8678
  %8680 = vrot.lane.b32.xlu0 %v8643, 124
  %v8681 = vpop.permute.xlu0 %8680
  %8682 = vrot.lane.b32.xlu0 %v8644, 124
  %v8683 = vpop.permute.xlu0 %8682
  %8684 = vrot.lane.b32.xlu0 %v8645, 124
  %v8685 = vpop.permute.xlu0 %8684
  %8686 = vrot.lane.b32.xlu0 %v8646, 124
  %v8687 = vpop.permute.xlu0 %8686
  %8688 = vrot.lane.b32.xlu0 %v8647, 124
  %v8689 = vpop.permute.xlu0 %8688
  %8690 = vrot.lane.b32.xlu0 %v8648, 124
  %v8691 = vpop.permute.xlu0 %8690
  %8692 = vrot.lane.b32.xlu0 %v8649, 124
  %v8693 = vpop.permute.xlu0 %8692
  %8694 = vrot.lane.b32.xlu0 %v8650, 124
  %v8695 = vpop.permute.xlu0 %8694
  %8696 = vrot.lane.b32.xlu0 %v8651, 124
  %v8697 = vpop.permute.xlu0 %8696
  %8698 = vrot.lane.b32.xlu0 %v8652, 124
  %v8699 = vpop.permute.xlu0 %8698
  %8700 = vrot.lane.b32.xlu0 %v8653, 124
  %v8701 = vpop.permute.xlu0 %8700
  %8702 = vrot.lane.b32.xlu0 %v8654, 124
  %v8703 = vpop.permute.xlu0 %8702
  %8704 = vrot.lane.b32.xlu0 %v8655, 124
  %v8705 = vpop.permute.xlu0 %8704
  %8706 = vrot.lane.b32.xlu0 %v8656, 124
  %v8707 = vpop.permute.xlu0 %8706
  %8708 = vrot.lane.b32.xlu0 %v8657, 124
  %v8709 = vpop.permute.xlu0 %8708
  %8710 = vrot.lane.b32.xlu0 %v8658, 124
  %v8711 = vpop.permute.xlu0 %8710
  %8712 = vrot.lane.b32.xlu0 %v8659, 124
  %v8713 = vpop.permute.xlu0 %8712
  %8732 = vmatprep.subr.mxu0 0.0
  %v8733 = vand.u32 %v8679, 4294901760
  %8734 = vmatpush1.msra.mxu0 %v8733
  %8735 = vmatprep.subr.mxu0 0.0
  %v8736 = vand.u32 %v8681, 4294901760
  %8737 = vmatpush1.msra.mxu0 %v8736
  %8738 = vmatprep.subr.mxu0 0.0
  %v8739 = vand.u32 %v8683, 4294901760
  %8740 = vmatpush1.msra.mxu0 %v8739
  %8741 = vmatprep.subr.mxu0 0.0
  %v8742 = vand.u32 %v8685, 4294901760
  %8743 = vmatpush1.msra.mxu0 %v8742
  %8744 = vmatprep.subr.mxu0 0.0
  %v8745 = vand.u32 %v8687, 4294901760
  %8746 = vmatpush1.msra.mxu0 %v8745
  %8747 = vmatprep.subr.mxu0 0.0
  %v8748 = vand.u32 %v8689, 4294901760
  %8749 = vmatpush1.msra.mxu0 %v8748
  %8750 = vmatprep.subr.mxu0 0.0
  %v8751 = vand.u32 %v8691, 4294901760
  %8752 = vmatpush1.msra.mxu0 %v8751
  %8753 = vmatprep.subr.mxu0 0.0
  %v8754 = vand.u32 %v8693, 4294901760
  %8755 = vmatpush1.msra.mxu0 %v8754
  %8756 = vmatprep.subr.mxu0 0.0
  %v8757 = vand.u32 %v8695, 4294901760
  %8758 = vmatpush1.msra.mxu0 %v8757
  %8759 = vmatprep.subr.mxu0 0.0
  %v8760 = vand.u32 %v8697, 4294901760
  %8761 = vmatpush1.msra.mxu0 %v8760
  %8762 = vmatprep.subr.mxu0 0.0
  %v8763 = vand.u32 %v8699, 4294901760
  %8764 = vmatpush1.msra.mxu0 %v8763
  %8765 = vmatprep.subr.mxu0 0.0
  %v8766 = vand.u32 %v8701, 4294901760
  %8767 = vmatpush1.msra.mxu0 %v8766
  %8768 = vmatprep.subr.mxu0 0.0
  %v8769 = vand.u32 %v8703, 4294901760
  %8770 = vmatpush1.msra.mxu0 %v8769
  %8771 = vmatprep.subr.mxu0 0.0
  %v8772 = vand.u32 %v8705, 4294901760
  %8773 = vmatpush1.msra.mxu0 %v8772
  %8774 = vmatprep.subr.mxu0 0.0
  %v8775 = vand.u32 %v8707, 4294901760
  %8776 = vmatpush1.msra.mxu0 %v8775
  %8777 = vmatprep.subr.mxu0 0.0
  %v8778 = vand.u32 %v8709, 4294901760
  %8779 = vmatpush1.msra.mxu0 %v8778
  %8780 = vmatprep.subr.mxu0 0.0
  %v8781 = vand.u32 %v8711, 4294901760
  %8782 = vmatpush1.msra.mxu0 %v8781
  %8783 = vmatprep.subr.mxu0 0.0
  %v8784 = vand.u32 %v8713, 4294901760
  %8785 = vmatpush1.msra.mxu0 %v8784
  %8786 = vmatprep.subr.mxu0 0.0
  %8787 = vmatpush1.msra.mxu0 0.0
  %8788 = vmatprep.subr.mxu0 0.0
  %8789 = vmatpush1.msra.mxu0 0.0
  %8790 = vmatprep.subr.mxu0 0.0
  %8791 = vmatpush1.msra.mxu0 0.0
  %8792 = vmatprep.subr.mxu0 0.0
  %8793 = vmatpush1.msra.mxu0 0.0
  %8794 = vmatprep.subr.mxu0 0.0
  %8795 = vmatpush1.msra.mxu0 0.0
  %8796 = vmatprep.subr.mxu0 0.0
  %8797 = vmatpush1.msra.mxu0 0.0
  %8798 = vmatprep.subr.mxu0 0.0
  %8799 = vmatpush1.msra.mxu0 0.0
  %8800 = vmatprep.subr.mxu0 0.0
  %8801 = vmatpush1.msra.mxu0 0.0
  %8802 = vmatprep.subr.mxu0 0.0
  %8803 = vmatpush1.msra.mxu0 0.0
  %8804 = vmatprep.subr.mxu0 0.0
  %8805 = vmatpush1.msra.mxu0 0.0
  %8806 = vmatprep.subr.mxu0 0.0
  %8807 = vmatpush1.msra.mxu0 0.0
  %8808 = vmatprep.subr.mxu0 0.0
  %8809 = vmatpush1.msra.mxu0 0.0
  %8810 = vmatprep.subr.mxu0 0.0
  %8811 = vmatpush1.msra.mxu0 0.0
  %8812 = vmatprep.subr.mxu0 0.0
  %8813 = vmatpush1.msra.mxu0 0.0
  %v8814 = vand.u32 %v3924, 4294901760
  %v8815 = vsub.f32 %v3924, %v8814
  %v8816 = vand.u32 %v8815, 4294901760
  %v8817 = vsub.f32 %v8815, %v8816
  %v8818 = vand.u32 %v8817, 4294901760
  %8819 = vmatprep.mubr.f32.mxu0 %v8818
  %v8820 = vand.u32 %v3641, 4294901760
  %v8821 = vsub.f32 %v3641, %v8820
  %v8822 = vand.u32 %v8821, 4294901760
  %v8823 = vsub.f32 %v8821, %v8822
  %v8824 = vand.u32 %v8823, 4294901760
  %8825 = vmatmul.mubr.f32.gmra.mrb[0].mxu0 %v8824
  %v8826 = vpop.f32.mrb[0].mxu0
  %v8827 = vadd.f32 0.0, %v8826
  %v8828 = vpop.f32.mrb[0].mxu0
  %v8829 = vand.u32 %v3927, 4294901760
  %v8830 = vsub.f32 %v3927, %v8829
  %v8831 = vand.u32 %v8830, 4294901760
  %v8832 = vsub.f32 %v8830, %v8831
  %v8833 = vand.u32 %v8832, 4294901760
  %8834 = vmatprep.mubr.f32.mxu0 %v8833
  %v8835 = vand.u32 %v3643, 4294901760
  %v8836 = vsub.f32 %v3643, %v8835
  %v8837 = vand.u32 %v8836, 4294901760
  %v8838 = vsub.f32 %v8836, %v8837
  %v8839 = vand.u32 %v8838, 4294901760
  %8840 = vmatmul.mubr.f32.gmra.mrb[0].mxu0 %v8839
  %v8841 = vpop.f32.mrb[0].mxu0
  %v8842 = vadd.f32 0.0, %v8841
  %v8843 = vpop.f32.mrb[0].mxu0
  %8844 = vdwg.mxu0
  %8845 = vmatprep.subr.mxu0 0.0
  %v8846 = vand.u32 %v8679, 4294901760
  %v8847 = vsub.f32 %v8679, %v8846
  %v8848 = vand.u32 %v8847, 4294901760
  %v8849 = vsub.f32 %v8847, %v8848
  %v8850 = vand.u32 %v8849, 4294901760
  %8851 = vmatpush1.msra.mxu0 %v8850
  %8852 = vmatprep.subr.mxu0 0.0
  %v8853 = vand.u32 %v8681, 4294901760
  %v8854 = vsub.f32 %v8681, %v8853
  %v8855 = vand.u32 %v8854, 4294901760
  %v8856 = vsub.f32 %v8854, %v8855
  %v8857 = vand.u32 %v8856, 4294901760
  %8858 = vmatpush1.msra.mxu0 %v8857
  %8859 = vmatprep.subr.mxu0 0.0
  %v8860 = vand.u32 %v8683, 4294901760
  %v8861 = vsub.f32 %v8683, %v8860
  %v8862 = vand.u32 %v8861, 4294901760
  %v8863 = vsub.f32 %v8861, %v8862
  %v8864 = vand.u32 %v8863, 4294901760
  %8865 = vmatpush1.msra.mxu0 %v8864
  %8866 = vmatprep.subr.mxu0 0.0
  %v8867 = vand.u32 %v8685, 4294901760
  %v8868 = vsub.f32 %v8685, %v8867
  %v8869 = vand.u32 %v8868, 4294901760
  %v8870 = vsub.f32 %v8868, %v8869
  %v8871 = vand.u32 %v8870, 4294901760
  %8872 = vmatpush1.msra.mxu0 %v8871
  %8873 = vmatprep.subr.mxu0 0.0
  %v8874 = vand.u32 %v8687, 4294901760
  %v8875 = vsub.f32 %v8687, %v8874
  %v8876 = vand.u32 %v8875, 4294901760
  %v8877 = vsub.f32 %v8875, %v8876
  %v8878 = vand.u32 %v8877, 4294901760
  %8879 = vmatpush1.msra.mxu0 %v8878
  %8880 = vmatprep.subr.mxu0 0.0
  %v8881 = vand.u32 %v8689, 4294901760
  %v8882 = vsub.f32 %v8689, %v8881
  %v8883 = vand.u32 %v8882, 4294901760
  %v8884 = vsub.f32 %v8882, %v8883
  %v8885 = vand.u32 %v8884, 4294901760
  %8886 = vmatpush1.msra.mxu0 %v8885
  %8887 = vmatprep.subr.mxu0 0.0
  %v8888 = vand.u32 %v8691, 4294901760
  %v8889 = vsub.f32 %v8691, %v8888
  %v8890 = vand.u32 %v8889, 4294901760
  %v8891 = vsub.f32 %v8889, %v8890
  %v8892 = vand.u32 %v8891, 4294901760
  %8893 = vmatpush1.msra.mxu0 %v8892
  %8894 = vmatprep.subr.mxu0 0.0
  %v8895 = vand.u32 %v8693, 4294901760
  %v8896 = vsub.f32 %v8693, %v8895
  %v8897 = vand.u32 %v8896, 4294901760
  %v8898 = vsub.f32 %v8896, %v8897
  %v8899 = vand.u32 %v8898, 4294901760
  %8900 = vmatpush1.msra.mxu0 %v8899
  %8901 = vmatprep.subr.mxu0 0.0
  %v8902 = vand.u32 %v8695, 4294901760
  %v8903 = vsub.f32 %v8695, %v8902
  %v8904 = vand.u32 %v8903, 4294901760
  %v8905 = vsub.f32 %v8903, %v8904
  %v8906 = vand.u32 %v8905, 4294901760
  %8907 = vmatpush1.msra.mxu0 %v8906
  %8908 = vmatprep.subr.mxu0 0.0
  %v8909 = vand.u32 %v8697, 4294901760
  %v8910 = vsub.f32 %v8697, %v8909
  %v8911 = vand.u32 %v8910, 4294901760
  %v8912 = vsub.f32 %v8910, %v8911
  %v8913 = vand.u32 %v8912, 4294901760
  %8914 = vmatpush1.msra.mxu0 %v8913
  %8915 = vmatprep.subr.mxu0 0.0
  %v8916 = vand.u32 %v8699, 4294901760
  %v8917 = vsub.f32 %v8699, %v8916
  %v8918 = vand.u32 %v8917, 4294901760
  %v8919 = vsub.f32 %v8917, %v8918
  %v8920 = vand.u32 %v8919, 4294901760
  %8921 = vmatpush1.msra.mxu0 %v8920
  %8922 = vmatprep.subr.mxu0 0.0
  %v8923 = vand.u32 %v8701, 4294901760
  %v8924 = vsub.f32 %v8701, %v8923
  %v8925 = vand.u32 %v8924, 4294901760
  %v8926 = vsub.f32 %v8924, %v8925
  %v8927 = vand.u32 %v8926, 4294901760
  %8928 = vmatpush1.msra.mxu0 %v8927
  %8929 = vmatprep.subr.mxu0 0.0
  %v8930 = vand.u32 %v8703, 4294901760
  %v8931 = vsub.f32 %v8703, %v8930
  %v8932 = vand.u32 %v8931, 4294901760
  %v8933 = vsub.f32 %v8931, %v8932
  %v8934 = vand.u32 %v8933, 4294901760
  %8935 = vmatpush1.msra.mxu0 %v8934
  %8936 = vmatprep.subr.mxu0 0.0
  %v8937 = vand.u32 %v8705, 4294901760
  %v8938 = vsub.f32 %v8705, %v8937
  %v8939 = vand.u32 %v8938, 4294901760
  %v8940 = vsub.f32 %v8938, %v8939
  %v8941 = vand.u32 %v8940, 4294901760
  %8942 = vmatpush1.msra.mxu0 %v8941
  %8943 = vmatprep.subr.mxu0 0.0
  %v8944 = vand.u32 %v8707, 4294901760
  %v8945 = vsub.f32 %v8707, %v8944
  %v8946 = vand.u32 %v8945, 4294901760
  %v8947 = vsub.f32 %v8945, %v8946
  %v8948 = vand.u32 %v8947, 4294901760
  %8949 = vmatpush1.msra.mxu0 %v8948
  %8950 = vmatprep.subr.mxu0 0.0
  %v8951 = vand.u32 %v8709, 4294901760
  %v8952 = vsub.f32 %v8709, %v8951
  %v8953 = vand.u32 %v8952, 4294901760
  %v8954 = vsub.f32 %v8952, %v8953
  %v8955 = vand.u32 %v8954, 4294901760
  %8956 = vmatpush1.msra.mxu0 %v8955
  %8957 = vmatprep.subr.mxu0 0.0
  %v8958 = vand.u32 %v8711, 4294901760
  %v8959 = vsub.f32 %v8711, %v8958
  %v8960 = vand.u32 %v8959, 4294901760
  %v8961 = vsub.f32 %v8959, %v8960
  %v8962 = vand.u32 %v8961, 4294901760
  %8963 = vmatpush1.msra.mxu0 %v8962
  %8964 = vmatprep.subr.mxu0 0.0
  %v8965 = vand.u32 %v8713, 4294901760
  %v8966 = vsub.f32 %v8713, %v8965
  %v8967 = vand.u32 %v8966, 4294901760
  %v8968 = vsub.f32 %v8966, %v8967
  %v8969 = vand.u32 %v8968, 4294901760
  %8970 = vmatpush1.msra.mxu0 %v8969
  %8971 = vmatprep.subr.mxu0 0.0
  %8972 = vmatpush1.msra.mxu0 0.0
  %8973 = vmatprep.subr.mxu0 0.0
  %8974 = vmatpush1.msra.mxu0 0.0
  %8975 = vmatprep.subr.mxu0 0.0
  %8976 = vmatpush1.msra.mxu0 0.0
  %8977 = vmatprep.subr.mxu0 0.0
  %8978 = vmatpush1.msra.mxu0 0.0
  %8979 = vmatprep.subr.mxu0 0.0
  %8980 = vmatpush1.msra.mxu0 0.0
  %8981 = vmatprep.subr.mxu0 0.0
  %8982 = vmatpush1.msra.mxu0 0.0
  %8983 = vmatprep.subr.mxu0 0.0
  %8984 = vmatpush1.msra.mxu0 0.0
  %8985 = vmatprep.subr.mxu0 0.0
  %8986 = vmatpush1.msra.mxu0 0.0
  %8987 = vmatprep.subr.mxu0 0.0
  %8988 = vmatpush1.msra.mxu0 0.0
  %8989 = vmatprep.subr.mxu0 0.0
  %8990 = vmatpush1.msra.mxu0 0.0
  %8991 = vmatprep.subr.mxu0 0.0
  %8992 = vmatpush1.msra.mxu0 0.0
  %8993 = vmatprep.subr.mxu0 0.0
  %8994 = vmatpush1.msra.mxu0 0.0
  %8995 = vmatprep.subr.mxu0 0.0
  %8996 = vmatpush1.msra.mxu0 0.0
  %8997 = vmatprep.subr.mxu0 0.0
  %8998 = vmatpush1.msra.mxu0 0.0
  %v8999 = vand.u32 %v3924, 4294901760
  %9000 = vmatprep.mubr.f32.mxu0 %v8999
  %v9001 = vand.u32 %v3641, 4294901760
  %9002 = vmatmul.mubr.f32.gmra.mrb[0].mxu0 %v9001
  %v9003 = vpop.f32.mrb[0].mxu0
  %v9004 = vadd.f32 %v8827, %v9003
  %v9005 = vpop.f32.mrb[0].mxu0
  %v9006 = vand.u32 %v3927, 4294901760
  %9007 = vmatprep.mubr.f32.mxu0 %v9006
  %v9008 = vand.u32 %v3643, 4294901760
  %9009 = vmatmul.mubr.f32.gmra.mrb[0].mxu0 %v9008
  %v9010 = vpop.f32.mrb[0].mxu0
  %v9011 = vadd.f32 %v8842, %v9010
  %v9012 = vpop.f32.mrb[0].mxu0
  %9013 = vdwg.mxu0
  %9014 = vmatprep.subr.mxu0 0.0
  %v9015 = vand.u32 %v8679, 4294901760
  %v9016 = vsub.f32 %v8679, %v9015
  %9017 = vmatpush1.msra.mxu0 %v9016
  %9018 = vmatprep.subr.mxu0 0.0
  %v9019 = vand.u32 %v8681, 4294901760
  %v9020 = vsub.f32 %v8681, %v9019
  %9021 = vmatpush1.msra.mxu0 %v9020
  %9022 = vmatprep.subr.mxu0 0.0
  %v9023 = vand.u32 %v8683, 4294901760
  %v9024 = vsub.f32 %v8683, %v9023
  %9025 = vmatpush1.msra.mxu0 %v9024
  %9026 = vmatprep.subr.mxu0 0.0
  %v9027 = vand.u32 %v8685, 4294901760
  %v9028 = vsub.f32 %v8685, %v9027
  %9029 = vmatpush1.msra.mxu0 %v9028
  %9030 = vmatprep.subr.mxu0 0.0
  %v9031 = vand.u32 %v8687, 4294901760
  %v9032 = vsub.f32 %v8687, %v9031
  %9033 = vmatpush1.msra.mxu0 %v9032
  %9034 = vmatprep.subr.mxu0 0.0
  %v9035 = vand.u32 %v8689, 4294901760
  %v9036 = vsub.f32 %v8689, %v9035
  %9037 = vmatpush1.msra.mxu0 %v9036
  %9038 = vmatprep.subr.mxu0 0.0
  %v9039 = vand.u32 %v8691, 4294901760
  %v9040 = vsub.f32 %v8691, %v9039
  %9041 = vmatpush1.msra.mxu0 %v9040
  %9042 = vmatprep.subr.mxu0 0.0
  %v9043 = vand.u32 %v8693, 4294901760
  %v9044 = vsub.f32 %v8693, %v9043
  %9045 = vmatpush1.msra.mxu0 %v9044
  %9046 = vmatprep.subr.mxu0 0.0
  %v9047 = vand.u32 %v8695, 4294901760
  %v9048 = vsub.f32 %v8695, %v9047
  %9049 = vmatpush1.msra.mxu0 %v9048
  %9050 = vmatprep.subr.mxu0 0.0
  %v9051 = vand.u32 %v8697, 4294901760
  %v9052 = vsub.f32 %v8697, %v9051
  %9053 = vmatpush1.msra.mxu0 %v9052
  %9054 = vmatprep.subr.mxu0 0.0
  %v9055 = vand.u32 %v8699, 4294901760
  %v9056 = vsub.f32 %v8699, %v9055
  %9057 = vmatpush1.msra.mxu0 %v9056
  %9058 = vmatprep.subr.mxu0 0.0
  %v9059 = vand.u32 %v8701, 4294901760
  %v9060 = vsub.f32 %v8701, %v9059
  %9061 = vmatpush1.msra.mxu0 %v9060
  %9062 = vmatprep.subr.mxu0 0.0
  %v9063 = vand.u32 %v8703, 4294901760
  %v9064 = vsub.f32 %v8703, %v9063
  %9065 = vmatpush1.msra.mxu0 %v9064
  %9066 = vmatprep.subr.mxu0 0.0
  %v9067 = vand.u32 %v8705, 4294901760
  %v9068 = vsub.f32 %v8705, %v9067
  %9069 = vmatpush1.msra.mxu0 %v9068
  %9070 = vmatprep.subr.mxu0 0.0
  %v9071 = vand.u32 %v8707, 4294901760
  %v9072 = vsub.f32 %v8707, %v9071
  %9073 = vmatpush1.msra.mxu0 %v9072
  %9074 = vmatprep.subr.mxu0 0.0
  %v9075 = vand.u32 %v8709, 4294901760
  %v9076 = vsub.f32 %v8709, %v9075
  %9077 = vmatpush1.msra.mxu0 %v9076
  %9078 = vmatprep.subr.mxu0 0.0
  %v9079 = vand.u32 %v8711, 4294901760
  %v9080 = vsub.f32 %v8711, %v9079
  %9081 = vmatpush1.msra.mxu0 %v9080
  %9082 = vmatprep.subr.mxu0 0.0
  %v9083 = vand.u32 %v8713, 4294901760
  %v9084 = vsub.f32 %v8713, %v9083
  %9085 = vmatpush1.msra.mxu0 %v9084
  %9086 = vmatprep.subr.mxu0 0.0
  %9087 = vmatpush1.msra.mxu0 0.0
  %9088 = vmatprep.subr.mxu0 0.0
  %9089 = vmatpush1.msra.mxu0 0.0
  %9090 = vmatprep.subr.mxu0 0.0
  %9091 = vmatpush1.msra.mxu0 0.0
  %9092 = vmatprep.subr.mxu0 0.0
  %9093 = vmatpush1.msra.mxu0 0.0
  %9094 = vmatprep.subr.mxu0 0.0
  %9095 = vmatpush1.msra.mxu0 0.0
  %9096 = vmatprep.subr.mxu0 0.0
  %9097 = vmatpush1.msra.mxu0 0.0
  %9098 = vmatprep.subr.mxu0 0.0
  %9099 = vmatpush1.msra.mxu0 0.0
  %9100 = vmatprep.subr.mxu0 0.0
  %9101 = vmatpush1.msra.mxu0 0.0
  %9102 = vmatprep.subr.mxu0 0.0
  %9103 = vmatpush1.msra.mxu0 0.0
  %9104 = vmatprep.subr.mxu0 0.0
  %9105 = vmatpush1.msra.mxu0 0.0
  %9106 = vmatprep.subr.mxu0 0.0
  %9107 = vmatpush1.msra.mxu0 0.0
  %9108 = vmatprep.subr.mxu0 0.0
  %9109 = vmatpush1.msra.mxu0 0.0
  %9110 = vmatprep.subr.mxu0 0.0
  %9111 = vmatpush1.msra.mxu0 0.0
  %9112 = vmatprep.subr.mxu0 0.0
  %9113 = vmatpush1.msra.mxu0 0.0
  %v9114 = vand.u32 %v3924, 4294901760
  %v9115 = vsub.f32 %v3924, %v9114
  %9116 = vmatprep.mubr.f32.mxu0 %v9115
  %v9117 = vand.u32 %v3641, 4294901760
  %v9118 = vsub.f32 %v3641, %v9117
  %9119 = vmatmul.mubr.f32.gmra.mrb[0].mxu0 %v9118
  %v9120 = vpop.f32.mrb[0].mxu0
  %v9121 = vadd.f32 %v9004, %v9120
  %v9122 = vpop.f32.mrb[0].mxu0
  %v9123 = vand.u32 %v3927, 4294901760
  %v9124 = vsub.f32 %v3927, %v9123
  %9125 = vmatprep.mubr.f32.mxu0 %v9124
  %v9126 = vand.u32 %v3643, 4294901760
  %v9127 = vsub.f32 %v3643, %v9126
  %9128 = vmatmul.mubr.f32.gmra.mrb[0].mxu0 %v9127
  %v9129 = vpop.f32.mrb[0].mxu0
  %v9130 = vadd.f32 %v9011, %v9129
  %v9131 = vpop.f32.mrb[0].mxu0
  %9132 = vdwg.mxu0
  %9133 = vmatprep.subr.mxu0 0.0
  %v9134 = vand.u32 %v8679, 4294901760
  %9135 = vmatpush1.msra.mxu0 %v9134
  %9136 = vmatprep.subr.mxu0 0.0
  %v9137 = vand.u32 %v8681, 4294901760
  %9138 = vmatpush1.msra.mxu0 %v9137
  %9139 = vmatprep.subr.mxu0 0.0
  %v9140 = vand.u32 %v8683, 4294901760
  %9141 = vmatpush1.msra.mxu0 %v9140
  %9142 = vmatprep.subr.mxu0 0.0
  %v9143 = vand.u32 %v8685, 4294901760
  %9144 = vmatpush1.msra.mxu0 %v9143
  %9145 = vmatprep.subr.mxu0 0.0
  %v9146 = vand.u32 %v8687, 4294901760
  %9147 = vmatpush1.msra.mxu0 %v9146
  %9148 = vmatprep.subr.mxu0 0.0
  %v9149 = vand.u32 %v8689, 4294901760
  %9150 = vmatpush1.msra.mxu0 %v9149
  %9151 = vmatprep.subr.mxu0 0.0
  %v9152 = vand.u32 %v8691, 4294901760
  %9153 = vmatpush1.msra.mxu0 %v9152
  %9154 = vmatprep.subr.mxu0 0.0
  %v9155 = vand.u32 %v8693, 4294901760
  %9156 = vmatpush1.msra.mxu0 %v9155
  %9157 = vmatprep.subr.mxu0 0.0
  %v9158 = vand.u32 %v8695, 4294901760
  %9159 = vmatpush1.msra.mxu0 %v9158
  %9160 = vmatprep.subr.mxu0 0.0
  %v9161 = vand.u32 %v8697, 4294901760
  %9162 = vmatpush1.msra.mxu0 %v9161
  %9163 = vmatprep.subr.mxu0 0.0
  %v9164 = vand.u32 %v8699, 4294901760
  %9165 = vmatpush1.msra.mxu0 %v9164
  %9166 = vmatprep.subr.mxu0 0.0
  %v9167 = vand.u32 %v8701, 4294901760
  %9168 = vmatpush1.msra.mxu0 %v9167
  %9169 = vmatprep.subr.mxu0 0.0
  %v9170 = vand.u32 %v8703, 4294901760
  %9171 = vmatpush1.msra.mxu0 %v9170
  %9172 = vmatprep.subr.mxu0 0.0
  %v9173 = vand.u32 %v8705, 4294901760
  %9174 = vmatpush1.msra.mxu0 %v9173
  %9175 = vmatprep.subr.mxu0 0.0
  %v9176 = vand.u32 %v8707, 4294901760
  %9177 = vmatpush1.msra.mxu0 %v9176
  %9178 = vmatprep.subr.mxu0 0.0
  %v9179 = vand.u32 %v8709, 4294901760
  %9180 = vmatpush1.msra.mxu0 %v9179
  %9181 = vmatprep.subr.mxu0 0.0
  %v9182 = vand.u32 %v8711, 4294901760
  %9183 = vmatpush1.msra.mxu0 %v9182
  %9184 = vmatprep.subr.mxu0 0.0
  %v9185 = vand.u32 %v8713, 4294901760
  %9186 = vmatpush1.msra.mxu0 %v9185
  %9187 = vmatprep.subr.mxu0 0.0
  %9188 = vmatpush1.msra.mxu0 0.0
  %9189 = vmatprep.subr.mxu0 0.0
  %9190 = vmatpush1.msra.mxu0 0.0
  %9191 = vmatprep.subr.mxu0 0.0
  %9192 = vmatpush1.msra.mxu0 0.0
  %9193 = vmatprep.subr.mxu0 0.0
  %9194 = vmatpush1.msra.mxu0 0.0
  %9195 = vmatprep.subr.mxu0 0.0
  %9196 = vmatpush1.msra.mxu0 0.0
  %9197 = vmatprep.subr.mxu0 0.0
  %9198 = vmatpush1.msra.mxu0 0.0
  %9199 = vmatprep.subr.mxu0 0.0
  %9200 = vmatpush1.msra.mxu0 0.0
  %9201 = vmatprep.subr.mxu0 0.0
  %9202 = vmatpush1.msra.mxu0 0.0
  %9203 = vmatprep.subr.mxu0 0.0
  %9204 = vmatpush1.msra.mxu0 0.0
  %9205 = vmatprep.subr.mxu0 0.0
  %9206 = vmatpush1.msra.mxu0 0.0
  %9207 = vmatprep.subr.mxu0 0.0
  %9208 = vmatpush1.msra.mxu0 0.0
  %9209 = vmatprep.subr.mxu0 0.0
  %9210 = vmatpush1.msra.mxu0 0.0
  %9211 = vmatprep.subr.mxu0 0.0
  %9212 = vmatpush1.msra.mxu0 0.0
  %9213 = vmatprep.subr.mxu0 0.0
  %9214 = vmatpush1.msra.mxu0 0.0
  %v9215 = vand.u32 %v3924, 4294901760
  %v9216 = vsub.f32 %v3924, %v9215
  %v9217 = vand.u32 %v9216, 4294901760
  %9218 = vmatprep.mubr.f32.mxu0 %v9217
  %v9219 = vand.u32 %v3641, 4294901760
  %v9220 = vsub.f32 %v3641, %v9219
  %v9221 = vand.u32 %v9220, 4294901760
  %9222 = vmatmul.mubr.f32.gmra.mrb[0].mxu0 %v9221
  %v9223 = vpop.f32.mrb[0].mxu0
  %v9224 = vadd.f32 %v9121, %v9223
  %v9225 = vpop.f32.mrb[0].mxu0
  %v9226 = vand.u32 %v3927, 4294901760
  %v9227 = vsub.f32 %v3927, %v9226
  %v9228 = vand.u32 %v9227, 4294901760
  %9229 = vmatprep.mubr.f32.mxu0 %v9228
  %v9230 = vand.u32 %v3643, 4294901760
  %v9231 = vsub.f32 %v3643, %v9230
  %v9232 = vand.u32 %v9231, 4294901760
  %9233 = vmatmul.mubr.f32.gmra.mrb[0].mxu0 %v9232
  %v9234 = vpop.f32.mrb[0].mxu0
  %v9235 = vadd.f32 %v9130, %v9234
  %v9236 = vpop.f32.mrb[0].mxu0
  %9237 = vdwg.mxu0
  %9238 = vmatprep.subr.mxu0 0.0
  %v9239 = vand.u32 %v8679, 4294901760
  %v9240 = vsub.f32 %v8679, %v9239
  %v9241 = vand.u32 %v9240, 4294901760
  %9242 = vmatpush1.msra.mxu0 %v9241
  %9243 = vmatprep.subr.mxu0 0.0
  %v9244 = vand.u32 %v8681, 4294901760
  %v9245 = vsub.f32 %v8681, %v9244
  %v9246 = vand.u32 %v9245, 4294901760
  %9247 = vmatpush1.msra.mxu0 %v9246
  %9248 = vmatprep.subr.mxu0 0.0
  %v9249 = vand.u32 %v8683, 4294901760
  %v9250 = vsub.f32 %v8683, %v9249
  %v9251 = vand.u32 %v9250, 4294901760
  %9252 = vmatpush1.msra.mxu0 %v9251
  %9253 = vmatprep.subr.mxu0 0.0
  %v9254 = vand.u32 %v8685, 4294901760
  %v9255 = vsub.f32 %v8685, %v9254
  %v9256 = vand.u32 %v9255, 4294901760
  %9257 = vmatpush1.msra.mxu0 %v9256
  %9258 = vmatprep.subr.mxu0 0.0
  %v9259 = vand.u32 %v8687, 4294901760
  %v9260 = vsub.f32 %v8687, %v9259
  %v9261 = vand.u32 %v9260, 4294901760
  %9262 = vmatpush1.msra.mxu0 %v9261
  %9263 = vmatprep.subr.mxu0 0.0
  %v9264 = vand.u32 %v8689, 4294901760
  %v9265 = vsub.f32 %v8689, %v9264
  %v9266 = vand.u32 %v9265, 4294901760
  %9267 = vmatpush1.msra.mxu0 %v9266
  %9268 = vmatprep.subr.mxu0 0.0
  %v9269 = vand.u32 %v8691, 4294901760
  %v9270 = vsub.f32 %v8691, %v9269
  %v9271 = vand.u32 %v9270, 4294901760
  %9272 = vmatpush1.msra.mxu0 %v9271
  %9273 = vmatprep.subr.mxu0 0.0
  %v9274 = vand.u32 %v8693, 4294901760
  %v9275 = vsub.f32 %v8693, %v9274
  %v9276 = vand.u32 %v9275, 4294901760
  %9277 = vmatpush1.msra.mxu0 %v9276
  %9278 = vmatprep.subr.mxu0 0.0
  %v9279 = vand.u32 %v8695, 4294901760
  %v9280 = vsub.f32 %v8695, %v9279
  %v9281 = vand.u32 %v9280, 4294901760
  %9282 = vmatpush1.msra.mxu0 %v9281
  %9283 = vmatprep.subr.mxu0 0.0
  %v9284 = vand.u32 %v8697, 4294901760
  %v9285 = vsub.f32 %v8697, %v9284
  %v9286 = vand.u32 %v9285, 4294901760
  %9287 = vmatpush1.msra.mxu0 %v9286
  %9288 = vmatprep.subr.mxu0 0.0
  %v9289 = vand.u32 %v8699, 4294901760
  %v9290 = vsub.f32 %v8699, %v9289
  %v9291 = vand.u32 %v9290, 4294901760
  %9292 = vmatpush1.msra.mxu0 %v9291
  %9293 = vmatprep.subr.mxu0 0.0
  %v9294 = vand.u32 %v8701, 4294901760
  %v9295 = vsub.f32 %v8701, %v9294
  %v9296 = vand.u32 %v9295, 4294901760
  %9297 = vmatpush1.msra.mxu0 %v9296
  %9298 = vmatprep.subr.mxu0 0.0
  %v9299 = vand.u32 %v8703, 4294901760
  %v9300 = vsub.f32 %v8703, %v9299
  %v9301 = vand.u32 %v9300, 4294901760
  %9302 = vmatpush1.msra.mxu0 %v9301
  %9303 = vmatprep.subr.mxu0 0.0
  %v9304 = vand.u32 %v8705, 4294901760
  %v9305 = vsub.f32 %v8705, %v9304
  %v9306 = vand.u32 %v9305, 4294901760
  %9307 = vmatpush1.msra.mxu0 %v9306
  %9308 = vmatprep.subr.mxu0 0.0
  %v9309 = vand.u32 %v8707, 4294901760
  %v9310 = vsub.f32 %v8707, %v9309
  %v9311 = vand.u32 %v9310, 4294901760
  %9312 = vmatpush1.msra.mxu0 %v9311
  %9313 = vmatprep.subr.mxu0 0.0
  %v9314 = vand.u32 %v8709, 4294901760
  %v9315 = vsub.f32 %v8709, %v9314
  %v9316 = vand.u32 %v9315, 4294901760
  %9317 = vmatpush1.msra.mxu0 %v9316
  %9318 = vmatprep.subr.mxu0 0.0
  %v9319 = vand.u32 %v8711, 4294901760
  %v9320 = vsub.f32 %v8711, %v9319
  %v9321 = vand.u32 %v9320, 4294901760
  %9322 = vmatpush1.msra.mxu0 %v9321
  %9323 = vmatprep.subr.mxu0 0.0
  %v9324 = vand.u32 %v8713, 4294901760
  %v9325 = vsub.f32 %v8713, %v9324
  %v9326 = vand.u32 %v9325, 4294901760
  %9327 = vmatpush1.msra.mxu0 %v9326
  %9328 = vmatprep.subr.mxu0 0.0
  %9329 = vmatpush1.msra.mxu0 0.0
  %9330 = vmatprep.subr.mxu0 0.0
  %9331 = vmatpush1.msra.mxu0 0.0
  %9332 = vmatprep.subr.mxu0 0.0
  %9333 = vmatpush1.msra.mxu0 0.0
  %9334 = vmatprep.subr.mxu0 0.0
  %9335 = vmatpush1.msra.mxu0 0.0
  %9336 = vmatprep.subr.mxu0 0.0
  %9337 = vmatpush1.msra.mxu0 0.0
  %9338 = vmatprep.subr.mxu0 0.0
  %9339 = vmatpush1.msra.mxu0 0.0
  %9340 = vmatprep.subr.mxu0 0.0
  %9341 = vmatpush1.msra.mxu0 0.0
  %9342 = vmatprep.subr.mxu0 0.0
  %9343 = vmatpush1.msra.mxu0 0.0
  %9344 = vmatprep.subr.mxu0 0.0
  %9345 = vmatpush1.msra.mxu0 0.0
  %9346 = vmatprep.subr.mxu0 0.0
  %9347 = vmatpush1.msra.mxu0 0.0
  %9348 = vmatprep.subr.mxu0 0.0
  %9349 = vmatpush1.msra.mxu0 0.0
  %9350 = vmatprep.subr.mxu0 0.0
  %9351 = vmatpush1.msra.mxu0 0.0
  %9352 = vmatprep.subr.mxu0 0.0
  %9353 = vmatpush1.msra.mxu0 0.0
  %9354 = vmatprep.subr.mxu0 0.0
  %9355 = vmatpush1.msra.mxu0 0.0
  %v9356 = vand.u32 %v3924, 4294901760
  %9357 = vmatprep.mubr.f32.mxu0 %v9356
  %v9358 = vand.u32 %v3641, 4294901760
  %9359 = vmatmul.mubr.f32.gmra.mrb[0].mxu0 %v9358
  %v9360 = vpop.f32.mrb[0].mxu0
  %v9361 = vadd.f32 %v9224, %v9360
  %v9362 = vpop.f32.mrb[0].mxu0
  %v9363 = vand.u32 %v3927, 4294901760
  %9364 = vmatprep.mubr.f32.mxu0 %v9363
  %v9365 = vand.u32 %v3643, 4294901760
  %9366 = vmatmul.mubr.f32.gmra.mrb[0].mxu0 %v9365
  %v9367 = vpop.f32.mrb[0].mxu0
  %v9368 = vadd.f32 %v9235, %v9367
  %v9369 = vpop.f32.mrb[0].mxu0
  %9370 = vdwg.mxu0
  %9371 = vmatprep.subr.mxu0 0.0
  %v9372 = vand.u32 %v8679, 4294901760
  %9373 = vmatpush1.msra.mxu0 %v9372
  %9374 = vmatprep.subr.mxu0 0.0
  %v9375 = vand.u32 %v8681, 4294901760
  %9376 = vmatpush1.msra.mxu0 %v9375
  %9377 = vmatprep.subr.mxu0 0.0
  %v9378 = vand.u32 %v8683, 4294901760
  %9379 = vmatpush1.msra.mxu0 %v9378
  %9380 = vmatprep.subr.mxu0 0.0
  %v9381 = vand.u32 %v8685, 4294901760
  %9382 = vmatpush1.msra.mxu0 %v9381
  %9383 = vmatprep.subr.mxu0 0.0
  %v9384 = vand.u32 %v8687, 4294901760
  %9385 = vmatpush1.msra.mxu0 %v9384
  %9386 = vmatprep.subr.mxu0 0.0
  %v9387 = vand.u32 %v8689, 4294901760
  %9388 = vmatpush1.msra.mxu0 %v9387
  %9389 = vmatprep.subr.mxu0 0.0
  %v9390 = vand.u32 %v8691, 4294901760
  %9391 = vmatpush1.msra.mxu0 %v9390
  %9392 = vmatprep.subr.mxu0 0.0
  %v9393 = vand.u32 %v8693, 4294901760
  %9394 = vmatpush1.msra.mxu0 %v9393
  %9395 = vmatprep.subr.mxu0 0.0
  %v9396 = vand.u32 %v8695, 4294901760
  %9397 = vmatpush1.msra.mxu0 %v9396
  %9398 = vmatprep.subr.mxu0 0.0
  %v9399 = vand.u32 %v8697, 4294901760
  %9400 = vmatpush1.msra.mxu0 %v9399
  %9401 = vmatprep.subr.mxu0 0.0
  %v9402 = vand.u32 %v8699, 4294901760
  %9403 = vmatpush1.msra.mxu0 %v9402
  %9404 = vmatprep.subr.mxu0 0.0
  %v9405 = vand.u32 %v8701, 4294901760
  %9406 = vmatpush1.msra.mxu0 %v9405
  %9407 = vmatprep.subr.mxu0 0.0
  %v9408 = vand.u32 %v8703, 4294901760
  %9409 = vmatpush1.msra.mxu0 %v9408
  %9410 = vmatprep.subr.mxu0 0.0
  %v9411 = vand.u32 %v8705, 4294901760
  %9412 = vmatpush1.msra.mxu0 %v9411
  %9413 = vmatprep.subr.mxu0 0.0
  %v9414 = vand.u32 %v8707, 4294901760
  %9415 = vmatpush1.msra.mxu0 %v9414
  %9416 = vmatprep.subr.mxu0 0.0
  %v9417 = vand.u32 %v8709, 4294901760
  %9418 = vmatpush1.msra.mxu0 %v9417
  %9419 = vmatprep.subr.mxu0 0.0
  %v9420 = vand.u32 %v8711, 4294901760
  %9421 = vmatpush1.msra.mxu0 %v9420
  %9422 = vmatprep.subr.mxu0 0.0
  %v9423 = vand.u32 %v8713, 4294901760
  %9424 = vmatpush1.msra.mxu0 %v9423
  %9425 = vmatprep.subr.mxu0 0.0
  %9426 = vmatpush1.msra.mxu0 0.0
  %9427 = vmatprep.subr.mxu0 0.0
  %9428 = vmatpush1.msra.mxu0 0.0
  %9429 = vmatprep.subr.mxu0 0.0
  %9430 = vmatpush1.msra.mxu0 0.0
  %9431 = vmatprep.subr.mxu0 0.0
  %9432 = vmatpush1.msra.mxu0 0.0
  %9433 = vmatprep.subr.mxu0 0.0
  %9434 = vmatpush1.msra.mxu0 0.0
  %9435 = vmatprep.subr.mxu0 0.0
  %9436 = vmatpush1.msra.mxu0 0.0
  %9437 = vmatprep.subr.mxu0 0.0
  %9438 = vmatpush1.msra.mxu0 0.0
  %9439 = vmatprep.subr.mxu0 0.0
  %9440 = vmatpush1.msra.mxu0 0.0
  %9441 = vmatprep.subr.mxu0 0.0
  %9442 = vmatpush1.msra.mxu0 0.0
  %9443 = vmatprep.subr.mxu0 0.0
  %9444 = vmatpush1.msra.mxu0 0.0
  %9445 = vmatprep.subr.mxu0 0.0
  %9446 = vmatpush1.msra.mxu0 0.0
  %9447 = vmatprep.subr.mxu0 0.0
  %9448 = vmatpush1.msra.mxu0 0.0
  %9449 = vmatprep.subr.mxu0 0.0
  %9450 = vmatpush1.msra.mxu0 0.0
  %9451 = vmatprep.subr.mxu0 0.0
  %9452 = vmatpush1.msra.mxu0 0.0
  %v9453 = vand.u32 %v3924, 4294901760
  %9454 = vmatprep.mubr.f32.mxu0 %v9453
  %v9455 = vand.u32 %v3641, 4294901760
  %9456 = vmatmul.mubr.f32.gmra.mrb[0].mxu0 %v9455
  %v9457 = vpop.f32.mrb[0].mxu0
  %v9458 = vadd.f32 %v9361, %v9457
  %v9459 = vpop.f32.mrb[0].mxu0
  %v9460 = vand.u32 %v3927, 4294901760
  %9461 = vmatprep.mubr.f32.mxu0 %v9460
  %v9462 = vand.u32 %v3643, 4294901760
  %9463 = vmatmul.mubr.f32.gmra.mrb[0].mxu0 %v9462
  %v9464 = vpop.f32.mrb[0].mxu0
  %v9465 = vadd.f32 %v9368, %v9464
  %v9466 = vpop.f32.mrb[0].mxu0
  %9467 = vdwg.mxu0
  %9469 = vset.pattern.permute.xlu0 0
  %9470 = vperm.xlu0 %9469, %v8567
  %v9471 = vpop.permute.xlu0 %9470
  %9474 = vset.pattern.permute.xlu0 0
  %9475 = vperm.xlu0 %9474, %v8569
  %v9476 = vpop.permute.xlu0 %9475
  %v9478 = vmul.f32 %v9458, %v9471
  %v9479 = vmul.f32 %v9465, %v9476
  %9480 = vrot.lane.b32.xlu0 %v5512, 124
  %v9481 = vpop.permute.xlu0 %9480
  %v9483 = vadd.f32 %v9478, %v9481
  %v9484 = vadd.f32 %v9479, %v9481
  %9487 = vrot.lane.b32.xlu0 %v9483, 4
  %v9488 = vpop.permute.xlu0 %9487
  %9489 = vrot.lane.b32.xlu0 %v9484, 4
  %v9490 = vpop.permute.xlu0 %9489
  %vm9493 = vcmask 48160
  %9494 = vst.msk [vmem:[%s5] sm:$0xff] %vm9493, %v9488
  %vm9495 = vcmask 44064
  %9496 = vst.msk [vmem:[%s5 + $0x8] sm:$0xf] %vm9495, %v9490
  %9497 = vrot.lane.b32.xlu0 %v3623, 122
  %v9498 = vpop.permute.xlu0 %9497
  %9499 = vrot.lane.b32.xlu0 %v3624, 122
  %v9500 = vpop.permute.xlu0 %9499
  %9501 = vrot.lane.b32.xlu0 %v3625, 122
  %v9502 = vpop.permute.xlu0 %9501
  %9503 = vrot.lane.b32.xlu0 %v3626, 122
  %v9504 = vpop.permute.xlu0 %9503
  %9505 = vrot.lane.b32.xlu0 %v3627, 122
  %v9506 = vpop.permute.xlu0 %9505
  %9507 = vrot.lane.b32.xlu0 %v3628, 122
  %v9508 = vpop.permute.xlu0 %9507
  %9509 = vrot.lane.b32.xlu0 %v3629, 122
  %v9510 = vpop.permute.xlu0 %9509
  %9511 = vrot.lane.b32.xlu0 %v3630, 122
  %v9512 = vpop.permute.xlu0 %9511
  %9513 = vrot.lane.b32.xlu0 %v3631, 122
  %v9514 = vpop.permute.xlu0 %9513
  %9515 = vrot.lane.b32.xlu0 %v3632, 122
  %v9516 = vpop.permute.xlu0 %9515
  %9517 = vrot.lane.b32.xlu0 %v3633, 122
  %v9518 = vpop.permute.xlu0 %9517
  %9519 = vrot.lane.b32.xlu0 %v3634, 122
  %v9520 = vpop.permute.xlu0 %9519
  %9521 = vrot.lane.b32.xlu0 %v3635, 122
  %v9522 = vpop.permute.xlu0 %9521
  %9523 = vrot.lane.b32.xlu0 %v3636, 122
  %v9524 = vpop.permute.xlu0 %9523
  %9525 = vrot.lane.b32.xlu0 %v3637, 122
  %v9526 = vpop.permute.xlu0 %9525
  %9527 = vrot.lane.b32.xlu0 %v3638, 122
  %v9528 = vpop.permute.xlu0 %9527
  %9529 = vrot.lane.b32.xlu0 %v3639, 122
  %v9530 = vpop.permute.xlu0 %9529
  %9531 = vrot.lane.b32.xlu0 %v3640, 122
  %v9532 = vpop.permute.xlu0 %9531
  %v9551 = vsel %vm3645, %v9498, 0.0
  %9552 = vadd.xlane.f32.xlu0 %v9551
  %v9553 = vpop.xlane.xlu0 %9552
  %v9554 = vsel %vm3645, %v9500, 0.0
  %9555 = vadd.xlane.f32.xlu0 %v9554
  %v9556 = vpop.xlane.xlu0 %9555
  %v9557 = vsel %vm3645, %v9502, 0.0
  %9558 = vadd.xlane.f32.xlu0 %v9557
  %v9559 = vpop.xlane.xlu0 %9558
  %v9560 = vsel %vm3645, %v9504, 0.0
  %9561 = vadd.xlane.f32.xlu0 %v9560
  %v9562 = vpop.xlane.xlu0 %9561
  %v9563 = vsel %vm3645, %v9506, 0.0
  %9564 = vadd.xlane.f32.xlu0 %v9563
  %v9565 = vpop.xlane.xlu0 %9564
  %v9566 = vsel %vm3645, %v9508, 0.0
  %9567 = vadd.xlane.f32.xlu0 %v9566
  %v9568 = vpop.xlane.xlu0 %9567
  %v9569 = vsel %vm3645, %v9510, 0.0
  %9570 = vadd.xlane.f32.xlu0 %v9569
  %v9571 = vpop.xlane.xlu0 %9570
  %v9572 = vsel %vm3645, %v9512, 0.0
  %9573 = vadd.xlane.f32.xlu0 %v9572
  %v9574 = vpop.xlane.xlu0 %9573
  %v9575 = vsel %vm3645, %v9514, 0.0
  %9576 = vadd.xlane.f32.xlu0 %v9575
  %v9577 = vpop.xlane.xlu0 %9576
  %v9578 = vsel %vm3645, %v9516, 0.0
  %9579 = vadd.xlane.f32.xlu0 %v9578
  %v9580 = vpop.xlane.xlu0 %9579
  %v9581 = vsel %vm3645, %v9518, 0.0
  %9582 = vadd.xlane.f32.xlu0 %v9581
  %v9583 = vpop.xlane.xlu0 %9582
  %v9584 = vsel %vm3645, %v9520, 0.0
  %9585 = vadd.xlane.f32.xlu0 %v9584
  %v9586 = vpop.xlane.xlu0 %9585
  %v9587 = vsel %vm3645, %v9522, 0.0
  %9588 = vadd.xlane.f32.xlu0 %v9587
  %v9589 = vpop.xlane.xlu0 %9588
  %v9590 = vsel %vm3645, %v9524, 0.0
  %9591 = vadd.xlane.f32.xlu0 %v9590
  %v9592 = vpop.xlane.xlu0 %9591
  %v9593 = vsel %vm3645, %v9526, 0.0
  %9594 = vadd.xlane.f32.xlu0 %v9593
  %v9595 = vpop.xlane.xlu0 %9594
  %v9596 = vsel %vm3645, %v9528, 0.0
  %9597 = vadd.xlane.f32.xlu0 %v9596
  %v9598 = vpop.xlane.xlu0 %9597
  %v9599 = vsel %vm3645, %v9530, 0.0
  %9600 = vadd.xlane.f32.xlu0 %v9599
  %v9601 = vpop.xlane.xlu0 %9600
  %v9602 = vsel %vm3645, %v9532, 0.0
  %9603 = vadd.xlane.f32.xlu0 %v9602
  %v9604 = vpop.xlane.xlu0 %9603
  %v9605 = vsel %vm3700, %v9553, -1e+30
  %v9606 = vsel %vm3701, %v9556, -1e+30
  %v9607 = vsel %vm3702, %v9559, -1e+30
  %v9608 = vsel %vm3703, %v9562, -1e+30
  %v9609 = vsel %vm3704, %v9565, -1e+30
  %v9610 = vsel %vm3705, %v9568, -1e+30
  %v9611 = vsel %vm3706, %v9571, -1e+30
  %v9612 = vsel %vm3707, %v9574, -1e+30
  %v9613 = vsel %vm3708, %v9577, -1e+30
  %v9614 = vsel %vm3709, %v9580, -1e+30
  %v9615 = vsel %vm3710, %v9583, -1e+30
  %v9616 = vsel %vm3711, %v9586, -1e+30
  %v9617 = vsel %vm3712, %v9589, -1e+30
  %v9618 = vsel %vm3713, %v9592, -1e+30
  %v9619 = vsel %vm3714, %v9595, -1e+30
  %v9620 = vsel %vm3715, %v9598, -1e+30
  %v9621 = vsel %vm3716, %v9601, -1e+30
  %v9622 = vsel %vm3717, %v9604, -1e+30
  %v9623 = vsel %vm3736, %v9605, -inf
  %v9624 = vsel %vm3736, %v9606, -inf
  %v9625 = vsel %vm3736, %v9607, -inf
  %v9626 = vsel %vm3736, %v9608, -inf
  %v9627 = vsel %vm3736, %v9609, -inf
  %v9628 = vmax.f32 %v9623, %v9627
  %v9629 = vsel %vm3736, %v9610, -inf
  %v9630 = vmax.f32 %v9624, %v9629
  %v9631 = vsel %vm3736, %v9611, -inf
  %v9632 = vmax.f32 %v9625, %v9631
  %v9633 = vsel %vm3736, %v9612, -inf
  %v9634 = vmax.f32 %v9626, %v9633
  %v9635 = vsel %vm3736, %v9613, -inf
  %v9636 = vmax.f32 %v9628, %v9635
  %v9637 = vsel %vm3736, %v9614, -inf
  %v9638 = vmax.f32 %v9630, %v9637
  %v9639 = vsel %vm3736, %v9615, -inf
  %v9640 = vmax.f32 %v9632, %v9639
  %v9641 = vsel %vm3736, %v9616, -inf
  %v9642 = vmax.f32 %v9634, %v9641
  %v9643 = vsel %vm3736, %v9617, -inf
  %v9644 = vmax.f32 %v9636, %v9643
  %v9645 = vsel %vm3736, %v9618, -inf
  %v9646 = vmax.f32 %v9638, %v9645
  %v9647 = vsel %vm3736, %v9619, -inf
  %v9648 = vmax.f32 %v9640, %v9647
  %v9649 = vsel %vm3736, %v9620, -inf
  %v9650 = vmax.f32 %v9642, %v9649
  %v9651 = vsel %vm3736, %v9621, -inf
  %v9652 = vmax.f32 %v9644, %v9651
  %v9653 = vsel %vm3736, %v9622, -inf
  %v9654 = vmax.f32 %v9646, %v9653
  %v9655 = vmax.f32 %v9652, %v9654
  %v9656 = vmax.f32 %v9648, %v9650
  %v9657 = vmax.f32 %v9655, %v9656
  %v9658 = vrot.slane %v9657, 4
  %v9659 = vmax.f32 %v9657, %v9658
  %v9660 = vrot.slane %v9659, 2
  %v9661 = vmax.f32 %v9659, %v9660
  %v9662 = vrot.slane %v9661, 1
  %v9663 = vmax.f32 %v9661, %v9662
  %v9664 = vsub.f32 %v9605, %v9663
  %v9665 = vsub.f32 %v9606, %v9663
  %v9666 = vsub.f32 %v9607, %v9663
  %v9667 = vsub.f32 %v9608, %v9663
  %v9668 = vsub.f32 %v9609, %v9663
  %v9669 = vsub.f32 %v9610, %v9663
  %v9670 = vsub.f32 %v9611, %v9663
  %v9671 = vsub.f32 %v9612, %v9663
  %v9672 = vsub.f32 %v9613, %v9663
  %v9673 = vsub.f32 %v9614, %v9663
  %v9674 = vsub.f32 %v9615, %v9663
  %v9675 = vsub.f32 %v9616, %v9663
  %v9676 = vsub.f32 %v9617, %v9663
  %v9677 = vsub.f32 %v9618, %v9663
  %v9678 = vsub.f32 %v9619, %v9663
  %v9679 = vsub.f32 %v9620, %v9663
  %v9680 = vsub.f32 %v9621, %v9663
  %v9681 = vsub.f32 %v9622, %v9663
  %v9682 = vmul.f32 %v9664, 1.442695
  %v9683 = vpow.pop %v9682
  %v9684 = vmul.f32 %v9665, 1.442695
  %v9685 = vpow.pop %v9684
  %v9686 = vmul.f32 %v9666, 1.442695
  %v9687 = vpow.pop %v9686
  %v9688 = vmul.f32 %v9667, 1.442695
  %v9689 = vpow.pop %v9688
  %v9690 = vmul.f32 %v9668, 1.442695
  %v9691 = vpow.pop %v9690
  %v9692 = vmul.f32 %v9669, 1.442695
  %v9693 = vpow.pop %v9692
  %v9694 = vmul.f32 %v9670, 1.442695
  %v9695 = vpow.pop %v9694
  %v9696 = vmul.f32 %v9671, 1.442695
  %v9697 = vpow.pop %v9696
  %v9698 = vmul.f32 %v9672, 1.442695
  %v9699 = vpow.pop %v9698
  %v9700 = vmul.f32 %v9673, 1.442695
  %v9701 = vpow.pop %v9700
  %v9702 = vmul.f32 %v9674, 1.442695
  %v9703 = vpow.pop %v9702
  %v9704 = vmul.f32 %v9675, 1.442695
  %v9705 = vpow.pop %v9704
  %v9706 = vmul.f32 %v9676, 1.442695
  %v9707 = vpow.pop %v9706
  %v9708 = vmul.f32 %v9677, 1.442695
  %v9709 = vpow.pop %v9708
  %v9710 = vmul.f32 %v9678, 1.442695
  %v9711 = vpow.pop %v9710
  %v9712 = vmul.f32 %v9679, 1.442695
  %v9713 = vpow.pop %v9712
  %v9714 = vmul.f32 %v9680, 1.442695
  %v9715 = vpow.pop %v9714
  %v9716 = vmul.f32 %v9681, 1.442695
  %v9717 = vpow.pop %v9716
  %v9718 = vmul.f32 %v9683, %v1033
  %v9719 = vmul.f32 %v9685, %v1034
  %v9720 = vmul.f32 %v9687, %v1035
  %v9721 = vmul.f32 %v9689, %v1036
  %v9722 = vmul.f32 %v9691, %v1037
  %v9723 = vmul.f32 %v9693, %v1038
  %v9724 = vmul.f32 %v9695, %v1039
  %v9725 = vmul.f32 %v9697, %v1040
  %v9726 = vmul.f32 %v9699, %v1041
  %v9727 = vmul.f32 %v9701, %v1042
  %v9728 = vmul.f32 %v9703, %v1043
  %v9729 = vmul.f32 %v9705, %v1044
  %v9730 = vmul.f32 %v9707, %v1045
  %v9731 = vmul.f32 %v9709, %v1046
  %v9732 = vmul.f32 %v9711, %v1047
  %v9733 = vmul.f32 %v9713, %v1048
  %v9734 = vmul.f32 %v9715, %v1049
  %v9735 = vmul.f32 %v9717, %v1050
  %9754 = vrot.lane.b32.xlu0 %v9718, 104
  %v9755 = vpop.permute.xlu0 %9754
  %9756 = vrot.lane.b32.xlu0 %v9719, 104
  %v9757 = vpop.permute.xlu0 %9756
  %9758 = vrot.lane.b32.xlu0 %v9720, 104
  %v9759 = vpop.permute.xlu0 %9758
  %9760 = vrot.lane.b32.xlu0 %v9721, 104
  %v9761 = vpop.permute.xlu0 %9760
  %9762 = vrot.lane.b32.xlu0 %v9722, 104
  %v9763 = vpop.permute.xlu0 %9762
  %9764 = vrot.lane.b32.xlu0 %v9723, 104
  %v9765 = vpop.permute.xlu0 %9764
  %9766 = vrot.lane.b32.xlu0 %v9724, 104
  %v9767 = vpop.permute.xlu0 %9766
  %9768 = vrot.lane.b32.xlu0 %v9725, 104
  %v9769 = vpop.permute.xlu0 %9768
  %9770 = vrot.lane.b32.xlu0 %v9726, 104
  %v9771 = vpop.permute.xlu0 %9770
  %9772 = vrot.lane.b32.xlu0 %v9727, 104
  %v9773 = vpop.permute.xlu0 %9772
  %9774 = vrot.lane.b32.xlu0 %v9728, 104
  %v9775 = vpop.permute.xlu0 %9774
  %9776 = vrot.lane.b32.xlu0 %v9729, 104
  %v9777 = vpop.permute.xlu0 %9776
  %9778 = vrot.lane.b32.xlu0 %v9730, 104
  %v9779 = vpop.permute.xlu0 %9778
  %9780 = vrot.lane.b32.xlu0 %v9731, 104
  %v9781 = vpop.permute.xlu0 %9780
  %9782 = vrot.lane.b32.xlu0 %v9732, 104
  %v9783 = vpop.permute.xlu0 %9782
  %9784 = vrot.lane.b32.xlu0 %v9733, 104
  %v9785 = vpop.permute.xlu0 %9784
  %9786 = vrot.lane.b32.xlu0 %v9734, 104
  %v9787 = vpop.permute.xlu0 %9786
  %9788 = vrot.lane.b32.xlu0 %v9735, 104
  %v9789 = vpop.permute.xlu0 %9788
  %9808 = vmatprep.subr.mxu0 0.0
  %v9809 = vand.u32 %v9755, 4294901760
  %9810 = vmatpush1.msra.mxu0 %v9809
  %9811 = vmatprep.subr.mxu0 0.0
  %v9812 = vand.u32 %v9757, 4294901760
  %9813 = vmatpush1.msra.mxu0 %v9812
  %9814 = vmatprep.subr.mxu0 0.0
  %v9815 = vand.u32 %v9759, 4294901760
  %9816 = vmatpush1.msra.mxu0 %v9815
  %9817 = vmatprep.subr.mxu0 0.0
  %v9818 = vand.u32 %v9761, 4294901760
  %9819 = vmatpush1.msra.mxu0 %v9818
  %9820 = vmatprep.subr.mxu0 0.0
  %v9821 = vand.u32 %v9763, 4294901760
  %9822 = vmatpush1.msra.mxu0 %v9821
  %9823 = vmatprep.subr.mxu0 0.0
  %v9824 = vand.u32 %v9765, 4294901760
  %9825 = vmatpush1.msra.mxu0 %v9824
  %9826 = vmatprep.subr.mxu0 0.0
  %v9827 = vand.u32 %v9767, 4294901760
  %9828 = vmatpush1.msra.mxu0 %v9827
  %9829 = vmatprep.subr.mxu0 0.0
  %v9830 = vand.u32 %v9769, 4294901760
  %9831 = vmatpush1.msra.mxu0 %v9830
  %9832 = vmatprep.subr.mxu0 0.0
  %v9833 = vand.u32 %v9771, 4294901760
  %9834 = vmatpush1.msra.mxu0 %v9833
  %9835 = vmatprep.subr.mxu0 0.0
  %v9836 = vand.u32 %v9773, 4294901760
  %9837 = vmatpush1.msra.mxu0 %v9836
  %9838 = vmatprep.subr.mxu0 0.0
  %v9839 = vand.u32 %v9775, 4294901760
  %9840 = vmatpush1.msra.mxu0 %v9839
  %9841 = vmatprep.subr.mxu0 0.0
  %v9842 = vand.u32 %v9777, 4294901760
  %9843 = vmatpush1.msra.mxu0 %v9842
  %9844 = vmatprep.subr.mxu0 0.0
  %v9845 = vand.u32 %v9779, 4294901760
  %9846 = vmatpush1.msra.mxu0 %v9845
  %9847 = vmatprep.subr.mxu0 0.0
  %v9848 = vand.u32 %v9781, 4294901760
  %9849 = vmatpush1.msra.mxu0 %v9848
  %9850 = vmatprep.subr.mxu0 0.0
  %v9851 = vand.u32 %v9783, 4294901760
  %9852 = vmatpush1.msra.mxu0 %v9851
  %9853 = vmatprep.subr.mxu0 0.0
  %v9854 = vand.u32 %v9785, 4294901760
  %9855 = vmatpush1.msra.mxu0 %v9854
  %9856 = vmatprep.subr.mxu0 0.0
  %v9857 = vand.u32 %v9787, 4294901760
  %9858 = vmatpush1.msra.mxu0 %v9857
  %9859 = vmatprep.subr.mxu0 0.0
  %v9860 = vand.u32 %v9789, 4294901760
  %9861 = vmatpush1.msra.mxu0 %v9860
  %9862 = vmatprep.subr.mxu0 0.0
  %9863 = vmatpush1.msra.mxu0 0.0
  %9864 = vmatprep.subr.mxu0 0.0
  %9865 = vmatpush1.msra.mxu0 0.0
  %9866 = vmatprep.subr.mxu0 0.0
  %9867 = vmatpush1.msra.mxu0 0.0
  %9868 = vmatprep.subr.mxu0 0.0
  %9869 = vmatpush1.msra.mxu0 0.0
  %9870 = vmatprep.subr.mxu0 0.0
  %9871 = vmatpush1.msra.mxu0 0.0
  %9872 = vmatprep.subr.mxu0 0.0
  %9873 = vmatpush1.msra.mxu0 0.0
  %9874 = vmatprep.subr.mxu0 0.0
  %9875 = vmatpush1.msra.mxu0 0.0
  %9876 = vmatprep.subr.mxu0 0.0
  %9877 = vmatpush1.msra.mxu0 0.0
  %9878 = vmatprep.subr.mxu0 0.0
  %9879 = vmatpush1.msra.mxu0 0.0
  %9880 = vmatprep.subr.mxu0 0.0
  %9881 = vmatpush1.msra.mxu0 0.0
  %9882 = vmatprep.subr.mxu0 0.0
  %9883 = vmatpush1.msra.mxu0 0.0
  %9884 = vmatprep.subr.mxu0 0.0
  %9885 = vmatpush1.msra.mxu0 0.0
  %9886 = vmatprep.subr.mxu0 0.0
  %9887 = vmatpush1.msra.mxu0 0.0
  %9888 = vmatprep.subr.mxu0 0.0
  %9889 = vmatpush1.msra.mxu0 0.0
  %v9890 = vand.u32 %v3924, 4294901760
  %v9891 = vsub.f32 %v3924, %v9890
  %v9892 = vand.u32 %v9891, 4294901760
  %v9893 = vsub.f32 %v9891, %v9892
  %v9894 = vand.u32 %v9893, 4294901760
  %9895 = vmatprep.mubr.f32.mxu0 %v9894
  %v9896 = vand.u32 %v3641, 4294901760
  %v9897 = vsub.f32 %v3641, %v9896
  %v9898 = vand.u32 %v9897, 4294901760
  %v9899 = vsub.f32 %v9897, %v9898
  %v9900 = vand.u32 %v9899, 4294901760
  %9901 = vmatmul.mubr.f32.gmra.mrb[0].mxu0 %v9900
  %v9902 = vpop.f32.mrb[0].mxu0
  %v9903 = vadd.f32 0.0, %v9902
  %v9904 = vpop.f32.mrb[0].mxu0
  %v9905 = vand.u32 %v3927, 4294901760
  %v9906 = vsub.f32 %v3927, %v9905
  %v9907 = vand.u32 %v9906, 4294901760
  %v9908 = vsub.f32 %v9906, %v9907
  %v9909 = vand.u32 %v9908, 4294901760
  %9910 = vmatprep.mubr.f32.mxu0 %v9909
  %v9911 = vand.u32 %v3643, 4294901760
  %v9912 = vsub.f32 %v3643, %v9911
  %v9913 = vand.u32 %v9912, 4294901760
  %v9914 = vsub.f32 %v9912, %v9913
  %v9915 = vand.u32 %v9914, 4294901760
  %9916 = vmatmul.mubr.f32.gmra.mrb[0].mxu0 %v9915
  %v9917 = vpop.f32.mrb[0].mxu0
  %v9918 = vadd.f32 0.0, %v9917
  %v9919 = vpop.f32.mrb[0].mxu0
  %9920 = vdwg.mxu0
  %9921 = vmatprep.subr.mxu0 0.0
  %v9922 = vand.u32 %v9755, 4294901760
  %v9923 = vsub.f32 %v9755, %v9922
  %v9924 = vand.u32 %v9923, 4294901760
  %v9925 = vsub.f32 %v9923, %v9924
  %v9926 = vand.u32 %v9925, 4294901760
  %9927 = vmatpush1.msra.mxu0 %v9926
  %9928 = vmatprep.subr.mxu0 0.0
  %v9929 = vand.u32 %v9757, 4294901760
  %v9930 = vsub.f32 %v9757, %v9929
  %v9931 = vand.u32 %v9930, 4294901760
  %v9932 = vsub.f32 %v9930, %v9931
  %v9933 = vand.u32 %v9932, 4294901760
  %9934 = vmatpush1.msra.mxu0 %v9933
  %9935 = vmatprep.subr.mxu0 0.0
  %v9936 = vand.u32 %v9759, 4294901760
  %v9937 = vsub.f32 %v9759, %v9936
  %v9938 = vand.u32 %v9937, 4294901760
  %v9939 = vsub.f32 %v9937, %v9938
  %v9940 = vand.u32 %v9939, 4294901760
  %9941 = vmatpush1.msra.mxu0 %v9940
  %9942 = vmatprep.subr.mxu0 0.0
  %v9943 = vand.u32 %v9761, 4294901760
  %v9944 = vsub.f32 %v9761, %v9943
  %v9945 = vand.u32 %v9944, 4294901760
  %v9946 = vsub.f32 %v9944, %v9945
  %v9947 = vand.u32 %v9946, 4294901760
  %9948 = vmatpush1.msra.mxu0 %v9947
  %9949 = vmatprep.subr.mxu0 0.0
  %v9950 = vand.u32 %v9763, 4294901760
  %v9951 = vsub.f32 %v9763, %v9950
  %v9952 = vand.u32 %v9951, 4294901760
  %v9953 = vsub.f32 %v9951, %v9952
  %v9954 = vand.u32 %v9953, 4294901760
  %9955 = vmatpush1.msra.mxu0 %v9954
  %9956 = vmatprep.subr.mxu0 0.0
  %v9957 = vand.u32 %v9765, 4294901760
  %v9958 = vsub.f32 %v9765, %v9957
  %v9959 = vand.u32 %v9958, 4294901760
  %v9960 = vsub.f32 %v9958, %v9959
  %v9961 = vand.u32 %v9960, 4294901760
  %9962 = vmatpush1.msra.mxu0 %v9961
  %9963 = vmatprep.subr.mxu0 0.0
  %v9964 = vand.u32 %v9767, 4294901760
  %v9965 = vsub.f32 %v9767, %v9964
  %v9966 = vand.u32 %v9965, 4294901760
  %v9967 = vsub.f32 %v9965, %v9966
  %v9968 = vand.u32 %v9967, 4294901760
  %9969 = vmatpush1.msra.mxu0 %v9968
  %9970 = vmatprep.subr.mxu0 0.0
  %v9971 = vand.u32 %v9769, 4294901760
  %v9972 = vsub.f32 %v9769, %v9971
  %v9973 = vand.u32 %v9972, 4294901760
  %v9974 = vsub.f32 %v9972, %v9973
  %v9975 = vand.u32 %v9974, 4294901760
  %9976 = vmatpush1.msra.mxu0 %v9975
  %9977 = vmatprep.subr.mxu0 0.0
  %v9978 = vand.u32 %v9771, 4294901760
  %v9979 = vsub.f32 %v9771, %v9978
  %v9980 = vand.u32 %v9979, 4294901760
  %v9981 = vsub.f32 %v9979, %v9980
  %v9982 = vand.u32 %v9981, 4294901760
  %9983 = vmatpush1.msra.mxu0 %v9982
  %9984 = vmatprep.subr.mxu0 0.0
  %v9985 = vand.u32 %v9773, 4294901760
  %v9986 = vsub.f32 %v9773, %v9985
  %v9987 = vand.u32 %v9986, 4294901760
  %v9988 = vsub.f32 %v9986, %v9987
  %v9989 = vand.u32 %v9988, 4294901760
  %9990 = vmatpush1.msra.mxu0 %v9989
  %9991 = vmatprep.subr.mxu0 0.0
  %v9992 = vand.u32 %v9775, 4294901760
  %v9993 = vsub.f32 %v9775, %v9992
  %v9994 = vand.u32 %v9993, 4294901760
  %v9995 = vsub.f32 %v9993, %v9994
  %v9996 = vand.u32 %v9995, 4294901760
  %9997 = vmatpush1.msra.mxu0 %v9996
  %9998 = vmatprep.subr.mxu0 0.0
  %v9999 = vand.u32 %v9777, 4294901760
  %v10000 = vsub.f32 %v9777, %v9999
  %v10001 = vand.u32 %v10000, 4294901760
  %v10002 = vsub.f32 %v10000, %v10001
  %v10003 = vand.u32 %v10002, 4294901760
  %10004 = vmatpush1.msra.mxu0 %v10003
  %10005 = vmatprep.subr.mxu0 0.0
  %v10006 = vand.u32 %v9779, 4294901760
  %v10007 = vsub.f32 %v9779, %v10006
  %v10008 = vand.u32 %v10007, 4294901760
  %v10009 = vsub.f32 %v10007, %v10008
  %v10010 = vand.u32 %v10009, 4294901760
  %10011 = vmatpush1.msra.mxu0 %v10010
  %10012 = vmatprep.subr.mxu0 0.0
  %v10013 = vand.u32 %v9781, 4294901760
  %v10014 = vsub.f32 %v9781, %v10013
  %v10015 = vand.u32 %v10014, 4294901760
  %v10016 = vsub.f32 %v10014, %v10015
  %v10017 = vand.u32 %v10016, 4294901760
  %10018 = vmatpush1.msra.mxu0 %v10017
  %10019 = vmatprep.subr.mxu0 0.0
  %v10020 = vand.u32 %v9783, 4294901760
  %v10021 = vsub.f32 %v9783, %v10020
  %v10022 = vand.u32 %v10021, 4294901760
  %v10023 = vsub.f32 %v10021, %v10022
  %v10024 = vand.u32 %v10023, 4294901760
  %10025 = vmatpush1.msra.mxu0 %v10024
  %10026 = vmatprep.subr.mxu0 0.0
  %v10027 = vand.u32 %v9785, 4294901760
  %v10028 = vsub.f32 %v9785, %v10027
  %v10029 = vand.u32 %v10028, 4294901760
  %v10030 = vsub.f32 %v10028, %v10029
  %v10031 = vand.u32 %v10030, 4294901760
  %10032 = vmatpush1.msra.mxu0 %v10031
  %10033 = vmatprep.subr.mxu0 0.0
  %v10034 = vand.u32 %v9787, 4294901760
  %v10035 = vsub.f32 %v9787, %v10034
  %v10036 = vand.u32 %v10035, 4294901760
  %v10037 = vsub.f32 %v10035, %v10036
  %v10038 = vand.u32 %v10037, 4294901760
  %10039 = vmatpush1.msra.mxu0 %v10038
  %10040 = vmatprep.subr.mxu0 0.0
  %v10041 = vand.u32 %v9789, 4294901760
  %v10042 = vsub.f32 %v9789, %v10041
  %v10043 = vand.u32 %v10042, 4294901760
  %v10044 = vsub.f32 %v10042, %v10043
  %v10045 = vand.u32 %v10044, 4294901760
  %10046 = vmatpush1.msra.mxu0 %v10045
  %10047 = vmatprep.subr.mxu0 0.0
  %10048 = vmatpush1.msra.mxu0 0.0
  %10049 = vmatprep.subr.mxu0 0.0
  %10050 = vmatpush1.msra.mxu0 0.0
  %10051 = vmatprep.subr.mxu0 0.0
  %10052 = vmatpush1.msra.mxu0 0.0
  %10053 = vmatprep.subr.mxu0 0.0
  %10054 = vmatpush1.msra.mxu0 0.0
  %10055 = vmatprep.subr.mxu0 0.0
  %10056 = vmatpush1.msra.mxu0 0.0
  %10057 = vmatprep.subr.mxu0 0.0
  %10058 = vmatpush1.msra.mxu0 0.0
  %10059 = vmatprep.subr.mxu0 0.0
  %10060 = vmatpush1.msra.mxu0 0.0
  %10061 = vmatprep.subr.mxu0 0.0
  %10062 = vmatpush1.msra.mxu0 0.0
  %10063 = vmatprep.subr.mxu0 0.0
  %10064 = vmatpush1.msra.mxu0 0.0
  %10065 = vmatprep.subr.mxu0 0.0
  %10066 = vmatpush1.msra.mxu0 0.0
  %10067 = vmatprep.subr.mxu0 0.0
  %10068 = vmatpush1.msra.mxu0 0.0
  %10069 = vmatprep.subr.mxu0 0.0
  %10070 = vmatpush1.msra.mxu0 0.0
  %10071 = vmatprep.subr.mxu0 0.0
  %10072 = vmatpush1.msra.mxu0 0.0
  %10073 = vmatprep.subr.mxu0 0.0
  %10074 = vmatpush1.msra.mxu0 0.0
  %v10075 = vand.u32 %v3924, 4294901760
  %10076 = vmatprep.mubr.f32.mxu0 %v10075
  %v10077 = vand.u32 %v3641, 4294901760
  %10078 = vmatmul.mubr.f32.gmra.mrb[0].mxu0 %v10077
  %v10079 = vpop.f32.mrb[0].mxu0
  %v10080 = vadd.f32 %v9903, %v10079
  %v10081 = vpop.f32.mrb[0].mxu0
  %v10082 = vand.u32 %v3927, 4294901760
  %10083 = vmatprep.mubr.f32.mxu0 %v10082
  %v10084 = vand.u32 %v3643, 4294901760
  %10085 = vmatmul.mubr.f32.gmra.mrb[0].mxu0 %v10084
  %v10086 = vpop.f32.mrb[0].mxu0
  %v10087 = vadd.f32 %v9918, %v10086
  %v10088 = vpop.f32.mrb[0].mxu0
  %10089 = vdwg.mxu0
  %10090 = vmatprep.subr.mxu0 0.0
  %v10091 = vand.u32 %v9755, 4294901760
  %v10092 = vsub.f32 %v9755, %v10091
  %10093 = vmatpush1.msra.mxu0 %v10092
  %10094 = vmatprep.subr.mxu0 0.0
  %v10095 = vand.u32 %v9757, 4294901760
  %v10096 = vsub.f32 %v9757, %v10095
  %10097 = vmatpush1.msra.mxu0 %v10096
  %10098 = vmatprep.subr.mxu0 0.0
  %v10099 = vand.u32 %v9759, 4294901760
  %v10100 = vsub.f32 %v9759, %v10099
  %10101 = vmatpush1.msra.mxu0 %v10100
  %10102 = vmatprep.subr.mxu0 0.0
  %v10103 = vand.u32 %v9761, 4294901760
  %v10104 = vsub.f32 %v9761, %v10103
  %10105 = vmatpush1.msra.mxu0 %v10104
  %10106 = vmatprep.subr.mxu0 0.0
  %v10107 = vand.u32 %v9763, 4294901760
  %v10108 = vsub.f32 %v9763, %v10107
  %10109 = vmatpush1.msra.mxu0 %v10108
  %10110 = vmatprep.subr.mxu0 0.0
  %v10111 = vand.u32 %v9765, 4294901760
  %v10112 = vsub.f32 %v9765, %v10111
  %10113 = vmatpush1.msra.mxu0 %v10112
  %10114 = vmatprep.subr.mxu0 0.0
  %v10115 = vand.u32 %v9767, 4294901760
  %v10116 = vsub.f32 %v9767, %v10115
  %10117 = vmatpush1.msra.mxu0 %v10116
  %10118 = vmatprep.subr.mxu0 0.0
  %v10119 = vand.u32 %v9769, 4294901760
  %v10120 = vsub.f32 %v9769, %v10119
  %10121 = vmatpush1.msra.mxu0 %v10120
  %10122 = vmatprep.subr.mxu0 0.0
  %v10123 = vand.u32 %v9771, 4294901760
  %v10124 = vsub.f32 %v9771, %v10123
  %10125 = vmatpush1.msra.mxu0 %v10124
  %10126 = vmatprep.subr.mxu0 0.0
  %v10127 = vand.u32 %v9773, 4294901760
  %v10128 = vsub.f32 %v9773, %v10127
  %10129 = vmatpush1.msra.mxu0 %v10128
  %10130 = vmatprep.subr.mxu0 0.0
  %v10131 = vand.u32 %v9775, 4294901760
  %v10132 = vsub.f32 %v9775, %v10131
  %10133 = vmatpush1.msra.mxu0 %v10132
  %10134 = vmatprep.subr.mxu0 0.0
  %v10135 = vand.u32 %v9777, 4294901760
  %v10136 = vsub.f32 %v9777, %v10135
  %10137 = vmatpush1.msra.mxu0 %v10136
  %10138 = vmatprep.subr.mxu0 0.0
  %v10139 = vand.u32 %v9779, 4294901760
  %v10140 = vsub.f32 %v9779, %v10139
  %10141 = vmatpush1.msra.mxu0 %v10140
  %10142 = vmatprep.subr.mxu0 0.0
  %v10143 = vand.u32 %v9781, 4294901760
  %v10144 = vsub.f32 %v9781, %v10143
  %10145 = vmatpush1.msra.mxu0 %v10144
  %10146 = vmatprep.subr.mxu0 0.0
  %v10147 = vand.u32 %v9783, 4294901760
  %v10148 = vsub.f32 %v9783, %v10147
  %10149 = vmatpush1.msra.mxu0 %v10148
  %10150 = vmatprep.subr.mxu0 0.0
  %v10151 = vand.u32 %v9785, 4294901760
  %v10152 = vsub.f32 %v9785, %v10151
  %10153 = vmatpush1.msra.mxu0 %v10152
  %10154 = vmatprep.subr.mxu0 0.0
  %v10155 = vand.u32 %v9787, 4294901760
  %v10156 = vsub.f32 %v9787, %v10155
  %10157 = vmatpush1.msra.mxu0 %v10156
  %10158 = vmatprep.subr.mxu0 0.0
  %v10159 = vand.u32 %v9789, 4294901760
  %v10160 = vsub.f32 %v9789, %v10159
  %10161 = vmatpush1.msra.mxu0 %v10160
  %10162 = vmatprep.subr.mxu0 0.0
  %10163 = vmatpush1.msra.mxu0 0.0
  %10164 = vmatprep.subr.mxu0 0.0
  %10165 = vmatpush1.msra.mxu0 0.0
  %10166 = vmatprep.subr.mxu0 0.0
  %10167 = vmatpush1.msra.mxu0 0.0
  %10168 = vmatprep.subr.mxu0 0.0
  %10169 = vmatpush1.msra.mxu0 0.0
  %10170 = vmatprep.subr.mxu0 0.0
  %10171 = vmatpush1.msra.mxu0 0.0
  %10172 = vmatprep.subr.mxu0 0.0
  %10173 = vmatpush1.msra.mxu0 0.0
  %10174 = vmatprep.subr.mxu0 0.0
  %10175 = vmatpush1.msra.mxu0 0.0
  %10176 = vmatprep.subr.mxu0 0.0
  %10177 = vmatpush1.msra.mxu0 0.0
  %10178 = vmatprep.subr.mxu0 0.0
  %10179 = vmatpush1.msra.mxu0 0.0
  %10180 = vmatprep.subr.mxu0 0.0
  %10181 = vmatpush1.msra.mxu0 0.0
  %10182 = vmatprep.subr.mxu0 0.0
  %10183 = vmatpush1.msra.mxu0 0.0
  %10184 = vmatprep.subr.mxu0 0.0
  %10185 = vmatpush1.msra.mxu0 0.0
  %10186 = vmatprep.subr.mxu0 0.0
  %10187 = vmatpush1.msra.mxu0 0.0
  %10188 = vmatprep.subr.mxu0 0.0
  %10189 = vmatpush1.msra.mxu0 0.0
  %v10190 = vand.u32 %v3924, 4294901760
  %v10191 = vsub.f32 %v3924, %v10190
  %10192 = vmatprep.mubr.f32.mxu0 %v10191
  %v10193 = vand.u32 %v3641, 4294901760
  %v10194 = vsub.f32 %v3641, %v10193
  %10195 = vmatmul.mubr.f32.gmra.mrb[0].mxu0 %v10194
  %v10196 = vpop.f32.mrb[0].mxu0
  %v10197 = vadd.f32 %v10080, %v10196
  %v10198 = vpop.f32.mrb[0].mxu0
  %v10199 = vand.u32 %v3927, 4294901760
  %v10200 = vsub.f32 %v3927, %v10199
  %10201 = vmatprep.mubr.f32.mxu0 %v10200
  %v10202 = vand.u32 %v3643, 4294901760
  %v10203 = vsub.f32 %v3643, %v10202
  %10204 = vmatmul.mubr.f32.gmra.mrb[0].mxu0 %v10203
  %v10205 = vpop.f32.mrb[0].mxu0
  %v10206 = vadd.f32 %v10087, %v10205
  %v10207 = vpop.f32.mrb[0].mxu0
  %10208 = vdwg.mxu0
  %10209 = vmatprep.subr.mxu0 0.0
  %v10210 = vand.u32 %v9755, 4294901760
  %10211 = vmatpush1.msra.mxu0 %v10210
  %10212 = vmatprep.subr.mxu0 0.0
  %v10213 = vand.u32 %v9757, 4294901760
  %10214 = vmatpush1.msra.mxu0 %v10213
  %10215 = vmatprep.subr.mxu0 0.0
  %v10216 = vand.u32 %v9759, 4294901760
  %10217 = vmatpush1.msra.mxu0 %v10216
  %10218 = vmatprep.subr.mxu0 0.0
  %v10219 = vand.u32 %v9761, 4294901760
  %10220 = vmatpush1.msra.mxu0 %v10219
  %10221 = vmatprep.subr.mxu0 0.0
  %v10222 = vand.u32 %v9763, 4294901760
  %10223 = vmatpush1.msra.mxu0 %v10222
  %10224 = vmatprep.subr.mxu0 0.0
  %v10225 = vand.u32 %v9765, 4294901760
  %10226 = vmatpush1.msra.mxu0 %v10225
  %10227 = vmatprep.subr.mxu0 0.0
  %v10228 = vand.u32 %v9767, 4294901760
  %10229 = vmatpush1.msra.mxu0 %v10228
  %10230 = vmatprep.subr.mxu0 0.0
  %v10231 = vand.u32 %v9769, 4294901760
  %10232 = vmatpush1.msra.mxu0 %v10231
  %10233 = vmatprep.subr.mxu0 0.0
  %v10234 = vand.u32 %v9771, 4294901760
  %10235 = vmatpush1.msra.mxu0 %v10234
  %10236 = vmatprep.subr.mxu0 0.0
  %v10237 = vand.u32 %v9773, 4294901760
  %10238 = vmatpush1.msra.mxu0 %v10237
  %10239 = vmatprep.subr.mxu0 0.0
  %v10240 = vand.u32 %v9775, 4294901760
  %10241 = vmatpush1.msra.mxu0 %v10240
  %10242 = vmatprep.subr.mxu0 0.0
  %v10243 = vand.u32 %v9777, 4294901760
  %10244 = vmatpush1.msra.mxu0 %v10243
  %10245 = vmatprep.subr.mxu0 0.0
  %v10246 = vand.u32 %v9779, 4294901760
  %10247 = vmatpush1.msra.mxu0 %v10246
  %10248 = vmatprep.subr.mxu0 0.0
  %v10249 = vand.u32 %v9781, 4294901760
  %10250 = vmatpush1.msra.mxu0 %v10249
  %10251 = vmatprep.subr.mxu0 0.0
  %v10252 = vand.u32 %v9783, 4294901760
  %10253 = vmatpush1.msra.mxu0 %v10252
  %10254 = vmatprep.subr.mxu0 0.0
  %v10255 = vand.u32 %v9785, 4294901760
  %10256 = vmatpush1.msra.mxu0 %v10255
  %10257 = vmatprep.subr.mxu0 0.0
  %v10258 = vand.u32 %v9787, 4294901760
  %10259 = vmatpush1.msra.mxu0 %v10258
  %10260 = vmatprep.subr.mxu0 0.0
  %v10261 = vand.u32 %v9789, 4294901760
  %10262 = vmatpush1.msra.mxu0 %v10261
  %10263 = vmatprep.subr.mxu0 0.0
  %10264 = vmatpush1.msra.mxu0 0.0
  %10265 = vmatprep.subr.mxu0 0.0
  %10266 = vmatpush1.msra.mxu0 0.0
  %10267 = vmatprep.subr.mxu0 0.0
  %10268 = vmatpush1.msra.mxu0 0.0
  %10269 = vmatprep.subr.mxu0 0.0
  %10270 = vmatpush1.msra.mxu0 0.0
  %10271 = vmatprep.subr.mxu0 0.0
  %10272 = vmatpush1.msra.mxu0 0.0
  %10273 = vmatprep.subr.mxu0 0.0
  %10274 = vmatpush1.msra.mxu0 0.0
  %10275 = vmatprep.subr.mxu0 0.0
  %10276 = vmatpush1.msra.mxu0 0.0
  %10277 = vmatprep.subr.mxu0 0.0
  %10278 = vmatpush1.msra.mxu0 0.0
  %10279 = vmatprep.subr.mxu0 0.0
  %10280 = vmatpush1.msra.mxu0 0.0
  %10281 = vmatprep.subr.mxu0 0.0
  %10282 = vmatpush1.msra.mxu0 0.0
  %10283 = vmatprep.subr.mxu0 0.0
  %10284 = vmatpush1.msra.mxu0 0.0
  %10285 = vmatprep.subr.mxu0 0.0
  %10286 = vmatpush1.msra.mxu0 0.0
  %10287 = vmatprep.subr.mxu0 0.0
  %10288 = vmatpush1.msra.mxu0 0.0
  %10289 = vmatprep.subr.mxu0 0.0
  %10290 = vmatpush1.msra.mxu0 0.0
  %v10291 = vand.u32 %v3924, 4294901760
  %v10292 = vsub.f32 %v3924, %v10291
  %v10293 = vand.u32 %v10292, 4294901760
  %10294 = vmatprep.mubr.f32.mxu0 %v10293
  %v10295 = vand.u32 %v3641, 4294901760
  %v10296 = vsub.f32 %v3641, %v10295
  %v10297 = vand.u32 %v10296, 4294901760
  %10298 = vmatmul.mubr.f32.gmra.mrb[0].mxu0 %v10297
  %v10299 = vpop.f32.mrb[0].mxu0
  %v10300 = vadd.f32 %v10197, %v10299
  %v10301 = vpop.f32.mrb[0].mxu0
  %v10302 = vand.u32 %v3927, 4294901760
  %v10303 = vsub.f32 %v3927, %v10302
  %v10304 = vand.u32 %v10303, 4294901760
  %10305 = vmatprep.mubr.f32.mxu0 %v10304
  %v10306 = vand.u32 %v3643, 4294901760
  %v10307 = vsub.f32 %v3643, %v10306
  %v10308 = vand.u32 %v10307, 4294901760
  %10309 = vmatmul.mubr.f32.gmra.mrb[0].mxu0 %v10308
  %v10310 = vpop.f32.mrb[0].mxu0
  %v10311 = vadd.f32 %v10206, %v10310
  %v10312 = vpop.f32.mrb[0].mxu0
  %10313 = vdwg.mxu0
  %10314 = vmatprep.subr.mxu0 0.0
  %v10315 = vand.u32 %v9755, 4294901760
  %v10316 = vsub.f32 %v9755, %v10315
  %v10317 = vand.u32 %v10316, 4294901760
  %10318 = vmatpush1.msra.mxu0 %v10317
  %10319 = vmatprep.subr.mxu0 0.0
  %v10320 = vand.u32 %v9757, 4294901760
  %v10321 = vsub.f32 %v9757, %v10320
  %v10322 = vand.u32 %v10321, 4294901760
  %10323 = vmatpush1.msra.mxu0 %v10322
  %10324 = vmatprep.subr.mxu0 0.0
  %v10325 = vand.u32 %v9759, 4294901760
  %v10326 = vsub.f32 %v9759, %v10325
  %v10327 = vand.u32 %v10326, 4294901760
  %10328 = vmatpush1.msra.mxu0 %v10327
  %10329 = vmatprep.subr.mxu0 0.0
  %v10330 = vand.u32 %v9761, 4294901760
  %v10331 = vsub.f32 %v9761, %v10330
  %v10332 = vand.u32 %v10331, 4294901760
  %10333 = vmatpush1.msra.mxu0 %v10332
  %10334 = vmatprep.subr.mxu0 0.0
  %v10335 = vand.u32 %v9763, 4294901760
  %v10336 = vsub.f32 %v9763, %v10335
  %v10337 = vand.u32 %v10336, 4294901760
  %10338 = vmatpush1.msra.mxu0 %v10337
  %10339 = vmatprep.subr.mxu0 0.0
  %v10340 = vand.u32 %v9765, 4294901760
  %v10341 = vsub.f32 %v9765, %v10340
  %v10342 = vand.u32 %v10341, 4294901760
  %10343 = vmatpush1.msra.mxu0 %v10342
  %10344 = vmatprep.subr.mxu0 0.0
  %v10345 = vand.u32 %v9767, 4294901760
  %v10346 = vsub.f32 %v9767, %v10345
  %v10347 = vand.u32 %v10346, 4294901760
  %10348 = vmatpush1.msra.mxu0 %v10347
  %10349 = vmatprep.subr.mxu0 0.0
  %v10350 = vand.u32 %v9769, 4294901760
  %v10351 = vsub.f32 %v9769, %v10350
  %v10352 = vand.u32 %v10351, 4294901760
  %10353 = vmatpush1.msra.mxu0 %v10352
  %10354 = vmatprep.subr.mxu0 0.0
  %v10355 = vand.u32 %v9771, 4294901760
  %v10356 = vsub.f32 %v9771, %v10355
  %v10357 = vand.u32 %v10356, 4294901760
  %10358 = vmatpush1.msra.mxu0 %v10357
  %10359 = vmatprep.subr.mxu0 0.0
  %v10360 = vand.u32 %v9773, 4294901760
  %v10361 = vsub.f32 %v9773, %v10360
  %v10362 = vand.u32 %v10361, 4294901760
  %10363 = vmatpush1.msra.mxu0 %v10362
  %10364 = vmatprep.subr.mxu0 0.0
  %v10365 = vand.u32 %v9775, 4294901760
  %v10366 = vsub.f32 %v9775, %v10365
  %v10367 = vand.u32 %v10366, 4294901760
  %10368 = vmatpush1.msra.mxu0 %v10367
  %10369 = vmatprep.subr.mxu0 0.0
  %v10370 = vand.u32 %v9777, 4294901760
  %v10371 = vsub.f32 %v9777, %v10370
  %v10372 = vand.u32 %v10371, 4294901760
  %10373 = vmatpush1.msra.mxu0 %v10372
  %10374 = vmatprep.subr.mxu0 0.0
  %v10375 = vand.u32 %v9779, 4294901760
  %v10376 = vsub.f32 %v9779, %v10375
  %v10377 = vand.u32 %v10376, 4294901760
  %10378 = vmatpush1.msra.mxu0 %v10377
  %10379 = vmatprep.subr.mxu0 0.0
  %v10380 = vand.u32 %v9781, 4294901760
  %v10381 = vsub.f32 %v9781, %v10380
  %v10382 = vand.u32 %v10381, 4294901760
  %10383 = vmatpush1.msra.mxu0 %v10382
  %10384 = vmatprep.subr.mxu0 0.0
  %v10385 = vand.u32 %v9783, 4294901760
  %v10386 = vsub.f32 %v9783, %v10385
  %v10387 = vand.u32 %v10386, 4294901760
  %10388 = vmatpush1.msra.mxu0 %v10387
  %10389 = vmatprep.subr.mxu0 0.0
  %v10390 = vand.u32 %v9785, 4294901760
  %v10391 = vsub.f32 %v9785, %v10390
  %v10392 = vand.u32 %v10391, 4294901760
  %10393 = vmatpush1.msra.mxu0 %v10392
  %10394 = vmatprep.subr.mxu0 0.0
  %v10395 = vand.u32 %v9787, 4294901760
  %v10396 = vsub.f32 %v9787, %v10395
  %v10397 = vand.u32 %v10396, 4294901760
  %10398 = vmatpush1.msra.mxu0 %v10397
  %10399 = vmatprep.subr.mxu0 0.0
  %v10400 = vand.u32 %v9789, 4294901760
  %v10401 = vsub.f32 %v9789, %v10400
  %v10402 = vand.u32 %v10401, 4294901760
  %10403 = vmatpush1.msra.mxu0 %v10402
  %10404 = vmatprep.subr.mxu0 0.0
  %10405 = vmatpush1.msra.mxu0 0.0
  %10406 = vmatprep.subr.mxu0 0.0
  %10407 = vmatpush1.msra.mxu0 0.0
  %10408 = vmatprep.subr.mxu0 0.0
  %10409 = vmatpush1.msra.mxu0 0.0
  %10410 = vmatprep.subr.mxu0 0.0
  %10411 = vmatpush1.msra.mxu0 0.0
  %10412 = vmatprep.subr.mxu0 0.0
  %10413 = vmatpush1.msra.mxu0 0.0
  %10414 = vmatprep.subr.mxu0 0.0
  %10415 = vmatpush1.msra.mxu0 0.0
  %10416 = vmatprep.subr.mxu0 0.0
  %10417 = vmatpush1.msra.mxu0 0.0
  %10418 = vmatprep.subr.mxu0 0.0
  %10419 = vmatpush1.msra.mxu0 0.0
  %10420 = vmatprep.subr.mxu0 0.0
  %10421 = vmatpush1.msra.mxu0 0.0
  %10422 = vmatprep.subr.mxu0 0.0
  %10423 = vmatpush1.msra.mxu0 0.0
  %10424 = vmatprep.subr.mxu0 0.0
  %10425 = vmatpush1.msra.mxu0 0.0
  %10426 = vmatprep.subr.mxu0 0.0
  %10427 = vmatpush1.msra.mxu0 0.0
  %10428 = vmatprep.subr.mxu0 0.0
  %10429 = vmatpush1.msra.mxu0 0.0
  %10430 = vmatprep.subr.mxu0 0.0
  %10431 = vmatpush1.msra.mxu0 0.0
  %v10432 = vand.u32 %v3924, 4294901760
  %10433 = vmatprep.mubr.f32.mxu0 %v10432
  %v10434 = vand.u32 %v3641, 4294901760
  %10435 = vmatmul.mubr.f32.gmra.mrb[0].mxu0 %v10434
  %v10436 = vpop.f32.mrb[0].mxu0
  %v10437 = vadd.f32 %v10300, %v10436
  %v10438 = vpop.f32.mrb[0].mxu0
  %v10439 = vand.u32 %v3927, 4294901760
  %10440 = vmatprep.mubr.f32.mxu0 %v10439
  %v10441 = vand.u32 %v3643, 4294901760
  %10442 = vmatmul.mubr.f32.gmra.mrb[0].mxu0 %v10441
  %v10443 = vpop.f32.mrb[0].mxu0
  %v10444 = vadd.f32 %v10311, %v10443
  %v10445 = vpop.f32.mrb[0].mxu0
  %10446 = vdwg.mxu0
  %10447 = vmatprep.subr.mxu0 0.0
  %v10448 = vand.u32 %v9755, 4294901760
  %10449 = vmatpush1.msra.mxu0 %v10448
  %10450 = vmatprep.subr.mxu0 0.0
  %v10451 = vand.u32 %v9757, 4294901760
  %10452 = vmatpush1.msra.mxu0 %v10451
  %10453 = vmatprep.subr.mxu0 0.0
  %v10454 = vand.u32 %v9759, 4294901760
  %10455 = vmatpush1.msra.mxu0 %v10454
  %10456 = vmatprep.subr.mxu0 0.0
  %v10457 = vand.u32 %v9761, 4294901760
  %10458 = vmatpush1.msra.mxu0 %v10457
  %10459 = vmatprep.subr.mxu0 0.0
  %v10460 = vand.u32 %v9763, 4294901760
  %10461 = vmatpush1.msra.mxu0 %v10460
  %10462 = vmatprep.subr.mxu0 0.0
  %v10463 = vand.u32 %v9765, 4294901760
  %10464 = vmatpush1.msra.mxu0 %v10463
  %10465 = vmatprep.subr.mxu0 0.0
  %v10466 = vand.u32 %v9767, 4294901760
  %10467 = vmatpush1.msra.mxu0 %v10466
  %10468 = vmatprep.subr.mxu0 0.0
  %v10469 = vand.u32 %v9769, 4294901760
  %10470 = vmatpush1.msra.mxu0 %v10469
  %10471 = vmatprep.subr.mxu0 0.0
  %v10472 = vand.u32 %v9771, 4294901760
  %10473 = vmatpush1.msra.mxu0 %v10472
  %10474 = vmatprep.subr.mxu0 0.0
  %v10475 = vand.u32 %v9773, 4294901760
  %10476 = vmatpush1.msra.mxu0 %v10475
  %10477 = vmatprep.subr.mxu0 0.0
  %v10478 = vand.u32 %v9775, 4294901760
  %10479 = vmatpush1.msra.mxu0 %v10478
  %10480 = vmatprep.subr.mxu0 0.0
  %v10481 = vand.u32 %v9777, 4294901760
  %10482 = vmatpush1.msra.mxu0 %v10481
  %10483 = vmatprep.subr.mxu0 0.0
  %v10484 = vand.u32 %v9779, 4294901760
  %10485 = vmatpush1.msra.mxu0 %v10484
  %10486 = vmatprep.subr.mxu0 0.0
  %v10487 = vand.u32 %v9781, 4294901760
  %10488 = vmatpush1.msra.mxu0 %v10487
  %10489 = vmatprep.subr.mxu0 0.0
  %v10490 = vand.u32 %v9783, 4294901760
  %10491 = vmatpush1.msra.mxu0 %v10490
  %10492 = vmatprep.subr.mxu0 0.0
  %v10493 = vand.u32 %v9785, 4294901760
  %10494 = vmatpush1.msra.mxu0 %v10493
  %10495 = vmatprep.subr.mxu0 0.0
  %v10496 = vand.u32 %v9787, 4294901760
  %10497 = vmatpush1.msra.mxu0 %v10496
  %10498 = vmatprep.subr.mxu0 0.0
  %v10499 = vand.u32 %v9789, 4294901760
  %10500 = vmatpush1.msra.mxu0 %v10499
  %10501 = vmatprep.subr.mxu0 0.0
  %10502 = vmatpush1.msra.mxu0 0.0
  %10503 = vmatprep.subr.mxu0 0.0
  %10504 = vmatpush1.msra.mxu0 0.0
  %10505 = vmatprep.subr.mxu0 0.0
  %10506 = vmatpush1.msra.mxu0 0.0
  %10507 = vmatprep.subr.mxu0 0.0
  %10508 = vmatpush1.msra.mxu0 0.0
  %10509 = vmatprep.subr.mxu0 0.0
  %10510 = vmatpush1.msra.mxu0 0.0
  %10511 = vmatprep.subr.mxu0 0.0
  %10512 = vmatpush1.msra.mxu0 0.0
  %10513 = vmatprep.subr.mxu0 0.0
  %10514 = vmatpush1.msra.mxu0 0.0
  %10515 = vmatprep.subr.mxu0 0.0
  %10516 = vmatpush1.msra.mxu0 0.0
  %10517 = vmatprep.subr.mxu0 0.0
  %10518 = vmatpush1.msra.mxu0 0.0
  %10519 = vmatprep.subr.mxu0 0.0
  %10520 = vmatpush1.msra.mxu0 0.0
  %10521 = vmatprep.subr.mxu0 0.0
  %10522 = vmatpush1.msra.mxu0 0.0
  %10523 = vmatprep.subr.mxu0 0.0
  %10524 = vmatpush1.msra.mxu0 0.0
  %10525 = vmatprep.subr.mxu0 0.0
  %10526 = vmatpush1.msra.mxu0 0.0
  %10527 = vmatprep.subr.mxu0 0.0
  %10528 = vmatpush1.msra.mxu0 0.0
  %v10529 = vand.u32 %v3924, 4294901760
  %10530 = vmatprep.mubr.f32.mxu0 %v10529
  %v10531 = vand.u32 %v3641, 4294901760
  %10532 = vmatmul.mubr.f32.gmra.mrb[0].mxu0 %v10531
  %v10533 = vpop.f32.mrb[0].mxu0
  %v10534 = vadd.f32 %v10437, %v10533
  %v10535 = vpop.f32.mrb[0].mxu0
  %v10536 = vand.u32 %v3927, 4294901760
  %10537 = vmatprep.mubr.f32.mxu0 %v10536
  %v10538 = vand.u32 %v3643, 4294901760
  %10539 = vmatmul.mubr.f32.gmra.mrb[0].mxu0 %v10538
  %v10540 = vpop.f32.mrb[0].mxu0
  %v10541 = vadd.f32 %v10444, %v10540
  %v10542 = vpop.f32.mrb[0].mxu0
  %10543 = vdwg.mxu0
  %v10544 = vmax.f32 %v10534, 1e-30
  %v10545 = vmax.f32 %v10541, 1e-30
  %v10546 = vrcp.pop %v10544
  %v10547 = vmul.f32 1.0, %v10546
  %v10548 = vrcp.pop %v10545
  %v10549 = vmul.f32 1.0, %v10548
  %10550 = vset.pattern.permute.xlu0 24
  %10551 = vperm.xlu0 %10550, %v9718
  %v10552 = vpop.permute.xlu0 %10551
  %10554 = vset.pattern.permute.xlu0 24
  %10555 = vperm.xlu0 %10554, %v9719
  %v10556 = vpop.permute.xlu0 %10555
  %10558 = vset.pattern.permute.xlu0 24
  %10559 = vperm.xlu0 %10558, %v9720
  %v10560 = vpop.permute.xlu0 %10559
  %10562 = vset.pattern.permute.xlu0 24
  %10563 = vperm.xlu0 %10562, %v9721
  %v10564 = vpop.permute.xlu0 %10563
  %10566 = vset.pattern.permute.xlu0 24
  %10567 = vperm.xlu0 %10566, %v9722
  %v10568 = vpop.permute.xlu0 %10567
  %10570 = vset.pattern.permute.xlu0 24
  %10571 = vperm.xlu0 %10570, %v9723
  %v10572 = vpop.permute.xlu0 %10571
  %10574 = vset.pattern.permute.xlu0 24
  %10575 = vperm.xlu0 %10574, %v9724
  %v10576 = vpop.permute.xlu0 %10575
  %10578 = vset.pattern.permute.xlu0 24
  %10579 = vperm.xlu0 %10578, %v9725
  %v10580 = vpop.permute.xlu0 %10579
  %10582 = vset.pattern.permute.xlu0 24
  %10583 = vperm.xlu0 %10582, %v9726
  %v10584 = vpop.permute.xlu0 %10583
  %10586 = vset.pattern.permute.xlu0 24
  %10587 = vperm.xlu0 %10586, %v9727
  %v10588 = vpop.permute.xlu0 %10587
  %10590 = vset.pattern.permute.xlu0 24
  %10591 = vperm.xlu0 %10590, %v9728
  %v10592 = vpop.permute.xlu0 %10591
  %10594 = vset.pattern.permute.xlu0 24
  %10595 = vperm.xlu0 %10594, %v9729
  %v10596 = vpop.permute.xlu0 %10595
  %10598 = vset.pattern.permute.xlu0 24
  %10599 = vperm.xlu0 %10598, %v9730
  %v10600 = vpop.permute.xlu0 %10599
  %10602 = vset.pattern.permute.xlu0 24
  %10603 = vperm.xlu0 %10602, %v9731
  %v10604 = vpop.permute.xlu0 %10603
  %10606 = vset.pattern.permute.xlu0 24
  %10607 = vperm.xlu0 %10606, %v9732
  %v10608 = vpop.permute.xlu0 %10607
  %10610 = vset.pattern.permute.xlu0 24
  %10611 = vperm.xlu0 %10610, %v9733
  %v10612 = vpop.permute.xlu0 %10611
  %10614 = vset.pattern.permute.xlu0 24
  %10615 = vperm.xlu0 %10614, %v9734
  %v10616 = vpop.permute.xlu0 %10615
  %10618 = vset.pattern.permute.xlu0 24
  %10619 = vperm.xlu0 %10618, %v9735
  %v10620 = vpop.permute.xlu0 %10619
  %v10622 = vmul.f32 %v10552, %v2195
  %v10623 = vmul.f32 %v10556, %v2201
  %v10624 = vmul.f32 %v10560, %v2207
  %v10625 = vmul.f32 %v10564, %v2213
  %v10626 = vmul.f32 %v10568, %v2219
  %v10627 = vmul.f32 %v10572, %v2225
  %v10628 = vmul.f32 %v10576, %v2231
  %v10629 = vmul.f32 %v10580, %v2237
  %v10630 = vmul.f32 %v10584, %v2243
  %v10631 = vmul.f32 %v10588, %v2249
  %v10632 = vmul.f32 %v10592, %v2255
  %v10633 = vmul.f32 %v10596, %v2261
  %v10634 = vmul.f32 %v10600, %v2267
  %v10635 = vmul.f32 %v10604, %v2273
  %v10636 = vmul.f32 %v10608, %v2279
  %v10637 = vmul.f32 %v10612, %v2285
  %v10638 = vmul.f32 %v10616, %v2291
  %v10639 = vmul.f32 %v10620, %v2297
  %10658 = vrot.lane.b32.xlu0 %v10622, 122
  %v10659 = vpop.permute.xlu0 %10658
  %10660 = vrot.lane.b32.xlu0 %v10623, 122
  %v10661 = vpop.permute.xlu0 %10660
  %10662 = vrot.lane.b32.xlu0 %v10624, 122
  %v10663 = vpop.permute.xlu0 %10662
  %10664 = vrot.lane.b32.xlu0 %v10625, 122
  %v10665 = vpop.permute.xlu0 %10664
  %10666 = vrot.lane.b32.xlu0 %v10626, 122
  %v10667 = vpop.permute.xlu0 %10666
  %10668 = vrot.lane.b32.xlu0 %v10627, 122
  %v10669 = vpop.permute.xlu0 %10668
  %10670 = vrot.lane.b32.xlu0 %v10628, 122
  %v10671 = vpop.permute.xlu0 %10670
  %10672 = vrot.lane.b32.xlu0 %v10629, 122
  %v10673 = vpop.permute.xlu0 %10672
  %10674 = vrot.lane.b32.xlu0 %v10630, 122
  %v10675 = vpop.permute.xlu0 %10674
  %10676 = vrot.lane.b32.xlu0 %v10631, 122
  %v10677 = vpop.permute.xlu0 %10676
  %10678 = vrot.lane.b32.xlu0 %v10632, 122
  %v10679 = vpop.permute.xlu0 %10678
  %10680 = vrot.lane.b32.xlu0 %v10633, 122
  %v10681 = vpop.permute.xlu0 %10680
  %10682 = vrot.lane.b32.xlu0 %v10634, 122
  %v10683 = vpop.permute.xlu0 %10682
  %10684 = vrot.lane.b32.xlu0 %v10635, 122
  %v10685 = vpop.permute.xlu0 %10684
  %10686 = vrot.lane.b32.xlu0 %v10636, 122
  %v10687 = vpop.permute.xlu0 %10686
  %10688 = vrot.lane.b32.xlu0 %v10637, 122
  %v10689 = vpop.permute.xlu0 %10688
  %10690 = vrot.lane.b32.xlu0 %v10638, 122
  %v10691 = vpop.permute.xlu0 %10690
  %10692 = vrot.lane.b32.xlu0 %v10639, 122
  %v10693 = vpop.permute.xlu0 %10692
  %10712 = vmatprep.subr.mxu0 0.0
  %v10713 = vand.u32 %v10659, 4294901760
  %10714 = vmatpush1.msra.mxu0 %v10713
  %10715 = vmatprep.subr.mxu0 0.0
  %v10716 = vand.u32 %v10661, 4294901760
  %10717 = vmatpush1.msra.mxu0 %v10716
  %10718 = vmatprep.subr.mxu0 0.0
  %v10719 = vand.u32 %v10663, 4294901760
  %10720 = vmatpush1.msra.mxu0 %v10719
  %10721 = vmatprep.subr.mxu0 0.0
  %v10722 = vand.u32 %v10665, 4294901760
  %10723 = vmatpush1.msra.mxu0 %v10722
  %10724 = vmatprep.subr.mxu0 0.0
  %v10725 = vand.u32 %v10667, 4294901760
  %10726 = vmatpush1.msra.mxu0 %v10725
  %10727 = vmatprep.subr.mxu0 0.0
  %v10728 = vand.u32 %v10669, 4294901760
  %10729 = vmatpush1.msra.mxu0 %v10728
  %10730 = vmatprep.subr.mxu0 0.0
  %v10731 = vand.u32 %v10671, 4294901760
  %10732 = vmatpush1.msra.mxu0 %v10731
  %10733 = vmatprep.subr.mxu0 0.0
  %v10734 = vand.u32 %v10673, 4294901760
  %10735 = vmatpush1.msra.mxu0 %v10734
  %10736 = vmatprep.subr.mxu0 0.0
  %v10737 = vand.u32 %v10675, 4294901760
  %10738 = vmatpush1.msra.mxu0 %v10737
  %10739 = vmatprep.subr.mxu0 0.0
  %v10740 = vand.u32 %v10677, 4294901760
  %10741 = vmatpush1.msra.mxu0 %v10740
  %10742 = vmatprep.subr.mxu0 0.0
  %v10743 = vand.u32 %v10679, 4294901760
  %10744 = vmatpush1.msra.mxu0 %v10743
  %10745 = vmatprep.subr.mxu0 0.0
  %v10746 = vand.u32 %v10681, 4294901760
  %10747 = vmatpush1.msra.mxu0 %v10746
  %10748 = vmatprep.subr.mxu0 0.0
  %v10749 = vand.u32 %v10683, 4294901760
  %10750 = vmatpush1.msra.mxu0 %v10749
  %10751 = vmatprep.subr.mxu0 0.0
  %v10752 = vand.u32 %v10685, 4294901760
  %10753 = vmatpush1.msra.mxu0 %v10752
  %10754 = vmatprep.subr.mxu0 0.0
  %v10755 = vand.u32 %v10687, 4294901760
  %10756 = vmatpush1.msra.mxu0 %v10755
  %10757 = vmatprep.subr.mxu0 0.0
  %v10758 = vand.u32 %v10689, 4294901760
  %10759 = vmatpush1.msra.mxu0 %v10758
  %10760 = vmatprep.subr.mxu0 0.0
  %v10761 = vand.u32 %v10691, 4294901760
  %10762 = vmatpush1.msra.mxu0 %v10761
  %10763 = vmatprep.subr.mxu0 0.0
  %v10764 = vand.u32 %v10693, 4294901760
  %10765 = vmatpush1.msra.mxu0 %v10764
  %10766 = vmatprep.subr.mxu0 0.0
  %10767 = vmatpush1.msra.mxu0 0.0
  %10768 = vmatprep.subr.mxu0 0.0
  %10769 = vmatpush1.msra.mxu0 0.0
  %10770 = vmatprep.subr.mxu0 0.0
  %10771 = vmatpush1.msra.mxu0 0.0
  %10772 = vmatprep.subr.mxu0 0.0
  %10773 = vmatpush1.msra.mxu0 0.0
  %10774 = vmatprep.subr.mxu0 0.0
  %10775 = vmatpush1.msra.mxu0 0.0
  %10776 = vmatprep.subr.mxu0 0.0
  %10777 = vmatpush1.msra.mxu0 0.0
  %10778 = vmatprep.subr.mxu0 0.0
  %10779 = vmatpush1.msra.mxu0 0.0
  %10780 = vmatprep.subr.mxu0 0.0
  %10781 = vmatpush1.msra.mxu0 0.0
  %10782 = vmatprep.subr.mxu0 0.0
  %10783 = vmatpush1.msra.mxu0 0.0
  %10784 = vmatprep.subr.mxu0 0.0
  %10785 = vmatpush1.msra.mxu0 0.0
  %10786 = vmatprep.subr.mxu0 0.0
  %10787 = vmatpush1.msra.mxu0 0.0
  %10788 = vmatprep.subr.mxu0 0.0
  %10789 = vmatpush1.msra.mxu0 0.0
  %10790 = vmatprep.subr.mxu0 0.0
  %10791 = vmatpush1.msra.mxu0 0.0
  %10792 = vmatprep.subr.mxu0 0.0
  %10793 = vmatpush1.msra.mxu0 0.0
  %v10794 = vand.u32 %v3924, 4294901760
  %v10795 = vsub.f32 %v3924, %v10794
  %v10796 = vand.u32 %v10795, 4294901760
  %v10797 = vsub.f32 %v10795, %v10796
  %v10798 = vand.u32 %v10797, 4294901760
  %10799 = vmatprep.mubr.f32.mxu0 %v10798
  %v10800 = vand.u32 %v3641, 4294901760
  %v10801 = vsub.f32 %v3641, %v10800
  %v10802 = vand.u32 %v10801, 4294901760
  %v10803 = vsub.f32 %v10801, %v10802
  %v10804 = vand.u32 %v10803, 4294901760
  %10805 = vmatmul.mubr.f32.gmra.mrb[0].mxu0 %v10804
  %v10806 = vpop.f32.mrb[0].mxu0
  %v10807 = vadd.f32 0.0, %v10806
  %v10808 = vpop.f32.mrb[0].mxu0
  %v10809 = vand.u32 %v3927, 4294901760
  %v10810 = vsub.f32 %v3927, %v10809
  %v10811 = vand.u32 %v10810, 4294901760
  %v10812 = vsub.f32 %v10810, %v10811
  %v10813 = vand.u32 %v10812, 4294901760
  %10814 = vmatprep.mubr.f32.mxu0 %v10813
  %v10815 = vand.u32 %v3643, 4294901760
  %v10816 = vsub.f32 %v3643, %v10815
  %v10817 = vand.u32 %v10816, 4294901760
  %v10818 = vsub.f32 %v10816, %v10817
  %v10819 = vand.u32 %v10818, 4294901760
  %10820 = vmatmul.mubr.f32.gmra.mrb[0].mxu0 %v10819
  %v10821 = vpop.f32.mrb[0].mxu0
  %v10822 = vadd.f32 0.0, %v10821
  %v10823 = vpop.f32.mrb[0].mxu0
  %10824 = vdwg.mxu0
  %10825 = vmatprep.subr.mxu0 0.0
  %v10826 = vand.u32 %v10659, 4294901760
  %v10827 = vsub.f32 %v10659, %v10826
  %v10828 = vand.u32 %v10827, 4294901760
  %v10829 = vsub.f32 %v10827, %v10828
  %v10830 = vand.u32 %v10829, 4294901760
  %10831 = vmatpush1.msra.mxu0 %v10830
  %10832 = vmatprep.subr.mxu0 0.0
  %v10833 = vand.u32 %v10661, 4294901760
  %v10834 = vsub.f32 %v10661, %v10833
  %v10835 = vand.u32 %v10834, 4294901760
  %v10836 = vsub.f32 %v10834, %v10835
  %v10837 = vand.u32 %v10836, 4294901760
  %10838 = vmatpush1.msra.mxu0 %v10837
  %10839 = vmatprep.subr.mxu0 0.0
  %v10840 = vand.u32 %v10663, 4294901760
  %v10841 = vsub.f32 %v10663, %v10840
  %v10842 = vand.u32 %v10841, 4294901760
  %v10843 = vsub.f32 %v10841, %v10842
  %v10844 = vand.u32 %v10843, 4294901760
  %10845 = vmatpush1.msra.mxu0 %v10844
  %10846 = vmatprep.subr.mxu0 0.0
  %v10847 = vand.u32 %v10665, 4294901760
  %v10848 = vsub.f32 %v10665, %v10847
  %v10849 = vand.u32 %v10848, 4294901760
  %v10850 = vsub.f32 %v10848, %v10849
  %v10851 = vand.u32 %v10850, 4294901760
  %10852 = vmatpush1.msra.mxu0 %v10851
  %10853 = vmatprep.subr.mxu0 0.0
  %v10854 = vand.u32 %v10667, 4294901760
  %v10855 = vsub.f32 %v10667, %v10854
  %v10856 = vand.u32 %v10855, 4294901760
  %v10857 = vsub.f32 %v10855, %v10856
  %v10858 = vand.u32 %v10857, 4294901760
  %10859 = vmatpush1.msra.mxu0 %v10858
  %10860 = vmatprep.subr.mxu0 0.0
  %v10861 = vand.u32 %v10669, 4294901760
  %v10862 = vsub.f32 %v10669, %v10861
  %v10863 = vand.u32 %v10862, 4294901760
  %v10864 = vsub.f32 %v10862, %v10863
  %v10865 = vand.u32 %v10864, 4294901760
  %10866 = vmatpush1.msra.mxu0 %v10865
  %10867 = vmatprep.subr.mxu0 0.0
  %v10868 = vand.u32 %v10671, 4294901760
  %v10869 = vsub.f32 %v10671, %v10868
  %v10870 = vand.u32 %v10869, 4294901760
  %v10871 = vsub.f32 %v10869, %v10870
  %v10872 = vand.u32 %v10871, 4294901760
  %10873 = vmatpush1.msra.mxu0 %v10872
  %10874 = vmatprep.subr.mxu0 0.0
  %v10875 = vand.u32 %v10673, 4294901760
  %v10876 = vsub.f32 %v10673, %v10875
  %v10877 = vand.u32 %v10876, 4294901760
  %v10878 = vsub.f32 %v10876, %v10877
  %v10879 = vand.u32 %v10878, 4294901760
  %10880 = vmatpush1.msra.mxu0 %v10879
  %10881 = vmatprep.subr.mxu0 0.0
  %v10882 = vand.u32 %v10675, 4294901760
  %v10883 = vsub.f32 %v10675, %v10882
  %v10884 = vand.u32 %v10883, 4294901760
  %v10885 = vsub.f32 %v10883, %v10884
  %v10886 = vand.u32 %v10885, 4294901760
  %10887 = vmatpush1.msra.mxu0 %v10886
  %10888 = vmatprep.subr.mxu0 0.0
  %v10889 = vand.u32 %v10677, 4294901760
  %v10890 = vsub.f32 %v10677, %v10889
  %v10891 = vand.u32 %v10890, 4294901760
  %v10892 = vsub.f32 %v10890, %v10891
  %v10893 = vand.u32 %v10892, 4294901760
  %10894 = vmatpush1.msra.mxu0 %v10893
  %10895 = vmatprep.subr.mxu0 0.0
  %v10896 = vand.u32 %v10679, 4294901760
  %v10897 = vsub.f32 %v10679, %v10896
  %v10898 = vand.u32 %v10897, 4294901760
  %v10899 = vsub.f32 %v10897, %v10898
  %v10900 = vand.u32 %v10899, 4294901760
  %10901 = vmatpush1.msra.mxu0 %v10900
  %10902 = vmatprep.subr.mxu0 0.0
  %v10903 = vand.u32 %v10681, 4294901760
  %v10904 = vsub.f32 %v10681, %v10903
  %v10905 = vand.u32 %v10904, 4294901760
  %v10906 = vsub.f32 %v10904, %v10905
  %v10907 = vand.u32 %v10906, 4294901760
  %10908 = vmatpush1.msra.mxu0 %v10907
  %10909 = vmatprep.subr.mxu0 0.0
  %v10910 = vand.u32 %v10683, 4294901760
  %v10911 = vsub.f32 %v10683, %v10910
  %v10912 = vand.u32 %v10911, 4294901760
  %v10913 = vsub.f32 %v10911, %v10912
  %v10914 = vand.u32 %v10913, 4294901760
  %10915 = vmatpush1.msra.mxu0 %v10914
  %10916 = vmatprep.subr.mxu0 0.0
  %v10917 = vand.u32 %v10685, 4294901760
  %v10918 = vsub.f32 %v10685, %v10917
  %v10919 = vand.u32 %v10918, 4294901760
  %v10920 = vsub.f32 %v10918, %v10919
  %v10921 = vand.u32 %v10920, 4294901760
  %10922 = vmatpush1.msra.mxu0 %v10921
  %10923 = vmatprep.subr.mxu0 0.0
  %v10924 = vand.u32 %v10687, 4294901760
  %v10925 = vsub.f32 %v10687, %v10924
  %v10926 = vand.u32 %v10925, 4294901760
  %v10927 = vsub.f32 %v10925, %v10926
  %v10928 = vand.u32 %v10927, 4294901760
  %10929 = vmatpush1.msra.mxu0 %v10928
  %10930 = vmatprep.subr.mxu0 0.0
  %v10931 = vand.u32 %v10689, 4294901760
  %v10932 = vsub.f32 %v10689, %v10931
  %v10933 = vand.u32 %v10932, 4294901760
  %v10934 = vsub.f32 %v10932, %v10933
  %v10935 = vand.u32 %v10934, 4294901760
  %10936 = vmatpush1.msra.mxu0 %v10935
  %10937 = vmatprep.subr.mxu0 0.0
  %v10938 = vand.u32 %v10691, 4294901760
  %v10939 = vsub.f32 %v10691, %v10938
  %v10940 = vand.u32 %v10939, 4294901760
  %v10941 = vsub.f32 %v10939, %v10940
  %v10942 = vand.u32 %v10941, 4294901760
  %10943 = vmatpush1.msra.mxu0 %v10942
  %10944 = vmatprep.subr.mxu0 0.0
  %v10945 = vand.u32 %v10693, 4294901760
  %v10946 = vsub.f32 %v10693, %v10945
  %v10947 = vand.u32 %v10946, 4294901760
  %v10948 = vsub.f32 %v10946, %v10947
  %v10949 = vand.u32 %v10948, 4294901760
  %10950 = vmatpush1.msra.mxu0 %v10949
  %10951 = vmatprep.subr.mxu0 0.0
  %10952 = vmatpush1.msra.mxu0 0.0
  %10953 = vmatprep.subr.mxu0 0.0
  %10954 = vmatpush1.msra.mxu0 0.0
  %10955 = vmatprep.subr.mxu0 0.0
  %10956 = vmatpush1.msra.mxu0 0.0
  %10957 = vmatprep.subr.mxu0 0.0
  %10958 = vmatpush1.msra.mxu0 0.0
  %10959 = vmatprep.subr.mxu0 0.0
  %10960 = vmatpush1.msra.mxu0 0.0
  %10961 = vmatprep.subr.mxu0 0.0
  %10962 = vmatpush1.msra.mxu0 0.0
  %10963 = vmatprep.subr.mxu0 0.0
  %10964 = vmatpush1.msra.mxu0 0.0
  %10965 = vmatprep.subr.mxu0 0.0
  %10966 = vmatpush1.msra.mxu0 0.0
  %10967 = vmatprep.subr.mxu0 0.0
  %10968 = vmatpush1.msra.mxu0 0.0
  %10969 = vmatprep.subr.mxu0 0.0
  %10970 = vmatpush1.msra.mxu0 0.0
  %10971 = vmatprep.subr.mxu0 0.0
  %10972 = vmatpush1.msra.mxu0 0.0
  %10973 = vmatprep.subr.mxu0 0.0
  %10974 = vmatpush1.msra.mxu0 0.0
  %10975 = vmatprep.subr.mxu0 0.0
  %10976 = vmatpush1.msra.mxu0 0.0
  %10977 = vmatprep.subr.mxu0 0.0
  %10978 = vmatpush1.msra.mxu0 0.0
  %v10979 = vand.u32 %v3924, 4294901760
  %10980 = vmatprep.mubr.f32.mxu0 %v10979
  %v10981 = vand.u32 %v3641, 4294901760
  %10982 = vmatmul.mubr.f32.gmra.mrb[0].mxu0 %v10981
  %v10983 = vpop.f32.mrb[0].mxu0
  %v10984 = vadd.f32 %v10807, %v10983
  %v10985 = vpop.f32.mrb[0].mxu0
  %v10986 = vand.u32 %v3927, 4294901760
  %10987 = vmatprep.mubr.f32.mxu0 %v10986
  %v10988 = vand.u32 %v3643, 4294901760
  %10989 = vmatmul.mubr.f32.gmra.mrb[0].mxu0 %v10988
  %v10990 = vpop.f32.mrb[0].mxu0
  %v10991 = vadd.f32 %v10822, %v10990
  %v10992 = vpop.f32.mrb[0].mxu0
  %10993 = vdwg.mxu0
  %10994 = vmatprep.subr.mxu0 0.0
  %v10995 = vand.u32 %v10659, 4294901760
  %v10996 = vsub.f32 %v10659, %v10995
  %10997 = vmatpush1.msra.mxu0 %v10996
  %10998 = vmatprep.subr.mxu0 0.0
  %v10999 = vand.u32 %v10661, 4294901760
  %v11000 = vsub.f32 %v10661, %v10999
  %11001 = vmatpush1.msra.mxu0 %v11000
  %11002 = vmatprep.subr.mxu0 0.0
  %v11003 = vand.u32 %v10663, 4294901760
  %v11004 = vsub.f32 %v10663, %v11003
  %11005 = vmatpush1.msra.mxu0 %v11004
  %11006 = vmatprep.subr.mxu0 0.0
  %v11007 = vand.u32 %v10665, 4294901760
  %v11008 = vsub.f32 %v10665, %v11007
  %11009 = vmatpush1.msra.mxu0 %v11008
  %11010 = vmatprep.subr.mxu0 0.0
  %v11011 = vand.u32 %v10667, 4294901760
  %v11012 = vsub.f32 %v10667, %v11011
  %11013 = vmatpush1.msra.mxu0 %v11012
  %11014 = vmatprep.subr.mxu0 0.0
  %v11015 = vand.u32 %v10669, 4294901760
  %v11016 = vsub.f32 %v10669, %v11015
  %11017 = vmatpush1.msra.mxu0 %v11016
  %11018 = vmatprep.subr.mxu0 0.0
  %v11019 = vand.u32 %v10671, 4294901760
  %v11020 = vsub.f32 %v10671, %v11019
  %11021 = vmatpush1.msra.mxu0 %v11020
  %11022 = vmatprep.subr.mxu0 0.0
  %v11023 = vand.u32 %v10673, 4294901760
  %v11024 = vsub.f32 %v10673, %v11023
  %11025 = vmatpush1.msra.mxu0 %v11024
  %11026 = vmatprep.subr.mxu0 0.0
  %v11027 = vand.u32 %v10675, 4294901760
  %v11028 = vsub.f32 %v10675, %v11027
  %11029 = vmatpush1.msra.mxu0 %v11028
  %11030 = vmatprep.subr.mxu0 0.0
  %v11031 = vand.u32 %v10677, 4294901760
  %v11032 = vsub.f32 %v10677, %v11031
  %11033 = vmatpush1.msra.mxu0 %v11032
  %11034 = vmatprep.subr.mxu0 0.0
  %v11035 = vand.u32 %v10679, 4294901760
  %v11036 = vsub.f32 %v10679, %v11035
  %11037 = vmatpush1.msra.mxu0 %v11036
  %11038 = vmatprep.subr.mxu0 0.0
  %v11039 = vand.u32 %v10681, 4294901760
  %v11040 = vsub.f32 %v10681, %v11039
  %11041 = vmatpush1.msra.mxu0 %v11040
  %11042 = vmatprep.subr.mxu0 0.0
  %v11043 = vand.u32 %v10683, 4294901760
  %v11044 = vsub.f32 %v10683, %v11043
  %11045 = vmatpush1.msra.mxu0 %v11044
  %11046 = vmatprep.subr.mxu0 0.0
  %v11047 = vand.u32 %v10685, 4294901760
  %v11048 = vsub.f32 %v10685, %v11047
  %11049 = vmatpush1.msra.mxu0 %v11048
  %11050 = vmatprep.subr.mxu0 0.0
  %v11051 = vand.u32 %v10687, 4294901760
  %v11052 = vsub.f32 %v10687, %v11051
  %11053 = vmatpush1.msra.mxu0 %v11052
  %11054 = vmatprep.subr.mxu0 0.0
  %v11055 = vand.u32 %v10689, 4294901760
  %v11056 = vsub.f32 %v10689, %v11055
  %11057 = vmatpush1.msra.mxu0 %v11056
  %11058 = vmatprep.subr.mxu0 0.0
  %v11059 = vand.u32 %v10691, 4294901760
  %v11060 = vsub.f32 %v10691, %v11059
  %11061 = vmatpush1.msra.mxu0 %v11060
  %11062 = vmatprep.subr.mxu0 0.0
  %v11063 = vand.u32 %v10693, 4294901760
  %v11064 = vsub.f32 %v10693, %v11063
  %11065 = vmatpush1.msra.mxu0 %v11064
  %11066 = vmatprep.subr.mxu0 0.0
  %11067 = vmatpush1.msra.mxu0 0.0
  %11068 = vmatprep.subr.mxu0 0.0
  %11069 = vmatpush1.msra.mxu0 0.0
  %11070 = vmatprep.subr.mxu0 0.0
  %11071 = vmatpush1.msra.mxu0 0.0
  %11072 = vmatprep.subr.mxu0 0.0
  %11073 = vmatpush1.msra.mxu0 0.0
  %11074 = vmatprep.subr.mxu0 0.0
  %11075 = vmatpush1.msra.mxu0 0.0
  %11076 = vmatprep.subr.mxu0 0.0
  %11077 = vmatpush1.msra.mxu0 0.0
  %11078 = vmatprep.subr.mxu0 0.0
  %11079 = vmatpush1.msra.mxu0 0.0
  %11080 = vmatprep.subr.mxu0 0.0
  %11081 = vmatpush1.msra.mxu0 0.0
  %11082 = vmatprep.subr.mxu0 0.0
  %11083 = vmatpush1.msra.mxu0 0.0
  %11084 = vmatprep.subr.mxu0 0.0
  %11085 = vmatpush1.msra.mxu0 0.0
  %11086 = vmatprep.subr.mxu0 0.0
  %11087 = vmatpush1.msra.mxu0 0.0
  %11088 = vmatprep.subr.mxu0 0.0
  %11089 = vmatpush1.msra.mxu0 0.0
  %11090 = vmatprep.subr.mxu0 0.0
  %11091 = vmatpush1.msra.mxu0 0.0
  %11092 = vmatprep.subr.mxu0 0.0
  %11093 = vmatpush1.msra.mxu0 0.0
  %v11094 = vand.u32 %v3924, 4294901760
  %v11095 = vsub.f32 %v3924, %v11094
  %11096 = vmatprep.mubr.f32.mxu0 %v11095
  %v11097 = vand.u32 %v3641, 4294901760
  %v11098 = vsub.f32 %v3641, %v11097
  %11099 = vmatmul.mubr.f32.gmra.mrb[0].mxu0 %v11098
  %v11100 = vpop.f32.mrb[0].mxu0
  %v11101 = vadd.f32 %v10984, %v11100
  %v11102 = vpop.f32.mrb[0].mxu0
  %v11103 = vand.u32 %v3927, 4294901760
  %v11104 = vsub.f32 %v3927, %v11103
  %11105 = vmatprep.mubr.f32.mxu0 %v11104
  %v11106 = vand.u32 %v3643, 4294901760
  %v11107 = vsub.f32 %v3643, %v11106
  %11108 = vmatmul.mubr.f32.gmra.mrb[0].mxu0 %v11107
  %v11109 = vpop.f32.mrb[0].mxu0
  %v11110 = vadd.f32 %v10991, %v11109
  %v11111 = vpop.f32.mrb[0].mxu0
  %11112 = vdwg.mxu0
  %11113 = vmatprep.subr.mxu0 0.0
  %v11114 = vand.u32 %v10659, 4294901760
  %11115 = vmatpush1.msra.mxu0 %v11114
  %11116 = vmatprep.subr.mxu0 0.0
  %v11117 = vand.u32 %v10661, 4294901760
  %11118 = vmatpush1.msra.mxu0 %v11117
  %11119 = vmatprep.subr.mxu0 0.0
  %v11120 = vand.u32 %v10663, 4294901760
  %11121 = vmatpush1.msra.mxu0 %v11120
  %11122 = vmatprep.subr.mxu0 0.0
  %v11123 = vand.u32 %v10665, 4294901760
  %11124 = vmatpush1.msra.mxu0 %v11123
  %11125 = vmatprep.subr.mxu0 0.0
  %v11126 = vand.u32 %v10667, 4294901760
  %11127 = vmatpush1.msra.mxu0 %v11126
  %11128 = vmatprep.subr.mxu0 0.0
  %v11129 = vand.u32 %v10669, 4294901760
  %11130 = vmatpush1.msra.mxu0 %v11129
  %11131 = vmatprep.subr.mxu0 0.0
  %v11132 = vand.u32 %v10671, 4294901760
  %11133 = vmatpush1.msra.mxu0 %v11132
  %11134 = vmatprep.subr.mxu0 0.0
  %v11135 = vand.u32 %v10673, 4294901760
  %11136 = vmatpush1.msra.mxu0 %v11135
  %11137 = vmatprep.subr.mxu0 0.0
  %v11138 = vand.u32 %v10675, 4294901760
  %11139 = vmatpush1.msra.mxu0 %v11138
  %11140 = vmatprep.subr.mxu0 0.0
  %v11141 = vand.u32 %v10677, 4294901760
  %11142 = vmatpush1.msra.mxu0 %v11141
  %11143 = vmatprep.subr.mxu0 0.0
  %v11144 = vand.u32 %v10679, 4294901760
  %11145 = vmatpush1.msra.mxu0 %v11144
  %11146 = vmatprep.subr.mxu0 0.0
  %v11147 = vand.u32 %v10681, 4294901760
  %11148 = vmatpush1.msra.mxu0 %v11147
  %11149 = vmatprep.subr.mxu0 0.0
  %v11150 = vand.u32 %v10683, 4294901760
  %11151 = vmatpush1.msra.mxu0 %v11150
  %11152 = vmatprep.subr.mxu0 0.0
  %v11153 = vand.u32 %v10685, 4294901760
  %11154 = vmatpush1.msra.mxu0 %v11153
  %11155 = vmatprep.subr.mxu0 0.0
  %v11156 = vand.u32 %v10687, 4294901760
  %11157 = vmatpush1.msra.mxu0 %v11156
  %11158 = vmatprep.subr.mxu0 0.0
  %v11159 = vand.u32 %v10689, 4294901760
  %11160 = vmatpush1.msra.mxu0 %v11159
  %11161 = vmatprep.subr.mxu0 0.0
  %v11162 = vand.u32 %v10691, 4294901760
  %11163 = vmatpush1.msra.mxu0 %v11162
  %11164 = vmatprep.subr.mxu0 0.0
  %v11165 = vand.u32 %v10693, 4294901760
  %11166 = vmatpush1.msra.mxu0 %v11165
  %11167 = vmatprep.subr.mxu0 0.0
  %11168 = vmatpush1.msra.mxu0 0.0
  %11169 = vmatprep.subr.mxu0 0.0
  %11170 = vmatpush1.msra.mxu0 0.0
  %11171 = vmatprep.subr.mxu0 0.0
  %11172 = vmatpush1.msra.mxu0 0.0
  %11173 = vmatprep.subr.mxu0 0.0
  %11174 = vmatpush1.msra.mxu0 0.0
  %11175 = vmatprep.subr.mxu0 0.0
  %11176 = vmatpush1.msra.mxu0 0.0
  %11177 = vmatprep.subr.mxu0 0.0
  %11178 = vmatpush1.msra.mxu0 0.0
  %11179 = vmatprep.subr.mxu0 0.0
  %11180 = vmatpush1.msra.mxu0 0.0
  %11181 = vmatprep.subr.mxu0 0.0
  %11182 = vmatpush1.msra.mxu0 0.0
  %11183 = vmatprep.subr.mxu0 0.0
  %11184 = vmatpush1.msra.mxu0 0.0
  %11185 = vmatprep.subr.mxu0 0.0
  %11186 = vmatpush1.msra.mxu0 0.0
  %11187 = vmatprep.subr.mxu0 0.0
  %11188 = vmatpush1.msra.mxu0 0.0
  %11189 = vmatprep.subr.mxu0 0.0
  %11190 = vmatpush1.msra.mxu0 0.0
  %11191 = vmatprep.subr.mxu0 0.0
  %11192 = vmatpush1.msra.mxu0 0.0
  %11193 = vmatprep.subr.mxu0 0.0
  %11194 = vmatpush1.msra.mxu0 0.0
  %v11195 = vand.u32 %v3924, 4294901760
  %v11196 = vsub.f32 %v3924, %v11195
  %v11197 = vand.u32 %v11196, 4294901760
  %11198 = vmatprep.mubr.f32.mxu0 %v11197
  %v11199 = vand.u32 %v3641, 4294901760
  %v11200 = vsub.f32 %v3641, %v11199
  %v11201 = vand.u32 %v11200, 4294901760
  %11202 = vmatmul.mubr.f32.gmra.mrb[0].mxu0 %v11201
  %v11203 = vpop.f32.mrb[0].mxu0
  %v11204 = vadd.f32 %v11101, %v11203
  %v11205 = vpop.f32.mrb[0].mxu0
  %v11206 = vand.u32 %v3927, 4294901760
  %v11207 = vsub.f32 %v3927, %v11206
  %v11208 = vand.u32 %v11207, 4294901760
  %11209 = vmatprep.mubr.f32.mxu0 %v11208
  %v11210 = vand.u32 %v3643, 4294901760
  %v11211 = vsub.f32 %v3643, %v11210
  %v11212 = vand.u32 %v11211, 4294901760
  %11213 = vmatmul.mubr.f32.gmra.mrb[0].mxu0 %v11212
  %v11214 = vpop.f32.mrb[0].mxu0
  %v11215 = vadd.f32 %v11110, %v11214
  %v11216 = vpop.f32.mrb[0].mxu0
  %11217 = vdwg.mxu0
  %11218 = vmatprep.subr.mxu0 0.0
  %v11219 = vand.u32 %v10659, 4294901760
  %v11220 = vsub.f32 %v10659, %v11219
  %v11221 = vand.u32 %v11220, 4294901760
  %11222 = vmatpush1.msra.mxu0 %v11221
  %11223 = vmatprep.subr.mxu0 0.0
  %v11224 = vand.u32 %v10661, 4294901760
  %v11225 = vsub.f32 %v10661, %v11224
  %v11226 = vand.u32 %v11225, 4294901760
  %11227 = vmatpush1.msra.mxu0 %v11226
  %11228 = vmatprep.subr.mxu0 0.0
  %v11229 = vand.u32 %v10663, 4294901760
  %v11230 = vsub.f32 %v10663, %v11229
  %v11231 = vand.u32 %v11230, 4294901760
  %11232 = vmatpush1.msra.mxu0 %v11231
  %11233 = vmatprep.subr.mxu0 0.0
  %v11234 = vand.u32 %v10665, 4294901760
  %v11235 = vsub.f32 %v10665, %v11234
  %v11236 = vand.u32 %v11235, 4294901760
  %11237 = vmatpush1.msra.mxu0 %v11236
  %11238 = vmatprep.subr.mxu0 0.0
  %v11239 = vand.u32 %v10667, 4294901760
  %v11240 = vsub.f32 %v10667, %v11239
  %v11241 = vand.u32 %v11240, 4294901760
  %11242 = vmatpush1.msra.mxu0 %v11241
  %11243 = vmatprep.subr.mxu0 0.0
  %v11244 = vand.u32 %v10669, 4294901760
  %v11245 = vsub.f32 %v10669, %v11244
  %v11246 = vand.u32 %v11245, 4294901760
  %11247 = vmatpush1.msra.mxu0 %v11246
  %11248 = vmatprep.subr.mxu0 0.0
  %v11249 = vand.u32 %v10671, 4294901760
  %v11250 = vsub.f32 %v10671, %v11249
  %v11251 = vand.u32 %v11250, 4294901760
  %11252 = vmatpush1.msra.mxu0 %v11251
  %11253 = vmatprep.subr.mxu0 0.0
  %v11254 = vand.u32 %v10673, 4294901760
  %v11255 = vsub.f32 %v10673, %v11254
  %v11256 = vand.u32 %v11255, 4294901760
  %11257 = vmatpush1.msra.mxu0 %v11256
  %11258 = vmatprep.subr.mxu0 0.0
  %v11259 = vand.u32 %v10675, 4294901760
  %v11260 = vsub.f32 %v10675, %v11259
  %v11261 = vand.u32 %v11260, 4294901760
  %11262 = vmatpush1.msra.mxu0 %v11261
  %11263 = vmatprep.subr.mxu0 0.0
  %v11264 = vand.u32 %v10677, 4294901760
  %v11265 = vsub.f32 %v10677, %v11264
  %v11266 = vand.u32 %v11265, 4294901760
  %11267 = vmatpush1.msra.mxu0 %v11266
  %11268 = vmatprep.subr.mxu0 0.0
  %v11269 = vand.u32 %v10679, 4294901760
  %v11270 = vsub.f32 %v10679, %v11269
  %v11271 = vand.u32 %v11270, 4294901760
  %11272 = vmatpush1.msra.mxu0 %v11271
  %11273 = vmatprep.subr.mxu0 0.0
  %v11274 = vand.u32 %v10681, 4294901760
  %v11275 = vsub.f32 %v10681, %v11274
  %v11276 = vand.u32 %v11275, 4294901760
  %11277 = vmatpush1.msra.mxu0 %v11276
  %11278 = vmatprep.subr.mxu0 0.0
  %v11279 = vand.u32 %v10683, 4294901760
  %v11280 = vsub.f32 %v10683, %v11279
  %v11281 = vand.u32 %v11280, 4294901760
  %11282 = vmatpush1.msra.mxu0 %v11281
  %11283 = vmatprep.subr.mxu0 0.0
  %v11284 = vand.u32 %v10685, 4294901760
  %v11285 = vsub.f32 %v10685, %v11284
  %v11286 = vand.u32 %v11285, 4294901760
  %11287 = vmatpush1.msra.mxu0 %v11286
  %11288 = vmatprep.subr.mxu0 0.0
  %v11289 = vand.u32 %v10687, 4294901760
  %v11290 = vsub.f32 %v10687, %v11289
  %v11291 = vand.u32 %v11290, 4294901760
  %11292 = vmatpush1.msra.mxu0 %v11291
  %11293 = vmatprep.subr.mxu0 0.0
  %v11294 = vand.u32 %v10689, 4294901760
  %v11295 = vsub.f32 %v10689, %v11294
  %v11296 = vand.u32 %v11295, 4294901760
  %11297 = vmatpush1.msra.mxu0 %v11296
  %11298 = vmatprep.subr.mxu0 0.0
  %v11299 = vand.u32 %v10691, 4294901760
  %v11300 = vsub.f32 %v10691, %v11299
  %v11301 = vand.u32 %v11300, 4294901760
  %11302 = vmatpush1.msra.mxu0 %v11301
  %11303 = vmatprep.subr.mxu0 0.0
  %v11304 = vand.u32 %v10693, 4294901760
  %v11305 = vsub.f32 %v10693, %v11304
  %v11306 = vand.u32 %v11305, 4294901760
  %11307 = vmatpush1.msra.mxu0 %v11306
  %11308 = vmatprep.subr.mxu0 0.0
  %11309 = vmatpush1.msra.mxu0 0.0
  %11310 = vmatprep.subr.mxu0 0.0
  %11311 = vmatpush1.msra.mxu0 0.0
  %11312 = vmatprep.subr.mxu0 0.0
  %11313 = vmatpush1.msra.mxu0 0.0
  %11314 = vmatprep.subr.mxu0 0.0
  %11315 = vmatpush1.msra.mxu0 0.0
  %11316 = vmatprep.subr.mxu0 0.0
  %11317 = vmatpush1.msra.mxu0 0.0
  %11318 = vmatprep.subr.mxu0 0.0
  %11319 = vmatpush1.msra.mxu0 0.0
  %11320 = vmatprep.subr.mxu0 0.0
  %11321 = vmatpush1.msra.mxu0 0.0
  %11322 = vmatprep.subr.mxu0 0.0
  %11323 = vmatpush1.msra.mxu0 0.0
  %11324 = vmatprep.subr.mxu0 0.0
  %11325 = vmatpush1.msra.mxu0 0.0
  %11326 = vmatprep.subr.mxu0 0.0
  %11327 = vmatpush1.msra.mxu0 0.0
  %11328 = vmatprep.subr.mxu0 0.0
  %11329 = vmatpush1.msra.mxu0 0.0
  %11330 = vmatprep.subr.mxu0 0.0
  %11331 = vmatpush1.msra.mxu0 0.0
  %11332 = vmatprep.subr.mxu0 0.0
  %11333 = vmatpush1.msra.mxu0 0.0
  %11334 = vmatprep.subr.mxu0 0.0
  %11335 = vmatpush1.msra.mxu0 0.0
  %v11336 = vand.u32 %v3924, 4294901760
  %11337 = vmatprep.mubr.f32.mxu0 %v11336
  %v11338 = vand.u32 %v3641, 4294901760
  %11339 = vmatmul.mubr.f32.gmra.mrb[0].mxu0 %v11338
  %v11340 = vpop.f32.mrb[0].mxu0
  %v11341 = vadd.f32 %v11204, %v11340
  %v11342 = vpop.f32.mrb[0].mxu0
  %v11343 = vand.u32 %v3927, 4294901760
  %11344 = vmatprep.mubr.f32.mxu0 %v11343
  %v11345 = vand.u32 %v3643, 4294901760
  %11346 = vmatmul.mubr.f32.gmra.mrb[0].mxu0 %v11345
  %v11347 = vpop.f32.mrb[0].mxu0
  %v11348 = vadd.f32 %v11215, %v11347
  %v11349 = vpop.f32.mrb[0].mxu0
  %11350 = vdwg.mxu0
  %11351 = vmatprep.subr.mxu0 0.0
  %v11352 = vand.u32 %v10659, 4294901760
  %11353 = vmatpush1.msra.mxu0 %v11352
  %11354 = vmatprep.subr.mxu0 0.0
  %v11355 = vand.u32 %v10661, 4294901760
  %11356 = vmatpush1.msra.mxu0 %v11355
  %11357 = vmatprep.subr.mxu0 0.0
  %v11358 = vand.u32 %v10663, 4294901760
  %11359 = vmatpush1.msra.mxu0 %v11358
  %11360 = vmatprep.subr.mxu0 0.0
  %v11361 = vand.u32 %v10665, 4294901760
  %11362 = vmatpush1.msra.mxu0 %v11361
  %11363 = vmatprep.subr.mxu0 0.0
  %v11364 = vand.u32 %v10667, 4294901760
  %11365 = vmatpush1.msra.mxu0 %v11364
  %11366 = vmatprep.subr.mxu0 0.0
  %v11367 = vand.u32 %v10669, 4294901760
  %11368 = vmatpush1.msra.mxu0 %v11367
  %11369 = vmatprep.subr.mxu0 0.0
  %v11370 = vand.u32 %v10671, 4294901760
  %11371 = vmatpush1.msra.mxu0 %v11370
  %11372 = vmatprep.subr.mxu0 0.0
  %v11373 = vand.u32 %v10673, 4294901760
  %11374 = vmatpush1.msra.mxu0 %v11373
  %11375 = vmatprep.subr.mxu0 0.0
  %v11376 = vand.u32 %v10675, 4294901760
  %11377 = vmatpush1.msra.mxu0 %v11376
  %11378 = vmatprep.subr.mxu0 0.0
  %v11379 = vand.u32 %v10677, 4294901760
  %11380 = vmatpush1.msra.mxu0 %v11379
  %11381 = vmatprep.subr.mxu0 0.0
  %v11382 = vand.u32 %v10679, 4294901760
  %11383 = vmatpush1.msra.mxu0 %v11382
  %11384 = vmatprep.subr.mxu0 0.0
  %v11385 = vand.u32 %v10681, 4294901760
  %11386 = vmatpush1.msra.mxu0 %v11385
  %11387 = vmatprep.subr.mxu0 0.0
  %v11388 = vand.u32 %v10683, 4294901760
  %11389 = vmatpush1.msra.mxu0 %v11388
  %11390 = vmatprep.subr.mxu0 0.0
  %v11391 = vand.u32 %v10685, 4294901760
  %11392 = vmatpush1.msra.mxu0 %v11391
  %11393 = vmatprep.subr.mxu0 0.0
  %v11394 = vand.u32 %v10687, 4294901760
  %11395 = vmatpush1.msra.mxu0 %v11394
  %11396 = vmatprep.subr.mxu0 0.0
  %v11397 = vand.u32 %v10689, 4294901760
  %11398 = vmatpush1.msra.mxu0 %v11397
  %11399 = vmatprep.subr.mxu0 0.0
  %v11400 = vand.u32 %v10691, 4294901760
  %11401 = vmatpush1.msra.mxu0 %v11400
  %11402 = vmatprep.subr.mxu0 0.0
  %v11403 = vand.u32 %v10693, 4294901760
  %11404 = vmatpush1.msra.mxu0 %v11403
  %11405 = vmatprep.subr.mxu0 0.0
  %11406 = vmatpush1.msra.mxu0 0.0
  %11407 = vmatprep.subr.mxu0 0.0
  %11408 = vmatpush1.msra.mxu0 0.0
  %11409 = vmatprep.subr.mxu0 0.0
  %11410 = vmatpush1.msra.mxu0 0.0
  %11411 = vmatprep.subr.mxu0 0.0
  %11412 = vmatpush1.msra.mxu0 0.0
  %11413 = vmatprep.subr.mxu0 0.0
  %11414 = vmatpush1.msra.mxu0 0.0
  %11415 = vmatprep.subr.mxu0 0.0
  %11416 = vmatpush1.msra.mxu0 0.0
  %11417 = vmatprep.subr.mxu0 0.0
  %11418 = vmatpush1.msra.mxu0 0.0
  %11419 = vmatprep.subr.mxu0 0.0
  %11420 = vmatpush1.msra.mxu0 0.0
  %11421 = vmatprep.subr.mxu0 0.0
  %11422 = vmatpush1.msra.mxu0 0.0
  %11423 = vmatprep.subr.mxu0 0.0
  %11424 = vmatpush1.msra.mxu0 0.0
  %11425 = vmatprep.subr.mxu0 0.0
  %11426 = vmatpush1.msra.mxu0 0.0
  %11427 = vmatprep.subr.mxu0 0.0
  %11428 = vmatpush1.msra.mxu0 0.0
  %11429 = vmatprep.subr.mxu0 0.0
  %11430 = vmatpush1.msra.mxu0 0.0
  %11431 = vmatprep.subr.mxu0 0.0
  %11432 = vmatpush1.msra.mxu0 0.0
  %v11433 = vand.u32 %v3924, 4294901760
  %11434 = vmatprep.mubr.f32.mxu0 %v11433
  %v11435 = vand.u32 %v3641, 4294901760
  %11436 = vmatmul.mubr.f32.gmra.mrb[0].mxu0 %v11435
  %v11437 = vpop.f32.mrb[0].mxu0
  %v11438 = vadd.f32 %v11341, %v11437
  %v11439 = vpop.f32.mrb[0].mxu0
  %v11440 = vand.u32 %v3927, 4294901760
  %11441 = vmatprep.mubr.f32.mxu0 %v11440
  %v11442 = vand.u32 %v3643, 4294901760
  %11443 = vmatmul.mubr.f32.gmra.mrb[0].mxu0 %v11442
  %v11444 = vpop.f32.mrb[0].mxu0
  %v11445 = vadd.f32 %v11348, %v11444
  %v11446 = vpop.f32.mrb[0].mxu0
  %11447 = vdwg.mxu0
  %11449 = vset.pattern.permute.xlu0 0
  %11450 = vperm.xlu0 %11449, %v10547
  %v11451 = vpop.permute.xlu0 %11450
  %11454 = vset.pattern.permute.xlu0 0
  %11455 = vperm.xlu0 %11454, %v10549
  %v11456 = vpop.permute.xlu0 %11455
  %v11458 = vmul.f32 %v11438, %v11451
  %v11459 = vmul.f32 %v11445, %v11456
  %11460 = vrot.lane.b32.xlu0 %v5512, 122
  %v11461 = vpop.permute.xlu0 %11460
  %v11463 = vadd.f32 %v11458, %v11461
  %v11464 = vadd.f32 %v11459, %v11461
  %11467 = vrot.lane.b32.xlu0 %v11463, 6
  %v11468 = vpop.permute.xlu0 %11467
  %11469 = vrot.lane.b32.xlu0 %v11464, 6
  %v11470 = vpop.permute.xlu0 %11469
  %vm11473 = vcmask 64560
  %11474 = vst.msk [vmem:[%s5] sm:$0xff] %vm11473, %v11468
  %vm11475 = vcmask 60464
  %11476 = vst.msk [vmem:[%s5 + $0x8] sm:$0xf] %vm11475, %v11470
  // Predicated region
  $region22: #{tpu_custom_call.1} parent=0 // pred_check
    _
  $region23: #{tpu_custom_call.1} parent=0 // pred_check_branch
    %11478 = sbr.rel (0) target = $region25
  $region24: #{tpu_custom_call.1} parent=0 // pred_region
    _
  $region25: #{tpu_custom_call.1} parent=0 // pred_fallthru
    _
  // Predicated region
  $region26: #{tpu_custom_call.1} parent=0 // pred_check
    _
  $region27: #{tpu_custom_call.1} parent=0 // pred_check_branch
    %11480 = sbr.rel (0) target = $region29
  $region28: #{tpu_custom_call.1} parent=0 // pred_region
    _
  $region29: #{tpu_custom_call.1} parent=0 // pred_fallthru
    _

</llo_original>
